<compile_context>
chip_gen: v5e
topology: v5e:2x2
jax: 0.10.0
libtpu: 0.0.40
codegen_flags: <defaults>
</compile_context>

<pallas_src>
import jax
import jax.numpy as jnp
from jax.experimental import pallas as pl
from jax.experimental.pallas import tpu as pltpu

EPS = 1e-5
SLOPE = 0.01          # nn.LeakyReLU default negative_slope
LANE = 128            # TPU lane width


def _leaky_relu(x):
    return jnp.where(x >= 0, x, SLOPE * x)


def residual_block(x_nchw, w1_oihw, g1, b1, w2_oihw, g2, b2):
    """ResidualBlock forward (downsample=None). x_nchw: (N, C, H, W) float32."""
    N, C, H, W = x_nchw.shape
    Co = w1_oihw.shape[0]
    assert Co == C, "downsample=None requires out_channels == in_channels"

    Hp, Wp = H + 2, W + 2
    Cp = ((max(C, Co) + LANE - 1) // LANE) * LANE    # channels padded to 128-lane multiple
    R = N * Hp * Wp                                  # flattened padded-spatial rows
    HALO = ((Wp + 1 + 7) // 8) * 8                   # aligned halo, >= max |tap offset|
    Rh = R + 2 * HALO                                # haloed row count
    inv_cnt = 1.0 / float(N * H * W)                 # BN averages over valid positions only

    # ---- wrapper glue: layout / padding only (all conv + BN math is in the kernel) ----
    x_nhwc = jnp.transpose(x_nchw, (0, 2, 3, 1))
    x_pad = jnp.pad(x_nhwc, ((0, 0), (1, 1), (1, 1), (0, Cp - C)))
    xf = x_pad.reshape(R, Cp)                                           # (R, Cp) f32
    xh = jnp.pad(xf, ((HALO, HALO), (0, 0)))                            # (Rh, Cp) f32

    # 1.0 on valid (non-border) output positions, 0.0 on padded border positions
    mask = jnp.pad(jnp.ones((N, H, W, 1), jnp.float32),
                   ((0, 0), (1, 1), (1, 1), (0, 0))).reshape(R, 1)

    def prep_w(w_oihw, cin):
        w = jnp.transpose(w_oihw, (2, 3, 1, 0))                         # OIHW -> HWIO
        w = jnp.pad(w, ((0, 0), (0, 0), (0, Cp - cin), (0, Cp - Co)))
        return w.reshape(9, Cp, Cp).astype(jnp.bfloat16)                # bf16 MXU operands

    w1p = prep_w(w1_oihw, C)
    w2p = prep_w(w2_oihw, Co)
    g1p = jnp.pad(g1, (0, Cp - Co), constant_values=1.0).reshape(1, Cp)
    b1p = jnp.pad(b1, (0, Cp - Co)).reshape(1, Cp)
    g2p = jnp.pad(g2, (0, Cp - Co), constant_values=1.0).reshape(1, Cp)
    b2p = jnp.pad(b2, (0, Cp - Co)).reshape(1, Cp)

    # tap row-offsets in flattened padded-spatial space (dy, dx in {-1, 0, 1})
    offs = [(dy - 1) * Wp + (dx - 1) for dy in range(3) for dx in range(3)]

    def kernel(xh_ref, mask_ref, w1_ref, g1_ref, b1_ref, w2_ref, g2_ref, b2_ref,
               o_ref, y1h_ref):
        mask_r = mask_ref[...]                                          # (R, 1) f32

        def conv(src_ref, w_ref):
            # 9 full-R row-slices of the haloed activation -> bf16 MXU matmuls
            # (K = Cp) with f32 accumulation.  No im2col copies, no reshapes.
            acc = None
            for k, off in enumerate(offs):
                patch = src_ref[HALO + off:HALO + off + R, :].astype(jnp.bfloat16)
                part = jnp.dot(patch, w_ref[k], preferred_element_type=jnp.float32)
                acc = part if acc is None else acc + part
            return acc                                                  # (R, Cp) f32

        def bn(acc, g_ref, b_ref):
            # PyTorch training-mode batch stats (biased variance) over valid rows,
            # one masked pass; folded into a single scale/shift.
            acc_m = acc * mask_r
            s = jnp.sum(acc_m, axis=0, keepdims=True)
            ss = jnp.sum(acc_m * acc, axis=0, keepdims=True)
            m = s * inv_cnt
            v = jnp.maximum(ss * inv_cnt - m * m, 0.0)
            scale = g_ref[...] * jax.lax.rsqrt(v + EPS)
            shift = b_ref[...] - m * scale
            return acc * scale + shift

        # ---- conv1 -> bn1 -> LeakyReLU (border positions forced back to zero) ----
        y1 = _leaky_relu(bn(conv(xh_ref, w1_ref), g1_ref, b1_ref)) * mask_r

        # ---- re-pad y1 into a zero-haloed VMEM scratch (aligned interior write) ----
        y1h_ref[0:HALO, :] = jnp.zeros((HALO, Cp), jnp.float32)
        y1h_ref[HALO + R:Rh, :] = jnp.zeros((HALO, Cp), jnp.float32)
        y1h_ref[HALO:HALO + R, :] = y1

        # ---- conv2 -> bn2 -> +residual -> LeakyReLU ----
        y2 = bn(conv(y1h_ref, w2_ref), g2_ref, b2_ref)
        res = xh_ref[HALO:HALO + R, :]            # original x (exact f32, padded lanes = 0)
        o_ref[...] = _leaky_relu(y2 + res)        # full-block, lane-dense, unmasked store

    out_flat = pl.pallas_call(
        kernel,
        out_shape=jax.ShapeDtypeStruct((R, Cp), jnp.float32),
        grid=(1,),
        in_specs=[
            pl.BlockSpec((Rh, Cp), lambda i: (0, 0)),         # haloed x
            pl.BlockSpec((R, 1), lambda i: (0, 0)),           # valid-position mask
            pl.BlockSpec((9, Cp, Cp), lambda i: (0, 0, 0)),   # w1 (bf16)
            pl.BlockSpec((1, Cp), lambda i: (0, 0)),          # gamma1
            pl.BlockSpec((1, Cp), lambda i: (0, 0)),          # beta1
            pl.BlockSpec((9, Cp, Cp), lambda i: (0, 0, 0)),   # w2 (bf16)
            pl.BlockSpec((1, Cp), lambda i: (0, 0)),          # gamma2
            pl.BlockSpec((1, Cp), lambda i: (0, 0)),          # beta2
        ],
        out_specs=pl.BlockSpec((R, Cp), lambda i: (0, 0)),
        scratch_shapes=[pltpu.VMEM((Rh, Cp), jnp.float32)],   # zero-haloed y1 buffer
        compiler_params=pltpu.CompilerParams(
            dimension_semantics=("arbitrary",)),
    )(xh, mask, w1p, g1p, b1p, w2p, g2p, b2p)

    # decode: flat padded rows -> NHWC interior -> NCHW (cheap XLA slice/transpose)
    out_nhwc = out_flat.reshape(N, Hp, Wp, Cp)[:, 1:H + 1, 1:W + 1, :Co]
    return jnp.transpose(out_nhwc, (0, 3, 1, 2))


def reference_forward(x_nchw, w1, g1, b1, w2, g2, b2):
    """Pure-JAX reference mirroring the PyTorch forward (training-mode BN)."""
    def conv(x, w):
        return jax.lax.conv_general_dilated(
            x, w, window_strides=(1, 1), padding=((1, 1), (1, 1)),
            dimension_numbers=("NCHW", "OIHW", "NCHW"),
            precision=jax.lax.Precision.HIGHEST)

    def bn(x, g, b):
        m = x.mean(axis=(0, 2, 3), keepdims=True)
        v = ((x - m) ** 2).mean(axis=(0, 2, 3), keepdims=True)
        return (x - m) * jax.lax.rsqrt(v + EPS) * g.reshape(1, -1, 1, 1) \
            + b.reshape(1, -1, 1, 1)

    out = _leaky_relu(bn(conv(x_nchw, w1), g1, b1))
    out = bn(conv(out, w2), g2, b2)
    return _leaky_relu(out + x_nchw)


if __name__ == "__main__":
    N, C, H, W = 2, 4, 16, 16          # downsample=None => out_channels == in_channels
    Co = C

    key = jax.random.PRNGKey(0)
    kx, kw1, kw2, kg1, kb1, kg2, kb2 = jax.random.split(key, 7)

    x = jax.random.normal(kx, (N, C, H, W), jnp.float32)
    # conv3x3 weights (bias=False), PyTorch OIHW layout
    w1 = 0.2 * jax.random.normal(kw1, (Co, C, 3, 3), jnp.float32)
    w2 = 0.2 * jax.random.normal(kw2, (Co, Co, 3, 3), jnp.float32)
    # BatchNorm affine params (deterministic synthetic init)
    g1 = 1.0 + 0.1 * jax.random.normal(kg1, (Co,), jnp.float32)
    b1 = 0.1 * jax.random.normal(kb1, (Co,), jnp.float32)
    g2 = 1.0 + 0.1 * jax.random.normal(kg2, (Co,), jnp.float32)
    b2 = 0.1 * jax.random.normal(kb2, (Co,), jnp.float32)

    out = jax.block_until_ready(residual_block(x, w1, g1, b1, w2, g2, b2))
    ref = jax.block_until_ready(reference_forward(x, w1, g1, b1, w2, g2, b2))

    assert out.shape == (N, C, H, W)
    # Tolerance 2e-2: the conv operands are fed to the MXU in bf16 (per perf
    # guidance), which introduces ~1e-2-scale error vs the f32 HIGHEST-precision
    # reference; drop the two astype(bfloat16) casts for a bit-closer f32 path.
    assert jnp.allclose(out, ref, atol=2e-2, rtol=2e-2), \
        f"max abs err {jnp.max(jnp.abs(out - ref))}"

    print("KERNEL_OK")
</pallas_src>

<mosaic_0001>
module attributes {stable_mosaic.version = 11 : i64} {
  func.func @kernel(%arg0: i32, %arg1: memref<696x128xf32, #tpu.memory_space<vmem>>, %arg2: memref<648x1xf32, #tpu.memory_space<vmem>>, %arg3: memref<9x128x128xbf16, #tpu.memory_space<vmem>>, %arg4: memref<1x128xf32, #tpu.memory_space<vmem>>, %arg5: memref<1x128xf32, #tpu.memory_space<vmem>>, %arg6: memref<9x128x128xbf16, #tpu.memory_space<vmem>>, %arg7: memref<1x128xf32, #tpu.memory_space<vmem>>, %arg8: memref<1x128xf32, #tpu.memory_space<vmem>>, %arg9: memref<648x128xf32, #tpu.memory_space<vmem>>, %arg10: memref<696x128xf32, #tpu.memory_space<vmem>>) attributes {dimension_semantics = [#tpu.dimension_semantics<arbitrary>], iteration_bounds = array<i64: 1>, scalar_prefetch = 0 : i64, scratch_operands = 1 : i64, tpu.core_type = #tpu.core_type<tc>, window_params = [{pipeline_mode = #tpu.pipeline_mode<synchronous>, transform_indices = @transform_0, window_bounds = array<i64: 696, 128>}, {pipeline_mode = #tpu.pipeline_mode<synchronous>, transform_indices = @transform_1, window_bounds = array<i64: 648, 1>}, {pipeline_mode = #tpu.pipeline_mode<synchronous>, transform_indices = @transform_2, window_bounds = array<i64: 9, 128, 128>}, {pipeline_mode = #tpu.pipeline_mode<synchronous>, transform_indices = @transform_3, window_bounds = array<i64: 1, 128>}, {pipeline_mode = #tpu.pipeline_mode<synchronous>, transform_indices = @transform_4, window_bounds = array<i64: 1, 128>}, {pipeline_mode = #tpu.pipeline_mode<synchronous>, transform_indices = @transform_5, window_bounds = array<i64: 9, 128, 128>}, {pipeline_mode = #tpu.pipeline_mode<synchronous>, transform_indices = @transform_6, window_bounds = array<i64: 1, 128>}, {pipeline_mode = #tpu.pipeline_mode<synchronous>, transform_indices = @transform_7, window_bounds = array<i64: 1, 128>}, {pipeline_mode = #tpu.pipeline_mode<synchronous>, transform_indices = @transform_8, window_bounds = array<i64: 648, 128>}]} {
    %c0 = arith.constant 0 : index
    %c0_0 = arith.constant 0 : index
    %0 = vector.load %arg2[%c0, %c0_0] : memref<648x1xf32, #tpu.memory_space<vmem>>, vector<648x1xf32>
    %c5 = arith.constant 5 : index
    %c0_1 = arith.constant 0 : index
    %1 = vector.load %arg1[%c5, %c0_1] : memref<696x128xf32, #tpu.memory_space<vmem>>, vector<648x128xf32>
    %2 = arith.truncf %1 : vector<648x128xf32> to vector<648x128xbf16>
    %c0_2 = arith.constant 0 : index
    %c0_3 = arith.constant 0 : index
    %c0_4 = arith.constant 0 : index
    %3 = vector.load %arg3[%c0_2, %c0_3, %c0_4] : memref<9x128x128xbf16, #tpu.memory_space<vmem>>, vector<1x128x128xbf16>
    %4 = vector.shape_cast %3 : vector<1x128x128xbf16> to vector<128x128xbf16>
    %cst = arith.constant dense<0.000000e+00> : vector<648x128xf32>
    %5 = tpu.matmul %2, %4, %cst {dimension_numbers = #tpu.dot_dimension_numbers<[1], [0], [0], [1], [0, 0, 1, 1], [], []>} : vector<648x128xbf16>, vector<128x128xbf16>, vector<648x128xf32> -> vector<648x128xf32>
    %c6 = arith.constant 6 : index
    %c0_5 = arith.constant 0 : index
    %6 = vector.load %arg1[%c6, %c0_5] : memref<696x128xf32, #tpu.memory_space<vmem>>, vector<648x128xf32>
    %7 = arith.truncf %6 : vector<648x128xf32> to vector<648x128xbf16>
    %c1 = arith.constant 1 : index
    %c0_6 = arith.constant 0 : index
    %c0_7 = arith.constant 0 : index
    %8 = vector.load %arg3[%c1, %c0_6, %c0_7] : memref<9x128x128xbf16, #tpu.memory_space<vmem>>, vector<1x128x128xbf16>
    %9 = vector.shape_cast %8 : vector<1x128x128xbf16> to vector<128x128xbf16>
    %cst_8 = arith.constant dense<0.000000e+00> : vector<648x128xf32>
    %10 = tpu.matmul %7, %9, %cst_8 {dimension_numbers = #tpu.dot_dimension_numbers<[1], [0], [0], [1], [0, 0, 1, 1], [], []>} : vector<648x128xbf16>, vector<128x128xbf16>, vector<648x128xf32> -> vector<648x128xf32>
    %11 = arith.addf %5, %10 : vector<648x128xf32>
    %c7 = arith.constant 7 : index
    %c0_9 = arith.constant 0 : index
    %12 = vector.load %arg1[%c7, %c0_9] : memref<696x128xf32, #tpu.memory_space<vmem>>, vector<648x128xf32>
    %13 = arith.truncf %12 : vector<648x128xf32> to vector<648x128xbf16>
    %c2 = arith.constant 2 : index
    %c0_10 = arith.constant 0 : index
    %c0_11 = arith.constant 0 : index
    %14 = vector.load %arg3[%c2, %c0_10, %c0_11] : memref<9x128x128xbf16, #tpu.memory_space<vmem>>, vector<1x128x128xbf16>
    %15 = vector.shape_cast %14 : vector<1x128x128xbf16> to vector<128x128xbf16>
    %cst_12 = arith.constant dense<0.000000e+00> : vector<648x128xf32>
    %16 = tpu.matmul %13, %15, %cst_12 {dimension_numbers = #tpu.dot_dimension_numbers<[1], [0], [0], [1], [0, 0, 1, 1], [], []>} : vector<648x128xbf16>, vector<128x128xbf16>, vector<648x128xf32> -> vector<648x128xf32>
    %17 = arith.addf %11, %16 : vector<648x128xf32>
    %c23 = arith.constant 23 : index
    %c0_13 = arith.constant 0 : index
    %18 = vector.load %arg1[%c23, %c0_13] : memref<696x128xf32, #tpu.memory_space<vmem>>, vector<648x128xf32>
    %19 = arith.truncf %18 : vector<648x128xf32> to vector<648x128xbf16>
    %c3 = arith.constant 3 : index
    %c0_14 = arith.constant 0 : index
    %c0_15 = arith.constant 0 : index
    %20 = vector.load %arg3[%c3, %c0_14, %c0_15] : memref<9x128x128xbf16, #tpu.memory_space<vmem>>, vector<1x128x128xbf16>
    %21 = vector.shape_cast %20 : vector<1x128x128xbf16> to vector<128x128xbf16>
    %cst_16 = arith.constant dense<0.000000e+00> : vector<648x128xf32>
    %22 = tpu.matmul %19, %21, %cst_16 {dimension_numbers = #tpu.dot_dimension_numbers<[1], [0], [0], [1], [0, 0, 1, 1], [], []>} : vector<648x128xbf16>, vector<128x128xbf16>, vector<648x128xf32> -> vector<648x128xf32>
    %23 = arith.addf %17, %22 : vector<648x128xf32>
    %c24 = arith.constant 24 : index
    %c0_17 = arith.constant 0 : index
    %24 = vector.load %arg1[%c24, %c0_17] : memref<696x128xf32, #tpu.memory_space<vmem>>, vector<648x128xf32>
    %25 = arith.truncf %24 : vector<648x128xf32> to vector<648x128xbf16>
    %c4 = arith.constant 4 : index
    %c0_18 = arith.constant 0 : index
    %c0_19 = arith.constant 0 : index
    %26 = vector.load %arg3[%c4, %c0_18, %c0_19] : memref<9x128x128xbf16, #tpu.memory_space<vmem>>, vector<1x128x128xbf16>
    %27 = vector.shape_cast %26 : vector<1x128x128xbf16> to vector<128x128xbf16>
    %cst_20 = arith.constant dense<0.000000e+00> : vector<648x128xf32>
    %28 = tpu.matmul %25, %27, %cst_20 {dimension_numbers = #tpu.dot_dimension_numbers<[1], [0], [0], [1], [0, 0, 1, 1], [], []>} : vector<648x128xbf16>, vector<128x128xbf16>, vector<648x128xf32> -> vector<648x128xf32>
    %29 = arith.addf %23, %28 : vector<648x128xf32>
    %c25 = arith.constant 25 : index
    %c0_21 = arith.constant 0 : index
    %30 = vector.load %arg1[%c25, %c0_21] : memref<696x128xf32, #tpu.memory_space<vmem>>, vector<648x128xf32>
    %31 = arith.truncf %30 : vector<648x128xf32> to vector<648x128xbf16>
    %c5_22 = arith.constant 5 : index
    %c0_23 = arith.constant 0 : index
    %c0_24 = arith.constant 0 : index
    %32 = vector.load %arg3[%c5_22, %c0_23, %c0_24] : memref<9x128x128xbf16, #tpu.memory_space<vmem>>, vector<1x128x128xbf16>
    %33 = vector.shape_cast %32 : vector<1x128x128xbf16> to vector<128x128xbf16>
    %cst_25 = arith.constant dense<0.000000e+00> : vector<648x128xf32>
    %34 = tpu.matmul %31, %33, %cst_25 {dimension_numbers = #tpu.dot_dimension_numbers<[1], [0], [0], [1], [0, 0, 1, 1], [], []>} : vector<648x128xbf16>, vector<128x128xbf16>, vector<648x128xf32> -> vector<648x128xf32>
    %35 = arith.addf %29, %34 : vector<648x128xf32>
    %c41 = arith.constant 41 : index
    %c0_26 = arith.constant 0 : index
    %36 = vector.load %arg1[%c41, %c0_26] : memref<696x128xf32, #tpu.memory_space<vmem>>, vector<648x128xf32>
    %37 = arith.truncf %36 : vector<648x128xf32> to vector<648x128xbf16>
    %c6_27 = arith.constant 6 : index
    %c0_28 = arith.constant 0 : index
    %c0_29 = arith.constant 0 : index
    %38 = vector.load %arg3[%c6_27, %c0_28, %c0_29] : memref<9x128x128xbf16, #tpu.memory_space<vmem>>, vector<1x128x128xbf16>
    %39 = vector.shape_cast %38 : vector<1x128x128xbf16> to vector<128x128xbf16>
    %cst_30 = arith.constant dense<0.000000e+00> : vector<648x128xf32>
    %40 = tpu.matmul %37, %39, %cst_30 {dimension_numbers = #tpu.dot_dimension_numbers<[1], [0], [0], [1], [0, 0, 1, 1], [], []>} : vector<648x128xbf16>, vector<128x128xbf16>, vector<648x128xf32> -> vector<648x128xf32>
    %41 = arith.addf %35, %40 : vector<648x128xf32>
    %c42 = arith.constant 42 : index
    %c0_31 = arith.constant 0 : index
    %42 = vector.load %arg1[%c42, %c0_31] : memref<696x128xf32, #tpu.memory_space<vmem>>, vector<648x128xf32>
    %43 = arith.truncf %42 : vector<648x128xf32> to vector<648x128xbf16>
    %c7_32 = arith.constant 7 : index
    %c0_33 = arith.constant 0 : index
    %c0_34 = arith.constant 0 : index
    %44 = vector.load %arg3[%c7_32, %c0_33, %c0_34] : memref<9x128x128xbf16, #tpu.memory_space<vmem>>, vector<1x128x128xbf16>
    %45 = vector.shape_cast %44 : vector<1x128x128xbf16> to vector<128x128xbf16>
    %cst_35 = arith.constant dense<0.000000e+00> : vector<648x128xf32>
    %46 = tpu.matmul %43, %45, %cst_35 {dimension_numbers = #tpu.dot_dimension_numbers<[1], [0], [0], [1], [0, 0, 1, 1], [], []>} : vector<648x128xbf16>, vector<128x128xbf16>, vector<648x128xf32> -> vector<648x128xf32>
    %47 = arith.addf %41, %46 : vector<648x128xf32>
    %c43 = arith.constant 43 : index
    %c0_36 = arith.constant 0 : index
    %48 = vector.load %arg1[%c43, %c0_36] : memref<696x128xf32, #tpu.memory_space<vmem>>, vector<648x128xf32>
    %49 = arith.truncf %48 : vector<648x128xf32> to vector<648x128xbf16>
    %c8 = arith.constant 8 : index
    %c0_37 = arith.constant 0 : index
    %c0_38 = arith.constant 0 : index
    %50 = vector.load %arg3[%c8, %c0_37, %c0_38] : memref<9x128x128xbf16, #tpu.memory_space<vmem>>, vector<1x128x128xbf16>
    %51 = vector.shape_cast %50 : vector<1x128x128xbf16> to vector<128x128xbf16>
    %cst_39 = arith.constant dense<0.000000e+00> : vector<648x128xf32>
    %52 = tpu.matmul %49, %51, %cst_39 {dimension_numbers = #tpu.dot_dimension_numbers<[1], [0], [0], [1], [0, 0, 1, 1], [], []>} : vector<648x128xbf16>, vector<128x128xbf16>, vector<648x128xf32> -> vector<648x128xf32>
    %53 = arith.addf %47, %52 : vector<648x128xf32>
    %54 = vector.broadcast %0 : vector<648x1xf32> to vector<648x128xf32>
    %55 = arith.mulf %53, %54 : vector<648x128xf32>
    %cst_40 = arith.constant dense<0.000000e+00> : vector<128xf32>
    %56 = vector.multi_reduction <add>, %55, %cst_40 [0] : vector<648x128xf32> to vector<128xf32>
    %57 = vector.shape_cast %56 : vector<128xf32> to vector<1x128xf32>
    %58 = arith.mulf %55, %53 : vector<648x128xf32>
    %cst_41 = arith.constant dense<0.000000e+00> : vector<128xf32>
    %59 = vector.multi_reduction <add>, %58, %cst_41 [0] : vector<648x128xf32> to vector<128xf32>
    %60 = vector.shape_cast %59 : vector<128xf32> to vector<1x128xf32>
    %cst_42 = arith.constant 0.001953125 : f32
    %61 = vector.broadcast %cst_42 : f32 to vector<1x128xf32>
    %62 = arith.mulf %57, %61 : vector<1x128xf32>
    %cst_43 = arith.constant 0.001953125 : f32
    %63 = vector.broadcast %cst_43 : f32 to vector<1x128xf32>
    %64 = arith.mulf %60, %63 : vector<1x128xf32>
    %65 = arith.mulf %62, %62 : vector<1x128xf32>
    %66 = arith.subf %64, %65 : vector<1x128xf32>
    %cst_44 = arith.constant 0.000000e+00 : f32
    %67 = vector.broadcast %cst_44 : f32 to vector<1x128xf32>
    %68 = arith.maximumf %66, %67 : vector<1x128xf32>
    %c0_45 = arith.constant 0 : index
    %c0_46 = arith.constant 0 : index
    %69 = vector.load %arg4[%c0_45, %c0_46] : memref<1x128xf32, #tpu.memory_space<vmem>>, vector<1x128xf32>
    %cst_47 = arith.constant 9.99999974E-6 : f32
    %70 = vector.broadcast %cst_47 : f32 to vector<1x128xf32>
    %71 = arith.addf %68, %70 : vector<1x128xf32>
    %72 = math.rsqrt %71 : vector<1x128xf32>
    %73 = arith.mulf %69, %72 : vector<1x128xf32>
    %c0_48 = arith.constant 0 : index
    %c0_49 = arith.constant 0 : index
    %74 = vector.load %arg5[%c0_48, %c0_49] : memref<1x128xf32, #tpu.memory_space<vmem>>, vector<1x128xf32>
    %75 = arith.mulf %62, %73 : vector<1x128xf32>
    %76 = arith.subf %74, %75 : vector<1x128xf32>
    %77 = vector.broadcast %73 : vector<1x128xf32> to vector<648x128xf32>
    %78 = arith.mulf %53, %77 : vector<648x128xf32>
    %79 = vector.broadcast %76 : vector<1x128xf32> to vector<648x128xf32>
    %80 = arith.addf %78, %79 : vector<648x128xf32>
    %cst_50 = arith.constant 0.000000e+00 : f32
    %81 = vector.broadcast %cst_50 : f32 to vector<648x128xf32>
    %82 = arith.cmpf oge, %80, %81 : vector<648x128xf32>
    %cst_51 = arith.constant 0.00999999977 : f32
    %83 = vector.broadcast %cst_51 : f32 to vector<648x128xf32>
    %84 = arith.mulf %83, %80 : vector<648x128xf32>
    %85 = arith.select %82, %80, %84 : vector<648x128xi1>, vector<648x128xf32>
    %86 = vector.broadcast %0 : vector<648x1xf32> to vector<648x128xf32>
    %87 = arith.mulf %85, %86 : vector<648x128xf32>
    %cst_52 = arith.constant 0.000000e+00 : f32
    %88 = vector.broadcast %cst_52 : f32 to vector<24x128xf32>
    %c0_53 = arith.constant 0 : index
    %c0_54 = arith.constant 0 : index
    %89 = vector.load %arg10[%c0_53, %c0_54] : memref<696x128xf32, #tpu.memory_space<vmem>>, vector<24x128xf32>
    tpu.vector_store %arg10[%c0_53, %c0_54], %88 {strides = array<i32>} : memref<696x128xf32, #tpu.memory_space<vmem>>, vector<24x128xf32>,
    %cst_55 = arith.constant 0.000000e+00 : f32
    %90 = vector.broadcast %cst_55 : f32 to vector<24x128xf32>
    %c672 = arith.constant 672 : index
    %c0_56 = arith.constant 0 : index
    %91 = vector.load %arg10[%c672, %c0_56] : memref<696x128xf32, #tpu.memory_space<vmem>>, vector<24x128xf32>
    tpu.vector_store %arg10[%c672, %c0_56], %90 {strides = array<i32>} : memref<696x128xf32, #tpu.memory_space<vmem>>, vector<24x128xf32>,
    %c24_57 = arith.constant 24 : index
    %c0_58 = arith.constant 0 : index
    %92 = vector.load %arg10[%c24_57, %c0_58] : memref<696x128xf32, #tpu.memory_space<vmem>>, vector<648x128xf32>
    tpu.vector_store %arg10[%c24_57, %c0_58], %87 {strides = array<i32>} : memref<696x128xf32, #tpu.memory_space<vmem>>, vector<648x128xf32>,
    %c5_59 = arith.constant 5 : index
    %c0_60 = arith.constant 0 : index
    %93 = vector.load %arg10[%c5_59, %c0_60] : memref<696x128xf32, #tpu.memory_space<vmem>>, vector<648x128xf32>
    %94 = arith.truncf %93 : vector<648x128xf32> to vector<648x128xbf16>
    %c0_61 = arith.constant 0 : index
    %c0_62 = arith.constant 0 : index
    %c0_63 = arith.constant 0 : index
    %95 = vector.load %arg6[%c0_61, %c0_62, %c0_63] : memref<9x128x128xbf16, #tpu.memory_space<vmem>>, vector<1x128x128xbf16>
    %96 = vector.shape_cast %95 : vector<1x128x128xbf16> to vector<128x128xbf16>
    %cst_64 = arith.constant dense<0.000000e+00> : vector<648x128xf32>
    %97 = tpu.matmul %94, %96, %cst_64 {dimension_numbers = #tpu.dot_dimension_numbers<[1], [0], [0], [1], [0, 0, 1, 1], [], []>} : vector<648x128xbf16>, vector<128x128xbf16>, vector<648x128xf32> -> vector<648x128xf32>
    %c6_65 = arith.constant 6 : index
    %c0_66 = arith.constant 0 : index
    %98 = vector.load %arg10[%c6_65, %c0_66] : memref<696x128xf32, #tpu.memory_space<vmem>>, vector<648x128xf32>
    %99 = arith.truncf %98 : vector<648x128xf32> to vector<648x128xbf16>
    %c1_67 = arith.constant 1 : index
    %c0_68 = arith.constant 0 : index
    %c0_69 = arith.constant 0 : index
    %100 = vector.load %arg6[%c1_67, %c0_68, %c0_69] : memref<9x128x128xbf16, #tpu.memory_space<vmem>>, vector<1x128x128xbf16>
    %101 = vector.shape_cast %100 : vector<1x128x128xbf16> to vector<128x128xbf16>
    %cst_70 = arith.constant dense<0.000000e+00> : vector<648x128xf32>
    %102 = tpu.matmul %99, %101, %cst_70 {dimension_numbers = #tpu.dot_dimension_numbers<[1], [0], [0], [1], [0, 0, 1, 1], [], []>} : vector<648x128xbf16>, vector<128x128xbf16>, vector<648x128xf32> -> vector<648x128xf32>
    %103 = arith.addf %97, %102 : vector<648x128xf32>
    %c7_71 = arith.constant 7 : index
    %c0_72 = arith.constant 0 : index
    %104 = vector.load %arg10[%c7_71, %c0_72] : memref<696x128xf32, #tpu.memory_space<vmem>>, vector<648x128xf32>
    %105 = arith.truncf %104 : vector<648x128xf32> to vector<648x128xbf16>
    %c2_73 = arith.constant 2 : index
    %c0_74 = arith.constant 0 : index
    %c0_75 = arith.constant 0 : index
    %106 = vector.load %arg6[%c2_73, %c0_74, %c0_75] : memref<9x128x128xbf16, #tpu.memory_space<vmem>>, vector<1x128x128xbf16>
    %107 = vector.shape_cast %106 : vector<1x128x128xbf16> to vector<128x128xbf16>
    %cst_76 = arith.constant dense<0.000000e+00> : vector<648x128xf32>
    %108 = tpu.matmul %105, %107, %cst_76 {dimension_numbers = #tpu.dot_dimension_numbers<[1], [0], [0], [1], [0, 0, 1, 1], [], []>} : vector<648x128xbf16>, vector<128x128xbf16>, vector<648x128xf32> -> vector<648x128xf32>
    %109 = arith.addf %103, %108 : vector<648x128xf32>
    %c23_77 = arith.constant 23 : index
    %c0_78 = arith.constant 0 : index
    %110 = vector.load %arg10[%c23_77, %c0_78] : memref<696x128xf32, #tpu.memory_space<vmem>>, vector<648x128xf32>
    %111 = arith.truncf %110 : vector<648x128xf32> to vector<648x128xbf16>
    %c3_79 = arith.constant 3 : index
    %c0_80 = arith.constant 0 : index
    %c0_81 = arith.constant 0 : index
    %112 = vector.load %arg6[%c3_79, %c0_80, %c0_81] : memref<9x128x128xbf16, #tpu.memory_space<vmem>>, vector<1x128x128xbf16>
    %113 = vector.shape_cast %112 : vector<1x128x128xbf16> to vector<128x128xbf16>
    %cst_82 = arith.constant dense<0.000000e+00> : vector<648x128xf32>
    %114 = tpu.matmul %111, %113, %cst_82 {dimension_numbers = #tpu.dot_dimension_numbers<[1], [0], [0], [1], [0, 0, 1, 1], [], []>} : vector<648x128xbf16>, vector<128x128xbf16>, vector<648x128xf32> -> vector<648x128xf32>
    %115 = arith.addf %109, %114 : vector<648x128xf32>
    %c24_83 = arith.constant 24 : index
    %c0_84 = arith.constant 0 : index
    %116 = vector.load %arg10[%c24_83, %c0_84] : memref<696x128xf32, #tpu.memory_space<vmem>>, vector<648x128xf32>
    %117 = arith.truncf %116 : vector<648x128xf32> to vector<648x128xbf16>
    %c4_85 = arith.constant 4 : index
    %c0_86 = arith.constant 0 : index
    %c0_87 = arith.constant 0 : index
    %118 = vector.load %arg6[%c4_85, %c0_86, %c0_87] : memref<9x128x128xbf16, #tpu.memory_space<vmem>>, vector<1x128x128xbf16>
    %119 = vector.shape_cast %118 : vector<1x128x128xbf16> to vector<128x128xbf16>
    %cst_88 = arith.constant dense<0.000000e+00> : vector<648x128xf32>
    %120 = tpu.matmul %117, %119, %cst_88 {dimension_numbers = #tpu.dot_dimension_numbers<[1], [0], [0], [1], [0, 0, 1, 1], [], []>} : vector<648x128xbf16>, vector<128x128xbf16>, vector<648x128xf32> -> vector<648x128xf32>
    %121 = arith.addf %115, %120 : vector<648x128xf32>
    %c25_89 = arith.constant 25 : index
    %c0_90 = arith.constant 0 : index
    %122 = vector.load %arg10[%c25_89, %c0_90] : memref<696x128xf32, #tpu.memory_space<vmem>>, vector<648x128xf32>
    %123 = arith.truncf %122 : vector<648x128xf32> to vector<648x128xbf16>
    %c5_91 = arith.constant 5 : index
    %c0_92 = arith.constant 0 : index
    %c0_93 = arith.constant 0 : index
    %124 = vector.load %arg6[%c5_91, %c0_92, %c0_93] : memref<9x128x128xbf16, #tpu.memory_space<vmem>>, vector<1x128x128xbf16>
    %125 = vector.shape_cast %124 : vector<1x128x128xbf16> to vector<128x128xbf16>
    %cst_94 = arith.constant dense<0.000000e+00> : vector<648x128xf32>
    %126 = tpu.matmul %123, %125, %cst_94 {dimension_numbers = #tpu.dot_dimension_numbers<[1], [0], [0], [1], [0, 0, 1, 1], [], []>} : vector<648x128xbf16>, vector<128x128xbf16>, vector<648x128xf32> -> vector<648x128xf32>
    %127 = arith.addf %121, %126 : vector<648x128xf32>
    %c41_95 = arith.constant 41 : index
    %c0_96 = arith.constant 0 : index
    %128 = vector.load %arg10[%c41_95, %c0_96] : memref<696x128xf32, #tpu.memory_space<vmem>>, vector<648x128xf32>
    %129 = arith.truncf %128 : vector<648x128xf32> to vector<648x128xbf16>
    %c6_97 = arith.constant 6 : index
    %c0_98 = arith.constant 0 : index
    %c0_99 = arith.constant 0 : index
    %130 = vector.load %arg6[%c6_97, %c0_98, %c0_99] : memref<9x128x128xbf16, #tpu.memory_space<vmem>>, vector<1x128x128xbf16>
    %131 = vector.shape_cast %130 : vector<1x128x128xbf16> to vector<128x128xbf16>
    %cst_100 = arith.constant dense<0.000000e+00> : vector<648x128xf32>
    %132 = tpu.matmul %129, %131, %cst_100 {dimension_numbers = #tpu.dot_dimension_numbers<[1], [0], [0], [1], [0, 0, 1, 1], [], []>} : vector<648x128xbf16>, vector<128x128xbf16>, vector<648x128xf32> -> vector<648x128xf32>
    %133 = arith.addf %127, %132 : vector<648x128xf32>
    %c42_101 = arith.constant 42 : index
    %c0_102 = arith.constant 0 : index
    %134 = vector.load %arg10[%c42_101, %c0_102] : memref<696x128xf32, #tpu.memory_space<vmem>>, vector<648x128xf32>
    %135 = arith.truncf %134 : vector<648x128xf32> to vector<648x128xbf16>
    %c7_103 = arith.constant 7 : index
    %c0_104 = arith.constant 0 : index
    %c0_105 = arith.constant 0 : index
    %136 = vector.load %arg6[%c7_103, %c0_104, %c0_105] : memref<9x128x128xbf16, #tpu.memory_space<vmem>>, vector<1x128x128xbf16>
    %137 = vector.shape_cast %136 : vector<1x128x128xbf16> to vector<128x128xbf16>
    %cst_106 = arith.constant dense<0.000000e+00> : vector<648x128xf32>
    %138 = tpu.matmul %135, %137, %cst_106 {dimension_numbers = #tpu.dot_dimension_numbers<[1], [0], [0], [1], [0, 0, 1, 1], [], []>} : vector<648x128xbf16>, vector<128x128xbf16>, vector<648x128xf32> -> vector<648x128xf32>
    %139 = arith.addf %133, %138 : vector<648x128xf32>
    %c43_107 = arith.constant 43 : index
    %c0_108 = arith.constant 0 : index
    %140 = vector.load %arg10[%c43_107, %c0_108] : memref<696x128xf32, #tpu.memory_space<vmem>>, vector<648x128xf32>
    %141 = arith.truncf %140 : vector<648x128xf32> to vector<648x128xbf16>
    %c8_109 = arith.constant 8 : index
    %c0_110 = arith.constant 0 : index
    %c0_111 = arith.constant 0 : index
    %142 = vector.load %arg6[%c8_109, %c0_110, %c0_111] : memref<9x128x128xbf16, #tpu.memory_space<vmem>>, vector<1x128x128xbf16>
    %143 = vector.shape_cast %142 : vector<1x128x128xbf16> to vector<128x128xbf16>
    %cst_112 = arith.constant dense<0.000000e+00> : vector<648x128xf32>
    %144 = tpu.matmul %141, %143, %cst_112 {dimension_numbers = #tpu.dot_dimension_numbers<[1], [0], [0], [1], [0, 0, 1, 1], [], []>} : vector<648x128xbf16>, vector<128x128xbf16>, vector<648x128xf32> -> vector<648x128xf32>
    %145 = arith.addf %139, %144 : vector<648x128xf32>
    %146 = vector.broadcast %0 : vector<648x1xf32> to vector<648x128xf32>
    %147 = arith.mulf %145, %146 : vector<648x128xf32>
    %cst_113 = arith.constant dense<0.000000e+00> : vector<128xf32>
    %148 = vector.multi_reduction <add>, %147, %cst_113 [0] : vector<648x128xf32> to vector<128xf32>
    %149 = vector.shape_cast %148 : vector<128xf32> to vector<1x128xf32>
    %150 = arith.mulf %147, %145 : vector<648x128xf32>
    %cst_114 = arith.constant dense<0.000000e+00> : vector<128xf32>
    %151 = vector.multi_reduction <add>, %150, %cst_114 [0] : vector<648x128xf32> to vector<128xf32>
    %152 = vector.shape_cast %151 : vector<128xf32> to vector<1x128xf32>
    %cst_115 = arith.constant 0.001953125 : f32
    %153 = vector.broadcast %cst_115 : f32 to vector<1x128xf32>
    %154 = arith.mulf %149, %153 : vector<1x128xf32>
    %cst_116 = arith.constant 0.001953125 : f32
    %155 = vector.broadcast %cst_116 : f32 to vector<1x128xf32>
    %156 = arith.mulf %152, %155 : vector<1x128xf32>
    %157 = arith.mulf %154, %154 : vector<1x128xf32>
    %158 = arith.subf %156, %157 : vector<1x128xf32>
    %cst_117 = arith.constant 0.000000e+00 : f32
    %159 = vector.broadcast %cst_117 : f32 to vector<1x128xf32>
    %160 = arith.maximumf %158, %159 : vector<1x128xf32>
    %c0_118 = arith.constant 0 : index
    %c0_119 = arith.constant 0 : index
    %161 = vector.load %arg7[%c0_118, %c0_119] : memref<1x128xf32, #tpu.memory_space<vmem>>, vector<1x128xf32>
    %cst_120 = arith.constant 9.99999974E-6 : f32
    %162 = vector.broadcast %cst_120 : f32 to vector<1x128xf32>
    %163 = arith.addf %160, %162 : vector<1x128xf32>
    %164 = math.rsqrt %163 : vector<1x128xf32>
    %165 = arith.mulf %161, %164 : vector<1x128xf32>
    %c0_121 = arith.constant 0 : index
    %c0_122 = arith.constant 0 : index
    %166 = vector.load %arg8[%c0_121, %c0_122] : memref<1x128xf32, #tpu.memory_space<vmem>>, vector<1x128xf32>
    %167 = arith.mulf %154, %165 : vector<1x128xf32>
    %168 = arith.subf %166, %167 : vector<1x128xf32>
    %169 = vector.broadcast %165 : vector<1x128xf32> to vector<648x128xf32>
    %170 = arith.mulf %145, %169 : vector<648x128xf32>
    %171 = vector.broadcast %168 : vector<1x128xf32> to vector<648x128xf32>
    %172 = arith.addf %170, %171 : vector<648x128xf32>
    %c24_123 = arith.constant 24 : index
    %c0_124 = arith.constant 0 : index
    %173 = vector.load %arg1[%c24_123, %c0_124] : memref<696x128xf32, #tpu.memory_space<vmem>>, vector<648x128xf32>
    %174 = arith.addf %172, %173 : vector<648x128xf32>
    %cst_125 = arith.constant 0.000000e+00 : f32
    %175 = vector.broadcast %cst_125 : f32 to vector<648x128xf32>
    %176 = arith.cmpf oge, %174, %175 : vector<648x128xf32>
    %cst_126 = arith.constant 0.00999999977 : f32
    %177 = vector.broadcast %cst_126 : f32 to vector<648x128xf32>
    %178 = arith.mulf %177, %174 : vector<648x128xf32>
    %179 = arith.select %176, %174, %178 : vector<648x128xi1>, vector<648x128xf32>
    %c0_127 = arith.constant 0 : index
    %c0_128 = arith.constant 0 : index
    %180 = vector.load %arg9[%c0_127, %c0_128] : memref<648x128xf32, #tpu.memory_space<vmem>>, vector<648x128xf32>
    tpu.vector_store %arg9[%c0_127, %c0_128], %179 {strides = array<i32>} : memref<648x128xf32, #tpu.memory_space<vmem>>, vector<648x128xf32>,
    return
  }
  func.func @transform_0(%arg0: i32) -> (i32, i32) {
    %c0_i32 = arith.constant 0 : i32
    %c0_i32_0 = arith.constant 0 : i32
    %c0_i32_1 = arith.constant 0 : i32
    return %c0_i32, %c0_i32_0 : i32, i32
  }
  func.func @transform_1(%arg0: i32) -> (i32, i32) {
    %c0_i32 = arith.constant 0 : i32
    %c0_i32_0 = arith.constant 0 : i32
    %c0_i32_1 = arith.constant 0 : i32
    return %c0_i32, %c0_i32_0 : i32, i32
  }
  func.func @transform_2(%arg0: i32) -> (i32, i32, i32) {
    %c0_i32 = arith.constant 0 : i32
    %c0_i32_0 = arith.constant 0 : i32
    %c0_i32_1 = arith.constant 0 : i32
    %c0_i32_2 = arith.constant 0 : i32
    return %c0_i32, %c0_i32_0, %c0_i32_1 : i32, i32, i32
  }
  func.func @transform_3(%arg0: i32) -> (i32, i32) {
    %c0_i32 = arith.constant 0 : i32
    %c0_i32_0 = arith.constant 0 : i32
    %c0_i32_1 = arith.constant 0 : i32
    return %c0_i32, %c0_i32_0 : i32, i32
  }
  func.func @transform_4(%arg0: i32) -> (i32, i32) {
    %c0_i32 = arith.constant 0 : i32
    %c0_i32_0 = arith.constant 0 : i32
    %c0_i32_1 = arith.constant 0 : i32
    return %c0_i32, %c0_i32_0 : i32, i32
  }
  func.func @transform_5(%arg0: i32) -> (i32, i32, i32) {
    %c0_i32 = arith.constant 0 : i32
    %c0_i32_0 = arith.constant 0 : i32
    %c0_i32_1 = arith.constant 0 : i32
    %c0_i32_2 = arith.constant 0 : i32
    return %c0_i32, %c0_i32_0, %c0_i32_1 : i32, i32, i32
  }
  func.func @transform_6(%arg0: i32) -> (i32, i32) {
    %c0_i32 = arith.constant 0 : i32
    %c0_i32_0 = arith.constant 0 : i32
    %c0_i32_1 = arith.constant 0 : i32
    return %c0_i32, %c0_i32_0 : i32, i32
  }
  func.func @transform_7(%arg0: i32) -> (i32, i32) {
    %c0_i32 = arith.constant 0 : i32
    %c0_i32_0 = arith.constant 0 : i32
    %c0_i32_1 = arith.constant 0 : i32
    return %c0_i32, %c0_i32_0 : i32, i32
  }
  func.func @transform_8(%arg0: i32) -> (i32, i32) {
    %c0_i32 = arith.constant 0 : i32
    %c0_i32_0 = arith.constant 0 : i32
    %c0_i32_1 = arith.constant 0 : i32
    return %c0_i32, %c0_i32_0 : i32, i32
  }
}

</mosaic_0001>

<llo_original>
// kernel: tpu_custom_call.1
$region0: #{tpu_custom_call.1}
  #allocation0 [shape = 'u32[]', space=smem, size = 0x4, offset = 0x4, fixed_abs, tag = 'smem constant byte address 0x4 - core index']
  #allocation1 [shape = 'u32[72,128]{1,0:T(1,128)}', space=vmem, size = 0x9000, scoped, tag = 'internal scratch']
  #allocation2 [shape = 'f32[696,128]{1,0:T(8,128)}', space=vmem, size = 0x57000, scoped, tag = 'scratch operand']
  %s0 = inlined_call_operand.hbm [shape: f32[696,128], index: 0, kind: input, shape index: {}]
  %s1 = inlined_call_operand.vmem [shape: f32[648,1], index: 1, kind: input, shape index: {}]
  %s2 = inlined_call_operand.vmem [shape: bf16[9,128,128], index: 2, kind: input, shape index: {}]
  %s3 = inlined_call_operand.vmem [shape: f32[1,128], index: 3, kind: input, shape index: {}]
  %s4 = inlined_call_operand.vmem [shape: f32[1,128], index: 4, kind: input, shape index: {}]
  %s5 = inlined_call_operand.hbm [shape: bf16[9,128,128], index: 5, kind: input, shape index: {}]
  %s6 = inlined_call_operand.vmem [shape: f32[1,128], index: 6, kind: input, shape index: {}]
  %s7 = inlined_call_operand.vmem [shape: f32[1,128], index: 7, kind: input, shape index: {}]
  %s8 = inlined_call_operand.hbm [shape: f32[648,128], index: 8, kind: output, shape index: {}]
  %s9 = sld [smem:[#allocation0]]
  $region50: #{tpu_custom_call.1} parent=0
    _
  %s11 = ssub.s32 1, %s9
  %s12 = scalar_select 0, %s11, %s9
  $region1: #{tpu_custom_call.1} parent=0
    #allocation3 [shape = 'u8[356352]{0}', space=vmem, size = 0x57000, scoped, tag = 'input window, operand 0, single buffered']
    #allocation4 [shape = 's32[1]{0}', space=sflag, size = 0x4, scoped, tag = 'scoped memory for tpu_custom_call.1']
    #allocation5 [shape = 's32[1]{0}', space=sflag, size = 0x4, scoped, tag = 'scoped memory for tpu_custom_call.1']
    #allocation6 [shape = 'u8[294912]{0}', space=vmem, size = 0x48000, scoped, tag = 'input window, operand 5, single buffered']
    #allocation7 [shape = 's32[1]{0}', space=sflag, size = 0x4, scoped, tag = 'scoped memory for tpu_custom_call.1']
    #allocation8 [shape = 'u8[331776]{0}', space=vmem, size = 0x51000, scoped, tag = 'output window, operand 0, single buffered']
    %13 = vsyncpa [#allocation4], 0
    %14 = vsyncpa [#allocation7], 0
    %15 = vsyncpa [#allocation5], 0
    // Predicated region
    $region2: #{tpu_custom_call.1} parent=1 // pred_check
      _
    $region3: #{tpu_custom_call.1} parent=1 // pred_check_branch
      %17 = sbr.rel (0) target = $region5
    $region4: #{tpu_custom_call.1} parent=1 // pred_region
      %19 = vsyncadd [#allocation4], 0
      %s20 = sshll.u32 %s0, 4
      %s21 = int_to_ptr.hbm [resolvable:$true] %s20
      %s22 = sshll.u32 [#allocation3], 4
      %s23 = int_to_ptr.vmem [resolvable:$true] %s22
      %28 = dma.hbm_to_vmem [thread:$0]  %s21, 11136, %s23, [#allocation4], 128, 128, 8
    $region5: #{tpu_custom_call.1} parent=1 // pred_fallthru
      _
    // Predicated region
    $region6: #{tpu_custom_call.1} parent=1 // pred_check
      _
    $region7: #{tpu_custom_call.1} parent=1 // pred_check_branch
      %30 = sbr.rel (0) target = $region9
    $region8: #{tpu_custom_call.1} parent=1 // pred_region
      _
    $region9: #{tpu_custom_call.1} parent=1 // pred_fallthru
      _
    // Predicated region
    $region10: #{tpu_custom_call.1} parent=1 // pred_check
      _
    $region11: #{tpu_custom_call.1} parent=1 // pred_check_branch
      %32 = sbr.rel (0) target = $region13
    $region12: #{tpu_custom_call.1} parent=1 // pred_region
      _
    $region13: #{tpu_custom_call.1} parent=1 // pred_fallthru
      _
    // Predicated region
    $region14: #{tpu_custom_call.1} parent=1 // pred_check
      _
    $region15: #{tpu_custom_call.1} parent=1 // pred_check_branch
      %34 = sbr.rel (0) target = $region17
    $region16: #{tpu_custom_call.1} parent=1 // pred_region
      _
    $region17: #{tpu_custom_call.1} parent=1 // pred_fallthru
      _
    // Predicated region
    $region18: #{tpu_custom_call.1} parent=1 // pred_check
      _
    $region19: #{tpu_custom_call.1} parent=1 // pred_check_branch
      %36 = sbr.rel (0) target = $region21
    $region20: #{tpu_custom_call.1} parent=1 // pred_region
      _
    $region21: #{tpu_custom_call.1} parent=1 // pred_fallthru
      _
    // Predicated region
    $region22: #{tpu_custom_call.1} parent=1 // pred_check
      _
    $region23: #{tpu_custom_call.1} parent=1 // pred_check_branch
      %38 = sbr.rel (0) target = $region25
    $region24: #{tpu_custom_call.1} parent=1 // pred_region
      %40 = vsyncadd [#allocation7], 0
      %s41 = sshll.u32 %s5, 4
      %s42 = int_to_ptr.hbm [resolvable:$true] %s41
      %s43 = sshll.u32 [#allocation6], 4
      %s44 = int_to_ptr.vmem [resolvable:$true] %s43
      %49 = dma.hbm_to_vmem [thread:$0]  %s42, 9216, %s44, [#allocation7], 64, 64, 4
    $region25: #{tpu_custom_call.1} parent=1 // pred_fallthru
      _
    // Predicated region
    $region26: #{tpu_custom_call.1} parent=1 // pred_check
      _
    $region27: #{tpu_custom_call.1} parent=1 // pred_check_branch
      %51 = sbr.rel (0) target = $region29
    $region28: #{tpu_custom_call.1} parent=1 // pred_region
      _
    $region29: #{tpu_custom_call.1} parent=1 // pred_fallthru
      _
    // Predicated region
    $region30: #{tpu_custom_call.1} parent=1 // pred_check
      _
    $region31: #{tpu_custom_call.1} parent=1 // pred_check_branch
      %53 = sbr.rel (0) target = $region33
    $region32: #{tpu_custom_call.1} parent=1 // pred_region
      _
    $region33: #{tpu_custom_call.1} parent=1 // pred_fallthru
      _
    // Predicated region
    $region34: #{tpu_custom_call.1} parent=1 // pred_check
      _
    $region35: #{tpu_custom_call.1} parent=1 // pred_check_branch
      %55 = sbr.rel (0) target = $region37
    $region36: #{tpu_custom_call.1} parent=1 // pred_region
      %57 = dma.done [#allocation4], 11136
    $region37: #{tpu_custom_call.1} parent=1 // pred_fallthru
      _
    // Predicated region
    $region38: #{tpu_custom_call.1} parent=1 // pred_check
      _
    $region39: #{tpu_custom_call.1} parent=1 // pred_check_branch
      %59 = sbr.rel (0) target = $region41
    $region40: #{tpu_custom_call.1} parent=1 // pred_region
      %61 = dma.done [#allocation7], 9216
    $region41: #{tpu_custom_call.1} parent=1 // pred_fallthru
      _
    %v62 = vld [vmem:[%s1] sm:$0xff]
    %v63 = vld [vmem:[%s1 + $0x8] sm:$0xff]
    %v64 = vld [vmem:[%s1 + $0x10] sm:$0xff]
    %v65 = vld [vmem:[%s1 + $0x18] sm:$0xff]
    %v66 = vld [vmem:[%s1 + $0x20] sm:$0xff]
    %v67 = vld [vmem:[%s1 + $0x28] sm:$0xff]
    %v68 = vld [vmem:[%s1 + $0x30] sm:$0xff]
    %v69 = vld [vmem:[%s1 + $0x38] sm:$0xff]
    %v70 = vld [vmem:[%s1 + $0x40] sm:$0xff]
    %v71 = vld [vmem:[%s1 + $0x48] sm:$0xff]
    %v72 = vld [vmem:[%s1 + $0x50] sm:$0xff]
    %v73 = vld [vmem:[%s1 + $0x58] sm:$0xff]
    %v74 = vld [vmem:[%s1 + $0x60] sm:$0xff]
    %v75 = vld [vmem:[%s1 + $0x68] sm:$0xff]
    %v76 = vld [vmem:[%s1 + $0x70] sm:$0xff]
    %v77 = vld [vmem:[%s1 + $0x78] sm:$0xff]
    %v78 = vld [vmem:[%s1 + $0x80] sm:$0xff]
    %v79 = vld [vmem:[%s1 + $0x88] sm:$0xff]
    %v80 = vld [vmem:[%s1 + $0x90] sm:$0xff]
    %v81 = vld [vmem:[%s1 + $0x98] sm:$0xff]
    %v82 = vld [vmem:[%s1 + $0xa0] sm:$0xff]
    %v83 = vld [vmem:[%s1 + $0xa8] sm:$0xff]
    %v84 = vld [vmem:[%s1 + $0xb0] sm:$0xff]
    %v85 = vld [vmem:[%s1 + $0xb8] sm:$0xff]
    %v86 = vld [vmem:[%s1 + $0xc0] sm:$0xff]
    %v87 = vld [vmem:[%s1 + $0xc8] sm:$0xff]
    %v88 = vld [vmem:[%s1 + $0xd0] sm:$0xff]
    %v89 = vld [vmem:[%s1 + $0xd8] sm:$0xff]
    %v90 = vld [vmem:[%s1 + $0xe0] sm:$0xff]
    %v91 = vld [vmem:[%s1 + $0xe8] sm:$0xff]
    %v92 = vld [vmem:[%s1 + $0xf0] sm:$0xff]
    %v93 = vld [vmem:[%s1 + $0xf8] sm:$0xff]
    %v94 = vld [vmem:[%s1 + $0x100] sm:$0xff]
    %v95 = vld [vmem:[%s1 + $0x108] sm:$0xff]
    %v96 = vld [vmem:[%s1 + $0x110] sm:$0xff]
    %v97 = vld [vmem:[%s1 + $0x118] sm:$0xff]
    %v98 = vld [vmem:[%s1 + $0x120] sm:$0xff]
    %v99 = vld [vmem:[%s1 + $0x128] sm:$0xff]
    %v100 = vld [vmem:[%s1 + $0x130] sm:$0xff]
    %v101 = vld [vmem:[%s1 + $0x138] sm:$0xff]
    %v102 = vld [vmem:[%s1 + $0x140] sm:$0xff]
    %v103 = vld [vmem:[%s1 + $0x148] sm:$0xff]
    %v104 = vld [vmem:[%s1 + $0x150] sm:$0xff]
    %v105 = vld [vmem:[%s1 + $0x158] sm:$0xff]
    %v106 = vld [vmem:[%s1 + $0x160] sm:$0xff]
    %v107 = vld [vmem:[%s1 + $0x168] sm:$0xff]
    %v108 = vld [vmem:[%s1 + $0x170] sm:$0xff]
    %v109 = vld [vmem:[%s1 + $0x178] sm:$0xff]
    %v110 = vld [vmem:[%s1 + $0x180] sm:$0xff]
    %v111 = vld [vmem:[%s1 + $0x188] sm:$0xff]
    %v112 = vld [vmem:[%s1 + $0x190] sm:$0xff]
    %v113 = vld [vmem:[%s1 + $0x198] sm:$0xff]
    %v114 = vld [vmem:[%s1 + $0x1a0] sm:$0xff]
    %v115 = vld [vmem:[%s1 + $0x1a8] sm:$0xff]
    %v116 = vld [vmem:[%s1 + $0x1b0] sm:$0xff]
    %v117 = vld [vmem:[%s1 + $0x1b8] sm:$0xff]
    %v118 = vld [vmem:[%s1 + $0x1c0] sm:$0xff]
    %v119 = vld [vmem:[%s1 + $0x1c8] sm:$0xff]
    %v120 = vld [vmem:[%s1 + $0x1d0] sm:$0xff]
    %v121 = vld [vmem:[%s1 + $0x1d8] sm:$0xff]
    %v122 = vld [vmem:[%s1 + $0x1e0] sm:$0xff]
    %v123 = vld [vmem:[%s1 + $0x1e8] sm:$0xff]
    %v124 = vld [vmem:[%s1 + $0x1f0] sm:$0xff]
    %v125 = vld [vmem:[%s1 + $0x1f8] sm:$0xff]
    %v126 = vld [vmem:[%s1 + $0x200] sm:$0xff]
    %v127 = vld [vmem:[%s1 + $0x208] sm:$0xff]
    %v128 = vld [vmem:[%s1 + $0x210] sm:$0xff]
    %v129 = vld [vmem:[%s1 + $0x218] sm:$0xff]
    %v130 = vld [vmem:[%s1 + $0x220] sm:$0xff]
    %v131 = vld [vmem:[%s1 + $0x228] sm:$0xff]
    %v132 = vld [vmem:[%s1 + $0x230] sm:$0xff]
    %v133 = vld [vmem:[%s1 + $0x238] sm:$0xff]
    %v134 = vld [vmem:[%s1 + $0x240] sm:$0xff]
    %v135 = vld [vmem:[%s1 + $0x248] sm:$0xff]
    %v136 = vld [vmem:[%s1 + $0x250] sm:$0xff]
    %v137 = vld [vmem:[%s1 + $0x258] sm:$0xff]
    %v138 = vld [vmem:[%s1 + $0x260] sm:$0xff]
    %v139 = vld [vmem:[%s1 + $0x268] sm:$0xff]
    %v140 = vld [vmem:[%s1 + $0x270] sm:$0xff]
    %v141 = vld [vmem:[%s1 + $0x278] sm:$0xff]
    %v142 = vld [vmem:[%s1 + $0x280] sm:$0xff]
    %v143 = vld [vmem:[#allocation3 + $0x5] sm:$0xff]
    %v144 = vld [vmem:[#allocation3 + $0xd] sm:$0xff]
    %v145 = vld [vmem:[#allocation3 + $0x15] sm:$0xff]
    %v146 = vld [vmem:[#allocation3 + $0x1d] sm:$0xff]
    %v147 = vld [vmem:[#allocation3 + $0x25] sm:$0xff]
    %v148 = vld [vmem:[#allocation3 + $0x2d] sm:$0xff]
    %v149 = vld [vmem:[#allocation3 + $0x35] sm:$0xff]
    %v150 = vld [vmem:[#allocation3 + $0x3d] sm:$0xff]
    %v151 = vld [vmem:[#allocation3 + $0x45] sm:$0xff]
    %v152 = vld [vmem:[#allocation3 + $0x4d] sm:$0xff]
    %v153 = vld [vmem:[#allocation3 + $0x55] sm:$0xff]
    %v154 = vld [vmem:[#allocation3 + $0x5d] sm:$0xff]
    %v155 = vld [vmem:[#allocation3 + $0x65] sm:$0xff]
    %v156 = vld [vmem:[#allocation3 + $0x6d] sm:$0xff]
    %v157 = vld [vmem:[#allocation3 + $0x75] sm:$0xff]
    %v158 = vld [vmem:[#allocation3 + $0x7d] sm:$0xff]
    %v159 = vld [vmem:[#allocation3 + $0x85] sm:$0xff]
    %v160 = vld [vmem:[#allocation3 + $0x8d] sm:$0xff]
    %v161 = vld [vmem:[#allocation3 + $0x95] sm:$0xff]
    %v162 = vld [vmem:[#allocation3 + $0x9d] sm:$0xff]
    %v163 = vld [vmem:[#allocation3 + $0xa5] sm:$0xff]
    %v164 = vld [vmem:[#allocation3 + $0xad] sm:$0xff]
    %v165 = vld [vmem:[#allocation3 + $0xb5] sm:$0xff]
    %v166 = vld [vmem:[#allocation3 + $0xbd] sm:$0xff]
    %v167 = vld [vmem:[#allocation3 + $0xc5] sm:$0xff]
    %v168 = vld [vmem:[#allocation3 + $0xcd] sm:$0xff]
    %v169 = vld [vmem:[#allocation3 + $0xd5] sm:$0xff]
    %v170 = vld [vmem:[#allocation3 + $0xdd] sm:$0xff]
    %v171 = vld [vmem:[#allocation3 + $0xe5] sm:$0xff]
    %v172 = vld [vmem:[#allocation3 + $0xed] sm:$0xff]
    %v173 = vld [vmem:[#allocation3 + $0xf5] sm:$0xff]
    %v174 = vld [vmem:[#allocation3 + $0xfd] sm:$0xff]
    %v175 = vld [vmem:[#allocation3 + $0x105] sm:$0xff]
    %v176 = vld [vmem:[#allocation3 + $0x10d] sm:$0xff]
    %v177 = vld [vmem:[#allocation3 + $0x115] sm:$0xff]
    %v178 = vld [vmem:[#allocation3 + $0x11d] sm:$0xff]
    %v179 = vld [vmem:[#allocation3 + $0x125] sm:$0xff]
    %v180 = vld [vmem:[#allocation3 + $0x12d] sm:$0xff]
    %v181 = vld [vmem:[#allocation3 + $0x135] sm:$0xff]
    %v182 = vld [vmem:[#allocation3 + $0x13d] sm:$0xff]
    %v183 = vld [vmem:[#allocation3 + $0x145] sm:$0xff]
    %v184 = vld [vmem:[#allocation3 + $0x14d] sm:$0xff]
    %v185 = vld [vmem:[#allocation3 + $0x155] sm:$0xff]
    %v186 = vld [vmem:[#allocation3 + $0x15d] sm:$0xff]
    %v187 = vld [vmem:[#allocation3 + $0x165] sm:$0xff]
    %v188 = vld [vmem:[#allocation3 + $0x16d] sm:$0xff]
    %v189 = vld [vmem:[#allocation3 + $0x175] sm:$0xff]
    %v190 = vld [vmem:[#allocation3 + $0x17d] sm:$0xff]
    %v191 = vld [vmem:[#allocation3 + $0x185] sm:$0xff]
    %v192 = vld [vmem:[#allocation3 + $0x18d] sm:$0xff]
    %v193 = vld [vmem:[#allocation3 + $0x195] sm:$0xff]
    %v194 = vld [vmem:[#allocation3 + $0x19d] sm:$0xff]
    %v195 = vld [vmem:[#allocation3 + $0x1a5] sm:$0xff]
    %v196 = vld [vmem:[#allocation3 + $0x1ad] sm:$0xff]
    %v197 = vld [vmem:[#allocation3 + $0x1b5] sm:$0xff]
    %v198 = vld [vmem:[#allocation3 + $0x1bd] sm:$0xff]
    %v199 = vld [vmem:[#allocation3 + $0x1c5] sm:$0xff]
    %v200 = vld [vmem:[#allocation3 + $0x1cd] sm:$0xff]
    %v201 = vld [vmem:[#allocation3 + $0x1d5] sm:$0xff]
    %v202 = vld [vmem:[#allocation3 + $0x1dd] sm:$0xff]
    %v203 = vld [vmem:[#allocation3 + $0x1e5] sm:$0xff]
    %v204 = vld [vmem:[#allocation3 + $0x1ed] sm:$0xff]
    %v205 = vld [vmem:[#allocation3 + $0x1f5] sm:$0xff]
    %v206 = vld [vmem:[#allocation3 + $0x1fd] sm:$0xff]
    %v207 = vld [vmem:[#allocation3 + $0x205] sm:$0xff]
    %v208 = vld [vmem:[#allocation3 + $0x20d] sm:$0xff]
    %v209 = vld [vmem:[#allocation3 + $0x215] sm:$0xff]
    %v210 = vld [vmem:[#allocation3 + $0x21d] sm:$0xff]
    %v211 = vld [vmem:[#allocation3 + $0x225] sm:$0xff]
    %v212 = vld [vmem:[#allocation3 + $0x22d] sm:$0xff]
    %v213 = vld [vmem:[#allocation3 + $0x235] sm:$0xff]
    %v214 = vld [vmem:[#allocation3 + $0x23d] sm:$0xff]
    %v215 = vld [vmem:[#allocation3 + $0x245] sm:$0xff]
    %v216 = vld [vmem:[#allocation3 + $0x24d] sm:$0xff]
    %v217 = vld [vmem:[#allocation3 + $0x255] sm:$0xff]
    %v218 = vld [vmem:[#allocation3 + $0x25d] sm:$0xff]
    %v219 = vld [vmem:[#allocation3 + $0x265] sm:$0xff]
    %v220 = vld [vmem:[#allocation3 + $0x26d] sm:$0xff]
    %v221 = vld [vmem:[#allocation3 + $0x275] sm:$0xff]
    %v222 = vld [vmem:[#allocation3 + $0x27d] sm:$0xff]
    %v223 = vld [vmem:[#allocation3 + $0x285] sm:$0xff]
    %v224 = vpack.c.bf16 %v144, %v143
    %v225 = vpack.c.bf16 %v146, %v145
    %v226 = vpack.c.bf16 %v148, %v147
    %v227 = vpack.c.bf16 %v150, %v149
    %v228 = vpack.c.bf16 %v152, %v151
    %v229 = vpack.c.bf16 %v154, %v153
    %v230 = vpack.c.bf16 %v156, %v155
    %v231 = vpack.c.bf16 %v158, %v157
    %v232 = vpack.c.bf16 %v160, %v159
    %v233 = vpack.c.bf16 %v162, %v161
    %v234 = vpack.c.bf16 %v164, %v163
    %v235 = vpack.c.bf16 %v166, %v165
    %v236 = vpack.c.bf16 %v168, %v167
    %v237 = vpack.c.bf16 %v170, %v169
    %v238 = vpack.c.bf16 %v172, %v171
    %v239 = vpack.c.bf16 %v174, %v173
    %v240 = vpack.c.bf16 %v176, %v175
    %v241 = vpack.c.bf16 %v178, %v177
    %v242 = vpack.c.bf16 %v180, %v179
    %v243 = vpack.c.bf16 %v182, %v181
    %v244 = vpack.c.bf16 %v184, %v183
    %v245 = vpack.c.bf16 %v186, %v185
    %v246 = vpack.c.bf16 %v188, %v187
    %v247 = vpack.c.bf16 %v190, %v189
    %v248 = vpack.c.bf16 %v192, %v191
    %v249 = vpack.c.bf16 %v194, %v193
    %v250 = vpack.c.bf16 %v196, %v195
    %v251 = vpack.c.bf16 %v198, %v197
    %v252 = vpack.c.bf16 %v200, %v199
    %v253 = vpack.c.bf16 %v202, %v201
    %v254 = vpack.c.bf16 %v204, %v203
    %v255 = vpack.c.bf16 %v206, %v205
    %v256 = vpack.c.bf16 %v208, %v207
    %v257 = vpack.c.bf16 %v210, %v209
    %v258 = vpack.c.bf16 %v212, %v211
    %v259 = vpack.c.bf16 %v214, %v213
    %v260 = vpack.c.bf16 %v216, %v215
    %v261 = vpack.c.bf16 %v218, %v217
    %v262 = vpack.c.bf16 %v220, %v219
    %v263 = vpack.c.bf16 %v222, %v221
    %v264 = vpack.c.bf16 %v223, %v223
    %v265 = vld [vmem:[%s2] sm:$0xf]
    %v266 = vld [vmem:[%s2 + $0x4] sm:$0xf]
    %v267 = vld [vmem:[%s2 + $0x8] sm:$0xf]
    %v268 = vld [vmem:[%s2 + $0xc] sm:$0xf]
    %v269 = vld [vmem:[%s2 + $0x10] sm:$0xf]
    %v270 = vld [vmem:[%s2 + $0x14] sm:$0xf]
    %v271 = vld [vmem:[%s2 + $0x18] sm:$0xf]
    %v272 = vld [vmem:[%s2 + $0x1c] sm:$0xf]
    %v273 = vld [vmem:[%s2 + $0x20] sm:$0xf]
    %v274 = vld [vmem:[%s2 + $0x24] sm:$0xf]
    %v275 = vld [vmem:[%s2 + $0x28] sm:$0xf]
    %v276 = vld [vmem:[%s2 + $0x2c] sm:$0xf]
    %v277 = vld [vmem:[%s2 + $0x30] sm:$0xf]
    %v278 = vld [vmem:[%s2 + $0x34] sm:$0xf]
    %v279 = vld [vmem:[%s2 + $0x38] sm:$0xf]
    %v280 = vld [vmem:[%s2 + $0x3c] sm:$0xf]
    %v281 = vld [vmem:[#allocation3 + $0x6] sm:$0xff]
    %v282 = vld [vmem:[#allocation3 + $0xe] sm:$0xff]
    %v283 = vld [vmem:[#allocation3 + $0x16] sm:$0xff]
    %v284 = vld [vmem:[#allocation3 + $0x1e] sm:$0xff]
    %v285 = vld [vmem:[#allocation3 + $0x26] sm:$0xff]
    %v286 = vld [vmem:[#allocation3 + $0x2e] sm:$0xff]
    %v287 = vld [vmem:[#allocation3 + $0x36] sm:$0xff]
    %v288 = vld [vmem:[#allocation3 + $0x3e] sm:$0xff]
    %v289 = vld [vmem:[#allocation3 + $0x46] sm:$0xff]
    %v290 = vld [vmem:[#allocation3 + $0x4e] sm:$0xff]
    %v291 = vld [vmem:[#allocation3 + $0x56] sm:$0xff]
    %v292 = vld [vmem:[#allocation3 + $0x5e] sm:$0xff]
    %v293 = vld [vmem:[#allocation3 + $0x66] sm:$0xff]
    %v294 = vld [vmem:[#allocation3 + $0x6e] sm:$0xff]
    %v295 = vld [vmem:[#allocation3 + $0x76] sm:$0xff]
    %v296 = vld [vmem:[#allocation3 + $0x7e] sm:$0xff]
    %v297 = vld [vmem:[#allocation3 + $0x86] sm:$0xff]
    %v298 = vld [vmem:[#allocation3 + $0x8e] sm:$0xff]
    %v299 = vld [vmem:[#allocation3 + $0x96] sm:$0xff]
    %v300 = vld [vmem:[#allocation3 + $0x9e] sm:$0xff]
    %v301 = vld [vmem:[#allocation3 + $0xa6] sm:$0xff]
    %v302 = vld [vmem:[#allocation3 + $0xae] sm:$0xff]
    %v303 = vld [vmem:[#allocation3 + $0xb6] sm:$0xff]
    %v304 = vld [vmem:[#allocation3 + $0xbe] sm:$0xff]
    %v305 = vld [vmem:[#allocation3 + $0xc6] sm:$0xff]
    %v306 = vld [vmem:[#allocation3 + $0xce] sm:$0xff]
    %v307 = vld [vmem:[#allocation3 + $0xd6] sm:$0xff]
    %v308 = vld [vmem:[#allocation3 + $0xde] sm:$0xff]
    %v309 = vld [vmem:[#allocation3 + $0xe6] sm:$0xff]
    %v310 = vld [vmem:[#allocation3 + $0xee] sm:$0xff]
    %v311 = vld [vmem:[#allocation3 + $0xf6] sm:$0xff]
    %v312 = vld [vmem:[#allocation3 + $0xfe] sm:$0xff]
    %v313 = vld [vmem:[#allocation3 + $0x106] sm:$0xff]
    %v314 = vld [vmem:[#allocation3 + $0x10e] sm:$0xff]
    %v315 = vld [vmem:[#allocation3 + $0x116] sm:$0xff]
    %v316 = vld [vmem:[#allocation3 + $0x11e] sm:$0xff]
    %v317 = vld [vmem:[#allocation3 + $0x126] sm:$0xff]
    %v318 = vld [vmem:[#allocation3 + $0x12e] sm:$0xff]
    %v319 = vld [vmem:[#allocation3 + $0x136] sm:$0xff]
    %v320 = vld [vmem:[#allocation3 + $0x13e] sm:$0xff]
    %v321 = vld [vmem:[#allocation3 + $0x146] sm:$0xff]
    %v322 = vld [vmem:[#allocation3 + $0x14e] sm:$0xff]
    %v323 = vld [vmem:[#allocation3 + $0x156] sm:$0xff]
    %v324 = vld [vmem:[#allocation3 + $0x15e] sm:$0xff]
    %v325 = vld [vmem:[#allocation3 + $0x166] sm:$0xff]
    %v326 = vld [vmem:[#allocation3 + $0x16e] sm:$0xff]
    %v327 = vld [vmem:[#allocation3 + $0x176] sm:$0xff]
    %v328 = vld [vmem:[#allocation3 + $0x17e] sm:$0xff]
    %v329 = vld [vmem:[#allocation3 + $0x186] sm:$0xff]
    %v330 = vld [vmem:[#allocation3 + $0x18e] sm:$0xff]
    %v331 = vld [vmem:[#allocation3 + $0x196] sm:$0xff]
    %v332 = vld [vmem:[#allocation3 + $0x19e] sm:$0xff]
    %v333 = vld [vmem:[#allocation3 + $0x1a6] sm:$0xff]
    %v334 = vld [vmem:[#allocation3 + $0x1ae] sm:$0xff]
    %v335 = vld [vmem:[#allocation3 + $0x1b6] sm:$0xff]
    %v336 = vld [vmem:[#allocation3 + $0x1be] sm:$0xff]
    %v337 = vld [vmem:[#allocation3 + $0x1c6] sm:$0xff]
    %v338 = vld [vmem:[#allocation3 + $0x1ce] sm:$0xff]
    %v339 = vld [vmem:[#allocation3 + $0x1d6] sm:$0xff]
    %v340 = vld [vmem:[#allocation3 + $0x1de] sm:$0xff]
    %v341 = vld [vmem:[#allocation3 + $0x1e6] sm:$0xff]
    %v342 = vld [vmem:[#allocation3 + $0x1ee] sm:$0xff]
    %v343 = vld [vmem:[#allocation3 + $0x1f6] sm:$0xff]
    %v344 = vld [vmem:[#allocation3 + $0x1fe] sm:$0xff]
    %v345 = vld [vmem:[#allocation3 + $0x206] sm:$0xff]
    %v346 = vld [vmem:[#allocation3 + $0x20e] sm:$0xff]
    %v347 = vld [vmem:[#allocation3 + $0x216] sm:$0xff]
    %v348 = vld [vmem:[#allocation3 + $0x21e] sm:$0xff]
    %v349 = vld [vmem:[#allocation3 + $0x226] sm:$0xff]
    %v350 = vld [vmem:[#allocation3 + $0x22e] sm:$0xff]
    %v351 = vld [vmem:[#allocation3 + $0x236] sm:$0xff]
    %v352 = vld [vmem:[#allocation3 + $0x23e] sm:$0xff]
    %v353 = vld [vmem:[#allocation3 + $0x246] sm:$0xff]
    %v354 = vld [vmem:[#allocation3 + $0x24e] sm:$0xff]
    %v355 = vld [vmem:[#allocation3 + $0x256] sm:$0xff]
    %v356 = vld [vmem:[#allocation3 + $0x25e] sm:$0xff]
    %v357 = vld [vmem:[#allocation3 + $0x266] sm:$0xff]
    %v358 = vld [vmem:[#allocation3 + $0x26e] sm:$0xff]
    %v359 = vld [vmem:[#allocation3 + $0x276] sm:$0xff]
    %v360 = vld [vmem:[#allocation3 + $0x27e] sm:$0xff]
    %v361 = vld [vmem:[#allocation3 + $0x286] sm:$0xff]
    %v362 = vpack.c.bf16 %v282, %v281
    %v363 = vpack.c.bf16 %v284, %v283
    %v364 = vpack.c.bf16 %v286, %v285
    %v365 = vpack.c.bf16 %v288, %v287
    %v366 = vpack.c.bf16 %v290, %v289
    %v367 = vpack.c.bf16 %v292, %v291
    %v368 = vpack.c.bf16 %v294, %v293
    %v369 = vpack.c.bf16 %v296, %v295
    %v370 = vpack.c.bf16 %v298, %v297
    %v371 = vpack.c.bf16 %v300, %v299
    %v372 = vpack.c.bf16 %v302, %v301
    %v373 = vpack.c.bf16 %v304, %v303
    %v374 = vpack.c.bf16 %v306, %v305
    %v375 = vpack.c.bf16 %v308, %v307
    %v376 = vpack.c.bf16 %v310, %v309
    %v377 = vpack.c.bf16 %v312, %v311
    %v378 = vpack.c.bf16 %v314, %v313
    %v379 = vpack.c.bf16 %v316, %v315
    %v380 = vpack.c.bf16 %v318, %v317
    %v381 = vpack.c.bf16 %v320, %v319
    %v382 = vpack.c.bf16 %v322, %v321
    %v383 = vpack.c.bf16 %v324, %v323
    %v384 = vpack.c.bf16 %v326, %v325
    %v385 = vpack.c.bf16 %v328, %v327
    %v386 = vpack.c.bf16 %v330, %v329
    %v387 = vpack.c.bf16 %v332, %v331
    %v388 = vpack.c.bf16 %v334, %v333
    %v389 = vpack.c.bf16 %v336, %v335
    %v390 = vpack.c.bf16 %v338, %v337
    %v391 = vpack.c.bf16 %v340, %v339
    %v392 = vpack.c.bf16 %v342, %v341
    %v393 = vpack.c.bf16 %v344, %v343
    %v394 = vpack.c.bf16 %v346, %v345
    %v395 = vpack.c.bf16 %v348, %v347
    %v396 = vpack.c.bf16 %v350, %v349
    %v397 = vpack.c.bf16 %v352, %v351
    %v398 = vpack.c.bf16 %v354, %v353
    %v399 = vpack.c.bf16 %v356, %v355
    %v400 = vpack.c.bf16 %v358, %v357
    %v401 = vpack.c.bf16 %v360, %v359
    %v402 = vpack.c.bf16 %v361, %v361
    %s403 = scalar_lea.vmem %s2, 64
    %v404 = vld [vmem:[%s403] sm:$0xf]
    %v405 = vld [vmem:[%s403 + $0x4] sm:$0xf]
    %v406 = vld [vmem:[%s403 + $0x8] sm:$0xf]
    %v407 = vld [vmem:[%s403 + $0xc] sm:$0xf]
    %v408 = vld [vmem:[%s403 + $0x10] sm:$0xf]
    %v409 = vld [vmem:[%s403 + $0x14] sm:$0xf]
    %v410 = vld [vmem:[%s403 + $0x18] sm:$0xf]
    %v411 = vld [vmem:[%s403 + $0x1c] sm:$0xf]
    %v412 = vld [vmem:[%s403 + $0x20] sm:$0xf]
    %v413 = vld [vmem:[%s403 + $0x24] sm:$0xf]
    %v414 = vld [vmem:[%s403 + $0x28] sm:$0xf]
    %v415 = vld [vmem:[%s403 + $0x2c] sm:$0xf]
    %v416 = vld [vmem:[%s403 + $0x30] sm:$0xf]
    %v417 = vld [vmem:[%s403 + $0x34] sm:$0xf]
    %v418 = vld [vmem:[%s403 + $0x38] sm:$0xf]
    %v419 = vld [vmem:[%s403 + $0x3c] sm:$0xf]
    %v436 = vunpack.c.l.b16 %v404
    %v437 = vunpack.c.l.b16 %v405
    %v438 = vunpack.c.l.b16 %v406
    %v439 = vunpack.c.l.b16 %v407
    %v440 = vunpack.c.l.b16 %v408
    %v441 = vunpack.c.l.b16 %v409
    %v442 = vunpack.c.l.b16 %v410
    %v443 = vunpack.c.l.b16 %v411
    %v444 = vunpack.c.l.b16 %v412
    %v445 = vunpack.c.l.b16 %v413
    %v446 = vunpack.c.l.b16 %v414
    %v447 = vunpack.c.l.b16 %v415
    %v448 = vunpack.c.l.b16 %v416
    %v449 = vunpack.c.l.b16 %v417
    %v450 = vunpack.c.l.b16 %v418
    %v451 = vunpack.c.l.b16 %v419
    %v452 = vpack.c.b16 %v437, %v436
    %v453 = vpack.c.b16 %v439, %v438
    %v454 = vpack.c.b16 %v441, %v440
    %v455 = vpack.c.b16 %v443, %v442
    %v456 = vpack.c.b16 %v445, %v444
    %v457 = vpack.c.b16 %v447, %v446
    %v458 = vpack.c.b16 %v449, %v448
    %v459 = vpack.c.b16 %v451, %v450
    %468 = vmatpush.bf16.msra.mxu0 %v459
    %469 = vmatpush.bf16.msra.mxu0 %v458
    %470 = vmatpush.bf16.msra.mxu0 %v457
    %471 = vmatpush.bf16.msra.mxu0 %v456
    %472 = vmatpush.bf16.msra.mxu0 %v455
    %473 = vmatpush.bf16.msra.mxu0 %v454
    %474 = vmatpush.bf16.msra.mxu0 %v453
    %475 = vmatpush.bf16.msra.mxu0 %v452
    %476 = vmatmul.bf16.gmra.mxu0 %v362
    %v477 = vpop.f32.mrf.mxu0
    %v478 = vadd.f32 0.0, %v477
    %v479 = vpop.f32.mrf.mxu0
    %v480 = vadd.f32 0.0, %v479
    %481 = vmatmul.bf16.gmra.mxu0 %v363
    %v482 = vpop.f32.mrf.mxu0
    %v483 = vadd.f32 0.0, %v482
    %v484 = vpop.f32.mrf.mxu0
    %v485 = vadd.f32 0.0, %v484
    %486 = vmatmul.bf16.gmra.mxu0 %v364
    %v487 = vpop.f32.mrf.mxu0
    %v488 = vadd.f32 0.0, %v487
    %v489 = vpop.f32.mrf.mxu0
    %v490 = vadd.f32 0.0, %v489
    %491 = vmatmul.bf16.gmra.mxu0 %v365
    %v492 = vpop.f32.mrf.mxu0
    %v493 = vadd.f32 0.0, %v492
    %v494 = vpop.f32.mrf.mxu0
    %v495 = vadd.f32 0.0, %v494
    %496 = vmatmul.bf16.gmra.mxu0 %v366
    %v497 = vpop.f32.mrf.mxu0
    %v498 = vadd.f32 0.0, %v497
    %v499 = vpop.f32.mrf.mxu0
    %v500 = vadd.f32 0.0, %v499
    %501 = vmatmul.bf16.gmra.mxu0 %v367
    %v502 = vpop.f32.mrf.mxu0
    %v503 = vadd.f32 0.0, %v502
    %v504 = vpop.f32.mrf.mxu0
    %v505 = vadd.f32 0.0, %v504
    %506 = vmatmul.bf16.gmra.mxu0 %v368
    %v507 = vpop.f32.mrf.mxu0
    %v508 = vadd.f32 0.0, %v507
    %v509 = vpop.f32.mrf.mxu0
    %v510 = vadd.f32 0.0, %v509
    %511 = vmatmul.bf16.gmra.mxu0 %v369
    %v512 = vpop.f32.mrf.mxu0
    %v513 = vadd.f32 0.0, %v512
    %v514 = vpop.f32.mrf.mxu0
    %v515 = vadd.f32 0.0, %v514
    %516 = vmatmul.bf16.gmra.mxu0 %v370
    %v517 = vpop.f32.mrf.mxu0
    %v518 = vadd.f32 0.0, %v517
    %v519 = vpop.f32.mrf.mxu0
    %v520 = vadd.f32 0.0, %v519
    %521 = vmatmul.bf16.gmra.mxu0 %v371
    %v522 = vpop.f32.mrf.mxu0
    %v523 = vadd.f32 0.0, %v522
    %v524 = vpop.f32.mrf.mxu0
    %v525 = vadd.f32 0.0, %v524
    %526 = vmatmul.bf16.gmra.mxu0 %v372
    %v527 = vpop.f32.mrf.mxu0
    %v528 = vadd.f32 0.0, %v527
    %v529 = vpop.f32.mrf.mxu0
    %v530 = vadd.f32 0.0, %v529
    %531 = vmatmul.bf16.gmra.mxu0 %v373
    %v532 = vpop.f32.mrf.mxu0
    %v533 = vadd.f32 0.0, %v532
    %v534 = vpop.f32.mrf.mxu0
    %v535 = vadd.f32 0.0, %v534
    %536 = vmatmul.bf16.gmra.mxu0 %v374
    %v537 = vpop.f32.mrf.mxu0
    %v538 = vadd.f32 0.0, %v537
    %v539 = vpop.f32.mrf.mxu0
    %v540 = vadd.f32 0.0, %v539
    %541 = vmatmul.bf16.gmra.mxu0 %v375
    %v542 = vpop.f32.mrf.mxu0
    %v543 = vadd.f32 0.0, %v542
    %v544 = vpop.f32.mrf.mxu0
    %v545 = vadd.f32 0.0, %v544
    %546 = vmatmul.bf16.gmra.mxu0 %v376
    %v547 = vpop.f32.mrf.mxu0
    %v548 = vadd.f32 0.0, %v547
    %v549 = vpop.f32.mrf.mxu0
    %v550 = vadd.f32 0.0, %v549
    %551 = vmatmul.bf16.gmra.mxu0 %v377
    %v552 = vpop.f32.mrf.mxu0
    %v553 = vadd.f32 0.0, %v552
    %v554 = vpop.f32.mrf.mxu0
    %v555 = vadd.f32 0.0, %v554
    %556 = vmatmul.bf16.gmra.mxu0 %v378
    %v557 = vpop.f32.mrf.mxu0
    %v558 = vadd.f32 0.0, %v557
    %v559 = vpop.f32.mrf.mxu0
    %v560 = vadd.f32 0.0, %v559
    %561 = vmatmul.bf16.gmra.mxu0 %v379
    %v562 = vpop.f32.mrf.mxu0
    %v563 = vadd.f32 0.0, %v562
    %v564 = vpop.f32.mrf.mxu0
    %v565 = vadd.f32 0.0, %v564
    %566 = vmatmul.bf16.gmra.mxu0 %v380
    %v567 = vpop.f32.mrf.mxu0
    %v568 = vadd.f32 0.0, %v567
    %v569 = vpop.f32.mrf.mxu0
    %v570 = vadd.f32 0.0, %v569
    %571 = vmatmul.bf16.gmra.mxu0 %v381
    %v572 = vpop.f32.mrf.mxu0
    %v573 = vadd.f32 0.0, %v572
    %v574 = vpop.f32.mrf.mxu0
    %v575 = vadd.f32 0.0, %v574
    %576 = vmatmul.bf16.gmra.mxu0 %v382
    %v577 = vpop.f32.mrf.mxu0
    %v578 = vadd.f32 0.0, %v577
    %v579 = vpop.f32.mrf.mxu0
    %v580 = vadd.f32 0.0, %v579
    %581 = vmatmul.bf16.gmra.mxu0 %v383
    %v582 = vpop.f32.mrf.mxu0
    %v583 = vadd.f32 0.0, %v582
    %v584 = vpop.f32.mrf.mxu0
    %v585 = vadd.f32 0.0, %v584
    %586 = vmatmul.bf16.gmra.mxu0 %v384
    %v587 = vpop.f32.mrf.mxu0
    %v588 = vadd.f32 0.0, %v587
    %v589 = vpop.f32.mrf.mxu0
    %v590 = vadd.f32 0.0, %v589
    %591 = vmatmul.bf16.gmra.mxu0 %v385
    %v592 = vpop.f32.mrf.mxu0
    %v593 = vadd.f32 0.0, %v592
    %v594 = vpop.f32.mrf.mxu0
    %v595 = vadd.f32 0.0, %v594
    %596 = vmatmul.bf16.gmra.mxu0 %v386
    %v597 = vpop.f32.mrf.mxu0
    %v598 = vadd.f32 0.0, %v597
    %v599 = vpop.f32.mrf.mxu0
    %v600 = vadd.f32 0.0, %v599
    %601 = vmatmul.bf16.gmra.mxu0 %v387
    %v602 = vpop.f32.mrf.mxu0
    %v603 = vadd.f32 0.0, %v602
    %v604 = vpop.f32.mrf.mxu0
    %v605 = vadd.f32 0.0, %v604
    %606 = vmatmul.bf16.gmra.mxu0 %v388
    %v607 = vpop.f32.mrf.mxu0
    %v608 = vadd.f32 0.0, %v607
    %v609 = vpop.f32.mrf.mxu0
    %v610 = vadd.f32 0.0, %v609
    %611 = vmatmul.bf16.gmra.mxu0 %v389
    %v612 = vpop.f32.mrf.mxu0
    %v613 = vadd.f32 0.0, %v612
    %v614 = vpop.f32.mrf.mxu0
    %v615 = vadd.f32 0.0, %v614
    %616 = vmatmul.bf16.gmra.mxu0 %v390
    %v617 = vpop.f32.mrf.mxu0
    %v618 = vadd.f32 0.0, %v617
    %v619 = vpop.f32.mrf.mxu0
    %v620 = vadd.f32 0.0, %v619
    %621 = vmatmul.bf16.gmra.mxu0 %v391
    %v622 = vpop.f32.mrf.mxu0
    %v623 = vadd.f32 0.0, %v622
    %v624 = vpop.f32.mrf.mxu0
    %v625 = vadd.f32 0.0, %v624
    %626 = vmatmul.bf16.gmra.mxu0 %v392
    %v627 = vpop.f32.mrf.mxu0
    %v628 = vadd.f32 0.0, %v627
    %v629 = vpop.f32.mrf.mxu0
    %v630 = vadd.f32 0.0, %v629
    %631 = vmatmul.bf16.gmra.mxu0 %v393
    %v632 = vpop.f32.mrf.mxu0
    %v633 = vadd.f32 0.0, %v632
    %v634 = vpop.f32.mrf.mxu0
    %v635 = vadd.f32 0.0, %v634
    %636 = vmatmul.bf16.gmra.mxu0 %v394
    %v637 = vpop.f32.mrf.mxu0
    %v638 = vadd.f32 0.0, %v637
    %v639 = vpop.f32.mrf.mxu0
    %v640 = vadd.f32 0.0, %v639
    %641 = vmatmul.bf16.gmra.mxu0 %v395
    %v642 = vpop.f32.mrf.mxu0
    %v643 = vadd.f32 0.0, %v642
    %v644 = vpop.f32.mrf.mxu0
    %v645 = vadd.f32 0.0, %v644
    %646 = vmatmul.bf16.gmra.mxu0 %v396
    %v647 = vpop.f32.mrf.mxu0
    %v648 = vadd.f32 0.0, %v647
    %v649 = vpop.f32.mrf.mxu0
    %v650 = vadd.f32 0.0, %v649
    %651 = vmatmul.bf16.gmra.mxu0 %v397
    %v652 = vpop.f32.mrf.mxu0
    %v653 = vadd.f32 0.0, %v652
    %v654 = vpop.f32.mrf.mxu0
    %v655 = vadd.f32 0.0, %v654
    %656 = vmatmul.bf16.gmra.mxu0 %v398
    %v657 = vpop.f32.mrf.mxu0
    %v658 = vadd.f32 0.0, %v657
    %v659 = vpop.f32.mrf.mxu0
    %v660 = vadd.f32 0.0, %v659
    %661 = vmatmul.bf16.gmra.mxu0 %v399
    %v662 = vpop.f32.mrf.mxu0
    %v663 = vadd.f32 0.0, %v662
    %v664 = vpop.f32.mrf.mxu0
    %v665 = vadd.f32 0.0, %v664
    %666 = vmatmul.bf16.gmra.mxu0 %v400
    %v667 = vpop.f32.mrf.mxu0
    %v668 = vadd.f32 0.0, %v667
    %v669 = vpop.f32.mrf.mxu0
    %v670 = vadd.f32 0.0, %v669
    %671 = vmatmul.bf16.gmra.mxu0 %v401
    %v672 = vpop.f32.mrf.mxu0
    %v673 = vadd.f32 0.0, %v672
    %v674 = vpop.f32.mrf.mxu0
    %v675 = vadd.f32 0.0, %v674
    %676 = vmatmul.bf16.gmra.mxu0 %v402
    %v677 = vpop.f32.mrf.mxu0
    %v678 = vadd.f32 0.0, %v677
    %v679 = vpop.f32.mrf.mxu0
    %680 = vdwg.mxu0
    %v697 = vunpack.c.l.b16 %v265
    %v698 = vunpack.c.l.b16 %v266
    %v699 = vunpack.c.l.b16 %v267
    %v700 = vunpack.c.l.b16 %v268
    %v701 = vunpack.c.l.b16 %v269
    %v702 = vunpack.c.l.b16 %v270
    %v703 = vunpack.c.l.b16 %v271
    %v704 = vunpack.c.l.b16 %v272
    %v705 = vunpack.c.l.b16 %v273
    %v706 = vunpack.c.l.b16 %v274
    %v707 = vunpack.c.l.b16 %v275
    %v708 = vunpack.c.l.b16 %v276
    %v709 = vunpack.c.l.b16 %v277
    %v710 = vunpack.c.l.b16 %v278
    %v711 = vunpack.c.l.b16 %v279
    %v712 = vunpack.c.l.b16 %v280
    %v713 = vpack.c.b16 %v698, %v697
    %v714 = vpack.c.b16 %v700, %v699
    %v715 = vpack.c.b16 %v702, %v701
    %v716 = vpack.c.b16 %v704, %v703
    %v717 = vpack.c.b16 %v706, %v705
    %v718 = vpack.c.b16 %v708, %v707
    %v719 = vpack.c.b16 %v710, %v709
    %v720 = vpack.c.b16 %v712, %v711
    %729 = vmatpush.bf16.msra.mxu0 %v720
    %730 = vmatpush.bf16.msra.mxu0 %v719
    %731 = vmatpush.bf16.msra.mxu0 %v718
    %732 = vmatpush.bf16.msra.mxu0 %v717
    %733 = vmatpush.bf16.msra.mxu0 %v716
    %734 = vmatpush.bf16.msra.mxu0 %v715
    %735 = vmatpush.bf16.msra.mxu0 %v714
    %736 = vmatpush.bf16.msra.mxu0 %v713
    %737 = vmatmul.bf16.gmra.mxu0 %v224
    %v738 = vpop.f32.mrf.mxu0
    %v739 = vadd.f32 %v478, %v738
    %v740 = vpop.f32.mrf.mxu0
    %v741 = vadd.f32 %v480, %v740
    %742 = vmatmul.bf16.gmra.mxu0 %v225
    %v743 = vpop.f32.mrf.mxu0
    %v744 = vadd.f32 %v483, %v743
    %v745 = vpop.f32.mrf.mxu0
    %v746 = vadd.f32 %v485, %v745
    %747 = vmatmul.bf16.gmra.mxu0 %v226
    %v748 = vpop.f32.mrf.mxu0
    %v749 = vadd.f32 %v488, %v748
    %v750 = vpop.f32.mrf.mxu0
    %v751 = vadd.f32 %v490, %v750
    %752 = vmatmul.bf16.gmra.mxu0 %v227
    %v753 = vpop.f32.mrf.mxu0
    %v754 = vadd.f32 %v493, %v753
    %v755 = vpop.f32.mrf.mxu0
    %v756 = vadd.f32 %v495, %v755
    %757 = vmatmul.bf16.gmra.mxu0 %v228
    %v758 = vpop.f32.mrf.mxu0
    %v759 = vadd.f32 %v498, %v758
    %v760 = vpop.f32.mrf.mxu0
    %v761 = vadd.f32 %v500, %v760
    %762 = vmatmul.bf16.gmra.mxu0 %v229
    %v763 = vpop.f32.mrf.mxu0
    %v764 = vadd.f32 %v503, %v763
    %v765 = vpop.f32.mrf.mxu0
    %v766 = vadd.f32 %v505, %v765
    %767 = vmatmul.bf16.gmra.mxu0 %v230
    %v768 = vpop.f32.mrf.mxu0
    %v769 = vadd.f32 %v508, %v768
    %v770 = vpop.f32.mrf.mxu0
    %v771 = vadd.f32 %v510, %v770
    %772 = vmatmul.bf16.gmra.mxu0 %v231
    %v773 = vpop.f32.mrf.mxu0
    %v774 = vadd.f32 %v513, %v773
    %v775 = vpop.f32.mrf.mxu0
    %v776 = vadd.f32 %v515, %v775
    %777 = vmatmul.bf16.gmra.mxu0 %v232
    %v778 = vpop.f32.mrf.mxu0
    %v779 = vadd.f32 %v518, %v778
    %v780 = vpop.f32.mrf.mxu0
    %v781 = vadd.f32 %v520, %v780
    %782 = vmatmul.bf16.gmra.mxu0 %v233
    %v783 = vpop.f32.mrf.mxu0
    %v784 = vadd.f32 %v523, %v783
    %v785 = vpop.f32.mrf.mxu0
    %v786 = vadd.f32 %v525, %v785
    %787 = vmatmul.bf16.gmra.mxu0 %v234
    %v788 = vpop.f32.mrf.mxu0
    %v789 = vadd.f32 %v528, %v788
    %v790 = vpop.f32.mrf.mxu0
    %v791 = vadd.f32 %v530, %v790
    %792 = vmatmul.bf16.gmra.mxu0 %v235
    %v793 = vpop.f32.mrf.mxu0
    %v794 = vadd.f32 %v533, %v793
    %v795 = vpop.f32.mrf.mxu0
    %v796 = vadd.f32 %v535, %v795
    %797 = vmatmul.bf16.gmra.mxu0 %v236
    %v798 = vpop.f32.mrf.mxu0
    %v799 = vadd.f32 %v538, %v798
    %v800 = vpop.f32.mrf.mxu0
    %v801 = vadd.f32 %v540, %v800
    %802 = vmatmul.bf16.gmra.mxu0 %v237
    %v803 = vpop.f32.mrf.mxu0
    %v804 = vadd.f32 %v543, %v803
    %v805 = vpop.f32.mrf.mxu0
    %v806 = vadd.f32 %v545, %v805
    %807 = vmatmul.bf16.gmra.mxu0 %v238
    %v808 = vpop.f32.mrf.mxu0
    %v809 = vadd.f32 %v548, %v808
    %v810 = vpop.f32.mrf.mxu0
    %v811 = vadd.f32 %v550, %v810
    %812 = vmatmul.bf16.gmra.mxu0 %v239
    %v813 = vpop.f32.mrf.mxu0
    %v814 = vadd.f32 %v553, %v813
    %v815 = vpop.f32.mrf.mxu0
    %v816 = vadd.f32 %v555, %v815
    %817 = vmatmul.bf16.gmra.mxu0 %v240
    %v818 = vpop.f32.mrf.mxu0
    %v819 = vadd.f32 %v558, %v818
    %v820 = vpop.f32.mrf.mxu0
    %v821 = vadd.f32 %v560, %v820
    %822 = vmatmul.bf16.gmra.mxu0 %v241
    %v823 = vpop.f32.mrf.mxu0
    %v824 = vadd.f32 %v563, %v823
    %v825 = vpop.f32.mrf.mxu0
    %v826 = vadd.f32 %v565, %v825
    %827 = vmatmul.bf16.gmra.mxu0 %v242
    %v828 = vpop.f32.mrf.mxu0
    %v829 = vadd.f32 %v568, %v828
    %v830 = vpop.f32.mrf.mxu0
    %v831 = vadd.f32 %v570, %v830
    %832 = vmatmul.bf16.gmra.mxu0 %v243
    %v833 = vpop.f32.mrf.mxu0
    %v834 = vadd.f32 %v573, %v833
    %v835 = vpop.f32.mrf.mxu0
    %v836 = vadd.f32 %v575, %v835
    %837 = vmatmul.bf16.gmra.mxu0 %v244
    %v838 = vpop.f32.mrf.mxu0
    %v839 = vadd.f32 %v578, %v838
    %v840 = vpop.f32.mrf.mxu0
    %v841 = vadd.f32 %v580, %v840
    %842 = vmatmul.bf16.gmra.mxu0 %v245
    %v843 = vpop.f32.mrf.mxu0
    %v844 = vadd.f32 %v583, %v843
    %v845 = vpop.f32.mrf.mxu0
    %v846 = vadd.f32 %v585, %v845
    %847 = vmatmul.bf16.gmra.mxu0 %v246
    %v848 = vpop.f32.mrf.mxu0
    %v849 = vadd.f32 %v588, %v848
    %v850 = vpop.f32.mrf.mxu0
    %v851 = vadd.f32 %v590, %v850
    %852 = vmatmul.bf16.gmra.mxu0 %v247
    %v853 = vpop.f32.mrf.mxu0
    %v854 = vadd.f32 %v593, %v853
    %v855 = vpop.f32.mrf.mxu0
    %v856 = vadd.f32 %v595, %v855
    %857 = vmatmul.bf16.gmra.mxu0 %v248
    %v858 = vpop.f32.mrf.mxu0
    %v859 = vadd.f32 %v598, %v858
    %v860 = vpop.f32.mrf.mxu0
    %v861 = vadd.f32 %v600, %v860
    %862 = vmatmul.bf16.gmra.mxu0 %v249
    %v863 = vpop.f32.mrf.mxu0
    %v864 = vadd.f32 %v603, %v863
    %v865 = vpop.f32.mrf.mxu0
    %v866 = vadd.f32 %v605, %v865
    %867 = vmatmul.bf16.gmra.mxu0 %v250
    %v868 = vpop.f32.mrf.mxu0
    %v869 = vadd.f32 %v608, %v868
    %v870 = vpop.f32.mrf.mxu0
    %v871 = vadd.f32 %v610, %v870
    %872 = vmatmul.bf16.gmra.mxu0 %v251
    %v873 = vpop.f32.mrf.mxu0
    %v874 = vadd.f32 %v613, %v873
    %v875 = vpop.f32.mrf.mxu0
    %v876 = vadd.f32 %v615, %v875
    %877 = vmatmul.bf16.gmra.mxu0 %v252
    %v878 = vpop.f32.mrf.mxu0
    %v879 = vadd.f32 %v618, %v878
    %v880 = vpop.f32.mrf.mxu0
    %v881 = vadd.f32 %v620, %v880
    %882 = vmatmul.bf16.gmra.mxu0 %v253
    %v883 = vpop.f32.mrf.mxu0
    %v884 = vadd.f32 %v623, %v883
    %v885 = vpop.f32.mrf.mxu0
    %v886 = vadd.f32 %v625, %v885
    %887 = vmatmul.bf16.gmra.mxu0 %v254
    %v888 = vpop.f32.mrf.mxu0
    %v889 = vadd.f32 %v628, %v888
    %v890 = vpop.f32.mrf.mxu0
    %v891 = vadd.f32 %v630, %v890
    %892 = vmatmul.bf16.gmra.mxu0 %v255
    %v893 = vpop.f32.mrf.mxu0
    %v894 = vadd.f32 %v633, %v893
    %v895 = vpop.f32.mrf.mxu0
    %v896 = vadd.f32 %v635, %v895
    %897 = vmatmul.bf16.gmra.mxu0 %v256
    %v898 = vpop.f32.mrf.mxu0
    %v899 = vadd.f32 %v638, %v898
    %v900 = vpop.f32.mrf.mxu0
    %v901 = vadd.f32 %v640, %v900
    %902 = vmatmul.bf16.gmra.mxu0 %v257
    %v903 = vpop.f32.mrf.mxu0
    %v904 = vadd.f32 %v643, %v903
    %v905 = vpop.f32.mrf.mxu0
    %v906 = vadd.f32 %v645, %v905
    %907 = vmatmul.bf16.gmra.mxu0 %v258
    %v908 = vpop.f32.mrf.mxu0
    %v909 = vadd.f32 %v648, %v908
    %v910 = vpop.f32.mrf.mxu0
    %v911 = vadd.f32 %v650, %v910
    %912 = vmatmul.bf16.gmra.mxu0 %v259
    %v913 = vpop.f32.mrf.mxu0
    %v914 = vadd.f32 %v653, %v913
    %v915 = vpop.f32.mrf.mxu0
    %v916 = vadd.f32 %v655, %v915
    %917 = vmatmul.bf16.gmra.mxu0 %v260
    %v918 = vpop.f32.mrf.mxu0
    %v919 = vadd.f32 %v658, %v918
    %v920 = vpop.f32.mrf.mxu0
    %v921 = vadd.f32 %v660, %v920
    %922 = vmatmul.bf16.gmra.mxu0 %v261
    %v923 = vpop.f32.mrf.mxu0
    %v924 = vadd.f32 %v663, %v923
    %v925 = vpop.f32.mrf.mxu0
    %v926 = vadd.f32 %v665, %v925
    %927 = vmatmul.bf16.gmra.mxu0 %v262
    %v928 = vpop.f32.mrf.mxu0
    %v929 = vadd.f32 %v668, %v928
    %v930 = vpop.f32.mrf.mxu0
    %v931 = vadd.f32 %v670, %v930
    %932 = vmatmul.bf16.gmra.mxu0 %v263
    %v933 = vpop.f32.mrf.mxu0
    %v934 = vadd.f32 %v673, %v933
    %v935 = vpop.f32.mrf.mxu0
    %v936 = vadd.f32 %v675, %v935
    %937 = vmatmul.bf16.gmra.mxu0 %v264
    %v938 = vpop.f32.mrf.mxu0
    %v939 = vadd.f32 %v678, %v938
    %v940 = vpop.f32.mrf.mxu0
    %941 = vdwg.mxu0
    %v942 = vld [vmem:[#allocation3 + $0x7] sm:$0xff]
    %v943 = vld [vmem:[#allocation3 + $0xf] sm:$0xff]
    %v944 = vld [vmem:[#allocation3 + $0x17] sm:$0xff]
    %v945 = vld [vmem:[#allocation3 + $0x1f] sm:$0xff]
    %v946 = vld [vmem:[#allocation3 + $0x27] sm:$0xff]
    %v947 = vld [vmem:[#allocation3 + $0x2f] sm:$0xff]
    %v948 = vld [vmem:[#allocation3 + $0x37] sm:$0xff]
    %v949 = vld [vmem:[#allocation3 + $0x3f] sm:$0xff]
    %v950 = vld [vmem:[#allocation3 + $0x47] sm:$0xff]
    %v951 = vld [vmem:[#allocation3 + $0x4f] sm:$0xff]
    %v952 = vld [vmem:[#allocation3 + $0x57] sm:$0xff]
    %v953 = vld [vmem:[#allocation3 + $0x5f] sm:$0xff]
    %v954 = vld [vmem:[#allocation3 + $0x67] sm:$0xff]
    %v955 = vld [vmem:[#allocation3 + $0x6f] sm:$0xff]
    %v956 = vld [vmem:[#allocation3 + $0x77] sm:$0xff]
    %v957 = vld [vmem:[#allocation3 + $0x7f] sm:$0xff]
    %v958 = vld [vmem:[#allocation3 + $0x87] sm:$0xff]
    %v959 = vld [vmem:[#allocation3 + $0x8f] sm:$0xff]
    %v960 = vld [vmem:[#allocation3 + $0x97] sm:$0xff]
    %v961 = vld [vmem:[#allocation3 + $0x9f] sm:$0xff]
    %v962 = vld [vmem:[#allocation3 + $0xa7] sm:$0xff]
    %v963 = vld [vmem:[#allocation3 + $0xaf] sm:$0xff]
    %v964 = vld [vmem:[#allocation3 + $0xb7] sm:$0xff]
    %v965 = vld [vmem:[#allocation3 + $0xbf] sm:$0xff]
    %v966 = vld [vmem:[#allocation3 + $0xc7] sm:$0xff]
    %v967 = vld [vmem:[#allocation3 + $0xcf] sm:$0xff]
    %v968 = vld [vmem:[#allocation3 + $0xd7] sm:$0xff]
    %v969 = vld [vmem:[#allocation3 + $0xdf] sm:$0xff]
    %v970 = vld [vmem:[#allocation3 + $0xe7] sm:$0xff]
    %v971 = vld [vmem:[#allocation3 + $0xef] sm:$0xff]
    %v972 = vld [vmem:[#allocation3 + $0xf7] sm:$0xff]
    %v973 = vld [vmem:[#allocation3 + $0xff] sm:$0xff]
    %v974 = vld [vmem:[#allocation3 + $0x107] sm:$0xff]
    %v975 = vld [vmem:[#allocation3 + $0x10f] sm:$0xff]
    %v976 = vld [vmem:[#allocation3 + $0x117] sm:$0xff]
    %v977 = vld [vmem:[#allocation3 + $0x11f] sm:$0xff]
    %v978 = vld [vmem:[#allocation3 + $0x127] sm:$0xff]
    %v979 = vld [vmem:[#allocation3 + $0x12f] sm:$0xff]
    %v980 = vld [vmem:[#allocation3 + $0x137] sm:$0xff]
    %v981 = vld [vmem:[#allocation3 + $0x13f] sm:$0xff]
    %v982 = vld [vmem:[#allocation3 + $0x147] sm:$0xff]
    %v983 = vld [vmem:[#allocation3 + $0x14f] sm:$0xff]
    %v984 = vld [vmem:[#allocation3 + $0x157] sm:$0xff]
    %v985 = vld [vmem:[#allocation3 + $0x15f] sm:$0xff]
    %v986 = vld [vmem:[#allocation3 + $0x167] sm:$0xff]
    %v987 = vld [vmem:[#allocation3 + $0x16f] sm:$0xff]
    %v988 = vld [vmem:[#allocation3 + $0x177] sm:$0xff]
    %v989 = vld [vmem:[#allocation3 + $0x17f] sm:$0xff]
    %v990 = vld [vmem:[#allocation3 + $0x187] sm:$0xff]
    %v991 = vld [vmem:[#allocation3 + $0x18f] sm:$0xff]
    %v992 = vld [vmem:[#allocation3 + $0x197] sm:$0xff]
    %v993 = vld [vmem:[#allocation3 + $0x19f] sm:$0xff]
    %v994 = vld [vmem:[#allocation3 + $0x1a7] sm:$0xff]
    %v995 = vld [vmem:[#allocation3 + $0x1af] sm:$0xff]
    %v996 = vld [vmem:[#allocation3 + $0x1b7] sm:$0xff]
    %v997 = vld [vmem:[#allocation3 + $0x1bf] sm:$0xff]
    %v998 = vld [vmem:[#allocation3 + $0x1c7] sm:$0xff]
    %v999 = vld [vmem:[#allocation3 + $0x1cf] sm:$0xff]
    %v1000 = vld [vmem:[#allocation3 + $0x1d7] sm:$0xff]
    %v1001 = vld [vmem:[#allocation3 + $0x1df] sm:$0xff]
    %v1002 = vld [vmem:[#allocation3 + $0x1e7] sm:$0xff]
    %v1003 = vld [vmem:[#allocation3 + $0x1ef] sm:$0xff]
    %v1004 = vld [vmem:[#allocation3 + $0x1f7] sm:$0xff]
    %v1005 = vld [vmem:[#allocation3 + $0x1ff] sm:$0xff]
    %v1006 = vld [vmem:[#allocation3 + $0x207] sm:$0xff]
    %v1007 = vld [vmem:[#allocation3 + $0x20f] sm:$0xff]
    %v1008 = vld [vmem:[#allocation3 + $0x217] sm:$0xff]
    %v1009 = vld [vmem:[#allocation3 + $0x21f] sm:$0xff]
    %v1010 = vld [vmem:[#allocation3 + $0x227] sm:$0xff]
    %v1011 = vld [vmem:[#allocation3 + $0x22f] sm:$0xff]
    %v1012 = vld [vmem:[#allocation3 + $0x237] sm:$0xff]
    %v1013 = vld [vmem:[#allocation3 + $0x23f] sm:$0xff]
    %v1014 = vld [vmem:[#allocation3 + $0x247] sm:$0xff]
    %v1015 = vld [vmem:[#allocation3 + $0x24f] sm:$0xff]
    %v1016 = vld [vmem:[#allocation3 + $0x257] sm:$0xff]
    %v1017 = vld [vmem:[#allocation3 + $0x25f] sm:$0xff]
    %v1018 = vld [vmem:[#allocation3 + $0x267] sm:$0xff]
    %v1019 = vld [vmem:[#allocation3 + $0x26f] sm:$0xff]
    %v1020 = vld [vmem:[#allocation3 + $0x277] sm:$0xff]
    %v1021 = vld [vmem:[#allocation3 + $0x27f] sm:$0xff]
    %v1022 = vld [vmem:[#allocation3 + $0x287] sm:$0xff]
    %v1023 = vpack.c.bf16 %v943, %v942
    %v1024 = vpack.c.bf16 %v945, %v944
    %v1025 = vpack.c.bf16 %v947, %v946
    %v1026 = vpack.c.bf16 %v949, %v948
    %v1027 = vpack.c.bf16 %v951, %v950
    %v1028 = vpack.c.bf16 %v953, %v952
    %v1029 = vpack.c.bf16 %v955, %v954
    %v1030 = vpack.c.bf16 %v957, %v956
    %v1031 = vpack.c.bf16 %v959, %v958
    %v1032 = vpack.c.bf16 %v961, %v960
    %v1033 = vpack.c.bf16 %v963, %v962
    %v1034 = vpack.c.bf16 %v965, %v964
    %v1035 = vpack.c.bf16 %v967, %v966
    %v1036 = vpack.c.bf16 %v969, %v968
    %v1037 = vpack.c.bf16 %v971, %v970
    %v1038 = vpack.c.bf16 %v973, %v972
    %v1039 = vpack.c.bf16 %v975, %v974
    %v1040 = vpack.c.bf16 %v977, %v976
    %v1041 = vpack.c.bf16 %v979, %v978
    %v1042 = vpack.c.bf16 %v981, %v980
    %v1043 = vpack.c.bf16 %v983, %v982
    %v1044 = vpack.c.bf16 %v985, %v984
    %v1045 = vpack.c.bf16 %v987, %v986
    %v1046 = vpack.c.bf16 %v989, %v988
    %v1047 = vpack.c.bf16 %v991, %v990
    %v1048 = vpack.c.bf16 %v993, %v992
    %v1049 = vpack.c.bf16 %v995, %v994
    %v1050 = vpack.c.bf16 %v997, %v996
    %v1051 = vpack.c.bf16 %v999, %v998
    %v1052 = vpack.c.bf16 %v1001, %v1000
    %v1053 = vpack.c.bf16 %v1003, %v1002
    %v1054 = vpack.c.bf16 %v1005, %v1004
    %v1055 = vpack.c.bf16 %v1007, %v1006
    %v1056 = vpack.c.bf16 %v1009, %v1008
    %v1057 = vpack.c.bf16 %v1011, %v1010
    %v1058 = vpack.c.bf16 %v1013, %v1012
    %v1059 = vpack.c.bf16 %v1015, %v1014
    %v1060 = vpack.c.bf16 %v1017, %v1016
    %v1061 = vpack.c.bf16 %v1019, %v1018
    %v1062 = vpack.c.bf16 %v1021, %v1020
    %v1063 = vpack.c.bf16 %v1022, %v1022
    %s1064 = scalar_lea.vmem %s2, 128
    %v1065 = vld [vmem:[%s1064] sm:$0xf]
    %v1066 = vld [vmem:[%s1064 + $0x4] sm:$0xf]
    %v1067 = vld [vmem:[%s1064 + $0x8] sm:$0xf]
    %v1068 = vld [vmem:[%s1064 + $0xc] sm:$0xf]
    %v1069 = vld [vmem:[%s1064 + $0x10] sm:$0xf]
    %v1070 = vld [vmem:[%s1064 + $0x14] sm:$0xf]
    %v1071 = vld [vmem:[%s1064 + $0x18] sm:$0xf]
    %v1072 = vld [vmem:[%s1064 + $0x1c] sm:$0xf]
    %v1073 = vld [vmem:[%s1064 + $0x20] sm:$0xf]
    %v1074 = vld [vmem:[%s1064 + $0x24] sm:$0xf]
    %v1075 = vld [vmem:[%s1064 + $0x28] sm:$0xf]
    %v1076 = vld [vmem:[%s1064 + $0x2c] sm:$0xf]
    %v1077 = vld [vmem:[%s1064 + $0x30] sm:$0xf]
    %v1078 = vld [vmem:[%s1064 + $0x34] sm:$0xf]
    %v1079 = vld [vmem:[%s1064 + $0x38] sm:$0xf]
    %v1080 = vld [vmem:[%s1064 + $0x3c] sm:$0xf]
    %v1097 = vunpack.c.l.b16 %v1065
    %v1098 = vunpack.c.l.b16 %v1066
    %v1099 = vunpack.c.l.b16 %v1067
    %v1100 = vunpack.c.l.b16 %v1068
    %v1101 = vunpack.c.l.b16 %v1069
    %v1102 = vunpack.c.l.b16 %v1070
    %v1103 = vunpack.c.l.b16 %v1071
    %v1104 = vunpack.c.l.b16 %v1072
    %v1105 = vunpack.c.l.b16 %v1073
    %v1106 = vunpack.c.l.b16 %v1074
    %v1107 = vunpack.c.l.b16 %v1075
    %v1108 = vunpack.c.l.b16 %v1076
    %v1109 = vunpack.c.l.b16 %v1077
    %v1110 = vunpack.c.l.b16 %v1078
    %v1111 = vunpack.c.l.b16 %v1079
    %v1112 = vunpack.c.l.b16 %v1080
    %v1113 = vpack.c.b16 %v1098, %v1097
    %v1114 = vpack.c.b16 %v1100, %v1099
    %v1115 = vpack.c.b16 %v1102, %v1101
    %v1116 = vpack.c.b16 %v1104, %v1103
    %v1117 = vpack.c.b16 %v1106, %v1105
    %v1118 = vpack.c.b16 %v1108, %v1107
    %v1119 = vpack.c.b16 %v1110, %v1109
    %v1120 = vpack.c.b16 %v1112, %v1111
    %1129 = vmatpush.bf16.msra.mxu0 %v1120
    %1130 = vmatpush.bf16.msra.mxu0 %v1119
    %1131 = vmatpush.bf16.msra.mxu0 %v1118
    %1132 = vmatpush.bf16.msra.mxu0 %v1117
    %1133 = vmatpush.bf16.msra.mxu0 %v1116
    %1134 = vmatpush.bf16.msra.mxu0 %v1115
    %1135 = vmatpush.bf16.msra.mxu0 %v1114
    %1136 = vmatpush.bf16.msra.mxu0 %v1113
    %1137 = vmatmul.bf16.gmra.mxu0 %v1023
    %v1138 = vpop.f32.mrf.mxu0
    %v1139 = vadd.f32 0.0, %v1138
    %v1140 = vpop.f32.mrf.mxu0
    %v1141 = vadd.f32 0.0, %v1140
    %1142 = vmatmul.bf16.gmra.mxu0 %v1024
    %v1143 = vpop.f32.mrf.mxu0
    %v1144 = vadd.f32 0.0, %v1143
    %v1145 = vpop.f32.mrf.mxu0
    %v1146 = vadd.f32 0.0, %v1145
    %1147 = vmatmul.bf16.gmra.mxu0 %v1025
    %v1148 = vpop.f32.mrf.mxu0
    %v1149 = vadd.f32 0.0, %v1148
    %v1150 = vpop.f32.mrf.mxu0
    %v1151 = vadd.f32 0.0, %v1150
    %1152 = vmatmul.bf16.gmra.mxu0 %v1026
    %v1153 = vpop.f32.mrf.mxu0
    %v1154 = vadd.f32 0.0, %v1153
    %v1155 = vpop.f32.mrf.mxu0
    %v1156 = vadd.f32 0.0, %v1155
    %1157 = vmatmul.bf16.gmra.mxu0 %v1027
    %v1158 = vpop.f32.mrf.mxu0
    %v1159 = vadd.f32 0.0, %v1158
    %v1160 = vpop.f32.mrf.mxu0
    %v1161 = vadd.f32 0.0, %v1160
    %1162 = vmatmul.bf16.gmra.mxu0 %v1028
    %v1163 = vpop.f32.mrf.mxu0
    %v1164 = vadd.f32 0.0, %v1163
    %v1165 = vpop.f32.mrf.mxu0
    %v1166 = vadd.f32 0.0, %v1165
    %1167 = vmatmul.bf16.gmra.mxu0 %v1029
    %v1168 = vpop.f32.mrf.mxu0
    %v1169 = vadd.f32 0.0, %v1168
    %v1170 = vpop.f32.mrf.mxu0
    %v1171 = vadd.f32 0.0, %v1170
    %1172 = vmatmul.bf16.gmra.mxu0 %v1030
    %v1173 = vpop.f32.mrf.mxu0
    %v1174 = vadd.f32 0.0, %v1173
    %v1175 = vpop.f32.mrf.mxu0
    %v1176 = vadd.f32 0.0, %v1175
    %1177 = vmatmul.bf16.gmra.mxu0 %v1031
    %v1178 = vpop.f32.mrf.mxu0
    %v1179 = vadd.f32 0.0, %v1178
    %v1180 = vpop.f32.mrf.mxu0
    %v1181 = vadd.f32 0.0, %v1180
    %1182 = vmatmul.bf16.gmra.mxu0 %v1032
    %v1183 = vpop.f32.mrf.mxu0
    %v1184 = vadd.f32 0.0, %v1183
    %v1185 = vpop.f32.mrf.mxu0
    %v1186 = vadd.f32 0.0, %v1185
    %1187 = vmatmul.bf16.gmra.mxu0 %v1033
    %v1188 = vpop.f32.mrf.mxu0
    %v1189 = vadd.f32 0.0, %v1188
    %v1190 = vpop.f32.mrf.mxu0
    %v1191 = vadd.f32 0.0, %v1190
    %1192 = vmatmul.bf16.gmra.mxu0 %v1034
    %v1193 = vpop.f32.mrf.mxu0
    %v1194 = vadd.f32 0.0, %v1193
    %v1195 = vpop.f32.mrf.mxu0
    %v1196 = vadd.f32 0.0, %v1195
    %1197 = vmatmul.bf16.gmra.mxu0 %v1035
    %v1198 = vpop.f32.mrf.mxu0
    %v1199 = vadd.f32 0.0, %v1198
    %v1200 = vpop.f32.mrf.mxu0
    %v1201 = vadd.f32 0.0, %v1200
    %1202 = vmatmul.bf16.gmra.mxu0 %v1036
    %v1203 = vpop.f32.mrf.mxu0
    %v1204 = vadd.f32 0.0, %v1203
    %v1205 = vpop.f32.mrf.mxu0
    %v1206 = vadd.f32 0.0, %v1205
    %1207 = vmatmul.bf16.gmra.mxu0 %v1037
    %v1208 = vpop.f32.mrf.mxu0
    %v1209 = vadd.f32 0.0, %v1208
    %v1210 = vpop.f32.mrf.mxu0
    %v1211 = vadd.f32 0.0, %v1210
    %1212 = vmatmul.bf16.gmra.mxu0 %v1038
    %v1213 = vpop.f32.mrf.mxu0
    %v1214 = vadd.f32 0.0, %v1213
    %v1215 = vpop.f32.mrf.mxu0
    %v1216 = vadd.f32 0.0, %v1215
    %1217 = vmatmul.bf16.gmra.mxu0 %v1039
    %v1218 = vpop.f32.mrf.mxu0
    %v1219 = vadd.f32 0.0, %v1218
    %v1220 = vpop.f32.mrf.mxu0
    %v1221 = vadd.f32 0.0, %v1220
    %1222 = vmatmul.bf16.gmra.mxu0 %v1040
    %v1223 = vpop.f32.mrf.mxu0
    %v1224 = vadd.f32 0.0, %v1223
    %v1225 = vpop.f32.mrf.mxu0
    %v1226 = vadd.f32 0.0, %v1225
    %1227 = vmatmul.bf16.gmra.mxu0 %v1041
    %v1228 = vpop.f32.mrf.mxu0
    %v1229 = vadd.f32 0.0, %v1228
    %v1230 = vpop.f32.mrf.mxu0
    %v1231 = vadd.f32 0.0, %v1230
    %1232 = vmatmul.bf16.gmra.mxu0 %v1042
    %v1233 = vpop.f32.mrf.mxu0
    %v1234 = vadd.f32 0.0, %v1233
    %v1235 = vpop.f32.mrf.mxu0
    %v1236 = vadd.f32 0.0, %v1235
    %1237 = vmatmul.bf16.gmra.mxu0 %v1043
    %v1238 = vpop.f32.mrf.mxu0
    %v1239 = vadd.f32 0.0, %v1238
    %v1240 = vpop.f32.mrf.mxu0
    %v1241 = vadd.f32 0.0, %v1240
    %1242 = vmatmul.bf16.gmra.mxu0 %v1044
    %v1243 = vpop.f32.mrf.mxu0
    %v1244 = vadd.f32 0.0, %v1243
    %v1245 = vpop.f32.mrf.mxu0
    %v1246 = vadd.f32 0.0, %v1245
    %1247 = vmatmul.bf16.gmra.mxu0 %v1045
    %v1248 = vpop.f32.mrf.mxu0
    %v1249 = vadd.f32 0.0, %v1248
    %v1250 = vpop.f32.mrf.mxu0
    %v1251 = vadd.f32 0.0, %v1250
    %1252 = vmatmul.bf16.gmra.mxu0 %v1046
    %v1253 = vpop.f32.mrf.mxu0
    %v1254 = vadd.f32 0.0, %v1253
    %v1255 = vpop.f32.mrf.mxu0
    %v1256 = vadd.f32 0.0, %v1255
    %1257 = vmatmul.bf16.gmra.mxu0 %v1047
    %v1258 = vpop.f32.mrf.mxu0
    %v1259 = vadd.f32 0.0, %v1258
    %v1260 = vpop.f32.mrf.mxu0
    %v1261 = vadd.f32 0.0, %v1260
    %1262 = vmatmul.bf16.gmra.mxu0 %v1048
    %v1263 = vpop.f32.mrf.mxu0
    %v1264 = vadd.f32 0.0, %v1263
    %v1265 = vpop.f32.mrf.mxu0
    %v1266 = vadd.f32 0.0, %v1265
    %1267 = vmatmul.bf16.gmra.mxu0 %v1049
    %v1268 = vpop.f32.mrf.mxu0
    %v1269 = vadd.f32 0.0, %v1268
    %v1270 = vpop.f32.mrf.mxu0
    %v1271 = vadd.f32 0.0, %v1270
    %1272 = vmatmul.bf16.gmra.mxu0 %v1050
    %v1273 = vpop.f32.mrf.mxu0
    %v1274 = vadd.f32 0.0, %v1273
    %v1275 = vpop.f32.mrf.mxu0
    %v1276 = vadd.f32 0.0, %v1275
    %1277 = vmatmul.bf16.gmra.mxu0 %v1051
    %v1278 = vpop.f32.mrf.mxu0
    %v1279 = vadd.f32 0.0, %v1278
    %v1280 = vpop.f32.mrf.mxu0
    %v1281 = vadd.f32 0.0, %v1280
    %1282 = vmatmul.bf16.gmra.mxu0 %v1052
    %v1283 = vpop.f32.mrf.mxu0
    %v1284 = vadd.f32 0.0, %v1283
    %v1285 = vpop.f32.mrf.mxu0
    %v1286 = vadd.f32 0.0, %v1285
    %1287 = vmatmul.bf16.gmra.mxu0 %v1053
    %v1288 = vpop.f32.mrf.mxu0
    %v1289 = vadd.f32 0.0, %v1288
    %v1290 = vpop.f32.mrf.mxu0
    %v1291 = vadd.f32 0.0, %v1290
    %1292 = vmatmul.bf16.gmra.mxu0 %v1054
    %v1293 = vpop.f32.mrf.mxu0
    %v1294 = vadd.f32 0.0, %v1293
    %v1295 = vpop.f32.mrf.mxu0
    %v1296 = vadd.f32 0.0, %v1295
    %1297 = vmatmul.bf16.gmra.mxu0 %v1055
    %v1298 = vpop.f32.mrf.mxu0
    %v1299 = vadd.f32 0.0, %v1298
    %v1300 = vpop.f32.mrf.mxu0
    %v1301 = vadd.f32 0.0, %v1300
    %1302 = vmatmul.bf16.gmra.mxu0 %v1056
    %v1303 = vpop.f32.mrf.mxu0
    %v1304 = vadd.f32 0.0, %v1303
    %v1305 = vpop.f32.mrf.mxu0
    %v1306 = vadd.f32 0.0, %v1305
    %1307 = vmatmul.bf16.gmra.mxu0 %v1057
    %v1308 = vpop.f32.mrf.mxu0
    %v1309 = vadd.f32 0.0, %v1308
    %v1310 = vpop.f32.mrf.mxu0
    %v1311 = vadd.f32 0.0, %v1310
    %1312 = vmatmul.bf16.gmra.mxu0 %v1058
    %v1313 = vpop.f32.mrf.mxu0
    %v1314 = vadd.f32 0.0, %v1313
    %v1315 = vpop.f32.mrf.mxu0
    %v1316 = vadd.f32 0.0, %v1315
    %1317 = vmatmul.bf16.gmra.mxu0 %v1059
    %v1318 = vpop.f32.mrf.mxu0
    %v1319 = vadd.f32 0.0, %v1318
    %v1320 = vpop.f32.mrf.mxu0
    %v1321 = vadd.f32 0.0, %v1320
    %1322 = vmatmul.bf16.gmra.mxu0 %v1060
    %v1323 = vpop.f32.mrf.mxu0
    %v1324 = vadd.f32 0.0, %v1323
    %v1325 = vpop.f32.mrf.mxu0
    %v1326 = vadd.f32 0.0, %v1325
    %1327 = vmatmul.bf16.gmra.mxu0 %v1061
    %v1328 = vpop.f32.mrf.mxu0
    %v1329 = vadd.f32 0.0, %v1328
    %v1330 = vpop.f32.mrf.mxu0
    %v1331 = vadd.f32 0.0, %v1330
    %1332 = vmatmul.bf16.gmra.mxu0 %v1062
    %v1333 = vpop.f32.mrf.mxu0
    %v1334 = vadd.f32 0.0, %v1333
    %v1335 = vpop.f32.mrf.mxu0
    %v1336 = vadd.f32 0.0, %v1335
    %1337 = vmatmul.bf16.gmra.mxu0 %v1063
    %v1338 = vpop.f32.mrf.mxu0
    %v1339 = vadd.f32 0.0, %v1338
    %v1340 = vpop.f32.mrf.mxu0
    %1341 = vdwg.mxu0
    %v1342 = vadd.f32 %v739, %v1139
    %v1343 = vadd.f32 %v741, %v1141
    %v1344 = vadd.f32 %v744, %v1144
    %v1345 = vadd.f32 %v746, %v1146
    %v1346 = vadd.f32 %v749, %v1149
    %v1347 = vadd.f32 %v751, %v1151
    %v1348 = vadd.f32 %v754, %v1154
    %v1349 = vadd.f32 %v756, %v1156
    %v1350 = vadd.f32 %v759, %v1159
    %v1351 = vadd.f32 %v761, %v1161
    %v1352 = vadd.f32 %v764, %v1164
    %v1353 = vadd.f32 %v766, %v1166
    %v1354 = vadd.f32 %v769, %v1169
    %v1355 = vadd.f32 %v771, %v1171
    %v1356 = vadd.f32 %v774, %v1174
    %v1357 = vadd.f32 %v776, %v1176
    %v1358 = vadd.f32 %v779, %v1179
    %v1359 = vadd.f32 %v781, %v1181
    %v1360 = vadd.f32 %v784, %v1184
    %v1361 = vadd.f32 %v786, %v1186
    %v1362 = vadd.f32 %v789, %v1189
    %v1363 = vadd.f32 %v791, %v1191
    %v1364 = vadd.f32 %v794, %v1194
    %v1365 = vadd.f32 %v796, %v1196
    %v1366 = vadd.f32 %v799, %v1199
    %v1367 = vadd.f32 %v801, %v1201
    %v1368 = vadd.f32 %v804, %v1204
    %v1369 = vadd.f32 %v806, %v1206
    %v1370 = vadd.f32 %v809, %v1209
    %v1371 = vadd.f32 %v811, %v1211
    %v1372 = vadd.f32 %v814, %v1214
    %v1373 = vadd.f32 %v816, %v1216
    %v1374 = vadd.f32 %v819, %v1219
    %v1375 = vadd.f32 %v821, %v1221
    %v1376 = vadd.f32 %v824, %v1224
    %v1377 = vadd.f32 %v826, %v1226
    %v1378 = vadd.f32 %v829, %v1229
    %v1379 = vadd.f32 %v831, %v1231
    %v1380 = vadd.f32 %v834, %v1234
    %v1381 = vadd.f32 %v836, %v1236
    %v1382 = vadd.f32 %v839, %v1239
    %v1383 = vadd.f32 %v841, %v1241
    %v1384 = vadd.f32 %v844, %v1244
    %v1385 = vadd.f32 %v846, %v1246
    %v1386 = vadd.f32 %v849, %v1249
    %v1387 = vadd.f32 %v851, %v1251
    %v1388 = vadd.f32 %v854, %v1254
    %v1389 = vadd.f32 %v856, %v1256
    %v1390 = vadd.f32 %v859, %v1259
    %v1391 = vadd.f32 %v861, %v1261
    %v1392 = vadd.f32 %v864, %v1264
    %v1393 = vadd.f32 %v866, %v1266
    %v1394 = vadd.f32 %v869, %v1269
    %v1395 = vadd.f32 %v871, %v1271
    %v1396 = vadd.f32 %v874, %v1274
    %v1397 = vadd.f32 %v876, %v1276
    %v1398 = vadd.f32 %v879, %v1279
    %v1399 = vadd.f32 %v881, %v1281
    %v1400 = vadd.f32 %v884, %v1284
    %v1401 = vadd.f32 %v886, %v1286
    %v1402 = vadd.f32 %v889, %v1289
    %v1403 = vadd.f32 %v891, %v1291
    %v1404 = vadd.f32 %v894, %v1294
    %v1405 = vadd.f32 %v896, %v1296
    %v1406 = vadd.f32 %v899, %v1299
    %v1407 = vadd.f32 %v901, %v1301
    %v1408 = vadd.f32 %v904, %v1304
    %v1409 = vadd.f32 %v906, %v1306
    %v1410 = vadd.f32 %v909, %v1309
    %v1411 = vadd.f32 %v911, %v1311
    %v1412 = vadd.f32 %v914, %v1314
    %v1413 = vadd.f32 %v916, %v1316
    %v1414 = vadd.f32 %v919, %v1319
    %v1415 = vadd.f32 %v921, %v1321
    %v1416 = vadd.f32 %v924, %v1324
    %v1417 = vadd.f32 %v926, %v1326
    %v1418 = vadd.f32 %v929, %v1329
    %v1419 = vadd.f32 %v931, %v1331
    %v1420 = vadd.f32 %v934, %v1334
    %v1421 = vadd.f32 %v936, %v1336
    %v1422 = vadd.f32 %v939, %v1339
    %v1423 = vld [vmem:[#allocation3 + $0x17] sm:$0xff]
    %v1424 = vld [vmem:[#allocation3 + $0x1f] sm:$0xff]
    %v1425 = vld [vmem:[#allocation3 + $0x27] sm:$0xff]
    %v1426 = vld [vmem:[#allocation3 + $0x2f] sm:$0xff]
    %v1427 = vld [vmem:[#allocation3 + $0x37] sm:$0xff]
    %v1428 = vld [vmem:[#allocation3 + $0x3f] sm:$0xff]
    %v1429 = vld [vmem:[#allocation3 + $0x47] sm:$0xff]
    %v1430 = vld [vmem:[#allocation3 + $0x4f] sm:$0xff]
    %v1431 = vld [vmem:[#allocation3 + $0x57] sm:$0xff]
    %v1432 = vld [vmem:[#allocation3 + $0x5f] sm:$0xff]
    %v1433 = vld [vmem:[#allocation3 + $0x67] sm:$0xff]
    %v1434 = vld [vmem:[#allocation3 + $0x6f] sm:$0xff]
    %v1435 = vld [vmem:[#allocation3 + $0x77] sm:$0xff]
    %v1436 = vld [vmem:[#allocation3 + $0x7f] sm:$0xff]
    %v1437 = vld [vmem:[#allocation3 + $0x87] sm:$0xff]
    %v1438 = vld [vmem:[#allocation3 + $0x8f] sm:$0xff]
    %v1439 = vld [vmem:[#allocation3 + $0x97] sm:$0xff]
    %v1440 = vld [vmem:[#allocation3 + $0x9f] sm:$0xff]
    %v1441 = vld [vmem:[#allocation3 + $0xa7] sm:$0xff]
    %v1442 = vld [vmem:[#allocation3 + $0xaf] sm:$0xff]
    %v1443 = vld [vmem:[#allocation3 + $0xb7] sm:$0xff]
    %v1444 = vld [vmem:[#allocation3 + $0xbf] sm:$0xff]
    %v1445 = vld [vmem:[#allocation3 + $0xc7] sm:$0xff]
    %v1446 = vld [vmem:[#allocation3 + $0xcf] sm:$0xff]
    %v1447 = vld [vmem:[#allocation3 + $0xd7] sm:$0xff]
    %v1448 = vld [vmem:[#allocation3 + $0xdf] sm:$0xff]
    %v1449 = vld [vmem:[#allocation3 + $0xe7] sm:$0xff]
    %v1450 = vld [vmem:[#allocation3 + $0xef] sm:$0xff]
    %v1451 = vld [vmem:[#allocation3 + $0xf7] sm:$0xff]
    %v1452 = vld [vmem:[#allocation3 + $0xff] sm:$0xff]
    %v1453 = vld [vmem:[#allocation3 + $0x107] sm:$0xff]
    %v1454 = vld [vmem:[#allocation3 + $0x10f] sm:$0xff]
    %v1455 = vld [vmem:[#allocation3 + $0x117] sm:$0xff]
    %v1456 = vld [vmem:[#allocation3 + $0x11f] sm:$0xff]
    %v1457 = vld [vmem:[#allocation3 + $0x127] sm:$0xff]
    %v1458 = vld [vmem:[#allocation3 + $0x12f] sm:$0xff]
    %v1459 = vld [vmem:[#allocation3 + $0x137] sm:$0xff]
    %v1460 = vld [vmem:[#allocation3 + $0x13f] sm:$0xff]
    %v1461 = vld [vmem:[#allocation3 + $0x147] sm:$0xff]
    %v1462 = vld [vmem:[#allocation3 + $0x14f] sm:$0xff]
    %v1463 = vld [vmem:[#allocation3 + $0x157] sm:$0xff]
    %v1464 = vld [vmem:[#allocation3 + $0x15f] sm:$0xff]
    %v1465 = vld [vmem:[#allocation3 + $0x167] sm:$0xff]
    %v1466 = vld [vmem:[#allocation3 + $0x16f] sm:$0xff]
    %v1467 = vld [vmem:[#allocation3 + $0x177] sm:$0xff]
    %v1468 = vld [vmem:[#allocation3 + $0x17f] sm:$0xff]
    %v1469 = vld [vmem:[#allocation3 + $0x187] sm:$0xff]
    %v1470 = vld [vmem:[#allocation3 + $0x18f] sm:$0xff]
    %v1471 = vld [vmem:[#allocation3 + $0x197] sm:$0xff]
    %v1472 = vld [vmem:[#allocation3 + $0x19f] sm:$0xff]
    %v1473 = vld [vmem:[#allocation3 + $0x1a7] sm:$0xff]
    %v1474 = vld [vmem:[#allocation3 + $0x1af] sm:$0xff]
    %v1475 = vld [vmem:[#allocation3 + $0x1b7] sm:$0xff]
    %v1476 = vld [vmem:[#allocation3 + $0x1bf] sm:$0xff]
    %v1477 = vld [vmem:[#allocation3 + $0x1c7] sm:$0xff]
    %v1478 = vld [vmem:[#allocation3 + $0x1cf] sm:$0xff]
    %v1479 = vld [vmem:[#allocation3 + $0x1d7] sm:$0xff]
    %v1480 = vld [vmem:[#allocation3 + $0x1df] sm:$0xff]
    %v1481 = vld [vmem:[#allocation3 + $0x1e7] sm:$0xff]
    %v1482 = vld [vmem:[#allocation3 + $0x1ef] sm:$0xff]
    %v1483 = vld [vmem:[#allocation3 + $0x1f7] sm:$0xff]
    %v1484 = vld [vmem:[#allocation3 + $0x1ff] sm:$0xff]
    %v1485 = vld [vmem:[#allocation3 + $0x207] sm:$0xff]
    %v1486 = vld [vmem:[#allocation3 + $0x20f] sm:$0xff]
    %v1487 = vld [vmem:[#allocation3 + $0x217] sm:$0xff]
    %v1488 = vld [vmem:[#allocation3 + $0x21f] sm:$0xff]
    %v1489 = vld [vmem:[#allocation3 + $0x227] sm:$0xff]
    %v1490 = vld [vmem:[#allocation3 + $0x22f] sm:$0xff]
    %v1491 = vld [vmem:[#allocation3 + $0x237] sm:$0xff]
    %v1492 = vld [vmem:[#allocation3 + $0x23f] sm:$0xff]
    %v1493 = vld [vmem:[#allocation3 + $0x247] sm:$0xff]
    %v1494 = vld [vmem:[#allocation3 + $0x24f] sm:$0xff]
    %v1495 = vld [vmem:[#allocation3 + $0x257] sm:$0xff]
    %v1496 = vld [vmem:[#allocation3 + $0x25f] sm:$0xff]
    %v1497 = vld [vmem:[#allocation3 + $0x267] sm:$0xff]
    %v1498 = vld [vmem:[#allocation3 + $0x26f] sm:$0xff]
    %v1499 = vld [vmem:[#allocation3 + $0x277] sm:$0xff]
    %v1500 = vld [vmem:[#allocation3 + $0x27f] sm:$0xff]
    %v1501 = vld [vmem:[#allocation3 + $0x287] sm:$0xff]
    %v1502 = vld [vmem:[#allocation3 + $0x28f] sm:$0xff]
    %v1503 = vld [vmem:[#allocation3 + $0x297] sm:$0xff]
    %v1504 = vpack.c.bf16 %v1424, %v1423
    %v1505 = vpack.c.bf16 %v1426, %v1425
    %v1506 = vpack.c.bf16 %v1428, %v1427
    %v1507 = vpack.c.bf16 %v1430, %v1429
    %v1508 = vpack.c.bf16 %v1432, %v1431
    %v1509 = vpack.c.bf16 %v1434, %v1433
    %v1510 = vpack.c.bf16 %v1436, %v1435
    %v1511 = vpack.c.bf16 %v1438, %v1437
    %v1512 = vpack.c.bf16 %v1440, %v1439
    %v1513 = vpack.c.bf16 %v1442, %v1441
    %v1514 = vpack.c.bf16 %v1444, %v1443
    %v1515 = vpack.c.bf16 %v1446, %v1445
    %v1516 = vpack.c.bf16 %v1448, %v1447
    %v1517 = vpack.c.bf16 %v1450, %v1449
    %v1518 = vpack.c.bf16 %v1452, %v1451
    %v1519 = vpack.c.bf16 %v1454, %v1453
    %v1520 = vpack.c.bf16 %v1456, %v1455
    %v1521 = vpack.c.bf16 %v1458, %v1457
    %v1522 = vpack.c.bf16 %v1460, %v1459
    %v1523 = vpack.c.bf16 %v1462, %v1461
    %v1524 = vpack.c.bf16 %v1464, %v1463
    %v1525 = vpack.c.bf16 %v1466, %v1465
    %v1526 = vpack.c.bf16 %v1468, %v1467
    %v1527 = vpack.c.bf16 %v1470, %v1469
    %v1528 = vpack.c.bf16 %v1472, %v1471
    %v1529 = vpack.c.bf16 %v1474, %v1473
    %v1530 = vpack.c.bf16 %v1476, %v1475
    %v1531 = vpack.c.bf16 %v1478, %v1477
    %v1532 = vpack.c.bf16 %v1480, %v1479
    %v1533 = vpack.c.bf16 %v1482, %v1481
    %v1534 = vpack.c.bf16 %v1484, %v1483
    %v1535 = vpack.c.bf16 %v1486, %v1485
    %v1536 = vpack.c.bf16 %v1488, %v1487
    %v1537 = vpack.c.bf16 %v1490, %v1489
    %v1538 = vpack.c.bf16 %v1492, %v1491
    %v1539 = vpack.c.bf16 %v1494, %v1493
    %v1540 = vpack.c.bf16 %v1496, %v1495
    %v1541 = vpack.c.bf16 %v1498, %v1497
    %v1542 = vpack.c.bf16 %v1500, %v1499
    %v1543 = vpack.c.bf16 %v1502, %v1501
    %v1544 = vpack.c.bf16 %v1503, %v1503
    %s1545 = scalar_lea.vmem %s2, 192
    %v1546 = vld [vmem:[%s1545] sm:$0xf]
    %v1547 = vld [vmem:[%s1545 + $0x4] sm:$0xf]
    %v1548 = vld [vmem:[%s1545 + $0x8] sm:$0xf]
    %v1549 = vld [vmem:[%s1545 + $0xc] sm:$0xf]
    %v1550 = vld [vmem:[%s1545 + $0x10] sm:$0xf]
    %v1551 = vld [vmem:[%s1545 + $0x14] sm:$0xf]
    %v1552 = vld [vmem:[%s1545 + $0x18] sm:$0xf]
    %v1553 = vld [vmem:[%s1545 + $0x1c] sm:$0xf]
    %v1554 = vld [vmem:[%s1545 + $0x20] sm:$0xf]
    %v1555 = vld [vmem:[%s1545 + $0x24] sm:$0xf]
    %v1556 = vld [vmem:[%s1545 + $0x28] sm:$0xf]
    %v1557 = vld [vmem:[%s1545 + $0x2c] sm:$0xf]
    %v1558 = vld [vmem:[%s1545 + $0x30] sm:$0xf]
    %v1559 = vld [vmem:[%s1545 + $0x34] sm:$0xf]
    %v1560 = vld [vmem:[%s1545 + $0x38] sm:$0xf]
    %v1561 = vld [vmem:[%s1545 + $0x3c] sm:$0xf]
    %v1578 = vunpack.c.l.b16 %v1546
    %v1579 = vunpack.c.l.b16 %v1547
    %v1580 = vunpack.c.l.b16 %v1548
    %v1581 = vunpack.c.l.b16 %v1549
    %v1582 = vunpack.c.l.b16 %v1550
    %v1583 = vunpack.c.l.b16 %v1551
    %v1584 = vunpack.c.l.b16 %v1552
    %v1585 = vunpack.c.l.b16 %v1553
    %v1586 = vunpack.c.l.b16 %v1554
    %v1587 = vunpack.c.l.b16 %v1555
    %v1588 = vunpack.c.l.b16 %v1556
    %v1589 = vunpack.c.l.b16 %v1557
    %v1590 = vunpack.c.l.b16 %v1558
    %v1591 = vunpack.c.l.b16 %v1559
    %v1592 = vunpack.c.l.b16 %v1560
    %v1593 = vunpack.c.l.b16 %v1561
    %v1594 = vpack.c.b16 %v1579, %v1578
    %v1595 = vpack.c.b16 %v1581, %v1580
    %v1596 = vpack.c.b16 %v1583, %v1582
    %v1597 = vpack.c.b16 %v1585, %v1584
    %v1598 = vpack.c.b16 %v1587, %v1586
    %v1599 = vpack.c.b16 %v1589, %v1588
    %v1600 = vpack.c.b16 %v1591, %v1590
    %v1601 = vpack.c.b16 %v1593, %v1592
    %1610 = vmatpush.bf16.msra.mxu0 %v1601
    %1611 = vmatpush.bf16.msra.mxu0 %v1600
    %1612 = vmatpush.bf16.msra.mxu0 %v1599
    %1613 = vmatpush.bf16.msra.mxu0 %v1598
    %1614 = vmatpush.bf16.msra.mxu0 %v1597
    %1615 = vmatpush.bf16.msra.mxu0 %v1596
    %1616 = vmatpush.bf16.msra.mxu0 %v1595
    %1617 = vmatpush.bf16.msra.mxu0 %v1594
    %1618 = vmatmul.bf16.gmra.mxu0 %v1504
    %v1619 = vpop.f32.mrf.mxu0
    %v1620 = vadd.f32 0.0, %v1619
    %v1621 = vpop.f32.mrf.mxu0
    %v1622 = vadd.f32 0.0, %v1621
    %1623 = vmatmul.bf16.gmra.mxu0 %v1505
    %v1624 = vpop.f32.mrf.mxu0
    %v1625 = vadd.f32 0.0, %v1624
    %v1626 = vpop.f32.mrf.mxu0
    %v1627 = vadd.f32 0.0, %v1626
    %1628 = vmatmul.bf16.gmra.mxu0 %v1506
    %v1629 = vpop.f32.mrf.mxu0
    %v1630 = vadd.f32 0.0, %v1629
    %v1631 = vpop.f32.mrf.mxu0
    %v1632 = vadd.f32 0.0, %v1631
    %1633 = vmatmul.bf16.gmra.mxu0 %v1507
    %v1634 = vpop.f32.mrf.mxu0
    %v1635 = vadd.f32 0.0, %v1634
    %v1636 = vpop.f32.mrf.mxu0
    %v1637 = vadd.f32 0.0, %v1636
    %1638 = vmatmul.bf16.gmra.mxu0 %v1508
    %v1639 = vpop.f32.mrf.mxu0
    %v1640 = vadd.f32 0.0, %v1639
    %v1641 = vpop.f32.mrf.mxu0
    %v1642 = vadd.f32 0.0, %v1641
    %1643 = vmatmul.bf16.gmra.mxu0 %v1509
    %v1644 = vpop.f32.mrf.mxu0
    %v1645 = vadd.f32 0.0, %v1644
    %v1646 = vpop.f32.mrf.mxu0
    %v1647 = vadd.f32 0.0, %v1646
    %1648 = vmatmul.bf16.gmra.mxu0 %v1510
    %v1649 = vpop.f32.mrf.mxu0
    %v1650 = vadd.f32 0.0, %v1649
    %v1651 = vpop.f32.mrf.mxu0
    %v1652 = vadd.f32 0.0, %v1651
    %1653 = vmatmul.bf16.gmra.mxu0 %v1511
    %v1654 = vpop.f32.mrf.mxu0
    %v1655 = vadd.f32 0.0, %v1654
    %v1656 = vpop.f32.mrf.mxu0
    %v1657 = vadd.f32 0.0, %v1656
    %1658 = vmatmul.bf16.gmra.mxu0 %v1512
    %v1659 = vpop.f32.mrf.mxu0
    %v1660 = vadd.f32 0.0, %v1659
    %v1661 = vpop.f32.mrf.mxu0
    %v1662 = vadd.f32 0.0, %v1661
    %1663 = vmatmul.bf16.gmra.mxu0 %v1513
    %v1664 = vpop.f32.mrf.mxu0
    %v1665 = vadd.f32 0.0, %v1664
    %v1666 = vpop.f32.mrf.mxu0
    %v1667 = vadd.f32 0.0, %v1666
    %1668 = vmatmul.bf16.gmra.mxu0 %v1514
    %v1669 = vpop.f32.mrf.mxu0
    %v1670 = vadd.f32 0.0, %v1669
    %v1671 = vpop.f32.mrf.mxu0
    %v1672 = vadd.f32 0.0, %v1671
    %1673 = vmatmul.bf16.gmra.mxu0 %v1515
    %v1674 = vpop.f32.mrf.mxu0
    %v1675 = vadd.f32 0.0, %v1674
    %v1676 = vpop.f32.mrf.mxu0
    %v1677 = vadd.f32 0.0, %v1676
    %1678 = vmatmul.bf16.gmra.mxu0 %v1516
    %v1679 = vpop.f32.mrf.mxu0
    %v1680 = vadd.f32 0.0, %v1679
    %v1681 = vpop.f32.mrf.mxu0
    %v1682 = vadd.f32 0.0, %v1681
    %1683 = vmatmul.bf16.gmra.mxu0 %v1517
    %v1684 = vpop.f32.mrf.mxu0
    %v1685 = vadd.f32 0.0, %v1684
    %v1686 = vpop.f32.mrf.mxu0
    %v1687 = vadd.f32 0.0, %v1686
    %1688 = vmatmul.bf16.gmra.mxu0 %v1518
    %v1689 = vpop.f32.mrf.mxu0
    %v1690 = vadd.f32 0.0, %v1689
    %v1691 = vpop.f32.mrf.mxu0
    %v1692 = vadd.f32 0.0, %v1691
    %1693 = vmatmul.bf16.gmra.mxu0 %v1519
    %v1694 = vpop.f32.mrf.mxu0
    %v1695 = vadd.f32 0.0, %v1694
    %v1696 = vpop.f32.mrf.mxu0
    %v1697 = vadd.f32 0.0, %v1696
    %1698 = vmatmul.bf16.gmra.mxu0 %v1520
    %v1699 = vpop.f32.mrf.mxu0
    %v1700 = vadd.f32 0.0, %v1699
    %v1701 = vpop.f32.mrf.mxu0
    %v1702 = vadd.f32 0.0, %v1701
    %1703 = vmatmul.bf16.gmra.mxu0 %v1521
    %v1704 = vpop.f32.mrf.mxu0
    %v1705 = vadd.f32 0.0, %v1704
    %v1706 = vpop.f32.mrf.mxu0
    %v1707 = vadd.f32 0.0, %v1706
    %1708 = vmatmul.bf16.gmra.mxu0 %v1522
    %v1709 = vpop.f32.mrf.mxu0
    %v1710 = vadd.f32 0.0, %v1709
    %v1711 = vpop.f32.mrf.mxu0
    %v1712 = vadd.f32 0.0, %v1711
    %1713 = vmatmul.bf16.gmra.mxu0 %v1523
    %v1714 = vpop.f32.mrf.mxu0
    %v1715 = vadd.f32 0.0, %v1714
    %v1716 = vpop.f32.mrf.mxu0
    %v1717 = vadd.f32 0.0, %v1716
    %1718 = vmatmul.bf16.gmra.mxu0 %v1524
    %v1719 = vpop.f32.mrf.mxu0
    %v1720 = vadd.f32 0.0, %v1719
    %v1721 = vpop.f32.mrf.mxu0
    %v1722 = vadd.f32 0.0, %v1721
    %1723 = vmatmul.bf16.gmra.mxu0 %v1525
    %v1724 = vpop.f32.mrf.mxu0
    %v1725 = vadd.f32 0.0, %v1724
    %v1726 = vpop.f32.mrf.mxu0
    %v1727 = vadd.f32 0.0, %v1726
    %1728 = vmatmul.bf16.gmra.mxu0 %v1526
    %v1729 = vpop.f32.mrf.mxu0
    %v1730 = vadd.f32 0.0, %v1729
    %v1731 = vpop.f32.mrf.mxu0
    %v1732 = vadd.f32 0.0, %v1731
    %1733 = vmatmul.bf16.gmra.mxu0 %v1527
    %v1734 = vpop.f32.mrf.mxu0
    %v1735 = vadd.f32 0.0, %v1734
    %v1736 = vpop.f32.mrf.mxu0
    %v1737 = vadd.f32 0.0, %v1736
    %1738 = vmatmul.bf16.gmra.mxu0 %v1528
    %v1739 = vpop.f32.mrf.mxu0
    %v1740 = vadd.f32 0.0, %v1739
    %v1741 = vpop.f32.mrf.mxu0
    %v1742 = vadd.f32 0.0, %v1741
    %1743 = vmatmul.bf16.gmra.mxu0 %v1529
    %v1744 = vpop.f32.mrf.mxu0
    %v1745 = vadd.f32 0.0, %v1744
    %v1746 = vpop.f32.mrf.mxu0
    %v1747 = vadd.f32 0.0, %v1746
    %1748 = vmatmul.bf16.gmra.mxu0 %v1530
    %v1749 = vpop.f32.mrf.mxu0
    %v1750 = vadd.f32 0.0, %v1749
    %v1751 = vpop.f32.mrf.mxu0
    %v1752 = vadd.f32 0.0, %v1751
    %1753 = vmatmul.bf16.gmra.mxu0 %v1531
    %v1754 = vpop.f32.mrf.mxu0
    %v1755 = vadd.f32 0.0, %v1754
    %v1756 = vpop.f32.mrf.mxu0
    %v1757 = vadd.f32 0.0, %v1756
    %1758 = vmatmul.bf16.gmra.mxu0 %v1532
    %v1759 = vpop.f32.mrf.mxu0
    %v1760 = vadd.f32 0.0, %v1759
    %v1761 = vpop.f32.mrf.mxu0
    %v1762 = vadd.f32 0.0, %v1761
    %1763 = vmatmul.bf16.gmra.mxu0 %v1533
    %v1764 = vpop.f32.mrf.mxu0
    %v1765 = vadd.f32 0.0, %v1764
    %v1766 = vpop.f32.mrf.mxu0
    %v1767 = vadd.f32 0.0, %v1766
    %1768 = vmatmul.bf16.gmra.mxu0 %v1534
    %v1769 = vpop.f32.mrf.mxu0
    %v1770 = vadd.f32 0.0, %v1769
    %v1771 = vpop.f32.mrf.mxu0
    %v1772 = vadd.f32 0.0, %v1771
    %1773 = vmatmul.bf16.gmra.mxu0 %v1535
    %v1774 = vpop.f32.mrf.mxu0
    %v1775 = vadd.f32 0.0, %v1774
    %v1776 = vpop.f32.mrf.mxu0
    %v1777 = vadd.f32 0.0, %v1776
    %1778 = vmatmul.bf16.gmra.mxu0 %v1536
    %v1779 = vpop.f32.mrf.mxu0
    %v1780 = vadd.f32 0.0, %v1779
    %v1781 = vpop.f32.mrf.mxu0
    %v1782 = vadd.f32 0.0, %v1781
    %1783 = vmatmul.bf16.gmra.mxu0 %v1537
    %v1784 = vpop.f32.mrf.mxu0
    %v1785 = vadd.f32 0.0, %v1784
    %v1786 = vpop.f32.mrf.mxu0
    %v1787 = vadd.f32 0.0, %v1786
    %1788 = vmatmul.bf16.gmra.mxu0 %v1538
    %v1789 = vpop.f32.mrf.mxu0
    %v1790 = vadd.f32 0.0, %v1789
    %v1791 = vpop.f32.mrf.mxu0
    %v1792 = vadd.f32 0.0, %v1791
    %1793 = vmatmul.bf16.gmra.mxu0 %v1539
    %v1794 = vpop.f32.mrf.mxu0
    %v1795 = vadd.f32 0.0, %v1794
    %v1796 = vpop.f32.mrf.mxu0
    %v1797 = vadd.f32 0.0, %v1796
    %1798 = vmatmul.bf16.gmra.mxu0 %v1540
    %v1799 = vpop.f32.mrf.mxu0
    %v1800 = vadd.f32 0.0, %v1799
    %v1801 = vpop.f32.mrf.mxu0
    %v1802 = vadd.f32 0.0, %v1801
    %1803 = vmatmul.bf16.gmra.mxu0 %v1541
    %v1804 = vpop.f32.mrf.mxu0
    %v1805 = vadd.f32 0.0, %v1804
    %v1806 = vpop.f32.mrf.mxu0
    %v1807 = vadd.f32 0.0, %v1806
    %1808 = vmatmul.bf16.gmra.mxu0 %v1542
    %v1809 = vpop.f32.mrf.mxu0
    %v1810 = vadd.f32 0.0, %v1809
    %v1811 = vpop.f32.mrf.mxu0
    %v1812 = vadd.f32 0.0, %v1811
    %1813 = vmatmul.bf16.gmra.mxu0 %v1543
    %v1814 = vpop.f32.mrf.mxu0
    %v1815 = vadd.f32 0.0, %v1814
    %v1816 = vpop.f32.mrf.mxu0
    %v1817 = vadd.f32 0.0, %v1816
    %1818 = vmatmul.bf16.gmra.mxu0 %v1544
    %v1819 = vpop.f32.mrf.mxu0
    %v1820 = vadd.f32 0.0, %v1819
    %v1821 = vpop.f32.mrf.mxu0
    %1822 = vdwg.mxu0
    %v1823 = vadd.f32 %v1342, %v1620
    %v1824 = vadd.f32 %v1343, %v1622
    %v1825 = vadd.f32 %v1344, %v1625
    %v1826 = vadd.f32 %v1345, %v1627
    %v1827 = vadd.f32 %v1346, %v1630
    %v1828 = vadd.f32 %v1347, %v1632
    %v1829 = vadd.f32 %v1348, %v1635
    %v1830 = vadd.f32 %v1349, %v1637
    %v1831 = vadd.f32 %v1350, %v1640
    %v1832 = vadd.f32 %v1351, %v1642
    %v1833 = vadd.f32 %v1352, %v1645
    %v1834 = vadd.f32 %v1353, %v1647
    %v1835 = vadd.f32 %v1354, %v1650
    %v1836 = vadd.f32 %v1355, %v1652
    %v1837 = vadd.f32 %v1356, %v1655
    %v1838 = vadd.f32 %v1357, %v1657
    %v1839 = vadd.f32 %v1358, %v1660
    %v1840 = vadd.f32 %v1359, %v1662
    %v1841 = vadd.f32 %v1360, %v1665
    %v1842 = vadd.f32 %v1361, %v1667
    %v1843 = vadd.f32 %v1362, %v1670
    %v1844 = vadd.f32 %v1363, %v1672
    %v1845 = vadd.f32 %v1364, %v1675
    %v1846 = vadd.f32 %v1365, %v1677
    %v1847 = vadd.f32 %v1366, %v1680
    %v1848 = vadd.f32 %v1367, %v1682
    %v1849 = vadd.f32 %v1368, %v1685
    %v1850 = vadd.f32 %v1369, %v1687
    %v1851 = vadd.f32 %v1370, %v1690
    %v1852 = vadd.f32 %v1371, %v1692
    %v1853 = vadd.f32 %v1372, %v1695
    %v1854 = vadd.f32 %v1373, %v1697
    %v1855 = vadd.f32 %v1374, %v1700
    %v1856 = vadd.f32 %v1375, %v1702
    %v1857 = vadd.f32 %v1376, %v1705
    %v1858 = vadd.f32 %v1377, %v1707
    %v1859 = vadd.f32 %v1378, %v1710
    %v1860 = vadd.f32 %v1379, %v1712
    %v1861 = vadd.f32 %v1380, %v1715
    %v1862 = vadd.f32 %v1381, %v1717
    %v1863 = vadd.f32 %v1382, %v1720
    %v1864 = vadd.f32 %v1383, %v1722
    %v1865 = vadd.f32 %v1384, %v1725
    %v1866 = vadd.f32 %v1385, %v1727
    %v1867 = vadd.f32 %v1386, %v1730
    %v1868 = vadd.f32 %v1387, %v1732
    %v1869 = vadd.f32 %v1388, %v1735
    %v1870 = vadd.f32 %v1389, %v1737
    %v1871 = vadd.f32 %v1390, %v1740
    %v1872 = vadd.f32 %v1391, %v1742
    %v1873 = vadd.f32 %v1392, %v1745
    %v1874 = vadd.f32 %v1393, %v1747
    %v1875 = vadd.f32 %v1394, %v1750
    %v1876 = vadd.f32 %v1395, %v1752
    %v1877 = vadd.f32 %v1396, %v1755
    %v1878 = vadd.f32 %v1397, %v1757
    %v1879 = vadd.f32 %v1398, %v1760
    %v1880 = vadd.f32 %v1399, %v1762
    %v1881 = vadd.f32 %v1400, %v1765
    %v1882 = vadd.f32 %v1401, %v1767
    %v1883 = vadd.f32 %v1402, %v1770
    %v1884 = vadd.f32 %v1403, %v1772
    %v1885 = vadd.f32 %v1404, %v1775
    %v1886 = vadd.f32 %v1405, %v1777
    %v1887 = vadd.f32 %v1406, %v1780
    %v1888 = vadd.f32 %v1407, %v1782
    %v1889 = vadd.f32 %v1408, %v1785
    %v1890 = vadd.f32 %v1409, %v1787
    %v1891 = vadd.f32 %v1410, %v1790
    %v1892 = vadd.f32 %v1411, %v1792
    %v1893 = vadd.f32 %v1412, %v1795
    %v1894 = vadd.f32 %v1413, %v1797
    %v1895 = vadd.f32 %v1414, %v1800
    %v1896 = vadd.f32 %v1415, %v1802
    %v1897 = vadd.f32 %v1416, %v1805
    %v1898 = vadd.f32 %v1417, %v1807
    %v1899 = vadd.f32 %v1418, %v1810
    %v1900 = vadd.f32 %v1419, %v1812
    %v1901 = vadd.f32 %v1420, %v1815
    %v1902 = vadd.f32 %v1421, %v1817
    %v1903 = vadd.f32 %v1422, %v1820
    %v1904 = vld [vmem:[#allocation3 + $0x18] sm:$0xff]
    %v1905 = vld [vmem:[#allocation3 + $0x20] sm:$0xff]
    %v1906 = vld [vmem:[#allocation3 + $0x28] sm:$0xff]
    %v1907 = vld [vmem:[#allocation3 + $0x30] sm:$0xff]
    %v1908 = vld [vmem:[#allocation3 + $0x38] sm:$0xff]
    %v1909 = vld [vmem:[#allocation3 + $0x40] sm:$0xff]
    %v1910 = vld [vmem:[#allocation3 + $0x48] sm:$0xff]
    %v1911 = vld [vmem:[#allocation3 + $0x50] sm:$0xff]
    %v1912 = vld [vmem:[#allocation3 + $0x58] sm:$0xff]
    %v1913 = vld [vmem:[#allocation3 + $0x60] sm:$0xff]
    %v1914 = vld [vmem:[#allocation3 + $0x68] sm:$0xff]
    %v1915 = vld [vmem:[#allocation3 + $0x70] sm:$0xff]
    %v1916 = vld [vmem:[#allocation3 + $0x78] sm:$0xff]
    %v1917 = vld [vmem:[#allocation3 + $0x80] sm:$0xff]
    %v1918 = vld [vmem:[#allocation3 + $0x88] sm:$0xff]
    %v1919 = vld [vmem:[#allocation3 + $0x90] sm:$0xff]
    %v1920 = vld [vmem:[#allocation3 + $0x98] sm:$0xff]
    %v1921 = vld [vmem:[#allocation3 + $0xa0] sm:$0xff]
    %v1922 = vld [vmem:[#allocation3 + $0xa8] sm:$0xff]
    %v1923 = vld [vmem:[#allocation3 + $0xb0] sm:$0xff]
    %v1924 = vld [vmem:[#allocation3 + $0xb8] sm:$0xff]
    %v1925 = vld [vmem:[#allocation3 + $0xc0] sm:$0xff]
    %v1926 = vld [vmem:[#allocation3 + $0xc8] sm:$0xff]
    %v1927 = vld [vmem:[#allocation3 + $0xd0] sm:$0xff]
    %v1928 = vld [vmem:[#allocation3 + $0xd8] sm:$0xff]
    %v1929 = vld [vmem:[#allocation3 + $0xe0] sm:$0xff]
    %v1930 = vld [vmem:[#allocation3 + $0xe8] sm:$0xff]
    %v1931 = vld [vmem:[#allocation3 + $0xf0] sm:$0xff]
    %v1932 = vld [vmem:[#allocation3 + $0xf8] sm:$0xff]
    %v1933 = vld [vmem:[#allocation3 + $0x100] sm:$0xff]
    %v1934 = vld [vmem:[#allocation3 + $0x108] sm:$0xff]
    %v1935 = vld [vmem:[#allocation3 + $0x110] sm:$0xff]
    %v1936 = vld [vmem:[#allocation3 + $0x118] sm:$0xff]
    %v1937 = vld [vmem:[#allocation3 + $0x120] sm:$0xff]
    %v1938 = vld [vmem:[#allocation3 + $0x128] sm:$0xff]
    %v1939 = vld [vmem:[#allocation3 + $0x130] sm:$0xff]
    %v1940 = vld [vmem:[#allocation3 + $0x138] sm:$0xff]
    %v1941 = vld [vmem:[#allocation3 + $0x140] sm:$0xff]
    %v1942 = vld [vmem:[#allocation3 + $0x148] sm:$0xff]
    %v1943 = vld [vmem:[#allocation3 + $0x150] sm:$0xff]
    %v1944 = vld [vmem:[#allocation3 + $0x158] sm:$0xff]
    %v1945 = vld [vmem:[#allocation3 + $0x160] sm:$0xff]
    %v1946 = vld [vmem:[#allocation3 + $0x168] sm:$0xff]
    %v1947 = vld [vmem:[#allocation3 + $0x170] sm:$0xff]
    %v1948 = vld [vmem:[#allocation3 + $0x178] sm:$0xff]
    %v1949 = vld [vmem:[#allocation3 + $0x180] sm:$0xff]
    %v1950 = vld [vmem:[#allocation3 + $0x188] sm:$0xff]
    %v1951 = vld [vmem:[#allocation3 + $0x190] sm:$0xff]
    %v1952 = vld [vmem:[#allocation3 + $0x198] sm:$0xff]
    %v1953 = vld [vmem:[#allocation3 + $0x1a0] sm:$0xff]
    %v1954 = vld [vmem:[#allocation3 + $0x1a8] sm:$0xff]
    %v1955 = vld [vmem:[#allocation3 + $0x1b0] sm:$0xff]
    %v1956 = vld [vmem:[#allocation3 + $0x1b8] sm:$0xff]
    %v1957 = vld [vmem:[#allocation3 + $0x1c0] sm:$0xff]
    %v1958 = vld [vmem:[#allocation3 + $0x1c8] sm:$0xff]
    %v1959 = vld [vmem:[#allocation3 + $0x1d0] sm:$0xff]
    %v1960 = vld [vmem:[#allocation3 + $0x1d8] sm:$0xff]
    %v1961 = vld [vmem:[#allocation3 + $0x1e0] sm:$0xff]
    %v1962 = vld [vmem:[#allocation3 + $0x1e8] sm:$0xff]
    %v1963 = vld [vmem:[#allocation3 + $0x1f0] sm:$0xff]
    %v1964 = vld [vmem:[#allocation3 + $0x1f8] sm:$0xff]
    %v1965 = vld [vmem:[#allocation3 + $0x200] sm:$0xff]
    %v1966 = vld [vmem:[#allocation3 + $0x208] sm:$0xff]
    %v1967 = vld [vmem:[#allocation3 + $0x210] sm:$0xff]
    %v1968 = vld [vmem:[#allocation3 + $0x218] sm:$0xff]
    %v1969 = vld [vmem:[#allocation3 + $0x220] sm:$0xff]
    %v1970 = vld [vmem:[#allocation3 + $0x228] sm:$0xff]
    %v1971 = vld [vmem:[#allocation3 + $0x230] sm:$0xff]
    %v1972 = vld [vmem:[#allocation3 + $0x238] sm:$0xff]
    %v1973 = vld [vmem:[#allocation3 + $0x240] sm:$0xff]
    %v1974 = vld [vmem:[#allocation3 + $0x248] sm:$0xff]
    %v1975 = vld [vmem:[#allocation3 + $0x250] sm:$0xff]
    %v1976 = vld [vmem:[#allocation3 + $0x258] sm:$0xff]
    %v1977 = vld [vmem:[#allocation3 + $0x260] sm:$0xff]
    %v1978 = vld [vmem:[#allocation3 + $0x268] sm:$0xff]
    %v1979 = vld [vmem:[#allocation3 + $0x270] sm:$0xff]
    %v1980 = vld [vmem:[#allocation3 + $0x278] sm:$0xff]
    %v1981 = vld [vmem:[#allocation3 + $0x280] sm:$0xff]
    %v1982 = vld [vmem:[#allocation3 + $0x288] sm:$0xff]
    %v1983 = vld [vmem:[#allocation3 + $0x290] sm:$0xff]
    %v1984 = vld [vmem:[#allocation3 + $0x298] sm:$0xff]
    %v1985 = vpack.c.bf16 %v1905, %v1904
    %v1986 = vpack.c.bf16 %v1907, %v1906
    %v1987 = vpack.c.bf16 %v1909, %v1908
    %v1988 = vpack.c.bf16 %v1911, %v1910
    %v1989 = vpack.c.bf16 %v1913, %v1912
    %v1990 = vpack.c.bf16 %v1915, %v1914
    %v1991 = vpack.c.bf16 %v1917, %v1916
    %v1992 = vpack.c.bf16 %v1919, %v1918
    %v1993 = vpack.c.bf16 %v1921, %v1920
    %v1994 = vpack.c.bf16 %v1923, %v1922
    %v1995 = vpack.c.bf16 %v1925, %v1924
    %v1996 = vpack.c.bf16 %v1927, %v1926
    %v1997 = vpack.c.bf16 %v1929, %v1928
    %v1998 = vpack.c.bf16 %v1931, %v1930
    %v1999 = vpack.c.bf16 %v1933, %v1932
    %v2000 = vpack.c.bf16 %v1935, %v1934
    %v2001 = vpack.c.bf16 %v1937, %v1936
    %v2002 = vpack.c.bf16 %v1939, %v1938
    %v2003 = vpack.c.bf16 %v1941, %v1940
    %v2004 = vpack.c.bf16 %v1943, %v1942
    %v2005 = vpack.c.bf16 %v1945, %v1944
    %v2006 = vpack.c.bf16 %v1947, %v1946
    %v2007 = vpack.c.bf16 %v1949, %v1948
    %v2008 = vpack.c.bf16 %v1951, %v1950
    %v2009 = vpack.c.bf16 %v1953, %v1952
    %v2010 = vpack.c.bf16 %v1955, %v1954
    %v2011 = vpack.c.bf16 %v1957, %v1956
    %v2012 = vpack.c.bf16 %v1959, %v1958
    %v2013 = vpack.c.bf16 %v1961, %v1960
    %v2014 = vpack.c.bf16 %v1963, %v1962
    %v2015 = vpack.c.bf16 %v1965, %v1964
    %v2016 = vpack.c.bf16 %v1967, %v1966
    %v2017 = vpack.c.bf16 %v1969, %v1968
    %v2018 = vpack.c.bf16 %v1971, %v1970
    %v2019 = vpack.c.bf16 %v1973, %v1972
    %v2020 = vpack.c.bf16 %v1975, %v1974
    %v2021 = vpack.c.bf16 %v1977, %v1976
    %v2022 = vpack.c.bf16 %v1979, %v1978
    %v2023 = vpack.c.bf16 %v1981, %v1980
    %v2024 = vpack.c.bf16 %v1983, %v1982
    %v2025 = vpack.c.bf16 %v1984, %v1984
    %s2026 = scalar_lea.vmem %s2, 256
    %v2027 = vld [vmem:[%s2026] sm:$0xf]
    %v2028 = vld [vmem:[%s2026 + $0x4] sm:$0xf]
    %v2029 = vld [vmem:[%s2026 + $0x8] sm:$0xf]
    %v2030 = vld [vmem:[%s2026 + $0xc] sm:$0xf]
    %v2031 = vld [vmem:[%s2026 + $0x10] sm:$0xf]
    %v2032 = vld [vmem:[%s2026 + $0x14] sm:$0xf]
    %v2033 = vld [vmem:[%s2026 + $0x18] sm:$0xf]
    %v2034 = vld [vmem:[%s2026 + $0x1c] sm:$0xf]
    %v2035 = vld [vmem:[%s2026 + $0x20] sm:$0xf]
    %v2036 = vld [vmem:[%s2026 + $0x24] sm:$0xf]
    %v2037 = vld [vmem:[%s2026 + $0x28] sm:$0xf]
    %v2038 = vld [vmem:[%s2026 + $0x2c] sm:$0xf]
    %v2039 = vld [vmem:[%s2026 + $0x30] sm:$0xf]
    %v2040 = vld [vmem:[%s2026 + $0x34] sm:$0xf]
    %v2041 = vld [vmem:[%s2026 + $0x38] sm:$0xf]
    %v2042 = vld [vmem:[%s2026 + $0x3c] sm:$0xf]
    %v2059 = vunpack.c.l.b16 %v2027
    %v2060 = vunpack.c.l.b16 %v2028
    %v2061 = vunpack.c.l.b16 %v2029
    %v2062 = vunpack.c.l.b16 %v2030
    %v2063 = vunpack.c.l.b16 %v2031
    %v2064 = vunpack.c.l.b16 %v2032
    %v2065 = vunpack.c.l.b16 %v2033
    %v2066 = vunpack.c.l.b16 %v2034
    %v2067 = vunpack.c.l.b16 %v2035
    %v2068 = vunpack.c.l.b16 %v2036
    %v2069 = vunpack.c.l.b16 %v2037
    %v2070 = vunpack.c.l.b16 %v2038
    %v2071 = vunpack.c.l.b16 %v2039
    %v2072 = vunpack.c.l.b16 %v2040
    %v2073 = vunpack.c.l.b16 %v2041
    %v2074 = vunpack.c.l.b16 %v2042
    %v2075 = vpack.c.b16 %v2060, %v2059
    %v2076 = vpack.c.b16 %v2062, %v2061
    %v2077 = vpack.c.b16 %v2064, %v2063
    %v2078 = vpack.c.b16 %v2066, %v2065
    %v2079 = vpack.c.b16 %v2068, %v2067
    %v2080 = vpack.c.b16 %v2070, %v2069
    %v2081 = vpack.c.b16 %v2072, %v2071
    %v2082 = vpack.c.b16 %v2074, %v2073
    %2091 = vmatpush.bf16.msra.mxu0 %v2082
    %2092 = vmatpush.bf16.msra.mxu0 %v2081
    %2093 = vmatpush.bf16.msra.mxu0 %v2080
    %2094 = vmatpush.bf16.msra.mxu0 %v2079
    %2095 = vmatpush.bf16.msra.mxu0 %v2078
    %2096 = vmatpush.bf16.msra.mxu0 %v2077
    %2097 = vmatpush.bf16.msra.mxu0 %v2076
    %2098 = vmatpush.bf16.msra.mxu0 %v2075
    %2099 = vmatmul.bf16.gmra.mxu0 %v1985
    %v2100 = vpop.f32.mrf.mxu0
    %v2101 = vadd.f32 0.0, %v2100
    %v2102 = vpop.f32.mrf.mxu0
    %v2103 = vadd.f32 0.0, %v2102
    %2104 = vmatmul.bf16.gmra.mxu0 %v1986
    %v2105 = vpop.f32.mrf.mxu0
    %v2106 = vadd.f32 0.0, %v2105
    %v2107 = vpop.f32.mrf.mxu0
    %v2108 = vadd.f32 0.0, %v2107
    %2109 = vmatmul.bf16.gmra.mxu0 %v1987
    %v2110 = vpop.f32.mrf.mxu0
    %v2111 = vadd.f32 0.0, %v2110
    %v2112 = vpop.f32.mrf.mxu0
    %v2113 = vadd.f32 0.0, %v2112
    %2114 = vmatmul.bf16.gmra.mxu0 %v1988
    %v2115 = vpop.f32.mrf.mxu0
    %v2116 = vadd.f32 0.0, %v2115
    %v2117 = vpop.f32.mrf.mxu0
    %v2118 = vadd.f32 0.0, %v2117
    %2119 = vmatmul.bf16.gmra.mxu0 %v1989
    %v2120 = vpop.f32.mrf.mxu0
    %v2121 = vadd.f32 0.0, %v2120
    %v2122 = vpop.f32.mrf.mxu0
    %v2123 = vadd.f32 0.0, %v2122
    %2124 = vmatmul.bf16.gmra.mxu0 %v1990
    %v2125 = vpop.f32.mrf.mxu0
    %v2126 = vadd.f32 0.0, %v2125
    %v2127 = vpop.f32.mrf.mxu0
    %v2128 = vadd.f32 0.0, %v2127
    %2129 = vmatmul.bf16.gmra.mxu0 %v1991
    %v2130 = vpop.f32.mrf.mxu0
    %v2131 = vadd.f32 0.0, %v2130
    %v2132 = vpop.f32.mrf.mxu0
    %v2133 = vadd.f32 0.0, %v2132
    %2134 = vmatmul.bf16.gmra.mxu0 %v1992
    %v2135 = vpop.f32.mrf.mxu0
    %v2136 = vadd.f32 0.0, %v2135
    %v2137 = vpop.f32.mrf.mxu0
    %v2138 = vadd.f32 0.0, %v2137
    %2139 = vmatmul.bf16.gmra.mxu0 %v1993
    %v2140 = vpop.f32.mrf.mxu0
    %v2141 = vadd.f32 0.0, %v2140
    %v2142 = vpop.f32.mrf.mxu0
    %v2143 = vadd.f32 0.0, %v2142
    %2144 = vmatmul.bf16.gmra.mxu0 %v1994
    %v2145 = vpop.f32.mrf.mxu0
    %v2146 = vadd.f32 0.0, %v2145
    %v2147 = vpop.f32.mrf.mxu0
    %v2148 = vadd.f32 0.0, %v2147
    %2149 = vmatmul.bf16.gmra.mxu0 %v1995
    %v2150 = vpop.f32.mrf.mxu0
    %v2151 = vadd.f32 0.0, %v2150
    %v2152 = vpop.f32.mrf.mxu0
    %v2153 = vadd.f32 0.0, %v2152
    %2154 = vmatmul.bf16.gmra.mxu0 %v1996
    %v2155 = vpop.f32.mrf.mxu0
    %v2156 = vadd.f32 0.0, %v2155
    %v2157 = vpop.f32.mrf.mxu0
    %v2158 = vadd.f32 0.0, %v2157
    %2159 = vmatmul.bf16.gmra.mxu0 %v1997
    %v2160 = vpop.f32.mrf.mxu0
    %v2161 = vadd.f32 0.0, %v2160
    %v2162 = vpop.f32.mrf.mxu0
    %v2163 = vadd.f32 0.0, %v2162
    %2164 = vmatmul.bf16.gmra.mxu0 %v1998
    %v2165 = vpop.f32.mrf.mxu0
    %v2166 = vadd.f32 0.0, %v2165
    %v2167 = vpop.f32.mrf.mxu0
    %v2168 = vadd.f32 0.0, %v2167
    %2169 = vmatmul.bf16.gmra.mxu0 %v1999
    %v2170 = vpop.f32.mrf.mxu0
    %v2171 = vadd.f32 0.0, %v2170
    %v2172 = vpop.f32.mrf.mxu0
    %v2173 = vadd.f32 0.0, %v2172
    %2174 = vmatmul.bf16.gmra.mxu0 %v2000
    %v2175 = vpop.f32.mrf.mxu0
    %v2176 = vadd.f32 0.0, %v2175
    %v2177 = vpop.f32.mrf.mxu0
    %v2178 = vadd.f32 0.0, %v2177
    %2179 = vmatmul.bf16.gmra.mxu0 %v2001
    %v2180 = vpop.f32.mrf.mxu0
    %v2181 = vadd.f32 0.0, %v2180
    %v2182 = vpop.f32.mrf.mxu0
    %v2183 = vadd.f32 0.0, %v2182
    %2184 = vmatmul.bf16.gmra.mxu0 %v2002
    %v2185 = vpop.f32.mrf.mxu0
    %v2186 = vadd.f32 0.0, %v2185
    %v2187 = vpop.f32.mrf.mxu0
    %v2188 = vadd.f32 0.0, %v2187
    %2189 = vmatmul.bf16.gmra.mxu0 %v2003
    %v2190 = vpop.f32.mrf.mxu0
    %v2191 = vadd.f32 0.0, %v2190
    %v2192 = vpop.f32.mrf.mxu0
    %v2193 = vadd.f32 0.0, %v2192
    %2194 = vmatmul.bf16.gmra.mxu0 %v2004
    %v2195 = vpop.f32.mrf.mxu0
    %v2196 = vadd.f32 0.0, %v2195
    %v2197 = vpop.f32.mrf.mxu0
    %v2198 = vadd.f32 0.0, %v2197
    %2199 = vmatmul.bf16.gmra.mxu0 %v2005
    %v2200 = vpop.f32.mrf.mxu0
    %v2201 = vadd.f32 0.0, %v2200
    %v2202 = vpop.f32.mrf.mxu0
    %v2203 = vadd.f32 0.0, %v2202
    %2204 = vmatmul.bf16.gmra.mxu0 %v2006
    %v2205 = vpop.f32.mrf.mxu0
    %v2206 = vadd.f32 0.0, %v2205
    %v2207 = vpop.f32.mrf.mxu0
    %v2208 = vadd.f32 0.0, %v2207
    %2209 = vmatmul.bf16.gmra.mxu0 %v2007
    %v2210 = vpop.f32.mrf.mxu0
    %v2211 = vadd.f32 0.0, %v2210
    %v2212 = vpop.f32.mrf.mxu0
    %v2213 = vadd.f32 0.0, %v2212
    %2214 = vmatmul.bf16.gmra.mxu0 %v2008
    %v2215 = vpop.f32.mrf.mxu0
    %v2216 = vadd.f32 0.0, %v2215
    %v2217 = vpop.f32.mrf.mxu0
    %v2218 = vadd.f32 0.0, %v2217
    %2219 = vmatmul.bf16.gmra.mxu0 %v2009
    %v2220 = vpop.f32.mrf.mxu0
    %v2221 = vadd.f32 0.0, %v2220
    %v2222 = vpop.f32.mrf.mxu0
    %v2223 = vadd.f32 0.0, %v2222
    %2224 = vmatmul.bf16.gmra.mxu0 %v2010
    %v2225 = vpop.f32.mrf.mxu0
    %v2226 = vadd.f32 0.0, %v2225
    %v2227 = vpop.f32.mrf.mxu0
    %v2228 = vadd.f32 0.0, %v2227
    %2229 = vmatmul.bf16.gmra.mxu0 %v2011
    %v2230 = vpop.f32.mrf.mxu0
    %v2231 = vadd.f32 0.0, %v2230
    %v2232 = vpop.f32.mrf.mxu0
    %v2233 = vadd.f32 0.0, %v2232
    %2234 = vmatmul.bf16.gmra.mxu0 %v2012
    %v2235 = vpop.f32.mrf.mxu0
    %v2236 = vadd.f32 0.0, %v2235
    %v2237 = vpop.f32.mrf.mxu0
    %v2238 = vadd.f32 0.0, %v2237
    %2239 = vmatmul.bf16.gmra.mxu0 %v2013
    %v2240 = vpop.f32.mrf.mxu0
    %v2241 = vadd.f32 0.0, %v2240
    %v2242 = vpop.f32.mrf.mxu0
    %v2243 = vadd.f32 0.0, %v2242
    %2244 = vmatmul.bf16.gmra.mxu0 %v2014
    %v2245 = vpop.f32.mrf.mxu0
    %v2246 = vadd.f32 0.0, %v2245
    %v2247 = vpop.f32.mrf.mxu0
    %v2248 = vadd.f32 0.0, %v2247
    %2249 = vmatmul.bf16.gmra.mxu0 %v2015
    %v2250 = vpop.f32.mrf.mxu0
    %v2251 = vadd.f32 0.0, %v2250
    %v2252 = vpop.f32.mrf.mxu0
    %v2253 = vadd.f32 0.0, %v2252
    %2254 = vmatmul.bf16.gmra.mxu0 %v2016
    %v2255 = vpop.f32.mrf.mxu0
    %v2256 = vadd.f32 0.0, %v2255
    %v2257 = vpop.f32.mrf.mxu0
    %v2258 = vadd.f32 0.0, %v2257
    %2259 = vmatmul.bf16.gmra.mxu0 %v2017
    %v2260 = vpop.f32.mrf.mxu0
    %v2261 = vadd.f32 0.0, %v2260
    %v2262 = vpop.f32.mrf.mxu0
    %v2263 = vadd.f32 0.0, %v2262
    %2264 = vmatmul.bf16.gmra.mxu0 %v2018
    %v2265 = vpop.f32.mrf.mxu0
    %v2266 = vadd.f32 0.0, %v2265
    %v2267 = vpop.f32.mrf.mxu0
    %v2268 = vadd.f32 0.0, %v2267
    %2269 = vmatmul.bf16.gmra.mxu0 %v2019
    %v2270 = vpop.f32.mrf.mxu0
    %v2271 = vadd.f32 0.0, %v2270
    %v2272 = vpop.f32.mrf.mxu0
    %v2273 = vadd.f32 0.0, %v2272
    %2274 = vmatmul.bf16.gmra.mxu0 %v2020
    %v2275 = vpop.f32.mrf.mxu0
    %v2276 = vadd.f32 0.0, %v2275
    %v2277 = vpop.f32.mrf.mxu0
    %v2278 = vadd.f32 0.0, %v2277
    %2279 = vmatmul.bf16.gmra.mxu0 %v2021
    %v2280 = vpop.f32.mrf.mxu0
    %v2281 = vadd.f32 0.0, %v2280
    %v2282 = vpop.f32.mrf.mxu0
    %v2283 = vadd.f32 0.0, %v2282
    %2284 = vmatmul.bf16.gmra.mxu0 %v2022
    %v2285 = vpop.f32.mrf.mxu0
    %v2286 = vadd.f32 0.0, %v2285
    %v2287 = vpop.f32.mrf.mxu0
    %v2288 = vadd.f32 0.0, %v2287
    %2289 = vmatmul.bf16.gmra.mxu0 %v2023
    %v2290 = vpop.f32.mrf.mxu0
    %v2291 = vadd.f32 0.0, %v2290
    %v2292 = vpop.f32.mrf.mxu0
    %v2293 = vadd.f32 0.0, %v2292
    %2294 = vmatmul.bf16.gmra.mxu0 %v2024
    %v2295 = vpop.f32.mrf.mxu0
    %v2296 = vadd.f32 0.0, %v2295
    %v2297 = vpop.f32.mrf.mxu0
    %v2298 = vadd.f32 0.0, %v2297
    %2299 = vmatmul.bf16.gmra.mxu0 %v2025
    %v2300 = vpop.f32.mrf.mxu0
    %v2301 = vadd.f32 0.0, %v2300
    %v2302 = vpop.f32.mrf.mxu0
    %2303 = vdwg.mxu0
    %v2304 = vadd.f32 %v1823, %v2101
    %v2305 = vadd.f32 %v1824, %v2103
    %v2306 = vadd.f32 %v1825, %v2106
    %v2307 = vadd.f32 %v1826, %v2108
    %v2308 = vadd.f32 %v1827, %v2111
    %v2309 = vadd.f32 %v1828, %v2113
    %v2310 = vadd.f32 %v1829, %v2116
    %v2311 = vadd.f32 %v1830, %v2118
    %v2312 = vadd.f32 %v1831, %v2121
    %v2313 = vadd.f32 %v1832, %v2123
    %v2314 = vadd.f32 %v1833, %v2126
    %v2315 = vadd.f32 %v1834, %v2128
    %v2316 = vadd.f32 %v1835, %v2131
    %v2317 = vadd.f32 %v1836, %v2133
    %v2318 = vadd.f32 %v1837, %v2136
    %v2319 = vadd.f32 %v1838, %v2138
    %v2320 = vadd.f32 %v1839, %v2141
    %v2321 = vadd.f32 %v1840, %v2143
    %v2322 = vadd.f32 %v1841, %v2146
    %v2323 = vadd.f32 %v1842, %v2148
    %v2324 = vadd.f32 %v1843, %v2151
    %v2325 = vadd.f32 %v1844, %v2153
    %v2326 = vadd.f32 %v1845, %v2156
    %v2327 = vadd.f32 %v1846, %v2158
    %v2328 = vadd.f32 %v1847, %v2161
    %v2329 = vadd.f32 %v1848, %v2163
    %v2330 = vadd.f32 %v1849, %v2166
    %v2331 = vadd.f32 %v1850, %v2168
    %v2332 = vadd.f32 %v1851, %v2171
    %v2333 = vadd.f32 %v1852, %v2173
    %v2334 = vadd.f32 %v1853, %v2176
    %v2335 = vadd.f32 %v1854, %v2178
    %v2336 = vadd.f32 %v1855, %v2181
    %v2337 = vadd.f32 %v1856, %v2183
    %v2338 = vadd.f32 %v1857, %v2186
    %v2339 = vadd.f32 %v1858, %v2188
    %v2340 = vadd.f32 %v1859, %v2191
    %v2341 = vadd.f32 %v1860, %v2193
    %v2342 = vadd.f32 %v1861, %v2196
    %v2343 = vadd.f32 %v1862, %v2198
    %v2344 = vadd.f32 %v1863, %v2201
    %v2345 = vadd.f32 %v1864, %v2203
    %v2346 = vadd.f32 %v1865, %v2206
    %v2347 = vadd.f32 %v1866, %v2208
    %v2348 = vadd.f32 %v1867, %v2211
    %v2349 = vadd.f32 %v1868, %v2213
    %v2350 = vadd.f32 %v1869, %v2216
    %v2351 = vadd.f32 %v1870, %v2218
    %v2352 = vadd.f32 %v1871, %v2221
    %v2353 = vadd.f32 %v1872, %v2223
    %v2354 = vadd.f32 %v1873, %v2226
    %v2355 = vadd.f32 %v1874, %v2228
    %v2356 = vadd.f32 %v1875, %v2231
    %v2357 = vadd.f32 %v1876, %v2233
    %v2358 = vadd.f32 %v1877, %v2236
    %v2359 = vadd.f32 %v1878, %v2238
    %v2360 = vadd.f32 %v1879, %v2241
    %v2361 = vadd.f32 %v1880, %v2243
    %v2362 = vadd.f32 %v1881, %v2246
    %v2363 = vadd.f32 %v1882, %v2248
    %v2364 = vadd.f32 %v1883, %v2251
    %v2365 = vadd.f32 %v1884, %v2253
    %v2366 = vadd.f32 %v1885, %v2256
    %v2367 = vadd.f32 %v1886, %v2258
    %v2368 = vadd.f32 %v1887, %v2261
    %v2369 = vadd.f32 %v1888, %v2263
    %v2370 = vadd.f32 %v1889, %v2266
    %v2371 = vadd.f32 %v1890, %v2268
    %v2372 = vadd.f32 %v1891, %v2271
    %v2373 = vadd.f32 %v1892, %v2273
    %v2374 = vadd.f32 %v1893, %v2276
    %v2375 = vadd.f32 %v1894, %v2278
    %v2376 = vadd.f32 %v1895, %v2281
    %v2377 = vadd.f32 %v1896, %v2283
    %v2378 = vadd.f32 %v1897, %v2286
    %v2379 = vadd.f32 %v1898, %v2288
    %v2380 = vadd.f32 %v1899, %v2291
    %v2381 = vadd.f32 %v1900, %v2293
    %v2382 = vadd.f32 %v1901, %v2296
    %v2383 = vadd.f32 %v1902, %v2298
    %v2384 = vadd.f32 %v1903, %v2301
    %v2385 = vld [vmem:[#allocation3 + $0x19] sm:$0xff]
    %v2386 = vld [vmem:[#allocation3 + $0x21] sm:$0xff]
    %v2387 = vld [vmem:[#allocation3 + $0x29] sm:$0xff]
    %v2388 = vld [vmem:[#allocation3 + $0x31] sm:$0xff]
    %v2389 = vld [vmem:[#allocation3 + $0x39] sm:$0xff]
    %v2390 = vld [vmem:[#allocation3 + $0x41] sm:$0xff]
    %v2391 = vld [vmem:[#allocation3 + $0x49] sm:$0xff]
    %v2392 = vld [vmem:[#allocation3 + $0x51] sm:$0xff]
    %v2393 = vld [vmem:[#allocation3 + $0x59] sm:$0xff]
    %v2394 = vld [vmem:[#allocation3 + $0x61] sm:$0xff]
    %v2395 = vld [vmem:[#allocation3 + $0x69] sm:$0xff]
    %v2396 = vld [vmem:[#allocation3 + $0x71] sm:$0xff]
    %v2397 = vld [vmem:[#allocation3 + $0x79] sm:$0xff]
    %v2398 = vld [vmem:[#allocation3 + $0x81] sm:$0xff]
    %v2399 = vld [vmem:[#allocation3 + $0x89] sm:$0xff]
    %v2400 = vld [vmem:[#allocation3 + $0x91] sm:$0xff]
    %v2401 = vld [vmem:[#allocation3 + $0x99] sm:$0xff]
    %v2402 = vld [vmem:[#allocation3 + $0xa1] sm:$0xff]
    %v2403 = vld [vmem:[#allocation3 + $0xa9] sm:$0xff]
    %v2404 = vld [vmem:[#allocation3 + $0xb1] sm:$0xff]
    %v2405 = vld [vmem:[#allocation3 + $0xb9] sm:$0xff]
    %v2406 = vld [vmem:[#allocation3 + $0xc1] sm:$0xff]
    %v2407 = vld [vmem:[#allocation3 + $0xc9] sm:$0xff]
    %v2408 = vld [vmem:[#allocation3 + $0xd1] sm:$0xff]
    %v2409 = vld [vmem:[#allocation3 + $0xd9] sm:$0xff]
    %v2410 = vld [vmem:[#allocation3 + $0xe1] sm:$0xff]
    %v2411 = vld [vmem:[#allocation3 + $0xe9] sm:$0xff]
    %v2412 = vld [vmem:[#allocation3 + $0xf1] sm:$0xff]
    %v2413 = vld [vmem:[#allocation3 + $0xf9] sm:$0xff]
    %v2414 = vld [vmem:[#allocation3 + $0x101] sm:$0xff]
    %v2415 = vld [vmem:[#allocation3 + $0x109] sm:$0xff]
    %v2416 = vld [vmem:[#allocation3 + $0x111] sm:$0xff]
    %v2417 = vld [vmem:[#allocation3 + $0x119] sm:$0xff]
    %v2418 = vld [vmem:[#allocation3 + $0x121] sm:$0xff]
    %v2419 = vld [vmem:[#allocation3 + $0x129] sm:$0xff]
    %v2420 = vld [vmem:[#allocation3 + $0x131] sm:$0xff]
    %v2421 = vld [vmem:[#allocation3 + $0x139] sm:$0xff]
    %v2422 = vld [vmem:[#allocation3 + $0x141] sm:$0xff]
    %v2423 = vld [vmem:[#allocation3 + $0x149] sm:$0xff]
    %v2424 = vld [vmem:[#allocation3 + $0x151] sm:$0xff]
    %v2425 = vld [vmem:[#allocation3 + $0x159] sm:$0xff]
    %v2426 = vld [vmem:[#allocation3 + $0x161] sm:$0xff]
    %v2427 = vld [vmem:[#allocation3 + $0x169] sm:$0xff]
    %v2428 = vld [vmem:[#allocation3 + $0x171] sm:$0xff]
    %v2429 = vld [vmem:[#allocation3 + $0x179] sm:$0xff]
    %v2430 = vld [vmem:[#allocation3 + $0x181] sm:$0xff]
    %v2431 = vld [vmem:[#allocation3 + $0x189] sm:$0xff]
    %v2432 = vld [vmem:[#allocation3 + $0x191] sm:$0xff]
    %v2433 = vld [vmem:[#allocation3 + $0x199] sm:$0xff]
    %v2434 = vld [vmem:[#allocation3 + $0x1a1] sm:$0xff]
    %v2435 = vld [vmem:[#allocation3 + $0x1a9] sm:$0xff]
    %v2436 = vld [vmem:[#allocation3 + $0x1b1] sm:$0xff]
    %v2437 = vld [vmem:[#allocation3 + $0x1b9] sm:$0xff]
    %v2438 = vld [vmem:[#allocation3 + $0x1c1] sm:$0xff]
    %v2439 = vld [vmem:[#allocation3 + $0x1c9] sm:$0xff]
    %v2440 = vld [vmem:[#allocation3 + $0x1d1] sm:$0xff]
    %v2441 = vld [vmem:[#allocation3 + $0x1d9] sm:$0xff]
    %v2442 = vld [vmem:[#allocation3 + $0x1e1] sm:$0xff]
    %v2443 = vld [vmem:[#allocation3 + $0x1e9] sm:$0xff]
    %v2444 = vld [vmem:[#allocation3 + $0x1f1] sm:$0xff]
    %v2445 = vld [vmem:[#allocation3 + $0x1f9] sm:$0xff]
    %v2446 = vld [vmem:[#allocation3 + $0x201] sm:$0xff]
    %v2447 = vld [vmem:[#allocation3 + $0x209] sm:$0xff]
    %v2448 = vld [vmem:[#allocation3 + $0x211] sm:$0xff]
    %v2449 = vld [vmem:[#allocation3 + $0x219] sm:$0xff]
    %v2450 = vld [vmem:[#allocation3 + $0x221] sm:$0xff]
    %v2451 = vld [vmem:[#allocation3 + $0x229] sm:$0xff]
    %v2452 = vld [vmem:[#allocation3 + $0x231] sm:$0xff]
    %v2453 = vld [vmem:[#allocation3 + $0x239] sm:$0xff]
    %v2454 = vld [vmem:[#allocation3 + $0x241] sm:$0xff]
    %v2455 = vld [vmem:[#allocation3 + $0x249] sm:$0xff]
    %v2456 = vld [vmem:[#allocation3 + $0x251] sm:$0xff]
    %v2457 = vld [vmem:[#allocation3 + $0x259] sm:$0xff]
    %v2458 = vld [vmem:[#allocation3 + $0x261] sm:$0xff]
    %v2459 = vld [vmem:[#allocation3 + $0x269] sm:$0xff]
    %v2460 = vld [vmem:[#allocation3 + $0x271] sm:$0xff]
    %v2461 = vld [vmem:[#allocation3 + $0x279] sm:$0xff]
    %v2462 = vld [vmem:[#allocation3 + $0x281] sm:$0xff]
    %v2463 = vld [vmem:[#allocation3 + $0x289] sm:$0xff]
    %v2464 = vld [vmem:[#allocation3 + $0x291] sm:$0xff]
    %v2465 = vld [vmem:[#allocation3 + $0x299] sm:$0xff]
    %v2466 = vpack.c.bf16 %v2386, %v2385
    %v2467 = vpack.c.bf16 %v2388, %v2387
    %v2468 = vpack.c.bf16 %v2390, %v2389
    %v2469 = vpack.c.bf16 %v2392, %v2391
    %v2470 = vpack.c.bf16 %v2394, %v2393
    %v2471 = vpack.c.bf16 %v2396, %v2395
    %v2472 = vpack.c.bf16 %v2398, %v2397
    %v2473 = vpack.c.bf16 %v2400, %v2399
    %v2474 = vpack.c.bf16 %v2402, %v2401
    %v2475 = vpack.c.bf16 %v2404, %v2403
    %v2476 = vpack.c.bf16 %v2406, %v2405
    %v2477 = vpack.c.bf16 %v2408, %v2407
    %v2478 = vpack.c.bf16 %v2410, %v2409
    %v2479 = vpack.c.bf16 %v2412, %v2411
    %v2480 = vpack.c.bf16 %v2414, %v2413
    %v2481 = vpack.c.bf16 %v2416, %v2415
    %v2482 = vpack.c.bf16 %v2418, %v2417
    %v2483 = vpack.c.bf16 %v2420, %v2419
    %v2484 = vpack.c.bf16 %v2422, %v2421
    %v2485 = vpack.c.bf16 %v2424, %v2423
    %v2486 = vpack.c.bf16 %v2426, %v2425
    %v2487 = vpack.c.bf16 %v2428, %v2427
    %v2488 = vpack.c.bf16 %v2430, %v2429
    %v2489 = vpack.c.bf16 %v2432, %v2431
    %v2490 = vpack.c.bf16 %v2434, %v2433
    %v2491 = vpack.c.bf16 %v2436, %v2435
    %v2492 = vpack.c.bf16 %v2438, %v2437
    %v2493 = vpack.c.bf16 %v2440, %v2439
    %v2494 = vpack.c.bf16 %v2442, %v2441
    %v2495 = vpack.c.bf16 %v2444, %v2443
    %v2496 = vpack.c.bf16 %v2446, %v2445
    %v2497 = vpack.c.bf16 %v2448, %v2447
    %v2498 = vpack.c.bf16 %v2450, %v2449
    %v2499 = vpack.c.bf16 %v2452, %v2451
    %v2500 = vpack.c.bf16 %v2454, %v2453
    %v2501 = vpack.c.bf16 %v2456, %v2455
    %v2502 = vpack.c.bf16 %v2458, %v2457
    %v2503 = vpack.c.bf16 %v2460, %v2459
    %v2504 = vpack.c.bf16 %v2462, %v2461
    %v2505 = vpack.c.bf16 %v2464, %v2463
    %v2506 = vpack.c.bf16 %v2465, %v2465
    %s2507 = scalar_lea.vmem %s2, 320
    %v2508 = vld [vmem:[%s2507] sm:$0xf]
    %v2509 = vld [vmem:[%s2507 + $0x4] sm:$0xf]
    %v2510 = vld [vmem:[%s2507 + $0x8] sm:$0xf]
    %v2511 = vld [vmem:[%s2507 + $0xc] sm:$0xf]
    %v2512 = vld [vmem:[%s2507 + $0x10] sm:$0xf]
    %v2513 = vld [vmem:[%s2507 + $0x14] sm:$0xf]
    %v2514 = vld [vmem:[%s2507 + $0x18] sm:$0xf]
    %v2515 = vld [vmem:[%s2507 + $0x1c] sm:$0xf]
    %v2516 = vld [vmem:[%s2507 + $0x20] sm:$0xf]
    %v2517 = vld [vmem:[%s2507 + $0x24] sm:$0xf]
    %v2518 = vld [vmem:[%s2507 + $0x28] sm:$0xf]
    %v2519 = vld [vmem:[%s2507 + $0x2c] sm:$0xf]
    %v2520 = vld [vmem:[%s2507 + $0x30] sm:$0xf]
    %v2521 = vld [vmem:[%s2507 + $0x34] sm:$0xf]
    %v2522 = vld [vmem:[%s2507 + $0x38] sm:$0xf]
    %v2523 = vld [vmem:[%s2507 + $0x3c] sm:$0xf]
    %v2540 = vunpack.c.l.b16 %v2508
    %v2541 = vunpack.c.l.b16 %v2509
    %v2542 = vunpack.c.l.b16 %v2510
    %v2543 = vunpack.c.l.b16 %v2511
    %v2544 = vunpack.c.l.b16 %v2512
    %v2545 = vunpack.c.l.b16 %v2513
    %v2546 = vunpack.c.l.b16 %v2514
    %v2547 = vunpack.c.l.b16 %v2515
    %v2548 = vunpack.c.l.b16 %v2516
    %v2549 = vunpack.c.l.b16 %v2517
    %v2550 = vunpack.c.l.b16 %v2518
    %v2551 = vunpack.c.l.b16 %v2519
    %v2552 = vunpack.c.l.b16 %v2520
    %v2553 = vunpack.c.l.b16 %v2521
    %v2554 = vunpack.c.l.b16 %v2522
    %v2555 = vunpack.c.l.b16 %v2523
    %v2556 = vpack.c.b16 %v2541, %v2540
    %v2557 = vpack.c.b16 %v2543, %v2542
    %v2558 = vpack.c.b16 %v2545, %v2544
    %v2559 = vpack.c.b16 %v2547, %v2546
    %v2560 = vpack.c.b16 %v2549, %v2548
    %v2561 = vpack.c.b16 %v2551, %v2550
    %v2562 = vpack.c.b16 %v2553, %v2552
    %v2563 = vpack.c.b16 %v2555, %v2554
    %2572 = vmatpush.bf16.msra.mxu0 %v2563
    %2573 = vmatpush.bf16.msra.mxu0 %v2562
    %2574 = vmatpush.bf16.msra.mxu0 %v2561
    %2575 = vmatpush.bf16.msra.mxu0 %v2560
    %2576 = vmatpush.bf16.msra.mxu0 %v2559
    %2577 = vmatpush.bf16.msra.mxu0 %v2558
    %2578 = vmatpush.bf16.msra.mxu0 %v2557
    %2579 = vmatpush.bf16.msra.mxu0 %v2556
    %2580 = vmatmul.bf16.gmra.mxu0 %v2466
    %v2581 = vpop.f32.mrf.mxu0
    %v2582 = vadd.f32 0.0, %v2581
    %v2583 = vpop.f32.mrf.mxu0
    %v2584 = vadd.f32 0.0, %v2583
    %2585 = vmatmul.bf16.gmra.mxu0 %v2467
    %v2586 = vpop.f32.mrf.mxu0
    %v2587 = vadd.f32 0.0, %v2586
    %v2588 = vpop.f32.mrf.mxu0
    %v2589 = vadd.f32 0.0, %v2588
    %2590 = vmatmul.bf16.gmra.mxu0 %v2468
    %v2591 = vpop.f32.mrf.mxu0
    %v2592 = vadd.f32 0.0, %v2591
    %v2593 = vpop.f32.mrf.mxu0
    %v2594 = vadd.f32 0.0, %v2593
    %2595 = vmatmul.bf16.gmra.mxu0 %v2469
    %v2596 = vpop.f32.mrf.mxu0
    %v2597 = vadd.f32 0.0, %v2596
    %v2598 = vpop.f32.mrf.mxu0
    %v2599 = vadd.f32 0.0, %v2598
    %2600 = vmatmul.bf16.gmra.mxu0 %v2470
    %v2601 = vpop.f32.mrf.mxu0
    %v2602 = vadd.f32 0.0, %v2601
    %v2603 = vpop.f32.mrf.mxu0
    %v2604 = vadd.f32 0.0, %v2603
    %2605 = vmatmul.bf16.gmra.mxu0 %v2471
    %v2606 = vpop.f32.mrf.mxu0
    %v2607 = vadd.f32 0.0, %v2606
    %v2608 = vpop.f32.mrf.mxu0
    %v2609 = vadd.f32 0.0, %v2608
    %2610 = vmatmul.bf16.gmra.mxu0 %v2472
    %v2611 = vpop.f32.mrf.mxu0
    %v2612 = vadd.f32 0.0, %v2611
    %v2613 = vpop.f32.mrf.mxu0
    %v2614 = vadd.f32 0.0, %v2613
    %2615 = vmatmul.bf16.gmra.mxu0 %v2473
    %v2616 = vpop.f32.mrf.mxu0
    %v2617 = vadd.f32 0.0, %v2616
    %v2618 = vpop.f32.mrf.mxu0
    %v2619 = vadd.f32 0.0, %v2618
    %2620 = vmatmul.bf16.gmra.mxu0 %v2474
    %v2621 = vpop.f32.mrf.mxu0
    %v2622 = vadd.f32 0.0, %v2621
    %v2623 = vpop.f32.mrf.mxu0
    %v2624 = vadd.f32 0.0, %v2623
    %2625 = vmatmul.bf16.gmra.mxu0 %v2475
    %v2626 = vpop.f32.mrf.mxu0
    %v2627 = vadd.f32 0.0, %v2626
    %v2628 = vpop.f32.mrf.mxu0
    %v2629 = vadd.f32 0.0, %v2628
    %2630 = vmatmul.bf16.gmra.mxu0 %v2476
    %v2631 = vpop.f32.mrf.mxu0
    %v2632 = vadd.f32 0.0, %v2631
    %v2633 = vpop.f32.mrf.mxu0
    %v2634 = vadd.f32 0.0, %v2633
    %2635 = vmatmul.bf16.gmra.mxu0 %v2477
    %v2636 = vpop.f32.mrf.mxu0
    %v2637 = vadd.f32 0.0, %v2636
    %v2638 = vpop.f32.mrf.mxu0
    %v2639 = vadd.f32 0.0, %v2638
    %2640 = vmatmul.bf16.gmra.mxu0 %v2478
    %v2641 = vpop.f32.mrf.mxu0
    %v2642 = vadd.f32 0.0, %v2641
    %v2643 = vpop.f32.mrf.mxu0
    %v2644 = vadd.f32 0.0, %v2643
    %2645 = vmatmul.bf16.gmra.mxu0 %v2479
    %v2646 = vpop.f32.mrf.mxu0
    %v2647 = vadd.f32 0.0, %v2646
    %v2648 = vpop.f32.mrf.mxu0
    %v2649 = vadd.f32 0.0, %v2648
    %2650 = vmatmul.bf16.gmra.mxu0 %v2480
    %v2651 = vpop.f32.mrf.mxu0
    %v2652 = vadd.f32 0.0, %v2651
    %v2653 = vpop.f32.mrf.mxu0
    %v2654 = vadd.f32 0.0, %v2653
    %2655 = vmatmul.bf16.gmra.mxu0 %v2481
    %v2656 = vpop.f32.mrf.mxu0
    %v2657 = vadd.f32 0.0, %v2656
    %v2658 = vpop.f32.mrf.mxu0
    %v2659 = vadd.f32 0.0, %v2658
    %2660 = vmatmul.bf16.gmra.mxu0 %v2482
    %v2661 = vpop.f32.mrf.mxu0
    %v2662 = vadd.f32 0.0, %v2661
    %v2663 = vpop.f32.mrf.mxu0
    %v2664 = vadd.f32 0.0, %v2663
    %2665 = vmatmul.bf16.gmra.mxu0 %v2483
    %v2666 = vpop.f32.mrf.mxu0
    %v2667 = vadd.f32 0.0, %v2666
    %v2668 = vpop.f32.mrf.mxu0
    %v2669 = vadd.f32 0.0, %v2668
    %2670 = vmatmul.bf16.gmra.mxu0 %v2484
    %v2671 = vpop.f32.mrf.mxu0
    %v2672 = vadd.f32 0.0, %v2671
    %v2673 = vpop.f32.mrf.mxu0
    %v2674 = vadd.f32 0.0, %v2673
    %2675 = vmatmul.bf16.gmra.mxu0 %v2485
    %v2676 = vpop.f32.mrf.mxu0
    %v2677 = vadd.f32 0.0, %v2676
    %v2678 = vpop.f32.mrf.mxu0
    %v2679 = vadd.f32 0.0, %v2678
    %2680 = vmatmul.bf16.gmra.mxu0 %v2486
    %v2681 = vpop.f32.mrf.mxu0
    %v2682 = vadd.f32 0.0, %v2681
    %v2683 = vpop.f32.mrf.mxu0
    %v2684 = vadd.f32 0.0, %v2683
    %2685 = vmatmul.bf16.gmra.mxu0 %v2487
    %v2686 = vpop.f32.mrf.mxu0
    %v2687 = vadd.f32 0.0, %v2686
    %v2688 = vpop.f32.mrf.mxu0
    %v2689 = vadd.f32 0.0, %v2688
    %2690 = vmatmul.bf16.gmra.mxu0 %v2488
    %v2691 = vpop.f32.mrf.mxu0
    %v2692 = vadd.f32 0.0, %v2691
    %v2693 = vpop.f32.mrf.mxu0
    %v2694 = vadd.f32 0.0, %v2693
    %2695 = vmatmul.bf16.gmra.mxu0 %v2489
    %v2696 = vpop.f32.mrf.mxu0
    %v2697 = vadd.f32 0.0, %v2696
    %v2698 = vpop.f32.mrf.mxu0
    %v2699 = vadd.f32 0.0, %v2698
    %2700 = vmatmul.bf16.gmra.mxu0 %v2490
    %v2701 = vpop.f32.mrf.mxu0
    %v2702 = vadd.f32 0.0, %v2701
    %v2703 = vpop.f32.mrf.mxu0
    %v2704 = vadd.f32 0.0, %v2703
    %2705 = vmatmul.bf16.gmra.mxu0 %v2491
    %v2706 = vpop.f32.mrf.mxu0
    %v2707 = vadd.f32 0.0, %v2706
    %v2708 = vpop.f32.mrf.mxu0
    %v2709 = vadd.f32 0.0, %v2708
    %2710 = vmatmul.bf16.gmra.mxu0 %v2492
    %v2711 = vpop.f32.mrf.mxu0
    %v2712 = vadd.f32 0.0, %v2711
    %v2713 = vpop.f32.mrf.mxu0
    %v2714 = vadd.f32 0.0, %v2713
    %2715 = vmatmul.bf16.gmra.mxu0 %v2493
    %v2716 = vpop.f32.mrf.mxu0
    %v2717 = vadd.f32 0.0, %v2716
    %v2718 = vpop.f32.mrf.mxu0
    %v2719 = vadd.f32 0.0, %v2718
    %2720 = vmatmul.bf16.gmra.mxu0 %v2494
    %v2721 = vpop.f32.mrf.mxu0
    %v2722 = vadd.f32 0.0, %v2721
    %v2723 = vpop.f32.mrf.mxu0
    %v2724 = vadd.f32 0.0, %v2723
    %2725 = vmatmul.bf16.gmra.mxu0 %v2495
    %v2726 = vpop.f32.mrf.mxu0
    %v2727 = vadd.f32 0.0, %v2726
    %v2728 = vpop.f32.mrf.mxu0
    %v2729 = vadd.f32 0.0, %v2728
    %2730 = vmatmul.bf16.gmra.mxu0 %v2496
    %v2731 = vpop.f32.mrf.mxu0
    %v2732 = vadd.f32 0.0, %v2731
    %v2733 = vpop.f32.mrf.mxu0
    %v2734 = vadd.f32 0.0, %v2733
    %2735 = vmatmul.bf16.gmra.mxu0 %v2497
    %v2736 = vpop.f32.mrf.mxu0
    %v2737 = vadd.f32 0.0, %v2736
    %v2738 = vpop.f32.mrf.mxu0
    %v2739 = vadd.f32 0.0, %v2738
    %2740 = vmatmul.bf16.gmra.mxu0 %v2498
    %v2741 = vpop.f32.mrf.mxu0
    %v2742 = vadd.f32 0.0, %v2741
    %v2743 = vpop.f32.mrf.mxu0
    %v2744 = vadd.f32 0.0, %v2743
    %2745 = vmatmul.bf16.gmra.mxu0 %v2499
    %v2746 = vpop.f32.mrf.mxu0
    %v2747 = vadd.f32 0.0, %v2746
    %v2748 = vpop.f32.mrf.mxu0
    %v2749 = vadd.f32 0.0, %v2748
    %2750 = vmatmul.bf16.gmra.mxu0 %v2500
    %v2751 = vpop.f32.mrf.mxu0
    %v2752 = vadd.f32 0.0, %v2751
    %v2753 = vpop.f32.mrf.mxu0
    %v2754 = vadd.f32 0.0, %v2753
    %2755 = vmatmul.bf16.gmra.mxu0 %v2501
    %v2756 = vpop.f32.mrf.mxu0
    %v2757 = vadd.f32 0.0, %v2756
    %v2758 = vpop.f32.mrf.mxu0
    %v2759 = vadd.f32 0.0, %v2758
    %2760 = vmatmul.bf16.gmra.mxu0 %v2502
    %v2761 = vpop.f32.mrf.mxu0
    %v2762 = vadd.f32 0.0, %v2761
    %v2763 = vpop.f32.mrf.mxu0
    %v2764 = vadd.f32 0.0, %v2763
    %2765 = vmatmul.bf16.gmra.mxu0 %v2503
    %v2766 = vpop.f32.mrf.mxu0
    %v2767 = vadd.f32 0.0, %v2766
    %v2768 = vpop.f32.mrf.mxu0
    %v2769 = vadd.f32 0.0, %v2768
    %2770 = vmatmul.bf16.gmra.mxu0 %v2504
    %v2771 = vpop.f32.mrf.mxu0
    %v2772 = vadd.f32 0.0, %v2771
    %v2773 = vpop.f32.mrf.mxu0
    %v2774 = vadd.f32 0.0, %v2773
    %2775 = vmatmul.bf16.gmra.mxu0 %v2505
    %v2776 = vpop.f32.mrf.mxu0
    %v2777 = vadd.f32 0.0, %v2776
    %v2778 = vpop.f32.mrf.mxu0
    %v2779 = vadd.f32 0.0, %v2778
    %2780 = vmatmul.bf16.gmra.mxu0 %v2506
    %v2781 = vpop.f32.mrf.mxu0
    %v2782 = vadd.f32 0.0, %v2781
    %v2783 = vpop.f32.mrf.mxu0
    %2784 = vdwg.mxu0
    %v2785 = vadd.f32 %v2304, %v2582
    %v2786 = vadd.f32 %v2305, %v2584
    %v2787 = vadd.f32 %v2306, %v2587
    %v2788 = vadd.f32 %v2307, %v2589
    %v2789 = vadd.f32 %v2308, %v2592
    %v2790 = vadd.f32 %v2309, %v2594
    %v2791 = vadd.f32 %v2310, %v2597
    %v2792 = vadd.f32 %v2311, %v2599
    %v2793 = vadd.f32 %v2312, %v2602
    %v2794 = vadd.f32 %v2313, %v2604
    %v2795 = vadd.f32 %v2314, %v2607
    %v2796 = vadd.f32 %v2315, %v2609
    %v2797 = vadd.f32 %v2316, %v2612
    %v2798 = vadd.f32 %v2317, %v2614
    %v2799 = vadd.f32 %v2318, %v2617
    %v2800 = vadd.f32 %v2319, %v2619
    %v2801 = vadd.f32 %v2320, %v2622
    %v2802 = vadd.f32 %v2321, %v2624
    %v2803 = vadd.f32 %v2322, %v2627
    %v2804 = vadd.f32 %v2323, %v2629
    %v2805 = vadd.f32 %v2324, %v2632
    %v2806 = vadd.f32 %v2325, %v2634
    %v2807 = vadd.f32 %v2326, %v2637
    %v2808 = vadd.f32 %v2327, %v2639
    %v2809 = vadd.f32 %v2328, %v2642
    %v2810 = vadd.f32 %v2329, %v2644
    %v2811 = vadd.f32 %v2330, %v2647
    %v2812 = vadd.f32 %v2331, %v2649
    %v2813 = vadd.f32 %v2332, %v2652
    %v2814 = vadd.f32 %v2333, %v2654
    %v2815 = vadd.f32 %v2334, %v2657
    %v2816 = vadd.f32 %v2335, %v2659
    %v2817 = vadd.f32 %v2336, %v2662
    %v2818 = vadd.f32 %v2337, %v2664
    %v2819 = vadd.f32 %v2338, %v2667
    %v2820 = vadd.f32 %v2339, %v2669
    %v2821 = vadd.f32 %v2340, %v2672
    %v2822 = vadd.f32 %v2341, %v2674
    %v2823 = vadd.f32 %v2342, %v2677
    %v2824 = vadd.f32 %v2343, %v2679
    %v2825 = vadd.f32 %v2344, %v2682
    %v2826 = vadd.f32 %v2345, %v2684
    %v2827 = vadd.f32 %v2346, %v2687
    %v2828 = vadd.f32 %v2347, %v2689
    %v2829 = vadd.f32 %v2348, %v2692
    %v2830 = vadd.f32 %v2349, %v2694
    %v2831 = vadd.f32 %v2350, %v2697
    %v2832 = vadd.f32 %v2351, %v2699
    %v2833 = vadd.f32 %v2352, %v2702
    %v2834 = vadd.f32 %v2353, %v2704
    %v2835 = vadd.f32 %v2354, %v2707
    %v2836 = vadd.f32 %v2355, %v2709
    %v2837 = vadd.f32 %v2356, %v2712
    %v2838 = vadd.f32 %v2357, %v2714
    %v2839 = vadd.f32 %v2358, %v2717
    %v2840 = vadd.f32 %v2359, %v2719
    %v2841 = vadd.f32 %v2360, %v2722
    %v2842 = vadd.f32 %v2361, %v2724
    %v2843 = vadd.f32 %v2362, %v2727
    %v2844 = vadd.f32 %v2363, %v2729
    %v2845 = vadd.f32 %v2364, %v2732
    %v2846 = vadd.f32 %v2365, %v2734
    %v2847 = vadd.f32 %v2366, %v2737
    %v2848 = vadd.f32 %v2367, %v2739
    %v2849 = vadd.f32 %v2368, %v2742
    %v2850 = vadd.f32 %v2369, %v2744
    %v2851 = vadd.f32 %v2370, %v2747
    %v2852 = vadd.f32 %v2371, %v2749
    %v2853 = vadd.f32 %v2372, %v2752
    %v2854 = vadd.f32 %v2373, %v2754
    %v2855 = vadd.f32 %v2374, %v2757
    %v2856 = vadd.f32 %v2375, %v2759
    %v2857 = vadd.f32 %v2376, %v2762
    %v2858 = vadd.f32 %v2377, %v2764
    %v2859 = vadd.f32 %v2378, %v2767
    %v2860 = vadd.f32 %v2379, %v2769
    %v2861 = vadd.f32 %v2380, %v2772
    %v2862 = vadd.f32 %v2381, %v2774
    %v2863 = vadd.f32 %v2382, %v2777
    %v2864 = vadd.f32 %v2383, %v2779
    %v2865 = vadd.f32 %v2384, %v2782
    %v2866 = vld [vmem:[#allocation3 + $0x29] sm:$0xff]
    %v2867 = vld [vmem:[#allocation3 + $0x31] sm:$0xff]
    %v2868 = vld [vmem:[#allocation3 + $0x39] sm:$0xff]
    %v2869 = vld [vmem:[#allocation3 + $0x41] sm:$0xff]
    %v2870 = vld [vmem:[#allocation3 + $0x49] sm:$0xff]
    %v2871 = vld [vmem:[#allocation3 + $0x51] sm:$0xff]
    %v2872 = vld [vmem:[#allocation3 + $0x59] sm:$0xff]
    %v2873 = vld [vmem:[#allocation3 + $0x61] sm:$0xff]
    %v2874 = vld [vmem:[#allocation3 + $0x69] sm:$0xff]
    %v2875 = vld [vmem:[#allocation3 + $0x71] sm:$0xff]
    %v2876 = vld [vmem:[#allocation3 + $0x79] sm:$0xff]
    %v2877 = vld [vmem:[#allocation3 + $0x81] sm:$0xff]
    %v2878 = vld [vmem:[#allocation3 + $0x89] sm:$0xff]
    %v2879 = vld [vmem:[#allocation3 + $0x91] sm:$0xff]
    %v2880 = vld [vmem:[#allocation3 + $0x99] sm:$0xff]
    %v2881 = vld [vmem:[#allocation3 + $0xa1] sm:$0xff]
    %v2882 = vld [vmem:[#allocation3 + $0xa9] sm:$0xff]
    %v2883 = vld [vmem:[#allocation3 + $0xb1] sm:$0xff]
    %v2884 = vld [vmem:[#allocation3 + $0xb9] sm:$0xff]
    %v2885 = vld [vmem:[#allocation3 + $0xc1] sm:$0xff]
    %v2886 = vld [vmem:[#allocation3 + $0xc9] sm:$0xff]
    %v2887 = vld [vmem:[#allocation3 + $0xd1] sm:$0xff]
    %v2888 = vld [vmem:[#allocation3 + $0xd9] sm:$0xff]
    %v2889 = vld [vmem:[#allocation3 + $0xe1] sm:$0xff]
    %v2890 = vld [vmem:[#allocation3 + $0xe9] sm:$0xff]
    %v2891 = vld [vmem:[#allocation3 + $0xf1] sm:$0xff]
    %v2892 = vld [vmem:[#allocation3 + $0xf9] sm:$0xff]
    %v2893 = vld [vmem:[#allocation3 + $0x101] sm:$0xff]
    %v2894 = vld [vmem:[#allocation3 + $0x109] sm:$0xff]
    %v2895 = vld [vmem:[#allocation3 + $0x111] sm:$0xff]
    %v2896 = vld [vmem:[#allocation3 + $0x119] sm:$0xff]
    %v2897 = vld [vmem:[#allocation3 + $0x121] sm:$0xff]
    %v2898 = vld [vmem:[#allocation3 + $0x129] sm:$0xff]
    %v2899 = vld [vmem:[#allocation3 + $0x131] sm:$0xff]
    %v2900 = vld [vmem:[#allocation3 + $0x139] sm:$0xff]
    %v2901 = vld [vmem:[#allocation3 + $0x141] sm:$0xff]
    %v2902 = vld [vmem:[#allocation3 + $0x149] sm:$0xff]
    %v2903 = vld [vmem:[#allocation3 + $0x151] sm:$0xff]
    %v2904 = vld [vmem:[#allocation3 + $0x159] sm:$0xff]
    %v2905 = vld [vmem:[#allocation3 + $0x161] sm:$0xff]
    %v2906 = vld [vmem:[#allocation3 + $0x169] sm:$0xff]
    %v2907 = vld [vmem:[#allocation3 + $0x171] sm:$0xff]
    %v2908 = vld [vmem:[#allocation3 + $0x179] sm:$0xff]
    %v2909 = vld [vmem:[#allocation3 + $0x181] sm:$0xff]
    %v2910 = vld [vmem:[#allocation3 + $0x189] sm:$0xff]
    %v2911 = vld [vmem:[#allocation3 + $0x191] sm:$0xff]
    %v2912 = vld [vmem:[#allocation3 + $0x199] sm:$0xff]
    %v2913 = vld [vmem:[#allocation3 + $0x1a1] sm:$0xff]
    %v2914 = vld [vmem:[#allocation3 + $0x1a9] sm:$0xff]
    %v2915 = vld [vmem:[#allocation3 + $0x1b1] sm:$0xff]
    %v2916 = vld [vmem:[#allocation3 + $0x1b9] sm:$0xff]
    %v2917 = vld [vmem:[#allocation3 + $0x1c1] sm:$0xff]
    %v2918 = vld [vmem:[#allocation3 + $0x1c9] sm:$0xff]
    %v2919 = vld [vmem:[#allocation3 + $0x1d1] sm:$0xff]
    %v2920 = vld [vmem:[#allocation3 + $0x1d9] sm:$0xff]
    %v2921 = vld [vmem:[#allocation3 + $0x1e1] sm:$0xff]
    %v2922 = vld [vmem:[#allocation3 + $0x1e9] sm:$0xff]
    %v2923 = vld [vmem:[#allocation3 + $0x1f1] sm:$0xff]
    %v2924 = vld [vmem:[#allocation3 + $0x1f9] sm:$0xff]
    %v2925 = vld [vmem:[#allocation3 + $0x201] sm:$0xff]
    %v2926 = vld [vmem:[#allocation3 + $0x209] sm:$0xff]
    %v2927 = vld [vmem:[#allocation3 + $0x211] sm:$0xff]
    %v2928 = vld [vmem:[#allocation3 + $0x219] sm:$0xff]
    %v2929 = vld [vmem:[#allocation3 + $0x221] sm:$0xff]
    %v2930 = vld [vmem:[#allocation3 + $0x229] sm:$0xff]
    %v2931 = vld [vmem:[#allocation3 + $0x231] sm:$0xff]
    %v2932 = vld [vmem:[#allocation3 + $0x239] sm:$0xff]
    %v2933 = vld [vmem:[#allocation3 + $0x241] sm:$0xff]
    %v2934 = vld [vmem:[#allocation3 + $0x249] sm:$0xff]
    %v2935 = vld [vmem:[#allocation3 + $0x251] sm:$0xff]
    %v2936 = vld [vmem:[#allocation3 + $0x259] sm:$0xff]
    %v2937 = vld [vmem:[#allocation3 + $0x261] sm:$0xff]
    %v2938 = vld [vmem:[#allocation3 + $0x269] sm:$0xff]
    %v2939 = vld [vmem:[#allocation3 + $0x271] sm:$0xff]
    %v2940 = vld [vmem:[#allocation3 + $0x279] sm:$0xff]
    %v2941 = vld [vmem:[#allocation3 + $0x281] sm:$0xff]
    %v2942 = vld [vmem:[#allocation3 + $0x289] sm:$0xff]
    %v2943 = vld [vmem:[#allocation3 + $0x291] sm:$0xff]
    %v2944 = vld [vmem:[#allocation3 + $0x299] sm:$0xff]
    %v2945 = vld [vmem:[#allocation3 + $0x2a1] sm:$0xff]
    %v2946 = vld [vmem:[#allocation3 + $0x2a9] sm:$0xff]
    %v2947 = vpack.c.bf16 %v2867, %v2866
    %v2948 = vpack.c.bf16 %v2869, %v2868
    %v2949 = vpack.c.bf16 %v2871, %v2870
    %v2950 = vpack.c.bf16 %v2873, %v2872
    %v2951 = vpack.c.bf16 %v2875, %v2874
    %v2952 = vpack.c.bf16 %v2877, %v2876
    %v2953 = vpack.c.bf16 %v2879, %v2878
    %v2954 = vpack.c.bf16 %v2881, %v2880
    %v2955 = vpack.c.bf16 %v2883, %v2882
    %v2956 = vpack.c.bf16 %v2885, %v2884
    %v2957 = vpack.c.bf16 %v2887, %v2886
    %v2958 = vpack.c.bf16 %v2889, %v2888
    %v2959 = vpack.c.bf16 %v2891, %v2890
    %v2960 = vpack.c.bf16 %v2893, %v2892
    %v2961 = vpack.c.bf16 %v2895, %v2894
    %v2962 = vpack.c.bf16 %v2897, %v2896
    %v2963 = vpack.c.bf16 %v2899, %v2898
    %v2964 = vpack.c.bf16 %v2901, %v2900
    %v2965 = vpack.c.bf16 %v2903, %v2902
    %v2966 = vpack.c.bf16 %v2905, %v2904
    %v2967 = vpack.c.bf16 %v2907, %v2906
    %v2968 = vpack.c.bf16 %v2909, %v2908
    %v2969 = vpack.c.bf16 %v2911, %v2910
    %v2970 = vpack.c.bf16 %v2913, %v2912
    %v2971 = vpack.c.bf16 %v2915, %v2914
    %v2972 = vpack.c.bf16 %v2917, %v2916
    %v2973 = vpack.c.bf16 %v2919, %v2918
    %v2974 = vpack.c.bf16 %v2921, %v2920
    %v2975 = vpack.c.bf16 %v2923, %v2922
    %v2976 = vpack.c.bf16 %v2925, %v2924
    %v2977 = vpack.c.bf16 %v2927, %v2926
    %v2978 = vpack.c.bf16 %v2929, %v2928
    %v2979 = vpack.c.bf16 %v2931, %v2930
    %v2980 = vpack.c.bf16 %v2933, %v2932
    %v2981 = vpack.c.bf16 %v2935, %v2934
    %v2982 = vpack.c.bf16 %v2937, %v2936
    %v2983 = vpack.c.bf16 %v2939, %v2938
    %v2984 = vpack.c.bf16 %v2941, %v2940
    %v2985 = vpack.c.bf16 %v2943, %v2942
    %v2986 = vpack.c.bf16 %v2945, %v2944
    %v2987 = vpack.c.bf16 %v2946, %v2946
    %s2988 = scalar_lea.vmem %s2, 384
    %v2989 = vld [vmem:[%s2988] sm:$0xf]
    %v2990 = vld [vmem:[%s2988 + $0x4] sm:$0xf]
    %v2991 = vld [vmem:[%s2988 + $0x8] sm:$0xf]
    %v2992 = vld [vmem:[%s2988 + $0xc] sm:$0xf]
    %v2993 = vld [vmem:[%s2988 + $0x10] sm:$0xf]
    %v2994 = vld [vmem:[%s2988 + $0x14] sm:$0xf]
    %v2995 = vld [vmem:[%s2988 + $0x18] sm:$0xf]
    %v2996 = vld [vmem:[%s2988 + $0x1c] sm:$0xf]
    %v2997 = vld [vmem:[%s2988 + $0x20] sm:$0xf]
    %v2998 = vld [vmem:[%s2988 + $0x24] sm:$0xf]
    %v2999 = vld [vmem:[%s2988 + $0x28] sm:$0xf]
    %v3000 = vld [vmem:[%s2988 + $0x2c] sm:$0xf]
    %v3001 = vld [vmem:[%s2988 + $0x30] sm:$0xf]
    %v3002 = vld [vmem:[%s2988 + $0x34] sm:$0xf]
    %v3003 = vld [vmem:[%s2988 + $0x38] sm:$0xf]
    %v3004 = vld [vmem:[%s2988 + $0x3c] sm:$0xf]
    %v3021 = vunpack.c.l.b16 %v2989
    %v3022 = vunpack.c.l.b16 %v2990
    %v3023 = vunpack.c.l.b16 %v2991
    %v3024 = vunpack.c.l.b16 %v2992
    %v3025 = vunpack.c.l.b16 %v2993
    %v3026 = vunpack.c.l.b16 %v2994
    %v3027 = vunpack.c.l.b16 %v2995
    %v3028 = vunpack.c.l.b16 %v2996
    %v3029 = vunpack.c.l.b16 %v2997
    %v3030 = vunpack.c.l.b16 %v2998
    %v3031 = vunpack.c.l.b16 %v2999
    %v3032 = vunpack.c.l.b16 %v3000
    %v3033 = vunpack.c.l.b16 %v3001
    %v3034 = vunpack.c.l.b16 %v3002
    %v3035 = vunpack.c.l.b16 %v3003
    %v3036 = vunpack.c.l.b16 %v3004
    %v3037 = vpack.c.b16 %v3022, %v3021
    %v3038 = vpack.c.b16 %v3024, %v3023
    %v3039 = vpack.c.b16 %v3026, %v3025
    %v3040 = vpack.c.b16 %v3028, %v3027
    %v3041 = vpack.c.b16 %v3030, %v3029
    %v3042 = vpack.c.b16 %v3032, %v3031
    %v3043 = vpack.c.b16 %v3034, %v3033
    %v3044 = vpack.c.b16 %v3036, %v3035
    %3053 = vmatpush.bf16.msra.mxu0 %v3044
    %3054 = vmatpush.bf16.msra.mxu0 %v3043
    %3055 = vmatpush.bf16.msra.mxu0 %v3042
    %3056 = vmatpush.bf16.msra.mxu0 %v3041
    %3057 = vmatpush.bf16.msra.mxu0 %v3040
    %3058 = vmatpush.bf16.msra.mxu0 %v3039
    %3059 = vmatpush.bf16.msra.mxu0 %v3038
    %3060 = vmatpush.bf16.msra.mxu0 %v3037
    %3061 = vmatmul.bf16.gmra.mxu0 %v2947
    %v3062 = vpop.f32.mrf.mxu0
    %v3063 = vadd.f32 0.0, %v3062
    %v3064 = vpop.f32.mrf.mxu0
    %v3065 = vadd.f32 0.0, %v3064
    %3066 = vmatmul.bf16.gmra.mxu0 %v2948
    %v3067 = vpop.f32.mrf.mxu0
    %v3068 = vadd.f32 0.0, %v3067
    %v3069 = vpop.f32.mrf.mxu0
    %v3070 = vadd.f32 0.0, %v3069
    %3071 = vmatmul.bf16.gmra.mxu0 %v2949
    %v3072 = vpop.f32.mrf.mxu0
    %v3073 = vadd.f32 0.0, %v3072
    %v3074 = vpop.f32.mrf.mxu0
    %v3075 = vadd.f32 0.0, %v3074
    %3076 = vmatmul.bf16.gmra.mxu0 %v2950
    %v3077 = vpop.f32.mrf.mxu0
    %v3078 = vadd.f32 0.0, %v3077
    %v3079 = vpop.f32.mrf.mxu0
    %v3080 = vadd.f32 0.0, %v3079
    %3081 = vmatmul.bf16.gmra.mxu0 %v2951
    %v3082 = vpop.f32.mrf.mxu0
    %v3083 = vadd.f32 0.0, %v3082
    %v3084 = vpop.f32.mrf.mxu0
    %v3085 = vadd.f32 0.0, %v3084
    %3086 = vmatmul.bf16.gmra.mxu0 %v2952
    %v3087 = vpop.f32.mrf.mxu0
    %v3088 = vadd.f32 0.0, %v3087
    %v3089 = vpop.f32.mrf.mxu0
    %v3090 = vadd.f32 0.0, %v3089
    %3091 = vmatmul.bf16.gmra.mxu0 %v2953
    %v3092 = vpop.f32.mrf.mxu0
    %v3093 = vadd.f32 0.0, %v3092
    %v3094 = vpop.f32.mrf.mxu0
    %v3095 = vadd.f32 0.0, %v3094
    %3096 = vmatmul.bf16.gmra.mxu0 %v2954
    %v3097 = vpop.f32.mrf.mxu0
    %v3098 = vadd.f32 0.0, %v3097
    %v3099 = vpop.f32.mrf.mxu0
    %v3100 = vadd.f32 0.0, %v3099
    %3101 = vmatmul.bf16.gmra.mxu0 %v2955
    %v3102 = vpop.f32.mrf.mxu0
    %v3103 = vadd.f32 0.0, %v3102
    %v3104 = vpop.f32.mrf.mxu0
    %v3105 = vadd.f32 0.0, %v3104
    %3106 = vmatmul.bf16.gmra.mxu0 %v2956
    %v3107 = vpop.f32.mrf.mxu0
    %v3108 = vadd.f32 0.0, %v3107
    %v3109 = vpop.f32.mrf.mxu0
    %v3110 = vadd.f32 0.0, %v3109
    %3111 = vmatmul.bf16.gmra.mxu0 %v2957
    %v3112 = vpop.f32.mrf.mxu0
    %v3113 = vadd.f32 0.0, %v3112
    %v3114 = vpop.f32.mrf.mxu0
    %v3115 = vadd.f32 0.0, %v3114
    %3116 = vmatmul.bf16.gmra.mxu0 %v2958
    %v3117 = vpop.f32.mrf.mxu0
    %v3118 = vadd.f32 0.0, %v3117
    %v3119 = vpop.f32.mrf.mxu0
    %v3120 = vadd.f32 0.0, %v3119
    %3121 = vmatmul.bf16.gmra.mxu0 %v2959
    %v3122 = vpop.f32.mrf.mxu0
    %v3123 = vadd.f32 0.0, %v3122
    %v3124 = vpop.f32.mrf.mxu0
    %v3125 = vadd.f32 0.0, %v3124
    %3126 = vmatmul.bf16.gmra.mxu0 %v2960
    %v3127 = vpop.f32.mrf.mxu0
    %v3128 = vadd.f32 0.0, %v3127
    %v3129 = vpop.f32.mrf.mxu0
    %v3130 = vadd.f32 0.0, %v3129
    %3131 = vmatmul.bf16.gmra.mxu0 %v2961
    %v3132 = vpop.f32.mrf.mxu0
    %v3133 = vadd.f32 0.0, %v3132
    %v3134 = vpop.f32.mrf.mxu0
    %v3135 = vadd.f32 0.0, %v3134
    %3136 = vmatmul.bf16.gmra.mxu0 %v2962
    %v3137 = vpop.f32.mrf.mxu0
    %v3138 = vadd.f32 0.0, %v3137
    %v3139 = vpop.f32.mrf.mxu0
    %v3140 = vadd.f32 0.0, %v3139
    %3141 = vmatmul.bf16.gmra.mxu0 %v2963
    %v3142 = vpop.f32.mrf.mxu0
    %v3143 = vadd.f32 0.0, %v3142
    %v3144 = vpop.f32.mrf.mxu0
    %v3145 = vadd.f32 0.0, %v3144
    %3146 = vmatmul.bf16.gmra.mxu0 %v2964
    %v3147 = vpop.f32.mrf.mxu0
    %v3148 = vadd.f32 0.0, %v3147
    %v3149 = vpop.f32.mrf.mxu0
    %v3150 = vadd.f32 0.0, %v3149
    %3151 = vmatmul.bf16.gmra.mxu0 %v2965
    %v3152 = vpop.f32.mrf.mxu0
    %v3153 = vadd.f32 0.0, %v3152
    %v3154 = vpop.f32.mrf.mxu0
    %v3155 = vadd.f32 0.0, %v3154
    %3156 = vmatmul.bf16.gmra.mxu0 %v2966
    %v3157 = vpop.f32.mrf.mxu0
    %v3158 = vadd.f32 0.0, %v3157
    %v3159 = vpop.f32.mrf.mxu0
    %v3160 = vadd.f32 0.0, %v3159
    %3161 = vmatmul.bf16.gmra.mxu0 %v2967
    %v3162 = vpop.f32.mrf.mxu0
    %v3163 = vadd.f32 0.0, %v3162
    %v3164 = vpop.f32.mrf.mxu0
    %v3165 = vadd.f32 0.0, %v3164
    %3166 = vmatmul.bf16.gmra.mxu0 %v2968
    %v3167 = vpop.f32.mrf.mxu0
    %v3168 = vadd.f32 0.0, %v3167
    %v3169 = vpop.f32.mrf.mxu0
    %v3170 = vadd.f32 0.0, %v3169
    %3171 = vmatmul.bf16.gmra.mxu0 %v2969
    %v3172 = vpop.f32.mrf.mxu0
    %v3173 = vadd.f32 0.0, %v3172
    %v3174 = vpop.f32.mrf.mxu0
    %v3175 = vadd.f32 0.0, %v3174
    %3176 = vmatmul.bf16.gmra.mxu0 %v2970
    %v3177 = vpop.f32.mrf.mxu0
    %v3178 = vadd.f32 0.0, %v3177
    %v3179 = vpop.f32.mrf.mxu0
    %v3180 = vadd.f32 0.0, %v3179
    %3181 = vmatmul.bf16.gmra.mxu0 %v2971
    %v3182 = vpop.f32.mrf.mxu0
    %v3183 = vadd.f32 0.0, %v3182
    %v3184 = vpop.f32.mrf.mxu0
    %v3185 = vadd.f32 0.0, %v3184
    %3186 = vmatmul.bf16.gmra.mxu0 %v2972
    %v3187 = vpop.f32.mrf.mxu0
    %v3188 = vadd.f32 0.0, %v3187
    %v3189 = vpop.f32.mrf.mxu0
    %v3190 = vadd.f32 0.0, %v3189
    %3191 = vmatmul.bf16.gmra.mxu0 %v2973
    %v3192 = vpop.f32.mrf.mxu0
    %v3193 = vadd.f32 0.0, %v3192
    %v3194 = vpop.f32.mrf.mxu0
    %v3195 = vadd.f32 0.0, %v3194
    %3196 = vmatmul.bf16.gmra.mxu0 %v2974
    %v3197 = vpop.f32.mrf.mxu0
    %v3198 = vadd.f32 0.0, %v3197
    %v3199 = vpop.f32.mrf.mxu0
    %v3200 = vadd.f32 0.0, %v3199
    %3201 = vmatmul.bf16.gmra.mxu0 %v2975
    %v3202 = vpop.f32.mrf.mxu0
    %v3203 = vadd.f32 0.0, %v3202
    %v3204 = vpop.f32.mrf.mxu0
    %v3205 = vadd.f32 0.0, %v3204
    %3206 = vmatmul.bf16.gmra.mxu0 %v2976
    %v3207 = vpop.f32.mrf.mxu0
    %v3208 = vadd.f32 0.0, %v3207
    %v3209 = vpop.f32.mrf.mxu0
    %v3210 = vadd.f32 0.0, %v3209
    %3211 = vmatmul.bf16.gmra.mxu0 %v2977
    %v3212 = vpop.f32.mrf.mxu0
    %v3213 = vadd.f32 0.0, %v3212
    %v3214 = vpop.f32.mrf.mxu0
    %v3215 = vadd.f32 0.0, %v3214
    %3216 = vmatmul.bf16.gmra.mxu0 %v2978
    %v3217 = vpop.f32.mrf.mxu0
    %v3218 = vadd.f32 0.0, %v3217
    %v3219 = vpop.f32.mrf.mxu0
    %v3220 = vadd.f32 0.0, %v3219
    %3221 = vmatmul.bf16.gmra.mxu0 %v2979
    %v3222 = vpop.f32.mrf.mxu0
    %v3223 = vadd.f32 0.0, %v3222
    %v3224 = vpop.f32.mrf.mxu0
    %v3225 = vadd.f32 0.0, %v3224
    %3226 = vmatmul.bf16.gmra.mxu0 %v2980
    %v3227 = vpop.f32.mrf.mxu0
    %v3228 = vadd.f32 0.0, %v3227
    %v3229 = vpop.f32.mrf.mxu0
    %v3230 = vadd.f32 0.0, %v3229
    %3231 = vmatmul.bf16.gmra.mxu0 %v2981
    %v3232 = vpop.f32.mrf.mxu0
    %v3233 = vadd.f32 0.0, %v3232
    %v3234 = vpop.f32.mrf.mxu0
    %v3235 = vadd.f32 0.0, %v3234
    %3236 = vmatmul.bf16.gmra.mxu0 %v2982
    %v3237 = vpop.f32.mrf.mxu0
    %v3238 = vadd.f32 0.0, %v3237
    %v3239 = vpop.f32.mrf.mxu0
    %v3240 = vadd.f32 0.0, %v3239
    %3241 = vmatmul.bf16.gmra.mxu0 %v2983
    %v3242 = vpop.f32.mrf.mxu0
    %v3243 = vadd.f32 0.0, %v3242
    %v3244 = vpop.f32.mrf.mxu0
    %v3245 = vadd.f32 0.0, %v3244
    %3246 = vmatmul.bf16.gmra.mxu0 %v2984
    %v3247 = vpop.f32.mrf.mxu0
    %v3248 = vadd.f32 0.0, %v3247
    %v3249 = vpop.f32.mrf.mxu0
    %v3250 = vadd.f32 0.0, %v3249
    %3251 = vmatmul.bf16.gmra.mxu0 %v2985
    %v3252 = vpop.f32.mrf.mxu0
    %v3253 = vadd.f32 0.0, %v3252
    %v3254 = vpop.f32.mrf.mxu0
    %v3255 = vadd.f32 0.0, %v3254
    %3256 = vmatmul.bf16.gmra.mxu0 %v2986
    %v3257 = vpop.f32.mrf.mxu0
    %v3258 = vadd.f32 0.0, %v3257
    %v3259 = vpop.f32.mrf.mxu0
    %v3260 = vadd.f32 0.0, %v3259
    %3261 = vmatmul.bf16.gmra.mxu0 %v2987
    %v3262 = vpop.f32.mrf.mxu0
    %v3263 = vadd.f32 0.0, %v3262
    %v3264 = vpop.f32.mrf.mxu0
    %3265 = vdwg.mxu0
    %v3266 = vadd.f32 %v2785, %v3063
    %v3267 = vadd.f32 %v2786, %v3065
    %v3268 = vadd.f32 %v2787, %v3068
    %v3269 = vadd.f32 %v2788, %v3070
    %v3270 = vadd.f32 %v2789, %v3073
    %v3271 = vadd.f32 %v2790, %v3075
    %v3272 = vadd.f32 %v2791, %v3078
    %v3273 = vadd.f32 %v2792, %v3080
    %v3274 = vadd.f32 %v2793, %v3083
    %v3275 = vadd.f32 %v2794, %v3085
    %v3276 = vadd.f32 %v2795, %v3088
    %v3277 = vadd.f32 %v2796, %v3090
    %v3278 = vadd.f32 %v2797, %v3093
    %v3279 = vadd.f32 %v2798, %v3095
    %v3280 = vadd.f32 %v2799, %v3098
    %v3281 = vadd.f32 %v2800, %v3100
    %v3282 = vadd.f32 %v2801, %v3103
    %v3283 = vadd.f32 %v2802, %v3105
    %v3284 = vadd.f32 %v2803, %v3108
    %v3285 = vadd.f32 %v2804, %v3110
    %v3286 = vadd.f32 %v2805, %v3113
    %v3287 = vadd.f32 %v2806, %v3115
    %v3288 = vadd.f32 %v2807, %v3118
    %v3289 = vadd.f32 %v2808, %v3120
    %v3290 = vadd.f32 %v2809, %v3123
    %v3291 = vadd.f32 %v2810, %v3125
    %v3292 = vadd.f32 %v2811, %v3128
    %v3293 = vadd.f32 %v2812, %v3130
    %v3294 = vadd.f32 %v2813, %v3133
    %v3295 = vadd.f32 %v2814, %v3135
    %v3296 = vadd.f32 %v2815, %v3138
    %v3297 = vadd.f32 %v2816, %v3140
    %v3298 = vadd.f32 %v2817, %v3143
    %v3299 = vadd.f32 %v2818, %v3145
    %v3300 = vadd.f32 %v2819, %v3148
    %v3301 = vadd.f32 %v2820, %v3150
    %v3302 = vadd.f32 %v2821, %v3153
    %v3303 = vadd.f32 %v2822, %v3155
    %v3304 = vadd.f32 %v2823, %v3158
    %v3305 = vadd.f32 %v2824, %v3160
    %v3306 = vadd.f32 %v2825, %v3163
    %v3307 = vadd.f32 %v2826, %v3165
    %v3308 = vadd.f32 %v2827, %v3168
    %v3309 = vadd.f32 %v2828, %v3170
    %v3310 = vadd.f32 %v2829, %v3173
    %v3311 = vadd.f32 %v2830, %v3175
    %v3312 = vadd.f32 %v2831, %v3178
    %v3313 = vadd.f32 %v2832, %v3180
    %v3314 = vadd.f32 %v2833, %v3183
    %v3315 = vadd.f32 %v2834, %v3185
    %v3316 = vadd.f32 %v2835, %v3188
    %v3317 = vadd.f32 %v2836, %v3190
    %v3318 = vadd.f32 %v2837, %v3193
    %v3319 = vadd.f32 %v2838, %v3195
    %v3320 = vadd.f32 %v2839, %v3198
    %v3321 = vadd.f32 %v2840, %v3200
    %v3322 = vadd.f32 %v2841, %v3203
    %v3323 = vadd.f32 %v2842, %v3205
    %v3324 = vadd.f32 %v2843, %v3208
    %v3325 = vadd.f32 %v2844, %v3210
    %v3326 = vadd.f32 %v2845, %v3213
    %v3327 = vadd.f32 %v2846, %v3215
    %v3328 = vadd.f32 %v2847, %v3218
    %v3329 = vadd.f32 %v2848, %v3220
    %v3330 = vadd.f32 %v2849, %v3223
    %v3331 = vadd.f32 %v2850, %v3225
    %v3332 = vadd.f32 %v2851, %v3228
    %v3333 = vadd.f32 %v2852, %v3230
    %v3334 = vadd.f32 %v2853, %v3233
    %v3335 = vadd.f32 %v2854, %v3235
    %v3336 = vadd.f32 %v2855, %v3238
    %v3337 = vadd.f32 %v2856, %v3240
    %v3338 = vadd.f32 %v2857, %v3243
    %v3339 = vadd.f32 %v2858, %v3245
    %v3340 = vadd.f32 %v2859, %v3248
    %v3341 = vadd.f32 %v2860, %v3250
    %v3342 = vadd.f32 %v2861, %v3253
    %v3343 = vadd.f32 %v2862, %v3255
    %v3344 = vadd.f32 %v2863, %v3258
    %v3345 = vadd.f32 %v2864, %v3260
    %v3346 = vadd.f32 %v2865, %v3263
    %v3347 = vld [vmem:[#allocation3 + $0x2a] sm:$0xff]
    %v3348 = vld [vmem:[#allocation3 + $0x32] sm:$0xff]
    %v3349 = vld [vmem:[#allocation3 + $0x3a] sm:$0xff]
    %v3350 = vld [vmem:[#allocation3 + $0x42] sm:$0xff]
    %v3351 = vld [vmem:[#allocation3 + $0x4a] sm:$0xff]
    %v3352 = vld [vmem:[#allocation3 + $0x52] sm:$0xff]
    %v3353 = vld [vmem:[#allocation3 + $0x5a] sm:$0xff]
    %v3354 = vld [vmem:[#allocation3 + $0x62] sm:$0xff]
    %v3355 = vld [vmem:[#allocation3 + $0x6a] sm:$0xff]
    %v3356 = vld [vmem:[#allocation3 + $0x72] sm:$0xff]
    %v3357 = vld [vmem:[#allocation3 + $0x7a] sm:$0xff]
    %v3358 = vld [vmem:[#allocation3 + $0x82] sm:$0xff]
    %v3359 = vld [vmem:[#allocation3 + $0x8a] sm:$0xff]
    %v3360 = vld [vmem:[#allocation3 + $0x92] sm:$0xff]
    %v3361 = vld [vmem:[#allocation3 + $0x9a] sm:$0xff]
    %v3362 = vld [vmem:[#allocation3 + $0xa2] sm:$0xff]
    %v3363 = vld [vmem:[#allocation3 + $0xaa] sm:$0xff]
    %v3364 = vld [vmem:[#allocation3 + $0xb2] sm:$0xff]
    %v3365 = vld [vmem:[#allocation3 + $0xba] sm:$0xff]
    %v3366 = vld [vmem:[#allocation3 + $0xc2] sm:$0xff]
    %v3367 = vld [vmem:[#allocation3 + $0xca] sm:$0xff]
    %v3368 = vld [vmem:[#allocation3 + $0xd2] sm:$0xff]
    %v3369 = vld [vmem:[#allocation3 + $0xda] sm:$0xff]
    %v3370 = vld [vmem:[#allocation3 + $0xe2] sm:$0xff]
    %v3371 = vld [vmem:[#allocation3 + $0xea] sm:$0xff]
    %v3372 = vld [vmem:[#allocation3 + $0xf2] sm:$0xff]
    %v3373 = vld [vmem:[#allocation3 + $0xfa] sm:$0xff]
    %v3374 = vld [vmem:[#allocation3 + $0x102] sm:$0xff]
    %v3375 = vld [vmem:[#allocation3 + $0x10a] sm:$0xff]
    %v3376 = vld [vmem:[#allocation3 + $0x112] sm:$0xff]
    %v3377 = vld [vmem:[#allocation3 + $0x11a] sm:$0xff]
    %v3378 = vld [vmem:[#allocation3 + $0x122] sm:$0xff]
    %v3379 = vld [vmem:[#allocation3 + $0x12a] sm:$0xff]
    %v3380 = vld [vmem:[#allocation3 + $0x132] sm:$0xff]
    %v3381 = vld [vmem:[#allocation3 + $0x13a] sm:$0xff]
    %v3382 = vld [vmem:[#allocation3 + $0x142] sm:$0xff]
    %v3383 = vld [vmem:[#allocation3 + $0x14a] sm:$0xff]
    %v3384 = vld [vmem:[#allocation3 + $0x152] sm:$0xff]
    %v3385 = vld [vmem:[#allocation3 + $0x15a] sm:$0xff]
    %v3386 = vld [vmem:[#allocation3 + $0x162] sm:$0xff]
    %v3387 = vld [vmem:[#allocation3 + $0x16a] sm:$0xff]
    %v3388 = vld [vmem:[#allocation3 + $0x172] sm:$0xff]
    %v3389 = vld [vmem:[#allocation3 + $0x17a] sm:$0xff]
    %v3390 = vld [vmem:[#allocation3 + $0x182] sm:$0xff]
    %v3391 = vld [vmem:[#allocation3 + $0x18a] sm:$0xff]
    %v3392 = vld [vmem:[#allocation3 + $0x192] sm:$0xff]
    %v3393 = vld [vmem:[#allocation3 + $0x19a] sm:$0xff]
    %v3394 = vld [vmem:[#allocation3 + $0x1a2] sm:$0xff]
    %v3395 = vld [vmem:[#allocation3 + $0x1aa] sm:$0xff]
    %v3396 = vld [vmem:[#allocation3 + $0x1b2] sm:$0xff]
    %v3397 = vld [vmem:[#allocation3 + $0x1ba] sm:$0xff]
    %v3398 = vld [vmem:[#allocation3 + $0x1c2] sm:$0xff]
    %v3399 = vld [vmem:[#allocation3 + $0x1ca] sm:$0xff]
    %v3400 = vld [vmem:[#allocation3 + $0x1d2] sm:$0xff]
    %v3401 = vld [vmem:[#allocation3 + $0x1da] sm:$0xff]
    %v3402 = vld [vmem:[#allocation3 + $0x1e2] sm:$0xff]
    %v3403 = vld [vmem:[#allocation3 + $0x1ea] sm:$0xff]
    %v3404 = vld [vmem:[#allocation3 + $0x1f2] sm:$0xff]
    %v3405 = vld [vmem:[#allocation3 + $0x1fa] sm:$0xff]
    %v3406 = vld [vmem:[#allocation3 + $0x202] sm:$0xff]
    %v3407 = vld [vmem:[#allocation3 + $0x20a] sm:$0xff]
    %v3408 = vld [vmem:[#allocation3 + $0x212] sm:$0xff]
    %v3409 = vld [vmem:[#allocation3 + $0x21a] sm:$0xff]
    %v3410 = vld [vmem:[#allocation3 + $0x222] sm:$0xff]
    %v3411 = vld [vmem:[#allocation3 + $0x22a] sm:$0xff]
    %v3412 = vld [vmem:[#allocation3 + $0x232] sm:$0xff]
    %v3413 = vld [vmem:[#allocation3 + $0x23a] sm:$0xff]
    %v3414 = vld [vmem:[#allocation3 + $0x242] sm:$0xff]
    %v3415 = vld [vmem:[#allocation3 + $0x24a] sm:$0xff]
    %v3416 = vld [vmem:[#allocation3 + $0x252] sm:$0xff]
    %v3417 = vld [vmem:[#allocation3 + $0x25a] sm:$0xff]
    %v3418 = vld [vmem:[#allocation3 + $0x262] sm:$0xff]
    %v3419 = vld [vmem:[#allocation3 + $0x26a] sm:$0xff]
    %v3420 = vld [vmem:[#allocation3 + $0x272] sm:$0xff]
    %v3421 = vld [vmem:[#allocation3 + $0x27a] sm:$0xff]
    %v3422 = vld [vmem:[#allocation3 + $0x282] sm:$0xff]
    %v3423 = vld [vmem:[#allocation3 + $0x28a] sm:$0xff]
    %v3424 = vld [vmem:[#allocation3 + $0x292] sm:$0xff]
    %v3425 = vld [vmem:[#allocation3 + $0x29a] sm:$0xff]
    %v3426 = vld [vmem:[#allocation3 + $0x2a2] sm:$0xff]
    %v3427 = vld [vmem:[#allocation3 + $0x2aa] sm:$0xff]
    %v3428 = vpack.c.bf16 %v3348, %v3347
    %v3429 = vpack.c.bf16 %v3350, %v3349
    %v3430 = vpack.c.bf16 %v3352, %v3351
    %v3431 = vpack.c.bf16 %v3354, %v3353
    %v3432 = vpack.c.bf16 %v3356, %v3355
    %v3433 = vpack.c.bf16 %v3358, %v3357
    %v3434 = vpack.c.bf16 %v3360, %v3359
    %v3435 = vpack.c.bf16 %v3362, %v3361
    %v3436 = vpack.c.bf16 %v3364, %v3363
    %v3437 = vpack.c.bf16 %v3366, %v3365
    %v3438 = vpack.c.bf16 %v3368, %v3367
    %v3439 = vpack.c.bf16 %v3370, %v3369
    %v3440 = vpack.c.bf16 %v3372, %v3371
    %v3441 = vpack.c.bf16 %v3374, %v3373
    %v3442 = vpack.c.bf16 %v3376, %v3375
    %v3443 = vpack.c.bf16 %v3378, %v3377
    %v3444 = vpack.c.bf16 %v3380, %v3379
    %v3445 = vpack.c.bf16 %v3382, %v3381
    %v3446 = vpack.c.bf16 %v3384, %v3383
    %v3447 = vpack.c.bf16 %v3386, %v3385
    %v3448 = vpack.c.bf16 %v3388, %v3387
    %v3449 = vpack.c.bf16 %v3390, %v3389
    %v3450 = vpack.c.bf16 %v3392, %v3391
    %v3451 = vpack.c.bf16 %v3394, %v3393
    %v3452 = vpack.c.bf16 %v3396, %v3395
    %v3453 = vpack.c.bf16 %v3398, %v3397
    %v3454 = vpack.c.bf16 %v3400, %v3399
    %v3455 = vpack.c.bf16 %v3402, %v3401
    %v3456 = vpack.c.bf16 %v3404, %v3403
    %v3457 = vpack.c.bf16 %v3406, %v3405
    %v3458 = vpack.c.bf16 %v3408, %v3407
    %v3459 = vpack.c.bf16 %v3410, %v3409
    %v3460 = vpack.c.bf16 %v3412, %v3411
    %v3461 = vpack.c.bf16 %v3414, %v3413
    %v3462 = vpack.c.bf16 %v3416, %v3415
    %v3463 = vpack.c.bf16 %v3418, %v3417
    %v3464 = vpack.c.bf16 %v3420, %v3419
    %v3465 = vpack.c.bf16 %v3422, %v3421
    %v3466 = vpack.c.bf16 %v3424, %v3423
    %v3467 = vpack.c.bf16 %v3426, %v3425
    %v3468 = vpack.c.bf16 %v3427, %v3427
    %s3469 = scalar_lea.vmem %s2, 448
    %v3470 = vld [vmem:[%s3469] sm:$0xf]
    %v3471 = vld [vmem:[%s3469 + $0x4] sm:$0xf]
    %v3472 = vld [vmem:[%s3469 + $0x8] sm:$0xf]
    %v3473 = vld [vmem:[%s3469 + $0xc] sm:$0xf]
    %v3474 = vld [vmem:[%s3469 + $0x10] sm:$0xf]
    %v3475 = vld [vmem:[%s3469 + $0x14] sm:$0xf]
    %v3476 = vld [vmem:[%s3469 + $0x18] sm:$0xf]
    %v3477 = vld [vmem:[%s3469 + $0x1c] sm:$0xf]
    %v3478 = vld [vmem:[%s3469 + $0x20] sm:$0xf]
    %v3479 = vld [vmem:[%s3469 + $0x24] sm:$0xf]
    %v3480 = vld [vmem:[%s3469 + $0x28] sm:$0xf]
    %v3481 = vld [vmem:[%s3469 + $0x2c] sm:$0xf]
    %v3482 = vld [vmem:[%s3469 + $0x30] sm:$0xf]
    %v3483 = vld [vmem:[%s3469 + $0x34] sm:$0xf]
    %v3484 = vld [vmem:[%s3469 + $0x38] sm:$0xf]
    %v3485 = vld [vmem:[%s3469 + $0x3c] sm:$0xf]
    %v3502 = vunpack.c.l.b16 %v3470
    %v3503 = vunpack.c.l.b16 %v3471
    %v3504 = vunpack.c.l.b16 %v3472
    %v3505 = vunpack.c.l.b16 %v3473
    %v3506 = vunpack.c.l.b16 %v3474
    %v3507 = vunpack.c.l.b16 %v3475
    %v3508 = vunpack.c.l.b16 %v3476
    %v3509 = vunpack.c.l.b16 %v3477
    %v3510 = vunpack.c.l.b16 %v3478
    %v3511 = vunpack.c.l.b16 %v3479
    %v3512 = vunpack.c.l.b16 %v3480
    %v3513 = vunpack.c.l.b16 %v3481
    %v3514 = vunpack.c.l.b16 %v3482
    %v3515 = vunpack.c.l.b16 %v3483
    %v3516 = vunpack.c.l.b16 %v3484
    %v3517 = vunpack.c.l.b16 %v3485
    %v3518 = vpack.c.b16 %v3503, %v3502
    %v3519 = vpack.c.b16 %v3505, %v3504
    %v3520 = vpack.c.b16 %v3507, %v3506
    %v3521 = vpack.c.b16 %v3509, %v3508
    %v3522 = vpack.c.b16 %v3511, %v3510
    %v3523 = vpack.c.b16 %v3513, %v3512
    %v3524 = vpack.c.b16 %v3515, %v3514
    %v3525 = vpack.c.b16 %v3517, %v3516
    %3534 = vmatpush.bf16.msra.mxu0 %v3525
    %3535 = vmatpush.bf16.msra.mxu0 %v3524
    %3536 = vmatpush.bf16.msra.mxu0 %v3523
    %3537 = vmatpush.bf16.msra.mxu0 %v3522
    %3538 = vmatpush.bf16.msra.mxu0 %v3521
    %3539 = vmatpush.bf16.msra.mxu0 %v3520
    %3540 = vmatpush.bf16.msra.mxu0 %v3519
    %3541 = vmatpush.bf16.msra.mxu0 %v3518
    %3542 = vmatmul.bf16.gmra.mxu0 %v3428
    %v3543 = vpop.f32.mrf.mxu0
    %v3544 = vadd.f32 0.0, %v3543
    %v3545 = vpop.f32.mrf.mxu0
    %v3546 = vadd.f32 0.0, %v3545
    %3547 = vmatmul.bf16.gmra.mxu0 %v3429
    %v3548 = vpop.f32.mrf.mxu0
    %v3549 = vadd.f32 0.0, %v3548
    %v3550 = vpop.f32.mrf.mxu0
    %v3551 = vadd.f32 0.0, %v3550
    %3552 = vmatmul.bf16.gmra.mxu0 %v3430
    %v3553 = vpop.f32.mrf.mxu0
    %v3554 = vadd.f32 0.0, %v3553
    %v3555 = vpop.f32.mrf.mxu0
    %v3556 = vadd.f32 0.0, %v3555
    %3557 = vmatmul.bf16.gmra.mxu0 %v3431
    %v3558 = vpop.f32.mrf.mxu0
    %v3559 = vadd.f32 0.0, %v3558
    %v3560 = vpop.f32.mrf.mxu0
    %v3561 = vadd.f32 0.0, %v3560
    %3562 = vmatmul.bf16.gmra.mxu0 %v3432
    %v3563 = vpop.f32.mrf.mxu0
    %v3564 = vadd.f32 0.0, %v3563
    %v3565 = vpop.f32.mrf.mxu0
    %v3566 = vadd.f32 0.0, %v3565
    %3567 = vmatmul.bf16.gmra.mxu0 %v3433
    %v3568 = vpop.f32.mrf.mxu0
    %v3569 = vadd.f32 0.0, %v3568
    %v3570 = vpop.f32.mrf.mxu0
    %v3571 = vadd.f32 0.0, %v3570
    %3572 = vmatmul.bf16.gmra.mxu0 %v3434
    %v3573 = vpop.f32.mrf.mxu0
    %v3574 = vadd.f32 0.0, %v3573
    %v3575 = vpop.f32.mrf.mxu0
    %v3576 = vadd.f32 0.0, %v3575
    %3577 = vmatmul.bf16.gmra.mxu0 %v3435
    %v3578 = vpop.f32.mrf.mxu0
    %v3579 = vadd.f32 0.0, %v3578
    %v3580 = vpop.f32.mrf.mxu0
    %v3581 = vadd.f32 0.0, %v3580
    %3582 = vmatmul.bf16.gmra.mxu0 %v3436
    %v3583 = vpop.f32.mrf.mxu0
    %v3584 = vadd.f32 0.0, %v3583
    %v3585 = vpop.f32.mrf.mxu0
    %v3586 = vadd.f32 0.0, %v3585
    %3587 = vmatmul.bf16.gmra.mxu0 %v3437
    %v3588 = vpop.f32.mrf.mxu0
    %v3589 = vadd.f32 0.0, %v3588
    %v3590 = vpop.f32.mrf.mxu0
    %v3591 = vadd.f32 0.0, %v3590
    %3592 = vmatmul.bf16.gmra.mxu0 %v3438
    %v3593 = vpop.f32.mrf.mxu0
    %v3594 = vadd.f32 0.0, %v3593
    %v3595 = vpop.f32.mrf.mxu0
    %v3596 = vadd.f32 0.0, %v3595
    %3597 = vmatmul.bf16.gmra.mxu0 %v3439
    %v3598 = vpop.f32.mrf.mxu0
    %v3599 = vadd.f32 0.0, %v3598
    %v3600 = vpop.f32.mrf.mxu0
    %v3601 = vadd.f32 0.0, %v3600
    %3602 = vmatmul.bf16.gmra.mxu0 %v3440
    %v3603 = vpop.f32.mrf.mxu0
    %v3604 = vadd.f32 0.0, %v3603
    %v3605 = vpop.f32.mrf.mxu0
    %v3606 = vadd.f32 0.0, %v3605
    %3607 = vmatmul.bf16.gmra.mxu0 %v3441
    %v3608 = vpop.f32.mrf.mxu0
    %v3609 = vadd.f32 0.0, %v3608
    %v3610 = vpop.f32.mrf.mxu0
    %v3611 = vadd.f32 0.0, %v3610
    %3612 = vmatmul.bf16.gmra.mxu0 %v3442
    %v3613 = vpop.f32.mrf.mxu0
    %v3614 = vadd.f32 0.0, %v3613
    %v3615 = vpop.f32.mrf.mxu0
    %v3616 = vadd.f32 0.0, %v3615
    %3617 = vmatmul.bf16.gmra.mxu0 %v3443
    %v3618 = vpop.f32.mrf.mxu0
    %v3619 = vadd.f32 0.0, %v3618
    %v3620 = vpop.f32.mrf.mxu0
    %v3621 = vadd.f32 0.0, %v3620
    %3622 = vmatmul.bf16.gmra.mxu0 %v3444
    %v3623 = vpop.f32.mrf.mxu0
    %v3624 = vadd.f32 0.0, %v3623
    %v3625 = vpop.f32.mrf.mxu0
    %v3626 = vadd.f32 0.0, %v3625
    %3627 = vmatmul.bf16.gmra.mxu0 %v3445
    %v3628 = vpop.f32.mrf.mxu0
    %v3629 = vadd.f32 0.0, %v3628
    %v3630 = vpop.f32.mrf.mxu0
    %v3631 = vadd.f32 0.0, %v3630
    %3632 = vmatmul.bf16.gmra.mxu0 %v3446
    %v3633 = vpop.f32.mrf.mxu0
    %v3634 = vadd.f32 0.0, %v3633
    %v3635 = vpop.f32.mrf.mxu0
    %v3636 = vadd.f32 0.0, %v3635
    %3637 = vmatmul.bf16.gmra.mxu0 %v3447
    %v3638 = vpop.f32.mrf.mxu0
    %v3639 = vadd.f32 0.0, %v3638
    %v3640 = vpop.f32.mrf.mxu0
    %v3641 = vadd.f32 0.0, %v3640
    %3642 = vmatmul.bf16.gmra.mxu0 %v3448
    %v3643 = vpop.f32.mrf.mxu0
    %v3644 = vadd.f32 0.0, %v3643
    %v3645 = vpop.f32.mrf.mxu0
    %v3646 = vadd.f32 0.0, %v3645
    %3647 = vmatmul.bf16.gmra.mxu0 %v3449
    %v3648 = vpop.f32.mrf.mxu0
    %v3649 = vadd.f32 0.0, %v3648
    %v3650 = vpop.f32.mrf.mxu0
    %v3651 = vadd.f32 0.0, %v3650
    %3652 = vmatmul.bf16.gmra.mxu0 %v3450
    %v3653 = vpop.f32.mrf.mxu0
    %v3654 = vadd.f32 0.0, %v3653
    %v3655 = vpop.f32.mrf.mxu0
    %v3656 = vadd.f32 0.0, %v3655
    %3657 = vmatmul.bf16.gmra.mxu0 %v3451
    %v3658 = vpop.f32.mrf.mxu0
    %v3659 = vadd.f32 0.0, %v3658
    %v3660 = vpop.f32.mrf.mxu0
    %v3661 = vadd.f32 0.0, %v3660
    %3662 = vmatmul.bf16.gmra.mxu0 %v3452
    %v3663 = vpop.f32.mrf.mxu0
    %v3664 = vadd.f32 0.0, %v3663
    %v3665 = vpop.f32.mrf.mxu0
    %v3666 = vadd.f32 0.0, %v3665
    %3667 = vmatmul.bf16.gmra.mxu0 %v3453
    %v3668 = vpop.f32.mrf.mxu0
    %v3669 = vadd.f32 0.0, %v3668
    %v3670 = vpop.f32.mrf.mxu0
    %v3671 = vadd.f32 0.0, %v3670
    %3672 = vmatmul.bf16.gmra.mxu0 %v3454
    %v3673 = vpop.f32.mrf.mxu0
    %v3674 = vadd.f32 0.0, %v3673
    %v3675 = vpop.f32.mrf.mxu0
    %v3676 = vadd.f32 0.0, %v3675
    %3677 = vmatmul.bf16.gmra.mxu0 %v3455
    %v3678 = vpop.f32.mrf.mxu0
    %v3679 = vadd.f32 0.0, %v3678
    %v3680 = vpop.f32.mrf.mxu0
    %v3681 = vadd.f32 0.0, %v3680
    %3682 = vmatmul.bf16.gmra.mxu0 %v3456
    %v3683 = vpop.f32.mrf.mxu0
    %v3684 = vadd.f32 0.0, %v3683
    %v3685 = vpop.f32.mrf.mxu0
    %v3686 = vadd.f32 0.0, %v3685
    %3687 = vmatmul.bf16.gmra.mxu0 %v3457
    %v3688 = vpop.f32.mrf.mxu0
    %v3689 = vadd.f32 0.0, %v3688
    %v3690 = vpop.f32.mrf.mxu0
    %v3691 = vadd.f32 0.0, %v3690
    %3692 = vmatmul.bf16.gmra.mxu0 %v3458
    %v3693 = vpop.f32.mrf.mxu0
    %v3694 = vadd.f32 0.0, %v3693
    %v3695 = vpop.f32.mrf.mxu0
    %v3696 = vadd.f32 0.0, %v3695
    %3697 = vmatmul.bf16.gmra.mxu0 %v3459
    %v3698 = vpop.f32.mrf.mxu0
    %v3699 = vadd.f32 0.0, %v3698
    %v3700 = vpop.f32.mrf.mxu0
    %v3701 = vadd.f32 0.0, %v3700
    %3702 = vmatmul.bf16.gmra.mxu0 %v3460
    %v3703 = vpop.f32.mrf.mxu0
    %v3704 = vadd.f32 0.0, %v3703
    %v3705 = vpop.f32.mrf.mxu0
    %v3706 = vadd.f32 0.0, %v3705
    %3707 = vmatmul.bf16.gmra.mxu0 %v3461
    %v3708 = vpop.f32.mrf.mxu0
    %v3709 = vadd.f32 0.0, %v3708
    %v3710 = vpop.f32.mrf.mxu0
    %v3711 = vadd.f32 0.0, %v3710
    %3712 = vmatmul.bf16.gmra.mxu0 %v3462
    %v3713 = vpop.f32.mrf.mxu0
    %v3714 = vadd.f32 0.0, %v3713
    %v3715 = vpop.f32.mrf.mxu0
    %v3716 = vadd.f32 0.0, %v3715
    %3717 = vmatmul.bf16.gmra.mxu0 %v3463
    %v3718 = vpop.f32.mrf.mxu0
    %v3719 = vadd.f32 0.0, %v3718
    %v3720 = vpop.f32.mrf.mxu0
    %v3721 = vadd.f32 0.0, %v3720
    %3722 = vmatmul.bf16.gmra.mxu0 %v3464
    %v3723 = vpop.f32.mrf.mxu0
    %v3724 = vadd.f32 0.0, %v3723
    %v3725 = vpop.f32.mrf.mxu0
    %v3726 = vadd.f32 0.0, %v3725
    %3727 = vmatmul.bf16.gmra.mxu0 %v3465
    %v3728 = vpop.f32.mrf.mxu0
    %v3729 = vadd.f32 0.0, %v3728
    %v3730 = vpop.f32.mrf.mxu0
    %v3731 = vadd.f32 0.0, %v3730
    %3732 = vmatmul.bf16.gmra.mxu0 %v3466
    %v3733 = vpop.f32.mrf.mxu0
    %v3734 = vadd.f32 0.0, %v3733
    %v3735 = vpop.f32.mrf.mxu0
    %v3736 = vadd.f32 0.0, %v3735
    %3737 = vmatmul.bf16.gmra.mxu0 %v3467
    %v3738 = vpop.f32.mrf.mxu0
    %v3739 = vadd.f32 0.0, %v3738
    %v3740 = vpop.f32.mrf.mxu0
    %v3741 = vadd.f32 0.0, %v3740
    %3742 = vmatmul.bf16.gmra.mxu0 %v3468
    %v3743 = vpop.f32.mrf.mxu0
    %v3744 = vadd.f32 0.0, %v3743
    %v3745 = vpop.f32.mrf.mxu0
    %3746 = vdwg.mxu0
    %v3747 = vadd.f32 %v3266, %v3544
    %v3748 = vadd.f32 %v3267, %v3546
    %v3749 = vadd.f32 %v3268, %v3549
    %v3750 = vadd.f32 %v3269, %v3551
    %v3751 = vadd.f32 %v3270, %v3554
    %v3752 = vadd.f32 %v3271, %v3556
    %v3753 = vadd.f32 %v3272, %v3559
    %v3754 = vadd.f32 %v3273, %v3561
    %v3755 = vadd.f32 %v3274, %v3564
    %v3756 = vadd.f32 %v3275, %v3566
    %v3757 = vadd.f32 %v3276, %v3569
    %v3758 = vadd.f32 %v3277, %v3571
    %v3759 = vadd.f32 %v3278, %v3574
    %v3760 = vadd.f32 %v3279, %v3576
    %v3761 = vadd.f32 %v3280, %v3579
    %v3762 = vadd.f32 %v3281, %v3581
    %v3763 = vadd.f32 %v3282, %v3584
    %v3764 = vadd.f32 %v3283, %v3586
    %v3765 = vadd.f32 %v3284, %v3589
    %v3766 = vadd.f32 %v3285, %v3591
    %v3767 = vadd.f32 %v3286, %v3594
    %v3768 = vadd.f32 %v3287, %v3596
    %v3769 = vadd.f32 %v3288, %v3599
    %v3770 = vadd.f32 %v3289, %v3601
    %v3771 = vadd.f32 %v3290, %v3604
    %v3772 = vadd.f32 %v3291, %v3606
    %v3773 = vadd.f32 %v3292, %v3609
    %v3774 = vadd.f32 %v3293, %v3611
    %v3775 = vadd.f32 %v3294, %v3614
    %v3776 = vadd.f32 %v3295, %v3616
    %v3777 = vadd.f32 %v3296, %v3619
    %v3778 = vadd.f32 %v3297, %v3621
    %v3779 = vadd.f32 %v3298, %v3624
    %v3780 = vadd.f32 %v3299, %v3626
    %v3781 = vadd.f32 %v3300, %v3629
    %v3782 = vadd.f32 %v3301, %v3631
    %v3783 = vadd.f32 %v3302, %v3634
    %v3784 = vadd.f32 %v3303, %v3636
    %v3785 = vadd.f32 %v3304, %v3639
    %v3786 = vadd.f32 %v3305, %v3641
    %v3787 = vadd.f32 %v3306, %v3644
    %v3788 = vadd.f32 %v3307, %v3646
    %v3789 = vadd.f32 %v3308, %v3649
    %v3790 = vadd.f32 %v3309, %v3651
    %v3791 = vadd.f32 %v3310, %v3654
    %v3792 = vadd.f32 %v3311, %v3656
    %v3793 = vadd.f32 %v3312, %v3659
    %v3794 = vadd.f32 %v3313, %v3661
    %v3795 = vadd.f32 %v3314, %v3664
    %v3796 = vadd.f32 %v3315, %v3666
    %v3797 = vadd.f32 %v3316, %v3669
    %v3798 = vadd.f32 %v3317, %v3671
    %v3799 = vadd.f32 %v3318, %v3674
    %v3800 = vadd.f32 %v3319, %v3676
    %v3801 = vadd.f32 %v3320, %v3679
    %v3802 = vadd.f32 %v3321, %v3681
    %v3803 = vadd.f32 %v3322, %v3684
    %v3804 = vadd.f32 %v3323, %v3686
    %v3805 = vadd.f32 %v3324, %v3689
    %v3806 = vadd.f32 %v3325, %v3691
    %v3807 = vadd.f32 %v3326, %v3694
    %v3808 = vadd.f32 %v3327, %v3696
    %v3809 = vadd.f32 %v3328, %v3699
    %v3810 = vadd.f32 %v3329, %v3701
    %v3811 = vadd.f32 %v3330, %v3704
    %v3812 = vadd.f32 %v3331, %v3706
    %v3813 = vadd.f32 %v3332, %v3709
    %v3814 = vadd.f32 %v3333, %v3711
    %v3815 = vadd.f32 %v3334, %v3714
    %v3816 = vadd.f32 %v3335, %v3716
    %v3817 = vadd.f32 %v3336, %v3719
    %v3818 = vadd.f32 %v3337, %v3721
    %v3819 = vadd.f32 %v3338, %v3724
    %v3820 = vadd.f32 %v3339, %v3726
    %v3821 = vadd.f32 %v3340, %v3729
    %v3822 = vadd.f32 %v3341, %v3731
    %v3823 = vadd.f32 %v3342, %v3734
    %v3824 = vadd.f32 %v3343, %v3736
    %v3825 = vadd.f32 %v3344, %v3739
    %v3826 = vadd.f32 %v3345, %v3741
    %v3827 = vadd.f32 %v3346, %v3744
    %v3828 = vld [vmem:[#allocation3 + $0x2b] sm:$0xff]
    %v3829 = vld [vmem:[#allocation3 + $0x33] sm:$0xff]
    %v3830 = vld [vmem:[#allocation3 + $0x3b] sm:$0xff]
    %v3831 = vld [vmem:[#allocation3 + $0x43] sm:$0xff]
    %v3832 = vld [vmem:[#allocation3 + $0x4b] sm:$0xff]
    %v3833 = vld [vmem:[#allocation3 + $0x53] sm:$0xff]
    %v3834 = vld [vmem:[#allocation3 + $0x5b] sm:$0xff]
    %v3835 = vld [vmem:[#allocation3 + $0x63] sm:$0xff]
    %v3836 = vld [vmem:[#allocation3 + $0x6b] sm:$0xff]
    %v3837 = vld [vmem:[#allocation3 + $0x73] sm:$0xff]
    %v3838 = vld [vmem:[#allocation3 + $0x7b] sm:$0xff]
    %v3839 = vld [vmem:[#allocation3 + $0x83] sm:$0xff]
    %v3840 = vld [vmem:[#allocation3 + $0x8b] sm:$0xff]
    %v3841 = vld [vmem:[#allocation3 + $0x93] sm:$0xff]
    %v3842 = vld [vmem:[#allocation3 + $0x9b] sm:$0xff]
    %v3843 = vld [vmem:[#allocation3 + $0xa3] sm:$0xff]
    %v3844 = vld [vmem:[#allocation3 + $0xab] sm:$0xff]
    %v3845 = vld [vmem:[#allocation3 + $0xb3] sm:$0xff]
    %v3846 = vld [vmem:[#allocation3 + $0xbb] sm:$0xff]
    %v3847 = vld [vmem:[#allocation3 + $0xc3] sm:$0xff]
    %v3848 = vld [vmem:[#allocation3 + $0xcb] sm:$0xff]
    %v3849 = vld [vmem:[#allocation3 + $0xd3] sm:$0xff]
    %v3850 = vld [vmem:[#allocation3 + $0xdb] sm:$0xff]
    %v3851 = vld [vmem:[#allocation3 + $0xe3] sm:$0xff]
    %v3852 = vld [vmem:[#allocation3 + $0xeb] sm:$0xff]
    %v3853 = vld [vmem:[#allocation3 + $0xf3] sm:$0xff]
    %v3854 = vld [vmem:[#allocation3 + $0xfb] sm:$0xff]
    %v3855 = vld [vmem:[#allocation3 + $0x103] sm:$0xff]
    %v3856 = vld [vmem:[#allocation3 + $0x10b] sm:$0xff]
    %v3857 = vld [vmem:[#allocation3 + $0x113] sm:$0xff]
    %v3858 = vld [vmem:[#allocation3 + $0x11b] sm:$0xff]
    %v3859 = vld [vmem:[#allocation3 + $0x123] sm:$0xff]
    %v3860 = vld [vmem:[#allocation3 + $0x12b] sm:$0xff]
    %v3861 = vld [vmem:[#allocation3 + $0x133] sm:$0xff]
    %v3862 = vld [vmem:[#allocation3 + $0x13b] sm:$0xff]
    %v3863 = vld [vmem:[#allocation3 + $0x143] sm:$0xff]
    %v3864 = vld [vmem:[#allocation3 + $0x14b] sm:$0xff]
    %v3865 = vld [vmem:[#allocation3 + $0x153] sm:$0xff]
    %v3866 = vld [vmem:[#allocation3 + $0x15b] sm:$0xff]
    %v3867 = vld [vmem:[#allocation3 + $0x163] sm:$0xff]
    %v3868 = vld [vmem:[#allocation3 + $0x16b] sm:$0xff]
    %v3869 = vld [vmem:[#allocation3 + $0x173] sm:$0xff]
    %v3870 = vld [vmem:[#allocation3 + $0x17b] sm:$0xff]
    %v3871 = vld [vmem:[#allocation3 + $0x183] sm:$0xff]
    %v3872 = vld [vmem:[#allocation3 + $0x18b] sm:$0xff]
    %v3873 = vld [vmem:[#allocation3 + $0x193] sm:$0xff]
    %v3874 = vld [vmem:[#allocation3 + $0x19b] sm:$0xff]
    %v3875 = vld [vmem:[#allocation3 + $0x1a3] sm:$0xff]
    %v3876 = vld [vmem:[#allocation3 + $0x1ab] sm:$0xff]
    %v3877 = vld [vmem:[#allocation3 + $0x1b3] sm:$0xff]
    %v3878 = vld [vmem:[#allocation3 + $0x1bb] sm:$0xff]
    %v3879 = vld [vmem:[#allocation3 + $0x1c3] sm:$0xff]
    %v3880 = vld [vmem:[#allocation3 + $0x1cb] sm:$0xff]
    %v3881 = vld [vmem:[#allocation3 + $0x1d3] sm:$0xff]
    %v3882 = vld [vmem:[#allocation3 + $0x1db] sm:$0xff]
    %v3883 = vld [vmem:[#allocation3 + $0x1e3] sm:$0xff]
    %v3884 = vld [vmem:[#allocation3 + $0x1eb] sm:$0xff]
    %v3885 = vld [vmem:[#allocation3 + $0x1f3] sm:$0xff]
    %v3886 = vld [vmem:[#allocation3 + $0x1fb] sm:$0xff]
    %v3887 = vld [vmem:[#allocation3 + $0x203] sm:$0xff]
    %v3888 = vld [vmem:[#allocation3 + $0x20b] sm:$0xff]
    %v3889 = vld [vmem:[#allocation3 + $0x213] sm:$0xff]
    %v3890 = vld [vmem:[#allocation3 + $0x21b] sm:$0xff]
    %v3891 = vld [vmem:[#allocation3 + $0x223] sm:$0xff]
    %v3892 = vld [vmem:[#allocation3 + $0x22b] sm:$0xff]
    %v3893 = vld [vmem:[#allocation3 + $0x233] sm:$0xff]
    %v3894 = vld [vmem:[#allocation3 + $0x23b] sm:$0xff]
    %v3895 = vld [vmem:[#allocation3 + $0x243] sm:$0xff]
    %v3896 = vld [vmem:[#allocation3 + $0x24b] sm:$0xff]
    %v3897 = vld [vmem:[#allocation3 + $0x253] sm:$0xff]
    %v3898 = vld [vmem:[#allocation3 + $0x25b] sm:$0xff]
    %v3899 = vld [vmem:[#allocation3 + $0x263] sm:$0xff]
    %v3900 = vld [vmem:[#allocation3 + $0x26b] sm:$0xff]
    %v3901 = vld [vmem:[#allocation3 + $0x273] sm:$0xff]
    %v3902 = vld [vmem:[#allocation3 + $0x27b] sm:$0xff]
    %v3903 = vld [vmem:[#allocation3 + $0x283] sm:$0xff]
    %v3904 = vld [vmem:[#allocation3 + $0x28b] sm:$0xff]
    %v3905 = vld [vmem:[#allocation3 + $0x293] sm:$0xff]
    %v3906 = vld [vmem:[#allocation3 + $0x29b] sm:$0xff]
    %v3907 = vld [vmem:[#allocation3 + $0x2a3] sm:$0xff]
    %v3908 = vld [vmem:[#allocation3 + $0x2ab] sm:$0xff]
    %v3909 = vpack.c.bf16 %v3829, %v3828
    %v3910 = vpack.c.bf16 %v3831, %v3830
    %v3911 = vpack.c.bf16 %v3833, %v3832
    %v3912 = vpack.c.bf16 %v3835, %v3834
    %v3913 = vpack.c.bf16 %v3837, %v3836
    %v3914 = vpack.c.bf16 %v3839, %v3838
    %v3915 = vpack.c.bf16 %v3841, %v3840
    %v3916 = vpack.c.bf16 %v3843, %v3842
    %v3917 = vpack.c.bf16 %v3845, %v3844
    %v3918 = vpack.c.bf16 %v3847, %v3846
    %v3919 = vpack.c.bf16 %v3849, %v3848
    %v3920 = vpack.c.bf16 %v3851, %v3850
    %v3921 = vpack.c.bf16 %v3853, %v3852
    %v3922 = vpack.c.bf16 %v3855, %v3854
    %v3923 = vpack.c.bf16 %v3857, %v3856
    %v3924 = vpack.c.bf16 %v3859, %v3858
    %v3925 = vpack.c.bf16 %v3861, %v3860
    %v3926 = vpack.c.bf16 %v3863, %v3862
    %v3927 = vpack.c.bf16 %v3865, %v3864
    %v3928 = vpack.c.bf16 %v3867, %v3866
    %v3929 = vpack.c.bf16 %v3869, %v3868
    %v3930 = vpack.c.bf16 %v3871, %v3870
    %v3931 = vpack.c.bf16 %v3873, %v3872
    %v3932 = vpack.c.bf16 %v3875, %v3874
    %v3933 = vpack.c.bf16 %v3877, %v3876
    %v3934 = vpack.c.bf16 %v3879, %v3878
    %v3935 = vpack.c.bf16 %v3881, %v3880
    %v3936 = vpack.c.bf16 %v3883, %v3882
    %v3937 = vpack.c.bf16 %v3885, %v3884
    %v3938 = vpack.c.bf16 %v3887, %v3886
    %v3939 = vpack.c.bf16 %v3889, %v3888
    %v3940 = vpack.c.bf16 %v3891, %v3890
    %v3941 = vpack.c.bf16 %v3893, %v3892
    %v3942 = vpack.c.bf16 %v3895, %v3894
    %v3943 = vpack.c.bf16 %v3897, %v3896
    %v3944 = vpack.c.bf16 %v3899, %v3898
    %v3945 = vpack.c.bf16 %v3901, %v3900
    %v3946 = vpack.c.bf16 %v3903, %v3902
    %v3947 = vpack.c.bf16 %v3905, %v3904
    %v3948 = vpack.c.bf16 %v3907, %v3906
    %v3949 = vpack.c.bf16 %v3908, %v3908
    %s3950 = scalar_lea.vmem %s2, 512
    %v3951 = vld [vmem:[%s3950] sm:$0xf]
    %v3952 = vld [vmem:[%s3950 + $0x4] sm:$0xf]
    %v3953 = vld [vmem:[%s3950 + $0x8] sm:$0xf]
    %v3954 = vld [vmem:[%s3950 + $0xc] sm:$0xf]
    %v3955 = vld [vmem:[%s3950 + $0x10] sm:$0xf]
    %v3956 = vld [vmem:[%s3950 + $0x14] sm:$0xf]
    %v3957 = vld [vmem:[%s3950 + $0x18] sm:$0xf]
    %v3958 = vld [vmem:[%s3950 + $0x1c] sm:$0xf]
    %v3959 = vld [vmem:[%s3950 + $0x20] sm:$0xf]
    %v3960 = vld [vmem:[%s3950 + $0x24] sm:$0xf]
    %v3961 = vld [vmem:[%s3950 + $0x28] sm:$0xf]
    %v3962 = vld [vmem:[%s3950 + $0x2c] sm:$0xf]
    %v3963 = vld [vmem:[%s3950 + $0x30] sm:$0xf]
    %v3964 = vld [vmem:[%s3950 + $0x34] sm:$0xf]
    %v3965 = vld [vmem:[%s3950 + $0x38] sm:$0xf]
    %v3966 = vld [vmem:[%s3950 + $0x3c] sm:$0xf]
    %v3983 = vunpack.c.l.b16 %v3951
    %v3984 = vunpack.c.l.b16 %v3952
    %v3985 = vunpack.c.l.b16 %v3953
    %v3986 = vunpack.c.l.b16 %v3954
    %v3987 = vunpack.c.l.b16 %v3955
    %v3988 = vunpack.c.l.b16 %v3956
    %v3989 = vunpack.c.l.b16 %v3957
    %v3990 = vunpack.c.l.b16 %v3958
    %v3991 = vunpack.c.l.b16 %v3959
    %v3992 = vunpack.c.l.b16 %v3960
    %v3993 = vunpack.c.l.b16 %v3961
    %v3994 = vunpack.c.l.b16 %v3962
    %v3995 = vunpack.c.l.b16 %v3963
    %v3996 = vunpack.c.l.b16 %v3964
    %v3997 = vunpack.c.l.b16 %v3965
    %v3998 = vunpack.c.l.b16 %v3966
    %v3999 = vpack.c.b16 %v3984, %v3983
    %v4000 = vpack.c.b16 %v3986, %v3985
    %v4001 = vpack.c.b16 %v3988, %v3987
    %v4002 = vpack.c.b16 %v3990, %v3989
    %v4003 = vpack.c.b16 %v3992, %v3991
    %v4004 = vpack.c.b16 %v3994, %v3993
    %v4005 = vpack.c.b16 %v3996, %v3995
    %v4006 = vpack.c.b16 %v3998, %v3997
    %4015 = vmatpush.bf16.msra.mxu0 %v4006
    %4016 = vmatpush.bf16.msra.mxu0 %v4005
    %4017 = vmatpush.bf16.msra.mxu0 %v4004
    %4018 = vmatpush.bf16.msra.mxu0 %v4003
    %4019 = vmatpush.bf16.msra.mxu0 %v4002
    %4020 = vmatpush.bf16.msra.mxu0 %v4001
    %4021 = vmatpush.bf16.msra.mxu0 %v4000
    %4022 = vmatpush.bf16.msra.mxu0 %v3999
    %4023 = vmatmul.bf16.gmra.mxu0 %v3909
    %v4024 = vpop.f32.mrf.mxu0
    %v4025 = vadd.f32 0.0, %v4024
    %v4026 = vpop.f32.mrf.mxu0
    %v4027 = vadd.f32 0.0, %v4026
    %4028 = vmatmul.bf16.gmra.mxu0 %v3910
    %v4029 = vpop.f32.mrf.mxu0
    %v4030 = vadd.f32 0.0, %v4029
    %v4031 = vpop.f32.mrf.mxu0
    %v4032 = vadd.f32 0.0, %v4031
    %4033 = vmatmul.bf16.gmra.mxu0 %v3911
    %v4034 = vpop.f32.mrf.mxu0
    %v4035 = vadd.f32 0.0, %v4034
    %v4036 = vpop.f32.mrf.mxu0
    %v4037 = vadd.f32 0.0, %v4036
    %4038 = vmatmul.bf16.gmra.mxu0 %v3912
    %v4039 = vpop.f32.mrf.mxu0
    %v4040 = vadd.f32 0.0, %v4039
    %v4041 = vpop.f32.mrf.mxu0
    %v4042 = vadd.f32 0.0, %v4041
    %4043 = vmatmul.bf16.gmra.mxu0 %v3913
    %v4044 = vpop.f32.mrf.mxu0
    %v4045 = vadd.f32 0.0, %v4044
    %v4046 = vpop.f32.mrf.mxu0
    %v4047 = vadd.f32 0.0, %v4046
    %4048 = vmatmul.bf16.gmra.mxu0 %v3914
    %v4049 = vpop.f32.mrf.mxu0
    %v4050 = vadd.f32 0.0, %v4049
    %v4051 = vpop.f32.mrf.mxu0
    %v4052 = vadd.f32 0.0, %v4051
    %4053 = vmatmul.bf16.gmra.mxu0 %v3915
    %v4054 = vpop.f32.mrf.mxu0
    %v4055 = vadd.f32 0.0, %v4054
    %v4056 = vpop.f32.mrf.mxu0
    %v4057 = vadd.f32 0.0, %v4056
    %4058 = vmatmul.bf16.gmra.mxu0 %v3916
    %v4059 = vpop.f32.mrf.mxu0
    %v4060 = vadd.f32 0.0, %v4059
    %v4061 = vpop.f32.mrf.mxu0
    %v4062 = vadd.f32 0.0, %v4061
    %4063 = vmatmul.bf16.gmra.mxu0 %v3917
    %v4064 = vpop.f32.mrf.mxu0
    %v4065 = vadd.f32 0.0, %v4064
    %v4066 = vpop.f32.mrf.mxu0
    %v4067 = vadd.f32 0.0, %v4066
    %4068 = vmatmul.bf16.gmra.mxu0 %v3918
    %v4069 = vpop.f32.mrf.mxu0
    %v4070 = vadd.f32 0.0, %v4069
    %v4071 = vpop.f32.mrf.mxu0
    %v4072 = vadd.f32 0.0, %v4071
    %4073 = vmatmul.bf16.gmra.mxu0 %v3919
    %v4074 = vpop.f32.mrf.mxu0
    %v4075 = vadd.f32 0.0, %v4074
    %v4076 = vpop.f32.mrf.mxu0
    %v4077 = vadd.f32 0.0, %v4076
    %4078 = vmatmul.bf16.gmra.mxu0 %v3920
    %v4079 = vpop.f32.mrf.mxu0
    %v4080 = vadd.f32 0.0, %v4079
    %v4081 = vpop.f32.mrf.mxu0
    %v4082 = vadd.f32 0.0, %v4081
    %4083 = vmatmul.bf16.gmra.mxu0 %v3921
    %v4084 = vpop.f32.mrf.mxu0
    %v4085 = vadd.f32 0.0, %v4084
    %v4086 = vpop.f32.mrf.mxu0
    %v4087 = vadd.f32 0.0, %v4086
    %4088 = vmatmul.bf16.gmra.mxu0 %v3922
    %v4089 = vpop.f32.mrf.mxu0
    %v4090 = vadd.f32 0.0, %v4089
    %v4091 = vpop.f32.mrf.mxu0
    %v4092 = vadd.f32 0.0, %v4091
    %4093 = vmatmul.bf16.gmra.mxu0 %v3923
    %v4094 = vpop.f32.mrf.mxu0
    %v4095 = vadd.f32 0.0, %v4094
    %v4096 = vpop.f32.mrf.mxu0
    %v4097 = vadd.f32 0.0, %v4096
    %4098 = vmatmul.bf16.gmra.mxu0 %v3924
    %v4099 = vpop.f32.mrf.mxu0
    %v4100 = vadd.f32 0.0, %v4099
    %v4101 = vpop.f32.mrf.mxu0
    %v4102 = vadd.f32 0.0, %v4101
    %4103 = vmatmul.bf16.gmra.mxu0 %v3925
    %v4104 = vpop.f32.mrf.mxu0
    %v4105 = vadd.f32 0.0, %v4104
    %v4106 = vpop.f32.mrf.mxu0
    %v4107 = vadd.f32 0.0, %v4106
    %4108 = vmatmul.bf16.gmra.mxu0 %v3926
    %v4109 = vpop.f32.mrf.mxu0
    %v4110 = vadd.f32 0.0, %v4109
    %v4111 = vpop.f32.mrf.mxu0
    %v4112 = vadd.f32 0.0, %v4111
    %4113 = vmatmul.bf16.gmra.mxu0 %v3927
    %v4114 = vpop.f32.mrf.mxu0
    %v4115 = vadd.f32 0.0, %v4114
    %v4116 = vpop.f32.mrf.mxu0
    %v4117 = vadd.f32 0.0, %v4116
    %4118 = vmatmul.bf16.gmra.mxu0 %v3928
    %v4119 = vpop.f32.mrf.mxu0
    %v4120 = vadd.f32 0.0, %v4119
    %v4121 = vpop.f32.mrf.mxu0
    %v4122 = vadd.f32 0.0, %v4121
    %4123 = vmatmul.bf16.gmra.mxu0 %v3929
    %v4124 = vpop.f32.mrf.mxu0
    %v4125 = vadd.f32 0.0, %v4124
    %v4126 = vpop.f32.mrf.mxu0
    %v4127 = vadd.f32 0.0, %v4126
    %4128 = vmatmul.bf16.gmra.mxu0 %v3930
    %v4129 = vpop.f32.mrf.mxu0
    %v4130 = vadd.f32 0.0, %v4129
    %v4131 = vpop.f32.mrf.mxu0
    %v4132 = vadd.f32 0.0, %v4131
    %4133 = vmatmul.bf16.gmra.mxu0 %v3931
    %v4134 = vpop.f32.mrf.mxu0
    %v4135 = vadd.f32 0.0, %v4134
    %v4136 = vpop.f32.mrf.mxu0
    %v4137 = vadd.f32 0.0, %v4136
    %4138 = vmatmul.bf16.gmra.mxu0 %v3932
    %v4139 = vpop.f32.mrf.mxu0
    %v4140 = vadd.f32 0.0, %v4139
    %v4141 = vpop.f32.mrf.mxu0
    %v4142 = vadd.f32 0.0, %v4141
    %4143 = vmatmul.bf16.gmra.mxu0 %v3933
    %v4144 = vpop.f32.mrf.mxu0
    %v4145 = vadd.f32 0.0, %v4144
    %v4146 = vpop.f32.mrf.mxu0
    %v4147 = vadd.f32 0.0, %v4146
    %4148 = vmatmul.bf16.gmra.mxu0 %v3934
    %v4149 = vpop.f32.mrf.mxu0
    %v4150 = vadd.f32 0.0, %v4149
    %v4151 = vpop.f32.mrf.mxu0
    %v4152 = vadd.f32 0.0, %v4151
    %4153 = vmatmul.bf16.gmra.mxu0 %v3935
    %v4154 = vpop.f32.mrf.mxu0
    %v4155 = vadd.f32 0.0, %v4154
    %v4156 = vpop.f32.mrf.mxu0
    %v4157 = vadd.f32 0.0, %v4156
    %4158 = vmatmul.bf16.gmra.mxu0 %v3936
    %v4159 = vpop.f32.mrf.mxu0
    %v4160 = vadd.f32 0.0, %v4159
    %v4161 = vpop.f32.mrf.mxu0
    %v4162 = vadd.f32 0.0, %v4161
    %4163 = vmatmul.bf16.gmra.mxu0 %v3937
    %v4164 = vpop.f32.mrf.mxu0
    %v4165 = vadd.f32 0.0, %v4164
    %v4166 = vpop.f32.mrf.mxu0
    %v4167 = vadd.f32 0.0, %v4166
    %4168 = vmatmul.bf16.gmra.mxu0 %v3938
    %v4169 = vpop.f32.mrf.mxu0
    %v4170 = vadd.f32 0.0, %v4169
    %v4171 = vpop.f32.mrf.mxu0
    %v4172 = vadd.f32 0.0, %v4171
    %4173 = vmatmul.bf16.gmra.mxu0 %v3939
    %v4174 = vpop.f32.mrf.mxu0
    %v4175 = vadd.f32 0.0, %v4174
    %v4176 = vpop.f32.mrf.mxu0
    %v4177 = vadd.f32 0.0, %v4176
    %4178 = vmatmul.bf16.gmra.mxu0 %v3940
    %v4179 = vpop.f32.mrf.mxu0
    %v4180 = vadd.f32 0.0, %v4179
    %v4181 = vpop.f32.mrf.mxu0
    %v4182 = vadd.f32 0.0, %v4181
    %4183 = vmatmul.bf16.gmra.mxu0 %v3941
    %v4184 = vpop.f32.mrf.mxu0
    %v4185 = vadd.f32 0.0, %v4184
    %v4186 = vpop.f32.mrf.mxu0
    %v4187 = vadd.f32 0.0, %v4186
    %4188 = vmatmul.bf16.gmra.mxu0 %v3942
    %v4189 = vpop.f32.mrf.mxu0
    %v4190 = vadd.f32 0.0, %v4189
    %v4191 = vpop.f32.mrf.mxu0
    %v4192 = vadd.f32 0.0, %v4191
    %4193 = vmatmul.bf16.gmra.mxu0 %v3943
    %v4194 = vpop.f32.mrf.mxu0
    %v4195 = vadd.f32 0.0, %v4194
    %v4196 = vpop.f32.mrf.mxu0
    %v4197 = vadd.f32 0.0, %v4196
    %4198 = vmatmul.bf16.gmra.mxu0 %v3944
    %v4199 = vpop.f32.mrf.mxu0
    %v4200 = vadd.f32 0.0, %v4199
    %v4201 = vpop.f32.mrf.mxu0
    %v4202 = vadd.f32 0.0, %v4201
    %4203 = vmatmul.bf16.gmra.mxu0 %v3945
    %v4204 = vpop.f32.mrf.mxu0
    %v4205 = vadd.f32 0.0, %v4204
    %v4206 = vpop.f32.mrf.mxu0
    %v4207 = vadd.f32 0.0, %v4206
    %4208 = vmatmul.bf16.gmra.mxu0 %v3946
    %v4209 = vpop.f32.mrf.mxu0
    %v4210 = vadd.f32 0.0, %v4209
    %v4211 = vpop.f32.mrf.mxu0
    %v4212 = vadd.f32 0.0, %v4211
    %4213 = vmatmul.bf16.gmra.mxu0 %v3947
    %v4214 = vpop.f32.mrf.mxu0
    %v4215 = vadd.f32 0.0, %v4214
    %v4216 = vpop.f32.mrf.mxu0
    %v4217 = vadd.f32 0.0, %v4216
    %4218 = vmatmul.bf16.gmra.mxu0 %v3948
    %v4219 = vpop.f32.mrf.mxu0
    %v4220 = vadd.f32 0.0, %v4219
    %v4221 = vpop.f32.mrf.mxu0
    %v4222 = vadd.f32 0.0, %v4221
    %4223 = vmatmul.bf16.gmra.mxu0 %v3949
    %v4224 = vpop.f32.mrf.mxu0
    %v4225 = vadd.f32 0.0, %v4224
    %v4226 = vpop.f32.mrf.mxu0
    %4227 = vdwg.mxu0
    %v4228 = vadd.f32 %v3747, %v4025
    %v4229 = vadd.f32 %v3748, %v4027
    %v4230 = vadd.f32 %v3749, %v4030
    %v4231 = vadd.f32 %v3750, %v4032
    %v4232 = vadd.f32 %v3751, %v4035
    %v4233 = vadd.f32 %v3752, %v4037
    %v4234 = vadd.f32 %v3753, %v4040
    %v4235 = vadd.f32 %v3754, %v4042
    %v4236 = vadd.f32 %v3755, %v4045
    %v4237 = vadd.f32 %v3756, %v4047
    %v4238 = vadd.f32 %v3757, %v4050
    %v4239 = vadd.f32 %v3758, %v4052
    %v4240 = vadd.f32 %v3759, %v4055
    %v4241 = vadd.f32 %v3760, %v4057
    %v4242 = vadd.f32 %v3761, %v4060
    %v4243 = vadd.f32 %v3762, %v4062
    %v4244 = vadd.f32 %v3763, %v4065
    %v4245 = vadd.f32 %v3764, %v4067
    %v4246 = vadd.f32 %v3765, %v4070
    %v4247 = vadd.f32 %v3766, %v4072
    %v4248 = vadd.f32 %v3767, %v4075
    %v4249 = vadd.f32 %v3768, %v4077
    %v4250 = vadd.f32 %v3769, %v4080
    %v4251 = vadd.f32 %v3770, %v4082
    %v4252 = vadd.f32 %v3771, %v4085
    %v4253 = vadd.f32 %v3772, %v4087
    %v4254 = vadd.f32 %v3773, %v4090
    %v4255 = vadd.f32 %v3774, %v4092
    %v4256 = vadd.f32 %v3775, %v4095
    %v4257 = vadd.f32 %v3776, %v4097
    %v4258 = vadd.f32 %v3777, %v4100
    %v4259 = vadd.f32 %v3778, %v4102
    %v4260 = vadd.f32 %v3779, %v4105
    %v4261 = vadd.f32 %v3780, %v4107
    %v4262 = vadd.f32 %v3781, %v4110
    %v4263 = vadd.f32 %v3782, %v4112
    %v4264 = vadd.f32 %v3783, %v4115
    %v4265 = vadd.f32 %v3784, %v4117
    %v4266 = vadd.f32 %v3785, %v4120
    %v4267 = vadd.f32 %v3786, %v4122
    %v4268 = vadd.f32 %v3787, %v4125
    %v4269 = vadd.f32 %v3788, %v4127
    %v4270 = vadd.f32 %v3789, %v4130
    %v4271 = vadd.f32 %v3790, %v4132
    %v4272 = vadd.f32 %v3791, %v4135
    %v4273 = vadd.f32 %v3792, %v4137
    %v4274 = vadd.f32 %v3793, %v4140
    %v4275 = vadd.f32 %v3794, %v4142
    %v4276 = vadd.f32 %v3795, %v4145
    %v4277 = vadd.f32 %v3796, %v4147
    %v4278 = vadd.f32 %v3797, %v4150
    %v4279 = vadd.f32 %v3798, %v4152
    %v4280 = vadd.f32 %v3799, %v4155
    %v4281 = vadd.f32 %v3800, %v4157
    %v4282 = vadd.f32 %v3801, %v4160
    %v4283 = vadd.f32 %v3802, %v4162
    %v4284 = vadd.f32 %v3803, %v4165
    %v4285 = vadd.f32 %v3804, %v4167
    %v4286 = vadd.f32 %v3805, %v4170
    %v4287 = vadd.f32 %v3806, %v4172
    %v4288 = vadd.f32 %v3807, %v4175
    %v4289 = vadd.f32 %v3808, %v4177
    %v4290 = vadd.f32 %v3809, %v4180
    %v4291 = vadd.f32 %v3810, %v4182
    %v4292 = vadd.f32 %v3811, %v4185
    %v4293 = vadd.f32 %v3812, %v4187
    %v4294 = vadd.f32 %v3813, %v4190
    %v4295 = vadd.f32 %v3814, %v4192
    %v4296 = vadd.f32 %v3815, %v4195
    %v4297 = vadd.f32 %v3816, %v4197
    %v4298 = vadd.f32 %v3817, %v4200
    %v4299 = vadd.f32 %v3818, %v4202
    %v4300 = vadd.f32 %v3819, %v4205
    %v4301 = vadd.f32 %v3820, %v4207
    %v4302 = vadd.f32 %v3821, %v4210
    %v4303 = vadd.f32 %v3822, %v4212
    %v4304 = vadd.f32 %v3823, %v4215
    %v4305 = vadd.f32 %v3824, %v4217
    %v4306 = vadd.f32 %v3825, %v4220
    %v4307 = vadd.f32 %v3826, %v4222
    %v4308 = vadd.f32 %v3827, %v4225
    %4310 = vset.pattern.permute.xlu0 0
    %4311 = vperm.xlu0 %4310, %v62
    %v4312 = vpop.permute.xlu0 %4311
    %4315 = vset.pattern.permute.xlu0 0
    %4316 = vperm.xlu0 %4315, %v63
    %v4317 = vpop.permute.xlu0 %4316
    %4320 = vset.pattern.permute.xlu0 0
    %4321 = vperm.xlu0 %4320, %v64
    %v4322 = vpop.permute.xlu0 %4321
    %4325 = vset.pattern.permute.xlu0 0
    %4326 = vperm.xlu0 %4325, %v65
    %v4327 = vpop.permute.xlu0 %4326
    %4330 = vset.pattern.permute.xlu0 0
    %4331 = vperm.xlu0 %4330, %v66
    %v4332 = vpop.permute.xlu0 %4331
    %4335 = vset.pattern.permute.xlu0 0
    %4336 = vperm.xlu0 %4335, %v67
    %v4337 = vpop.permute.xlu0 %4336
    %4340 = vset.pattern.permute.xlu0 0
    %4341 = vperm.xlu0 %4340, %v68
    %v4342 = vpop.permute.xlu0 %4341
    %4345 = vset.pattern.permute.xlu0 0
    %4346 = vperm.xlu0 %4345, %v69
    %v4347 = vpop.permute.xlu0 %4346
    %4350 = vset.pattern.permute.xlu0 0
    %4351 = vperm.xlu0 %4350, %v70
    %v4352 = vpop.permute.xlu0 %4351
    %4355 = vset.pattern.permute.xlu0 0
    %4356 = vperm.xlu0 %4355, %v71
    %v4357 = vpop.permute.xlu0 %4356
    %4360 = vset.pattern.permute.xlu0 0
    %4361 = vperm.xlu0 %4360, %v72
    %v4362 = vpop.permute.xlu0 %4361
    %4365 = vset.pattern.permute.xlu0 0
    %4366 = vperm.xlu0 %4365, %v73
    %v4367 = vpop.permute.xlu0 %4366
    %4370 = vset.pattern.permute.xlu0 0
    %4371 = vperm.xlu0 %4370, %v74
    %v4372 = vpop.permute.xlu0 %4371
    %4375 = vset.pattern.permute.xlu0 0
    %4376 = vperm.xlu0 %4375, %v75
    %v4377 = vpop.permute.xlu0 %4376
    %4380 = vset.pattern.permute.xlu0 0
    %4381 = vperm.xlu0 %4380, %v76
    %v4382 = vpop.permute.xlu0 %4381
    %4385 = vset.pattern.permute.xlu0 0
    %4386 = vperm.xlu0 %4385, %v77
    %v4387 = vpop.permute.xlu0 %4386
    %4390 = vset.pattern.permute.xlu0 0
    %4391 = vperm.xlu0 %4390, %v78
    %v4392 = vpop.permute.xlu0 %4391
    %4395 = vset.pattern.permute.xlu0 0
    %4396 = vperm.xlu0 %4395, %v79
    %v4397 = vpop.permute.xlu0 %4396
    %4400 = vset.pattern.permute.xlu0 0
    %4401 = vperm.xlu0 %4400, %v80
    %v4402 = vpop.permute.xlu0 %4401
    %4405 = vset.pattern.permute.xlu0 0
    %4406 = vperm.xlu0 %4405, %v81
    %v4407 = vpop.permute.xlu0 %4406
    %4410 = vset.pattern.permute.xlu0 0
    %4411 = vperm.xlu0 %4410, %v82
    %v4412 = vpop.permute.xlu0 %4411
    %4415 = vset.pattern.permute.xlu0 0
    %4416 = vperm.xlu0 %4415, %v83
    %v4417 = vpop.permute.xlu0 %4416
    %4420 = vset.pattern.permute.xlu0 0
    %4421 = vperm.xlu0 %4420, %v84
    %v4422 = vpop.permute.xlu0 %4421
    %4425 = vset.pattern.permute.xlu0 0
    %4426 = vperm.xlu0 %4425, %v85
    %v4427 = vpop.permute.xlu0 %4426
    %4430 = vset.pattern.permute.xlu0 0
    %4431 = vperm.xlu0 %4430, %v86
    %v4432 = vpop.permute.xlu0 %4431
    %4435 = vset.pattern.permute.xlu0 0
    %4436 = vperm.xlu0 %4435, %v87
    %v4437 = vpop.permute.xlu0 %4436
    %4440 = vset.pattern.permute.xlu0 0
    %4441 = vperm.xlu0 %4440, %v88
    %v4442 = vpop.permute.xlu0 %4441
    %4445 = vset.pattern.permute.xlu0 0
    %4446 = vperm.xlu0 %4445, %v89
    %v4447 = vpop.permute.xlu0 %4446
    %4450 = vset.pattern.permute.xlu0 0
    %4451 = vperm.xlu0 %4450, %v90
    %v4452 = vpop.permute.xlu0 %4451
    %4455 = vset.pattern.permute.xlu0 0
    %4456 = vperm.xlu0 %4455, %v91
    %v4457 = vpop.permute.xlu0 %4456
    %4460 = vset.pattern.permute.xlu0 0
    %4461 = vperm.xlu0 %4460, %v92
    %v4462 = vpop.permute.xlu0 %4461
    %4465 = vset.pattern.permute.xlu0 0
    %4466 = vperm.xlu0 %4465, %v93
    %v4467 = vpop.permute.xlu0 %4466
    %4470 = vset.pattern.permute.xlu0 0
    %4471 = vperm.xlu0 %4470, %v94
    %v4472 = vpop.permute.xlu0 %4471
    %4475 = vset.pattern.permute.xlu0 0
    %4476 = vperm.xlu0 %4475, %v95
    %v4477 = vpop.permute.xlu0 %4476
    %4480 = vset.pattern.permute.xlu0 0
    %4481 = vperm.xlu0 %4480, %v96
    %v4482 = vpop.permute.xlu0 %4481
    %4485 = vset.pattern.permute.xlu0 0
    %4486 = vperm.xlu0 %4485, %v97
    %v4487 = vpop.permute.xlu0 %4486
    %4490 = vset.pattern.permute.xlu0 0
    %4491 = vperm.xlu0 %4490, %v98
    %v4492 = vpop.permute.xlu0 %4491
    %4495 = vset.pattern.permute.xlu0 0
    %4496 = vperm.xlu0 %4495, %v99
    %v4497 = vpop.permute.xlu0 %4496
    %4500 = vset.pattern.permute.xlu0 0
    %4501 = vperm.xlu0 %4500, %v100
    %v4502 = vpop.permute.xlu0 %4501
    %4505 = vset.pattern.permute.xlu0 0
    %4506 = vperm.xlu0 %4505, %v101
    %v4507 = vpop.permute.xlu0 %4506
    %4510 = vset.pattern.permute.xlu0 0
    %4511 = vperm.xlu0 %4510, %v102
    %v4512 = vpop.permute.xlu0 %4511
    %4515 = vset.pattern.permute.xlu0 0
    %4516 = vperm.xlu0 %4515, %v103
    %v4517 = vpop.permute.xlu0 %4516
    %4520 = vset.pattern.permute.xlu0 0
    %4521 = vperm.xlu0 %4520, %v104
    %v4522 = vpop.permute.xlu0 %4521
    %4525 = vset.pattern.permute.xlu0 0
    %4526 = vperm.xlu0 %4525, %v105
    %v4527 = vpop.permute.xlu0 %4526
    %4530 = vset.pattern.permute.xlu0 0
    %4531 = vperm.xlu0 %4530, %v106
    %v4532 = vpop.permute.xlu0 %4531
    %4535 = vset.pattern.permute.xlu0 0
    %4536 = vperm.xlu0 %4535, %v107
    %v4537 = vpop.permute.xlu0 %4536
    %4540 = vset.pattern.permute.xlu0 0
    %4541 = vperm.xlu0 %4540, %v108
    %v4542 = vpop.permute.xlu0 %4541
    %4545 = vset.pattern.permute.xlu0 0
    %4546 = vperm.xlu0 %4545, %v109
    %v4547 = vpop.permute.xlu0 %4546
    %4550 = vset.pattern.permute.xlu0 0
    %4551 = vperm.xlu0 %4550, %v110
    %v4552 = vpop.permute.xlu0 %4551
    %4555 = vset.pattern.permute.xlu0 0
    %4556 = vperm.xlu0 %4555, %v111
    %v4557 = vpop.permute.xlu0 %4556
    %4560 = vset.pattern.permute.xlu0 0
    %4561 = vperm.xlu0 %4560, %v112
    %v4562 = vpop.permute.xlu0 %4561
    %4565 = vset.pattern.permute.xlu0 0
    %4566 = vperm.xlu0 %4565, %v113
    %v4567 = vpop.permute.xlu0 %4566
    %4570 = vset.pattern.permute.xlu0 0
    %4571 = vperm.xlu0 %4570, %v114
    %v4572 = vpop.permute.xlu0 %4571
    %4575 = vset.pattern.permute.xlu0 0
    %4576 = vperm.xlu0 %4575, %v115
    %v4577 = vpop.permute.xlu0 %4576
    %4580 = vset.pattern.permute.xlu0 0
    %4581 = vperm.xlu0 %4580, %v116
    %v4582 = vpop.permute.xlu0 %4581
    %4585 = vset.pattern.permute.xlu0 0
    %4586 = vperm.xlu0 %4585, %v117
    %v4587 = vpop.permute.xlu0 %4586
    %4590 = vset.pattern.permute.xlu0 0
    %4591 = vperm.xlu0 %4590, %v118
    %v4592 = vpop.permute.xlu0 %4591
    %4595 = vset.pattern.permute.xlu0 0
    %4596 = vperm.xlu0 %4595, %v119
    %v4597 = vpop.permute.xlu0 %4596
    %4600 = vset.pattern.permute.xlu0 0
    %4601 = vperm.xlu0 %4600, %v120
    %v4602 = vpop.permute.xlu0 %4601
    %4605 = vset.pattern.permute.xlu0 0
    %4606 = vperm.xlu0 %4605, %v121
    %v4607 = vpop.permute.xlu0 %4606
    %4610 = vset.pattern.permute.xlu0 0
    %4611 = vperm.xlu0 %4610, %v122
    %v4612 = vpop.permute.xlu0 %4611
    %4615 = vset.pattern.permute.xlu0 0
    %4616 = vperm.xlu0 %4615, %v123
    %v4617 = vpop.permute.xlu0 %4616
    %4620 = vset.pattern.permute.xlu0 0
    %4621 = vperm.xlu0 %4620, %v124
    %v4622 = vpop.permute.xlu0 %4621
    %4625 = vset.pattern.permute.xlu0 0
    %4626 = vperm.xlu0 %4625, %v125
    %v4627 = vpop.permute.xlu0 %4626
    %4630 = vset.pattern.permute.xlu0 0
    %4631 = vperm.xlu0 %4630, %v126
    %v4632 = vpop.permute.xlu0 %4631
    %4635 = vset.pattern.permute.xlu0 0
    %4636 = vperm.xlu0 %4635, %v127
    %v4637 = vpop.permute.xlu0 %4636
    %4640 = vset.pattern.permute.xlu0 0
    %4641 = vperm.xlu0 %4640, %v128
    %v4642 = vpop.permute.xlu0 %4641
    %4645 = vset.pattern.permute.xlu0 0
    %4646 = vperm.xlu0 %4645, %v129
    %v4647 = vpop.permute.xlu0 %4646
    %4650 = vset.pattern.permute.xlu0 0
    %4651 = vperm.xlu0 %4650, %v130
    %v4652 = vpop.permute.xlu0 %4651
    %4655 = vset.pattern.permute.xlu0 0
    %4656 = vperm.xlu0 %4655, %v131
    %v4657 = vpop.permute.xlu0 %4656
    %4660 = vset.pattern.permute.xlu0 0
    %4661 = vperm.xlu0 %4660, %v132
    %v4662 = vpop.permute.xlu0 %4661
    %4665 = vset.pattern.permute.xlu0 0
    %4666 = vperm.xlu0 %4665, %v133
    %v4667 = vpop.permute.xlu0 %4666
    %4670 = vset.pattern.permute.xlu0 0
    %4671 = vperm.xlu0 %4670, %v134
    %v4672 = vpop.permute.xlu0 %4671
    %4675 = vset.pattern.permute.xlu0 0
    %4676 = vperm.xlu0 %4675, %v135
    %v4677 = vpop.permute.xlu0 %4676
    %4680 = vset.pattern.permute.xlu0 0
    %4681 = vperm.xlu0 %4680, %v136
    %v4682 = vpop.permute.xlu0 %4681
    %4685 = vset.pattern.permute.xlu0 0
    %4686 = vperm.xlu0 %4685, %v137
    %v4687 = vpop.permute.xlu0 %4686
    %4690 = vset.pattern.permute.xlu0 0
    %4691 = vperm.xlu0 %4690, %v138
    %v4692 = vpop.permute.xlu0 %4691
    %4695 = vset.pattern.permute.xlu0 0
    %4696 = vperm.xlu0 %4695, %v139
    %v4697 = vpop.permute.xlu0 %4696
    %4700 = vset.pattern.permute.xlu0 0
    %4701 = vperm.xlu0 %4700, %v140
    %v4702 = vpop.permute.xlu0 %4701
    %4705 = vset.pattern.permute.xlu0 0
    %4706 = vperm.xlu0 %4705, %v141
    %v4707 = vpop.permute.xlu0 %4706
    %4710 = vset.pattern.permute.xlu0 0
    %4711 = vperm.xlu0 %4710, %v142
    %v4712 = vpop.permute.xlu0 %4711
    %v4714 = vmul.f32 %v4228, %v4312
    %v4715 = vmul.f32 %v4229, %v4317
    %v4716 = vmul.f32 %v4230, %v4322
    %v4717 = vmul.f32 %v4231, %v4327
    %v4718 = vmul.f32 %v4232, %v4332
    %v4719 = vmul.f32 %v4233, %v4337
    %v4720 = vmul.f32 %v4234, %v4342
    %v4721 = vmul.f32 %v4235, %v4347
    %v4722 = vmul.f32 %v4236, %v4352
    %v4723 = vmul.f32 %v4237, %v4357
    %v4724 = vmul.f32 %v4238, %v4362
    %v4725 = vmul.f32 %v4239, %v4367
    %v4726 = vmul.f32 %v4240, %v4372
    %v4727 = vmul.f32 %v4241, %v4377
    %v4728 = vmul.f32 %v4242, %v4382
    %v4729 = vmul.f32 %v4243, %v4387
    %v4730 = vmul.f32 %v4244, %v4392
    %v4731 = vmul.f32 %v4245, %v4397
    %v4732 = vmul.f32 %v4246, %v4402
    %v4733 = vmul.f32 %v4247, %v4407
    %v4734 = vmul.f32 %v4248, %v4412
    %v4735 = vmul.f32 %v4249, %v4417
    %v4736 = vmul.f32 %v4250, %v4422
    %v4737 = vmul.f32 %v4251, %v4427
    %v4738 = vmul.f32 %v4252, %v4432
    %v4739 = vmul.f32 %v4253, %v4437
    %v4740 = vmul.f32 %v4254, %v4442
    %v4741 = vmul.f32 %v4255, %v4447
    %v4742 = vmul.f32 %v4256, %v4452
    %v4743 = vmul.f32 %v4257, %v4457
    %v4744 = vmul.f32 %v4258, %v4462
    %v4745 = vmul.f32 %v4259, %v4467
    %v4746 = vmul.f32 %v4260, %v4472
    %v4747 = vmul.f32 %v4261, %v4477
    %v4748 = vmul.f32 %v4262, %v4482
    %v4749 = vmul.f32 %v4263, %v4487
    %v4750 = vmul.f32 %v4264, %v4492
    %v4751 = vmul.f32 %v4265, %v4497
    %v4752 = vmul.f32 %v4266, %v4502
    %v4753 = vmul.f32 %v4267, %v4507
    %v4754 = vmul.f32 %v4268, %v4512
    %v4755 = vmul.f32 %v4269, %v4517
    %v4756 = vmul.f32 %v4270, %v4522
    %v4757 = vmul.f32 %v4271, %v4527
    %v4758 = vmul.f32 %v4272, %v4532
    %v4759 = vmul.f32 %v4273, %v4537
    %v4760 = vmul.f32 %v4274, %v4542
    %v4761 = vmul.f32 %v4275, %v4547
    %v4762 = vmul.f32 %v4276, %v4552
    %v4763 = vmul.f32 %v4277, %v4557
    %v4764 = vmul.f32 %v4278, %v4562
    %v4765 = vmul.f32 %v4279, %v4567
    %v4766 = vmul.f32 %v4280, %v4572
    %v4767 = vmul.f32 %v4281, %v4577
    %v4768 = vmul.f32 %v4282, %v4582
    %v4769 = vmul.f32 %v4283, %v4587
    %v4770 = vmul.f32 %v4284, %v4592
    %v4771 = vmul.f32 %v4285, %v4597
    %v4772 = vmul.f32 %v4286, %v4602
    %v4773 = vmul.f32 %v4287, %v4607
    %v4774 = vmul.f32 %v4288, %v4612
    %v4775 = vmul.f32 %v4289, %v4617
    %v4776 = vmul.f32 %v4290, %v4622
    %v4777 = vmul.f32 %v4291, %v4627
    %v4778 = vmul.f32 %v4292, %v4632
    %v4779 = vmul.f32 %v4293, %v4637
    %v4780 = vmul.f32 %v4294, %v4642
    %v4781 = vmul.f32 %v4295, %v4647
    %v4782 = vmul.f32 %v4296, %v4652
    %v4783 = vmul.f32 %v4297, %v4657
    %v4784 = vmul.f32 %v4298, %v4662
    %v4785 = vmul.f32 %v4299, %v4667
    %v4786 = vmul.f32 %v4300, %v4672
    %v4787 = vmul.f32 %v4301, %v4677
    %v4788 = vmul.f32 %v4302, %v4682
    %v4789 = vmul.f32 %v4303, %v4687
    %v4790 = vmul.f32 %v4304, %v4692
    %v4791 = vmul.f32 %v4305, %v4697
    %v4792 = vmul.f32 %v4306, %v4702
    %v4793 = vmul.f32 %v4307, %v4707
    %v4794 = vmul.f32 %v4308, %v4712
    %v4795 = vadd.f32 %v4714, %v4715
    %v4796 = vadd.f32 %v4795, %v4716
    %v4797 = vadd.f32 %v4796, %v4717
    %v4798 = vadd.f32 %v4797, %v4718
    %v4799 = vadd.f32 %v4798, %v4719
    %v4800 = vadd.f32 %v4799, %v4720
    %v4801 = vadd.f32 %v4800, %v4721
    %v4802 = vadd.f32 %v4801, %v4722
    %v4803 = vadd.f32 %v4802, %v4723
    %v4804 = vadd.f32 %v4803, %v4724
    %v4805 = vadd.f32 %v4804, %v4725
    %v4806 = vadd.f32 %v4805, %v4726
    %v4807 = vadd.f32 %v4806, %v4727
    %v4808 = vadd.f32 %v4807, %v4728
    %v4809 = vadd.f32 %v4808, %v4729
    %v4810 = vadd.f32 %v4809, %v4730
    %v4811 = vadd.f32 %v4810, %v4731
    %v4812 = vadd.f32 %v4811, %v4732
    %v4813 = vadd.f32 %v4812, %v4733
    %v4814 = vadd.f32 %v4813, %v4734
    %v4815 = vadd.f32 %v4814, %v4735
    %v4816 = vadd.f32 %v4815, %v4736
    %v4817 = vadd.f32 %v4816, %v4737
    %v4818 = vadd.f32 %v4817, %v4738
    %v4819 = vadd.f32 %v4818, %v4739
    %v4820 = vadd.f32 %v4819, %v4740
    %v4821 = vadd.f32 %v4820, %v4741
    %v4822 = vadd.f32 %v4821, %v4742
    %v4823 = vadd.f32 %v4822, %v4743
    %v4824 = vadd.f32 %v4823, %v4744
    %v4825 = vadd.f32 %v4824, %v4745
    %v4826 = vadd.f32 %v4825, %v4746
    %v4827 = vadd.f32 %v4826, %v4747
    %v4828 = vadd.f32 %v4827, %v4748
    %v4829 = vadd.f32 %v4828, %v4749
    %v4830 = vadd.f32 %v4829, %v4750
    %v4831 = vadd.f32 %v4830, %v4751
    %v4832 = vadd.f32 %v4831, %v4752
    %v4833 = vadd.f32 %v4832, %v4753
    %v4834 = vadd.f32 %v4833, %v4754
    %v4835 = vadd.f32 %v4834, %v4755
    %v4836 = vadd.f32 %v4835, %v4756
    %v4837 = vadd.f32 %v4836, %v4757
    %v4838 = vadd.f32 %v4837, %v4758
    %v4839 = vadd.f32 %v4838, %v4759
    %v4840 = vadd.f32 %v4839, %v4760
    %v4841 = vadd.f32 %v4840, %v4761
    %v4842 = vadd.f32 %v4841, %v4762
    %v4843 = vadd.f32 %v4842, %v4763
    %v4844 = vadd.f32 %v4843, %v4764
    %v4845 = vadd.f32 %v4844, %v4765
    %v4846 = vadd.f32 %v4845, %v4766
    %v4847 = vadd.f32 %v4846, %v4767
    %v4848 = vadd.f32 %v4847, %v4768
    %v4849 = vadd.f32 %v4848, %v4769
    %v4850 = vadd.f32 %v4849, %v4770
    %v4851 = vadd.f32 %v4850, %v4771
    %v4852 = vadd.f32 %v4851, %v4772
    %v4853 = vadd.f32 %v4852, %v4773
    %v4854 = vadd.f32 %v4853, %v4774
    %v4855 = vadd.f32 %v4854, %v4775
    %v4856 = vadd.f32 %v4855, %v4776
    %v4857 = vadd.f32 %v4856, %v4777
    %v4858 = vadd.f32 %v4857, %v4778
    %v4859 = vadd.f32 %v4858, %v4779
    %v4860 = vadd.f32 %v4859, %v4780
    %v4861 = vadd.f32 %v4860, %v4781
    %v4862 = vadd.f32 %v4861, %v4782
    %v4863 = vadd.f32 %v4862, %v4783
    %v4864 = vadd.f32 %v4863, %v4784
    %v4865 = vadd.f32 %v4864, %v4785
    %v4866 = vadd.f32 %v4865, %v4786
    %v4867 = vadd.f32 %v4866, %v4787
    %v4868 = vadd.f32 %v4867, %v4788
    %v4869 = vadd.f32 %v4868, %v4789
    %v4870 = vadd.f32 %v4869, %v4790
    %v4871 = vadd.f32 %v4870, %v4791
    %v4872 = vadd.f32 %v4871, %v4792
    %v4873 = vadd.f32 %v4872, %v4793
    %v4874 = vadd.f32 %v4873, %v4794
    %v4875 = vrot.slane %v4874, 4
    %v4876 = vadd.f32 %v4874, %v4875
    %v4877 = vrot.slane %v4876, 2
    %v4878 = vadd.f32 %v4876, %v4877
    %v4879 = vrot.slane %v4878, 1
    %v4880 = vadd.f32 %v4878, %v4879
    %v4881 = vmul.f32 %v4714, %v4228
    %v4882 = vmul.f32 %v4715, %v4229
    %v4883 = vmul.f32 %v4716, %v4230
    %v4884 = vmul.f32 %v4717, %v4231
    %v4885 = vmul.f32 %v4718, %v4232
    %v4886 = vmul.f32 %v4719, %v4233
    %v4887 = vmul.f32 %v4720, %v4234
    %v4888 = vmul.f32 %v4721, %v4235
    %v4889 = vmul.f32 %v4722, %v4236
    %v4890 = vmul.f32 %v4723, %v4237
    %v4891 = vmul.f32 %v4724, %v4238
    %v4892 = vmul.f32 %v4725, %v4239
    %v4893 = vmul.f32 %v4726, %v4240
    %v4894 = vmul.f32 %v4727, %v4241
    %v4895 = vmul.f32 %v4728, %v4242
    %v4896 = vmul.f32 %v4729, %v4243
    %v4897 = vmul.f32 %v4730, %v4244
    %v4898 = vmul.f32 %v4731, %v4245
    %v4899 = vmul.f32 %v4732, %v4246
    %v4900 = vmul.f32 %v4733, %v4247
    %v4901 = vmul.f32 %v4734, %v4248
    %v4902 = vmul.f32 %v4735, %v4249
    %v4903 = vmul.f32 %v4736, %v4250
    %v4904 = vmul.f32 %v4737, %v4251
    %v4905 = vmul.f32 %v4738, %v4252
    %v4906 = vmul.f32 %v4739, %v4253
    %v4907 = vmul.f32 %v4740, %v4254
    %v4908 = vmul.f32 %v4741, %v4255
    %v4909 = vmul.f32 %v4742, %v4256
    %v4910 = vmul.f32 %v4743, %v4257
    %v4911 = vmul.f32 %v4744, %v4258
    %v4912 = vmul.f32 %v4745, %v4259
    %v4913 = vmul.f32 %v4746, %v4260
    %v4914 = vmul.f32 %v4747, %v4261
    %v4915 = vmul.f32 %v4748, %v4262
    %v4916 = vmul.f32 %v4749, %v4263
    %v4917 = vmul.f32 %v4750, %v4264
    %v4918 = vmul.f32 %v4751, %v4265
    %v4919 = vmul.f32 %v4752, %v4266
    %v4920 = vmul.f32 %v4753, %v4267
    %v4921 = vmul.f32 %v4754, %v4268
    %v4922 = vmul.f32 %v4755, %v4269
    %v4923 = vmul.f32 %v4756, %v4270
    %v4924 = vmul.f32 %v4757, %v4271
    %v4925 = vmul.f32 %v4758, %v4272
    %v4926 = vmul.f32 %v4759, %v4273
    %v4927 = vmul.f32 %v4760, %v4274
    %v4928 = vmul.f32 %v4761, %v4275
    %v4929 = vmul.f32 %v4762, %v4276
    %v4930 = vmul.f32 %v4763, %v4277
    %v4931 = vmul.f32 %v4764, %v4278
    %v4932 = vmul.f32 %v4765, %v4279
    %v4933 = vmul.f32 %v4766, %v4280
    %v4934 = vmul.f32 %v4767, %v4281
    %v4935 = vmul.f32 %v4768, %v4282
    %v4936 = vmul.f32 %v4769, %v4283
    %v4937 = vmul.f32 %v4770, %v4284
    %v4938 = vmul.f32 %v4771, %v4285
    %v4939 = vmul.f32 %v4772, %v4286
    %v4940 = vmul.f32 %v4773, %v4287
    %v4941 = vmul.f32 %v4774, %v4288
    %v4942 = vmul.f32 %v4775, %v4289
    %v4943 = vmul.f32 %v4776, %v4290
    %v4944 = vmul.f32 %v4777, %v4291
    %v4945 = vmul.f32 %v4778, %v4292
    %v4946 = vmul.f32 %v4779, %v4293
    %v4947 = vmul.f32 %v4780, %v4294
    %v4948 = vmul.f32 %v4781, %v4295
    %v4949 = vmul.f32 %v4782, %v4296
    %v4950 = vmul.f32 %v4783, %v4297
    %v4951 = vmul.f32 %v4784, %v4298
    %v4952 = vmul.f32 %v4785, %v4299
    %v4953 = vmul.f32 %v4786, %v4300
    %v4954 = vmul.f32 %v4787, %v4301
    %v4955 = vmul.f32 %v4788, %v4302
    %v4956 = vmul.f32 %v4789, %v4303
    %v4957 = vmul.f32 %v4790, %v4304
    %v4958 = vmul.f32 %v4791, %v4305
    %v4959 = vmul.f32 %v4792, %v4306
    %v4960 = vmul.f32 %v4793, %v4307
    %v4961 = vmul.f32 %v4794, %v4308
    %v4962 = vadd.f32 %v4881, %v4882
    %v4963 = vadd.f32 %v4962, %v4883
    %v4964 = vadd.f32 %v4963, %v4884
    %v4965 = vadd.f32 %v4964, %v4885
    %v4966 = vadd.f32 %v4965, %v4886
    %v4967 = vadd.f32 %v4966, %v4887
    %v4968 = vadd.f32 %v4967, %v4888
    %v4969 = vadd.f32 %v4968, %v4889
    %v4970 = vadd.f32 %v4969, %v4890
    %v4971 = vadd.f32 %v4970, %v4891
    %v4972 = vadd.f32 %v4971, %v4892
    %v4973 = vadd.f32 %v4972, %v4893
    %v4974 = vadd.f32 %v4973, %v4894
    %v4975 = vadd.f32 %v4974, %v4895
    %v4976 = vadd.f32 %v4975, %v4896
    %v4977 = vadd.f32 %v4976, %v4897
    %v4978 = vadd.f32 %v4977, %v4898
    %v4979 = vadd.f32 %v4978, %v4899
    %v4980 = vadd.f32 %v4979, %v4900
    %v4981 = vadd.f32 %v4980, %v4901
    %v4982 = vadd.f32 %v4981, %v4902
    %v4983 = vadd.f32 %v4982, %v4903
    %v4984 = vadd.f32 %v4983, %v4904
    %v4985 = vadd.f32 %v4984, %v4905
    %v4986 = vadd.f32 %v4985, %v4906
    %v4987 = vadd.f32 %v4986, %v4907
    %v4988 = vadd.f32 %v4987, %v4908
    %v4989 = vadd.f32 %v4988, %v4909
    %v4990 = vadd.f32 %v4989, %v4910
    %v4991 = vadd.f32 %v4990, %v4911
    %v4992 = vadd.f32 %v4991, %v4912
    %v4993 = vadd.f32 %v4992, %v4913
    %v4994 = vadd.f32 %v4993, %v4914
    %v4995 = vadd.f32 %v4994, %v4915
    %v4996 = vadd.f32 %v4995, %v4916
    %v4997 = vadd.f32 %v4996, %v4917
    %v4998 = vadd.f32 %v4997, %v4918
    %v4999 = vadd.f32 %v4998, %v4919
    %v5000 = vadd.f32 %v4999, %v4920
    %v5001 = vadd.f32 %v5000, %v4921
    %v5002 = vadd.f32 %v5001, %v4922
    %v5003 = vadd.f32 %v5002, %v4923
    %v5004 = vadd.f32 %v5003, %v4924
    %v5005 = vadd.f32 %v5004, %v4925
    %v5006 = vadd.f32 %v5005, %v4926
    %v5007 = vadd.f32 %v5006, %v4927
    %v5008 = vadd.f32 %v5007, %v4928
    %v5009 = vadd.f32 %v5008, %v4929
    %v5010 = vadd.f32 %v5009, %v4930
    %v5011 = vadd.f32 %v5010, %v4931
    %v5012 = vadd.f32 %v5011, %v4932
    %v5013 = vadd.f32 %v5012, %v4933
    %v5014 = vadd.f32 %v5013, %v4934
    %v5015 = vadd.f32 %v5014, %v4935
    %v5016 = vadd.f32 %v5015, %v4936
    %v5017 = vadd.f32 %v5016, %v4937
    %v5018 = vadd.f32 %v5017, %v4938
    %v5019 = vadd.f32 %v5018, %v4939
    %v5020 = vadd.f32 %v5019, %v4940
    %v5021 = vadd.f32 %v5020, %v4941
    %v5022 = vadd.f32 %v5021, %v4942
    %v5023 = vadd.f32 %v5022, %v4943
    %v5024 = vadd.f32 %v5023, %v4944
    %v5025 = vadd.f32 %v5024, %v4945
    %v5026 = vadd.f32 %v5025, %v4946
    %v5027 = vadd.f32 %v5026, %v4947
    %v5028 = vadd.f32 %v5027, %v4948
    %v5029 = vadd.f32 %v5028, %v4949
    %v5030 = vadd.f32 %v5029, %v4950
    %v5031 = vadd.f32 %v5030, %v4951
    %v5032 = vadd.f32 %v5031, %v4952
    %v5033 = vadd.f32 %v5032, %v4953
    %v5034 = vadd.f32 %v5033, %v4954
    %v5035 = vadd.f32 %v5034, %v4955
    %v5036 = vadd.f32 %v5035, %v4956
    %v5037 = vadd.f32 %v5036, %v4957
    %v5038 = vadd.f32 %v5037, %v4958
    %v5039 = vadd.f32 %v5038, %v4959
    %v5040 = vadd.f32 %v5039, %v4960
    %v5041 = vadd.f32 %v5040, %v4961
    %v5042 = vrot.slane %v5041, 4
    %v5043 = vadd.f32 %v5041, %v5042
    %v5044 = vrot.slane %v5043, 2
    %v5045 = vadd.f32 %v5043, %v5044
    %v5046 = vrot.slane %v5045, 1
    %v5047 = vadd.f32 %v5045, %v5046
    %v5048 = vmul.f32 %v4880, 0.001953125
    %v5049 = vmul.f32 %v5047, 0.001953125
    %v5050 = vmul.f32 %v5048, %v5048
    %v5051 = vsub.f32 %v5049, %v5050
    %v5052 = vmax.f32 %v5051, 0.0
    %v5053 = vld [vmem:[%s3] sm:$0x1]
    %v5054 = vadd.f32 %v5052, 1e-05
    %v5055 = vrsqrt.pop %v5054
    %v5056 = vmul.f32 %v5055, %v5054
    %v5057 = vmul.f32 %v5056, %v5055
    %v5058 = vmul.f32 0.5, %v5057
    %v5059 = vsub.f32 1.5, %v5058
    %v5060 = vmul.f32 %v5055, %v5059
    %vm5061 = vweird.f32 %v5054
    %vm5062 = vweird.f32 %v5055
    %vm5063 = vmor %vm5061, %vm5062
    %v5064 = vsel %vm5063, %v5055, %v5060
    %v5065 = vmul.f32 %v5053, %v5064
    %v5066 = vld [vmem:[%s4] sm:$0x1]
    %v5067 = vmul.f32 %v5048, %v5065
    %v5068 = vsub.f32 %v5066, %v5067
    %v5070 = vperm.slane %v5065, 0
    %v5072 = vmul.f32 %v4228, %v5070
    %v5073 = vmul.f32 %v4229, %v5070
    %v5074 = vmul.f32 %v4230, %v5070
    %v5075 = vmul.f32 %v4231, %v5070
    %v5076 = vmul.f32 %v4232, %v5070
    %v5077 = vmul.f32 %v4233, %v5070
    %v5078 = vmul.f32 %v4234, %v5070
    %v5079 = vmul.f32 %v4235, %v5070
    %v5080 = vmul.f32 %v4236, %v5070
    %v5081 = vmul.f32 %v4237, %v5070
    %v5082 = vmul.f32 %v4238, %v5070
    %v5083 = vmul.f32 %v4239, %v5070
    %v5084 = vmul.f32 %v4240, %v5070
    %v5085 = vmul.f32 %v4241, %v5070
    %v5086 = vmul.f32 %v4242, %v5070
    %v5087 = vmul.f32 %v4243, %v5070
    %v5088 = vmul.f32 %v4244, %v5070
    %v5089 = vmul.f32 %v4245, %v5070
    %v5090 = vmul.f32 %v4246, %v5070
    %v5091 = vmul.f32 %v4247, %v5070
    %v5092 = vmul.f32 %v4248, %v5070
    %v5093 = vmul.f32 %v4249, %v5070
    %v5094 = vmul.f32 %v4250, %v5070
    %v5095 = vmul.f32 %v4251, %v5070
    %v5096 = vmul.f32 %v4252, %v5070
    %v5097 = vmul.f32 %v4253, %v5070
    %v5098 = vmul.f32 %v4254, %v5070
    %v5099 = vmul.f32 %v4255, %v5070
    %v5100 = vmul.f32 %v4256, %v5070
    %v5101 = vmul.f32 %v4257, %v5070
    %v5102 = vmul.f32 %v4258, %v5070
    %v5103 = vmul.f32 %v4259, %v5070
    %v5104 = vmul.f32 %v4260, %v5070
    %v5105 = vmul.f32 %v4261, %v5070
    %v5106 = vmul.f32 %v4262, %v5070
    %v5107 = vmul.f32 %v4263, %v5070
    %v5108 = vmul.f32 %v4264, %v5070
    %v5109 = vmul.f32 %v4265, %v5070
    %v5110 = vmul.f32 %v4266, %v5070
    %v5111 = vmul.f32 %v4267, %v5070
    %v5112 = vmul.f32 %v4268, %v5070
    %v5113 = vmul.f32 %v4269, %v5070
    %v5114 = vmul.f32 %v4270, %v5070
    %v5115 = vmul.f32 %v4271, %v5070
    %v5116 = vmul.f32 %v4272, %v5070
    %v5117 = vmul.f32 %v4273, %v5070
    %v5118 = vmul.f32 %v4274, %v5070
    %v5119 = vmul.f32 %v4275, %v5070
    %v5120 = vmul.f32 %v4276, %v5070
    %v5121 = vmul.f32 %v4277, %v5070
    %v5122 = vmul.f32 %v4278, %v5070
    %v5123 = vmul.f32 %v4279, %v5070
    %v5124 = vmul.f32 %v4280, %v5070
    %v5125 = vmul.f32 %v4281, %v5070
    %v5126 = vmul.f32 %v4282, %v5070
    %v5127 = vmul.f32 %v4283, %v5070
    %v5128 = vmul.f32 %v4284, %v5070
    %v5129 = vmul.f32 %v4285, %v5070
    %v5130 = vmul.f32 %v4286, %v5070
    %v5131 = vmul.f32 %v4287, %v5070
    %v5132 = vmul.f32 %v4288, %v5070
    %v5133 = vmul.f32 %v4289, %v5070
    %v5134 = vmul.f32 %v4290, %v5070
    %v5135 = vmul.f32 %v4291, %v5070
    %v5136 = vmul.f32 %v4292, %v5070
    %v5137 = vmul.f32 %v4293, %v5070
    %v5138 = vmul.f32 %v4294, %v5070
    %v5139 = vmul.f32 %v4295, %v5070
    %v5140 = vmul.f32 %v4296, %v5070
    %v5141 = vmul.f32 %v4297, %v5070
    %v5142 = vmul.f32 %v4298, %v5070
    %v5143 = vmul.f32 %v4299, %v5070
    %v5144 = vmul.f32 %v4300, %v5070
    %v5145 = vmul.f32 %v4301, %v5070
    %v5146 = vmul.f32 %v4302, %v5070
    %v5147 = vmul.f32 %v4303, %v5070
    %v5148 = vmul.f32 %v4304, %v5070
    %v5149 = vmul.f32 %v4305, %v5070
    %v5150 = vmul.f32 %v4306, %v5070
    %v5151 = vmul.f32 %v4307, %v5070
    %v5152 = vmul.f32 %v4308, %v5070
    %v5154 = vperm.slane %v5068, 0
    %v5156 = vadd.f32 %v5072, %v5154
    %v5157 = vadd.f32 %v5073, %v5154
    %v5158 = vadd.f32 %v5074, %v5154
    %v5159 = vadd.f32 %v5075, %v5154
    %v5160 = vadd.f32 %v5076, %v5154
    %v5161 = vadd.f32 %v5077, %v5154
    %v5162 = vadd.f32 %v5078, %v5154
    %v5163 = vadd.f32 %v5079, %v5154
    %v5164 = vadd.f32 %v5080, %v5154
    %v5165 = vadd.f32 %v5081, %v5154
    %v5166 = vadd.f32 %v5082, %v5154
    %v5167 = vadd.f32 %v5083, %v5154
    %v5168 = vadd.f32 %v5084, %v5154
    %v5169 = vadd.f32 %v5085, %v5154
    %v5170 = vadd.f32 %v5086, %v5154
    %v5171 = vadd.f32 %v5087, %v5154
    %v5172 = vadd.f32 %v5088, %v5154
    %v5173 = vadd.f32 %v5089, %v5154
    %v5174 = vadd.f32 %v5090, %v5154
    %v5175 = vadd.f32 %v5091, %v5154
    %v5176 = vadd.f32 %v5092, %v5154
    %v5177 = vadd.f32 %v5093, %v5154
    %v5178 = vadd.f32 %v5094, %v5154
    %v5179 = vadd.f32 %v5095, %v5154
    %v5180 = vadd.f32 %v5096, %v5154
    %v5181 = vadd.f32 %v5097, %v5154
    %v5182 = vadd.f32 %v5098, %v5154
    %v5183 = vadd.f32 %v5099, %v5154
    %v5184 = vadd.f32 %v5100, %v5154
    %v5185 = vadd.f32 %v5101, %v5154
    %v5186 = vadd.f32 %v5102, %v5154
    %v5187 = vadd.f32 %v5103, %v5154
    %v5188 = vadd.f32 %v5104, %v5154
    %v5189 = vadd.f32 %v5105, %v5154
    %v5190 = vadd.f32 %v5106, %v5154
    %v5191 = vadd.f32 %v5107, %v5154
    %v5192 = vadd.f32 %v5108, %v5154
    %v5193 = vadd.f32 %v5109, %v5154
    %v5194 = vadd.f32 %v5110, %v5154
    %v5195 = vadd.f32 %v5111, %v5154
    %v5196 = vadd.f32 %v5112, %v5154
    %v5197 = vadd.f32 %v5113, %v5154
    %v5198 = vadd.f32 %v5114, %v5154
    %v5199 = vadd.f32 %v5115, %v5154
    %v5200 = vadd.f32 %v5116, %v5154
    %v5201 = vadd.f32 %v5117, %v5154
    %v5202 = vadd.f32 %v5118, %v5154
    %v5203 = vadd.f32 %v5119, %v5154
    %v5204 = vadd.f32 %v5120, %v5154
    %v5205 = vadd.f32 %v5121, %v5154
    %v5206 = vadd.f32 %v5122, %v5154
    %v5207 = vadd.f32 %v5123, %v5154
    %v5208 = vadd.f32 %v5124, %v5154
    %v5209 = vadd.f32 %v5125, %v5154
    %v5210 = vadd.f32 %v5126, %v5154
    %v5211 = vadd.f32 %v5127, %v5154
    %v5212 = vadd.f32 %v5128, %v5154
    %v5213 = vadd.f32 %v5129, %v5154
    %v5214 = vadd.f32 %v5130, %v5154
    %v5215 = vadd.f32 %v5131, %v5154
    %v5216 = vadd.f32 %v5132, %v5154
    %v5217 = vadd.f32 %v5133, %v5154
    %v5218 = vadd.f32 %v5134, %v5154
    %v5219 = vadd.f32 %v5135, %v5154
    %v5220 = vadd.f32 %v5136, %v5154
    %v5221 = vadd.f32 %v5137, %v5154
    %v5222 = vadd.f32 %v5138, %v5154
    %v5223 = vadd.f32 %v5139, %v5154
    %v5224 = vadd.f32 %v5140, %v5154
    %v5225 = vadd.f32 %v5141, %v5154
    %v5226 = vadd.f32 %v5142, %v5154
    %v5227 = vadd.f32 %v5143, %v5154
    %v5228 = vadd.f32 %v5144, %v5154
    %v5229 = vadd.f32 %v5145, %v5154
    %v5230 = vadd.f32 %v5146, %v5154
    %v5231 = vadd.f32 %v5147, %v5154
    %v5232 = vadd.f32 %v5148, %v5154
    %v5233 = vadd.f32 %v5149, %v5154
    %v5234 = vadd.f32 %v5150, %v5154
    %v5235 = vadd.f32 %v5151, %v5154
    %v5236 = vadd.f32 %v5152, %v5154
    %vm5237 = vcmp.ge.f32.partialorder %v5156, 0.0
    %vm5238 = vcmp.ge.f32.partialorder %v5157, 0.0
    %vm5239 = vcmp.ge.f32.partialorder %v5158, 0.0
    %vm5240 = vcmp.ge.f32.partialorder %v5159, 0.0
    %vm5241 = vcmp.ge.f32.partialorder %v5160, 0.0
    %vm5242 = vcmp.ge.f32.partialorder %v5161, 0.0
    %vm5243 = vcmp.ge.f32.partialorder %v5162, 0.0
    %vm5244 = vcmp.ge.f32.partialorder %v5163, 0.0
    %vm5245 = vcmp.ge.f32.partialorder %v5164, 0.0
    %vm5246 = vcmp.ge.f32.partialorder %v5165, 0.0
    %vm5247 = vcmp.ge.f32.partialorder %v5166, 0.0
    %vm5248 = vcmp.ge.f32.partialorder %v5167, 0.0
    %vm5249 = vcmp.ge.f32.partialorder %v5168, 0.0
    %vm5250 = vcmp.ge.f32.partialorder %v5169, 0.0
    %vm5251 = vcmp.ge.f32.partialorder %v5170, 0.0
    %vm5252 = vcmp.ge.f32.partialorder %v5171, 0.0
    %vm5253 = vcmp.ge.f32.partialorder %v5172, 0.0
    %vm5254 = vcmp.ge.f32.partialorder %v5173, 0.0
    %vm5255 = vcmp.ge.f32.partialorder %v5174, 0.0
    %vm5256 = vcmp.ge.f32.partialorder %v5175, 0.0
    %vm5257 = vcmp.ge.f32.partialorder %v5176, 0.0
    %vm5258 = vcmp.ge.f32.partialorder %v5177, 0.0
    %vm5259 = vcmp.ge.f32.partialorder %v5178, 0.0
    %vm5260 = vcmp.ge.f32.partialorder %v5179, 0.0
    %vm5261 = vcmp.ge.f32.partialorder %v5180, 0.0
    %vm5262 = vcmp.ge.f32.partialorder %v5181, 0.0
    %vm5263 = vcmp.ge.f32.partialorder %v5182, 0.0
    %vm5264 = vcmp.ge.f32.partialorder %v5183, 0.0
    %vm5265 = vcmp.ge.f32.partialorder %v5184, 0.0
    %vm5266 = vcmp.ge.f32.partialorder %v5185, 0.0
    %vm5267 = vcmp.ge.f32.partialorder %v5186, 0.0
    %vm5268 = vcmp.ge.f32.partialorder %v5187, 0.0
    %vm5269 = vcmp.ge.f32.partialorder %v5188, 0.0
    %vm5270 = vcmp.ge.f32.partialorder %v5189, 0.0
    %vm5271 = vcmp.ge.f32.partialorder %v5190, 0.0
    %vm5272 = vcmp.ge.f32.partialorder %v5191, 0.0
    %vm5273 = vcmp.ge.f32.partialorder %v5192, 0.0
    %vm5274 = vcmp.ge.f32.partialorder %v5193, 0.0
    %vm5275 = vcmp.ge.f32.partialorder %v5194, 0.0
    %vm5276 = vcmp.ge.f32.partialorder %v5195, 0.0
    %vm5277 = vcmp.ge.f32.partialorder %v5196, 0.0
    %vm5278 = vcmp.ge.f32.partialorder %v5197, 0.0
    %vm5279 = vcmp.ge.f32.partialorder %v5198, 0.0
    %vm5280 = vcmp.ge.f32.partialorder %v5199, 0.0
    %vm5281 = vcmp.ge.f32.partialorder %v5200, 0.0
    %vm5282 = vcmp.ge.f32.partialorder %v5201, 0.0
    %vm5283 = vcmp.ge.f32.partialorder %v5202, 0.0
    %vm5284 = vcmp.ge.f32.partialorder %v5203, 0.0
    %vm5285 = vcmp.ge.f32.partialorder %v5204, 0.0
    %vm5286 = vcmp.ge.f32.partialorder %v5205, 0.0
    %vm5287 = vcmp.ge.f32.partialorder %v5206, 0.0
    %vm5288 = vcmp.ge.f32.partialorder %v5207, 0.0
    %vm5289 = vcmp.ge.f32.partialorder %v5208, 0.0
    %vm5290 = vcmp.ge.f32.partialorder %v5209, 0.0
    %vm5291 = vcmp.ge.f32.partialorder %v5210, 0.0
    %vm5292 = vcmp.ge.f32.partialorder %v5211, 0.0
    %vm5293 = vcmp.ge.f32.partialorder %v5212, 0.0
    %vm5294 = vcmp.ge.f32.partialorder %v5213, 0.0
    %vm5295 = vcmp.ge.f32.partialorder %v5214, 0.0
    %vm5296 = vcmp.ge.f32.partialorder %v5215, 0.0
    %vm5297 = vcmp.ge.f32.partialorder %v5216, 0.0
    %vm5298 = vcmp.ge.f32.partialorder %v5217, 0.0
    %vm5299 = vcmp.ge.f32.partialorder %v5218, 0.0
    %vm5300 = vcmp.ge.f32.partialorder %v5219, 0.0
    %vm5301 = vcmp.ge.f32.partialorder %v5220, 0.0
    %vm5302 = vcmp.ge.f32.partialorder %v5221, 0.0
    %vm5303 = vcmp.ge.f32.partialorder %v5222, 0.0
    %vm5304 = vcmp.ge.f32.partialorder %v5223, 0.0
    %vm5305 = vcmp.ge.f32.partialorder %v5224, 0.0
    %vm5306 = vcmp.ge.f32.partialorder %v5225, 0.0
    %vm5307 = vcmp.ge.f32.partialorder %v5226, 0.0
    %vm5308 = vcmp.ge.f32.partialorder %v5227, 0.0
    %vm5309 = vcmp.ge.f32.partialorder %v5228, 0.0
    %vm5310 = vcmp.ge.f32.partialorder %v5229, 0.0
    %vm5311 = vcmp.ge.f32.partialorder %v5230, 0.0
    %vm5312 = vcmp.ge.f32.partialorder %v5231, 0.0
    %vm5313 = vcmp.ge.f32.partialorder %v5232, 0.0
    %vm5314 = vcmp.ge.f32.partialorder %v5233, 0.0
    %vm5315 = vcmp.ge.f32.partialorder %v5234, 0.0
    %vm5316 = vcmp.ge.f32.partialorder %v5235, 0.0
    %vm5317 = vcmp.ge.f32.partialorder %v5236, 0.0
    %v5318 = vmul.f32 %v5156, 0.01
    %v5319 = vmul.f32 %v5157, 0.01
    %v5320 = vmul.f32 %v5158, 0.01
    %v5321 = vmul.f32 %v5159, 0.01
    %v5322 = vmul.f32 %v5160, 0.01
    %v5323 = vmul.f32 %v5161, 0.01
    %v5324 = vmul.f32 %v5162, 0.01
    %v5325 = vmul.f32 %v5163, 0.01
    %v5326 = vmul.f32 %v5164, 0.01
    %v5327 = vmul.f32 %v5165, 0.01
    %v5328 = vmul.f32 %v5166, 0.01
    %v5329 = vmul.f32 %v5167, 0.01
    %v5330 = vmul.f32 %v5168, 0.01
    %v5331 = vmul.f32 %v5169, 0.01
    %v5332 = vmul.f32 %v5170, 0.01
    %v5333 = vmul.f32 %v5171, 0.01
    %v5334 = vmul.f32 %v5172, 0.01
    %v5335 = vmul.f32 %v5173, 0.01
    %v5336 = vmul.f32 %v5174, 0.01
    %v5337 = vmul.f32 %v5175, 0.01
    %v5338 = vmul.f32 %v5176, 0.01
    %v5339 = vmul.f32 %v5177, 0.01
    %v5340 = vmul.f32 %v5178, 0.01
    %v5341 = vmul.f32 %v5179, 0.01
    %v5342 = vmul.f32 %v5180, 0.01
    %v5343 = vmul.f32 %v5181, 0.01
    %v5344 = vmul.f32 %v5182, 0.01
    %v5345 = vmul.f32 %v5183, 0.01
    %v5346 = vmul.f32 %v5184, 0.01
    %v5347 = vmul.f32 %v5185, 0.01
    %v5348 = vmul.f32 %v5186, 0.01
    %v5349 = vmul.f32 %v5187, 0.01
    %v5350 = vmul.f32 %v5188, 0.01
    %v5351 = vmul.f32 %v5189, 0.01
    %v5352 = vmul.f32 %v5190, 0.01
    %v5353 = vmul.f32 %v5191, 0.01
    %v5354 = vmul.f32 %v5192, 0.01
    %v5355 = vmul.f32 %v5193, 0.01
    %v5356 = vmul.f32 %v5194, 0.01
    %v5357 = vmul.f32 %v5195, 0.01
    %v5358 = vmul.f32 %v5196, 0.01
    %v5359 = vmul.f32 %v5197, 0.01
    %v5360 = vmul.f32 %v5198, 0.01
    %v5361 = vmul.f32 %v5199, 0.01
    %v5362 = vmul.f32 %v5200, 0.01
    %v5363 = vmul.f32 %v5201, 0.01
    %v5364 = vmul.f32 %v5202, 0.01
    %v5365 = vmul.f32 %v5203, 0.01
    %v5366 = vmul.f32 %v5204, 0.01
    %v5367 = vmul.f32 %v5205, 0.01
    %v5368 = vmul.f32 %v5206, 0.01
    %v5369 = vmul.f32 %v5207, 0.01
    %v5370 = vmul.f32 %v5208, 0.01
    %v5371 = vmul.f32 %v5209, 0.01
    %v5372 = vmul.f32 %v5210, 0.01
    %v5373 = vmul.f32 %v5211, 0.01
    %v5374 = vmul.f32 %v5212, 0.01
    %v5375 = vmul.f32 %v5213, 0.01
    %v5376 = vmul.f32 %v5214, 0.01
    %v5377 = vmul.f32 %v5215, 0.01
    %v5378 = vmul.f32 %v5216, 0.01
    %v5379 = vmul.f32 %v5217, 0.01
    %v5380 = vmul.f32 %v5218, 0.01
    %v5381 = vmul.f32 %v5219, 0.01
    %v5382 = vmul.f32 %v5220, 0.01
    %v5383 = vmul.f32 %v5221, 0.01
    %v5384 = vmul.f32 %v5222, 0.01
    %v5385 = vmul.f32 %v5223, 0.01
    %v5386 = vmul.f32 %v5224, 0.01
    %v5387 = vmul.f32 %v5225, 0.01
    %v5388 = vmul.f32 %v5226, 0.01
    %v5389 = vmul.f32 %v5227, 0.01
    %v5390 = vmul.f32 %v5228, 0.01
    %v5391 = vmul.f32 %v5229, 0.01
    %v5392 = vmul.f32 %v5230, 0.01
    %v5393 = vmul.f32 %v5231, 0.01
    %v5394 = vmul.f32 %v5232, 0.01
    %v5395 = vmul.f32 %v5233, 0.01
    %v5396 = vmul.f32 %v5234, 0.01
    %v5397 = vmul.f32 %v5235, 0.01
    %v5398 = vmul.f32 %v5236, 0.01
    %v5399 = vsel %vm5237, %v5156, %v5318
    %v5400 = vsel %vm5238, %v5157, %v5319
    %v5401 = vsel %vm5239, %v5158, %v5320
    %v5402 = vsel %vm5240, %v5159, %v5321
    %v5403 = vsel %vm5241, %v5160, %v5322
    %v5404 = vsel %vm5242, %v5161, %v5323
    %v5405 = vsel %vm5243, %v5162, %v5324
    %v5406 = vsel %vm5244, %v5163, %v5325
    %v5407 = vsel %vm5245, %v5164, %v5326
    %v5408 = vsel %vm5246, %v5165, %v5327
    %v5409 = vsel %vm5247, %v5166, %v5328
    %v5410 = vsel %vm5248, %v5167, %v5329
    %v5411 = vsel %vm5249, %v5168, %v5330
    %v5412 = vsel %vm5250, %v5169, %v5331
    %v5413 = vsel %vm5251, %v5170, %v5332
    %v5414 = vsel %vm5252, %v5171, %v5333
    %v5415 = vsel %vm5253, %v5172, %v5334
    %v5416 = vsel %vm5254, %v5173, %v5335
    %v5417 = vsel %vm5255, %v5174, %v5336
    %v5418 = vsel %vm5256, %v5175, %v5337
    %v5419 = vsel %vm5257, %v5176, %v5338
    %v5420 = vsel %vm5258, %v5177, %v5339
    %v5421 = vsel %vm5259, %v5178, %v5340
    %v5422 = vsel %vm5260, %v5179, %v5341
    %v5423 = vsel %vm5261, %v5180, %v5342
    %v5424 = vsel %vm5262, %v5181, %v5343
    %v5425 = vsel %vm5263, %v5182, %v5344
    %v5426 = vsel %vm5264, %v5183, %v5345
    %v5427 = vsel %vm5265, %v5184, %v5346
    %v5428 = vsel %vm5266, %v5185, %v5347
    %v5429 = vsel %vm5267, %v5186, %v5348
    %v5430 = vsel %vm5268, %v5187, %v5349
    %v5431 = vsel %vm5269, %v5188, %v5350
    %v5432 = vsel %vm5270, %v5189, %v5351
    %v5433 = vsel %vm5271, %v5190, %v5352
    %v5434 = vsel %vm5272, %v5191, %v5353
    %v5435 = vsel %vm5273, %v5192, %v5354
    %v5436 = vsel %vm5274, %v5193, %v5355
    %v5437 = vsel %vm5275, %v5194, %v5356
    %v5438 = vsel %vm5276, %v5195, %v5357
    %v5439 = vsel %vm5277, %v5196, %v5358
    %v5440 = vsel %vm5278, %v5197, %v5359
    %v5441 = vsel %vm5279, %v5198, %v5360
    %v5442 = vsel %vm5280, %v5199, %v5361
    %v5443 = vsel %vm5281, %v5200, %v5362
    %v5444 = vsel %vm5282, %v5201, %v5363
    %v5445 = vsel %vm5283, %v5202, %v5364
    %v5446 = vsel %vm5284, %v5203, %v5365
    %v5447 = vsel %vm5285, %v5204, %v5366
    %v5448 = vsel %vm5286, %v5205, %v5367
    %v5449 = vsel %vm5287, %v5206, %v5368
    %v5450 = vsel %vm5288, %v5207, %v5369
    %v5451 = vsel %vm5289, %v5208, %v5370
    %v5452 = vsel %vm5290, %v5209, %v5371
    %v5453 = vsel %vm5291, %v5210, %v5372
    %v5454 = vsel %vm5292, %v5211, %v5373
    %v5455 = vsel %vm5293, %v5212, %v5374
    %v5456 = vsel %vm5294, %v5213, %v5375
    %v5457 = vsel %vm5295, %v5214, %v5376
    %v5458 = vsel %vm5296, %v5215, %v5377
    %v5459 = vsel %vm5297, %v5216, %v5378
    %v5460 = vsel %vm5298, %v5217, %v5379
    %v5461 = vsel %vm5299, %v5218, %v5380
    %v5462 = vsel %vm5300, %v5219, %v5381
    %v5463 = vsel %vm5301, %v5220, %v5382
    %v5464 = vsel %vm5302, %v5221, %v5383
    %v5465 = vsel %vm5303, %v5222, %v5384
    %v5466 = vsel %vm5304, %v5223, %v5385
    %v5467 = vsel %vm5305, %v5224, %v5386
    %v5468 = vsel %vm5306, %v5225, %v5387
    %v5469 = vsel %vm5307, %v5226, %v5388
    %v5470 = vsel %vm5308, %v5227, %v5389
    %v5471 = vsel %vm5309, %v5228, %v5390
    %v5472 = vsel %vm5310, %v5229, %v5391
    %v5473 = vsel %vm5311, %v5230, %v5392
    %v5474 = vsel %vm5312, %v5231, %v5393
    %v5475 = vsel %vm5313, %v5232, %v5394
    %v5476 = vsel %vm5314, %v5233, %v5395
    %v5477 = vsel %vm5315, %v5234, %v5396
    %v5478 = vsel %vm5316, %v5235, %v5397
    %v5479 = vsel %vm5317, %v5236, %v5398
    %v5480 = vmul.f32 %v5399, %v4312
    %v5481 = vmul.f32 %v5400, %v4317
    %v5482 = vmul.f32 %v5401, %v4322
    %v5483 = vmul.f32 %v5402, %v4327
    %v5484 = vmul.f32 %v5403, %v4332
    %v5485 = vmul.f32 %v5404, %v4337
    %v5486 = vmul.f32 %v5405, %v4342
    %v5487 = vmul.f32 %v5406, %v4347
    %v5488 = vmul.f32 %v5407, %v4352
    %v5489 = vmul.f32 %v5408, %v4357
    %v5490 = vmul.f32 %v5409, %v4362
    %v5491 = vmul.f32 %v5410, %v4367
    %v5492 = vmul.f32 %v5411, %v4372
    %v5493 = vmul.f32 %v5412, %v4377
    %v5494 = vmul.f32 %v5413, %v4382
    %v5495 = vmul.f32 %v5414, %v4387
    %v5496 = vmul.f32 %v5415, %v4392
    %v5497 = vmul.f32 %v5416, %v4397
    %v5498 = vmul.f32 %v5417, %v4402
    %v5499 = vmul.f32 %v5418, %v4407
    %v5500 = vmul.f32 %v5419, %v4412
    %v5501 = vmul.f32 %v5420, %v4417
    %v5502 = vmul.f32 %v5421, %v4422
    %v5503 = vmul.f32 %v5422, %v4427
    %v5504 = vmul.f32 %v5423, %v4432
    %v5505 = vmul.f32 %v5424, %v4437
    %v5506 = vmul.f32 %v5425, %v4442
    %v5507 = vmul.f32 %v5426, %v4447
    %v5508 = vmul.f32 %v5427, %v4452
    %v5509 = vmul.f32 %v5428, %v4457
    %v5510 = vmul.f32 %v5429, %v4462
    %v5511 = vmul.f32 %v5430, %v4467
    %v5512 = vmul.f32 %v5431, %v4472
    %v5513 = vmul.f32 %v5432, %v4477
    %v5514 = vmul.f32 %v5433, %v4482
    %v5515 = vmul.f32 %v5434, %v4487
    %v5516 = vmul.f32 %v5435, %v4492
    %v5517 = vmul.f32 %v5436, %v4497
    %v5518 = vmul.f32 %v5437, %v4502
    %v5519 = vmul.f32 %v5438, %v4507
    %v5520 = vmul.f32 %v5439, %v4512
    %v5521 = vmul.f32 %v5440, %v4517
    %v5522 = vmul.f32 %v5441, %v4522
    %v5523 = vmul.f32 %v5442, %v4527
    %v5524 = vmul.f32 %v5443, %v4532
    %v5525 = vmul.f32 %v5444, %v4537
    %v5526 = vmul.f32 %v5445, %v4542
    %v5527 = vmul.f32 %v5446, %v4547
    %v5528 = vmul.f32 %v5447, %v4552
    %v5529 = vmul.f32 %v5448, %v4557
    %v5530 = vmul.f32 %v5449, %v4562
    %v5531 = vmul.f32 %v5450, %v4567
    %v5532 = vmul.f32 %v5451, %v4572
    %v5533 = vmul.f32 %v5452, %v4577
    %v5534 = vmul.f32 %v5453, %v4582
    %v5535 = vmul.f32 %v5454, %v4587
    %v5536 = vmul.f32 %v5455, %v4592
    %v5537 = vmul.f32 %v5456, %v4597
    %v5538 = vmul.f32 %v5457, %v4602
    %v5539 = vmul.f32 %v5458, %v4607
    %v5540 = vmul.f32 %v5459, %v4612
    %v5541 = vmul.f32 %v5460, %v4617
    %v5542 = vmul.f32 %v5461, %v4622
    %v5543 = vmul.f32 %v5462, %v4627
    %v5544 = vmul.f32 %v5463, %v4632
    %v5545 = vmul.f32 %v5464, %v4637
    %v5546 = vmul.f32 %v5465, %v4642
    %v5547 = vmul.f32 %v5466, %v4647
    %v5548 = vmul.f32 %v5467, %v4652
    %v5549 = vmul.f32 %v5468, %v4657
    %v5550 = vmul.f32 %v5469, %v4662
    %v5551 = vmul.f32 %v5470, %v4667
    %v5552 = vmul.f32 %v5471, %v4672
    %v5553 = vmul.f32 %v5472, %v4677
    %v5554 = vmul.f32 %v5473, %v4682
    %v5555 = vmul.f32 %v5474, %v4687
    %v5556 = vmul.f32 %v5475, %v4692
    %v5557 = vmul.f32 %v5476, %v4697
    %v5558 = vmul.f32 %v5477, %v4702
    %v5559 = vmul.f32 %v5478, %v4707
    %v5560 = vmul.f32 %v5479, %v4712
    %5561 = vst [vmem:[#allocation2] sm:$0xff] 0.0
    %5562 = vst [vmem:[#allocation2 + $0x8] sm:$0xff] 0.0
    %5563 = vst [vmem:[#allocation2 + $0x10] sm:$0xff] 0.0
    %5564 = vst [vmem:[#allocation2 + $0x2a0] sm:$0xff] 0.0
    %5565 = vst [vmem:[#allocation2 + $0x2a8] sm:$0xff] 0.0
    %5566 = vst [vmem:[#allocation2 + $0x2b0] sm:$0xff] 0.0
    %5567 = vst [vmem:[#allocation2 + $0x18] sm:$0xff] %v5480
    %5568 = vst [vmem:[#allocation2 + $0x20] sm:$0xff] %v5481
    %5569 = vst [vmem:[#allocation2 + $0x28] sm:$0xff] %v5482
    %5570 = vst [vmem:[#allocation2 + $0x30] sm:$0xff] %v5483
    %5571 = vst [vmem:[#allocation2 + $0x38] sm:$0xff] %v5484
    %5572 = vst [vmem:[#allocation2 + $0x40] sm:$0xff] %v5485
    %5573 = vst [vmem:[#allocation2 + $0x48] sm:$0xff] %v5486
    %5574 = vst [vmem:[#allocation2 + $0x50] sm:$0xff] %v5487
    %5575 = vst [vmem:[#allocation2 + $0x58] sm:$0xff] %v5488
    %5576 = vst [vmem:[#allocation2 + $0x60] sm:$0xff] %v5489
    %5577 = vst [vmem:[#allocation2 + $0x68] sm:$0xff] %v5490
    %5578 = vst [vmem:[#allocation2 + $0x70] sm:$0xff] %v5491
    %5579 = vst [vmem:[#allocation2 + $0x78] sm:$0xff] %v5492
    %5580 = vst [vmem:[#allocation2 + $0x80] sm:$0xff] %v5493
    %5581 = vst [vmem:[#allocation2 + $0x88] sm:$0xff] %v5494
    %5582 = vst [vmem:[#allocation2 + $0x90] sm:$0xff] %v5495
    %5583 = vst [vmem:[#allocation2 + $0x98] sm:$0xff] %v5496
    %5584 = vst [vmem:[#allocation2 + $0xa0] sm:$0xff] %v5497
    %5585 = vst [vmem:[#allocation2 + $0xa8] sm:$0xff] %v5498
    %5586 = vst [vmem:[#allocation2 + $0xb0] sm:$0xff] %v5499
    %5587 = vst [vmem:[#allocation2 + $0xb8] sm:$0xff] %v5500
    %5588 = vst [vmem:[#allocation2 + $0xc0] sm:$0xff] %v5501
    %5589 = vst [vmem:[#allocation2 + $0xc8] sm:$0xff] %v5502
    %5590 = vst [vmem:[#allocation2 + $0xd0] sm:$0xff] %v5503
    %5591 = vst [vmem:[#allocation2 + $0xd8] sm:$0xff] %v5504
    %5592 = vst [vmem:[#allocation2 + $0xe0] sm:$0xff] %v5505
    %5593 = vst [vmem:[#allocation2 + $0xe8] sm:$0xff] %v5506
    %5594 = vst [vmem:[#allocation2 + $0xf0] sm:$0xff] %v5507
    %5595 = vst [vmem:[#allocation2 + $0xf8] sm:$0xff] %v5508
    %5596 = vst [vmem:[#allocation2 + $0x100] sm:$0xff] %v5509
    %5597 = vst [vmem:[#allocation2 + $0x108] sm:$0xff] %v5510
    %5598 = vst [vmem:[#allocation2 + $0x110] sm:$0xff] %v5511
    %5599 = vst [vmem:[#allocation2 + $0x118] sm:$0xff] %v5512
    %5600 = vst [vmem:[#allocation2 + $0x120] sm:$0xff] %v5513
    %5601 = vst [vmem:[#allocation2 + $0x128] sm:$0xff] %v5514
    %5602 = vst [vmem:[#allocation2 + $0x130] sm:$0xff] %v5515
    %5603 = vst [vmem:[#allocation2 + $0x138] sm:$0xff] %v5516
    %5604 = vst [vmem:[#allocation2 + $0x140] sm:$0xff] %v5517
    %5605 = vst [vmem:[#allocation2 + $0x148] sm:$0xff] %v5518
    %5606 = vst [vmem:[#allocation2 + $0x150] sm:$0xff] %v5519
    %5607 = vst [vmem:[#allocation2 + $0x158] sm:$0xff] %v5520
    %5608 = vst [vmem:[#allocation2 + $0x160] sm:$0xff] %v5521
    %5609 = vst [vmem:[#allocation2 + $0x168] sm:$0xff] %v5522
    %5610 = vst [vmem:[#allocation2 + $0x170] sm:$0xff] %v5523
    %5611 = vst [vmem:[#allocation2 + $0x178] sm:$0xff] %v5524
    %5612 = vst [vmem:[#allocation2 + $0x180] sm:$0xff] %v5525
    %5613 = vst [vmem:[#allocation2 + $0x188] sm:$0xff] %v5526
    %5614 = vst [vmem:[#allocation2 + $0x190] sm:$0xff] %v5527
    %5615 = vst [vmem:[#allocation2 + $0x198] sm:$0xff] %v5528
    %5616 = vst [vmem:[#allocation2 + $0x1a0] sm:$0xff] %v5529
    %5617 = vst [vmem:[#allocation2 + $0x1a8] sm:$0xff] %v5530
    %5618 = vst [vmem:[#allocation2 + $0x1b0] sm:$0xff] %v5531
    %5619 = vst [vmem:[#allocation2 + $0x1b8] sm:$0xff] %v5532
    %5620 = vst [vmem:[#allocation2 + $0x1c0] sm:$0xff] %v5533
    %5621 = vst [vmem:[#allocation2 + $0x1c8] sm:$0xff] %v5534
    %5622 = vst [vmem:[#allocation2 + $0x1d0] sm:$0xff] %v5535
    %5623 = vst [vmem:[#allocation2 + $0x1d8] sm:$0xff] %v5536
    %5624 = vst [vmem:[#allocation2 + $0x1e0] sm:$0xff] %v5537
    %5625 = vst [vmem:[#allocation2 + $0x1e8] sm:$0xff] %v5538
    %5626 = vst [vmem:[#allocation2 + $0x1f0] sm:$0xff] %v5539
    %5627 = vst [vmem:[#allocation2 + $0x1f8] sm:$0xff] %v5540
    %5628 = vst [vmem:[#allocation2 + $0x200] sm:$0xff] %v5541
    %5629 = vst [vmem:[#allocation2 + $0x208] sm:$0xff] %v5542
    %5630 = vst [vmem:[#allocation2 + $0x210] sm:$0xff] %v5543
    %5631 = vst [vmem:[#allocation2 + $0x218] sm:$0xff] %v5544
    %5632 = vst [vmem:[#allocation2 + $0x220] sm:$0xff] %v5545
    %5633 = vst [vmem:[#allocation2 + $0x228] sm:$0xff] %v5546
    %5634 = vst [vmem:[#allocation2 + $0x230] sm:$0xff] %v5547
    %5635 = vst [vmem:[#allocation2 + $0x238] sm:$0xff] %v5548
    %5636 = vst [vmem:[#allocation2 + $0x240] sm:$0xff] %v5549
    %5637 = vst [vmem:[#allocation2 + $0x248] sm:$0xff] %v5550
    %5638 = vst [vmem:[#allocation2 + $0x250] sm:$0xff] %v5551
    %5639 = vst [vmem:[#allocation2 + $0x258] sm:$0xff] %v5552
    %5640 = vst [vmem:[#allocation2 + $0x260] sm:$0xff] %v5553
    %5641 = vst [vmem:[#allocation2 + $0x268] sm:$0xff] %v5554
    %5642 = vst [vmem:[#allocation2 + $0x270] sm:$0xff] %v5555
    %5643 = vst [vmem:[#allocation2 + $0x278] sm:$0xff] %v5556
    %5644 = vst [vmem:[#allocation2 + $0x280] sm:$0xff] %v5557
    %5645 = vst [vmem:[#allocation2 + $0x288] sm:$0xff] %v5558
    %5646 = vst [vmem:[#allocation2 + $0x290] sm:$0xff] %v5559
    %5647 = vst [vmem:[#allocation2 + $0x298] sm:$0xff] %v5560
    %v5648 = vld [vmem:[#allocation2 + $0x5] sm:$0xff]
    %v5649 = vld [vmem:[#allocation2 + $0xd] sm:$0xff]
    %v5650 = vld [vmem:[#allocation2 + $0x15] sm:$0xff]
    %v5651 = vld [vmem:[#allocation2 + $0x1d] sm:$0xff]
    %v5652 = vld [vmem:[#allocation2 + $0x25] sm:$0xff]
    %v5653 = vld [vmem:[#allocation2 + $0x2d] sm:$0xff]
    %v5654 = vld [vmem:[#allocation2 + $0x35] sm:$0xff]
    %v5655 = vld [vmem:[#allocation2 + $0x3d] sm:$0xff]
    %v5656 = vld [vmem:[#allocation2 + $0x45] sm:$0xff]
    %v5657 = vld [vmem:[#allocation2 + $0x4d] sm:$0xff]
    %v5658 = vld [vmem:[#allocation2 + $0x55] sm:$0xff]
    %v5659 = vld [vmem:[#allocation2 + $0x5d] sm:$0xff]
    %v5660 = vld [vmem:[#allocation2 + $0x65] sm:$0xff]
    %v5661 = vld [vmem:[#allocation2 + $0x6d] sm:$0xff]
    %v5662 = vld [vmem:[#allocation2 + $0x75] sm:$0xff]
    %v5663 = vld [vmem:[#allocation2 + $0x7d] sm:$0xff]
    %v5664 = vld [vmem:[#allocation2 + $0x85] sm:$0xff]
    %v5665 = vld [vmem:[#allocation2 + $0x8d] sm:$0xff]
    %v5666 = vld [vmem:[#allocation2 + $0x95] sm:$0xff]
    %v5667 = vld [vmem:[#allocation2 + $0x9d] sm:$0xff]
    %v5668 = vld [vmem:[#allocation2 + $0xa5] sm:$0xff]
    %v5669 = vld [vmem:[#allocation2 + $0xad] sm:$0xff]
    %v5670 = vld [vmem:[#allocation2 + $0xb5] sm:$0xff]
    %v5671 = vld [vmem:[#allocation2 + $0xbd] sm:$0xff]
    %v5672 = vld [vmem:[#allocation2 + $0xc5] sm:$0xff]
    %v5673 = vld [vmem:[#allocation2 + $0xcd] sm:$0xff]
    %v5674 = vld [vmem:[#allocation2 + $0xd5] sm:$0xff]
    %v5675 = vld [vmem:[#allocation2 + $0xdd] sm:$0xff]
    %v5676 = vld [vmem:[#allocation2 + $0xe5] sm:$0xff]
    %v5677 = vld [vmem:[#allocation2 + $0xed] sm:$0xff]
    %v5678 = vld [vmem:[#allocation2 + $0xf5] sm:$0xff]
    %v5679 = vld [vmem:[#allocation2 + $0xfd] sm:$0xff]
    %v5680 = vld [vmem:[#allocation2 + $0x105] sm:$0xff]
    %v5681 = vld [vmem:[#allocation2 + $0x10d] sm:$0xff]
    %v5682 = vld [vmem:[#allocation2 + $0x115] sm:$0xff]
    %v5683 = vld [vmem:[#allocation2 + $0x11d] sm:$0xff]
    %v5684 = vld [vmem:[#allocation2 + $0x125] sm:$0xff]
    %v5685 = vld [vmem:[#allocation2 + $0x12d] sm:$0xff]
    %v5686 = vld [vmem:[#allocation2 + $0x135] sm:$0xff]
    %v5687 = vld [vmem:[#allocation2 + $0x13d] sm:$0xff]
    %v5688 = vld [vmem:[#allocation2 + $0x145] sm:$0xff]
    %v5689 = vld [vmem:[#allocation2 + $0x14d] sm:$0xff]
    %v5690 = vld [vmem:[#allocation2 + $0x155] sm:$0xff]
    %v5691 = vld [vmem:[#allocation2 + $0x15d] sm:$0xff]
    %v5692 = vld [vmem:[#allocation2 + $0x165] sm:$0xff]
    %v5693 = vld [vmem:[#allocation2 + $0x16d] sm:$0xff]
    %v5694 = vld [vmem:[#allocation2 + $0x175] sm:$0xff]
    %v5695 = vld [vmem:[#allocation2 + $0x17d] sm:$0xff]
    %v5696 = vld [vmem:[#allocation2 + $0x185] sm:$0xff]
    %v5697 = vld [vmem:[#allocation2 + $0x18d] sm:$0xff]
    %v5698 = vld [vmem:[#allocation2 + $0x195] sm:$0xff]
    %v5699 = vld [vmem:[#allocation2 + $0x19d] sm:$0xff]
    %v5700 = vld [vmem:[#allocation2 + $0x1a5] sm:$0xff]
    %v5701 = vld [vmem:[#allocation2 + $0x1ad] sm:$0xff]
    %v5702 = vld [vmem:[#allocation2 + $0x1b5] sm:$0xff]
    %v5703 = vld [vmem:[#allocation2 + $0x1bd] sm:$0xff]
    %v5704 = vld [vmem:[#allocation2 + $0x1c5] sm:$0xff]
    %v5705 = vld [vmem:[#allocation2 + $0x1cd] sm:$0xff]
    %v5706 = vld [vmem:[#allocation2 + $0x1d5] sm:$0xff]
    %v5707 = vld [vmem:[#allocation2 + $0x1dd] sm:$0xff]
    %v5708 = vld [vmem:[#allocation2 + $0x1e5] sm:$0xff]
    %v5709 = vld [vmem:[#allocation2 + $0x1ed] sm:$0xff]
    %v5710 = vld [vmem:[#allocation2 + $0x1f5] sm:$0xff]
    %v5711 = vld [vmem:[#allocation2 + $0x1fd] sm:$0xff]
    %v5712 = vld [vmem:[#allocation2 + $0x205] sm:$0xff]
    %v5713 = vld [vmem:[#allocation2 + $0x20d] sm:$0xff]
    %v5714 = vld [vmem:[#allocation2 + $0x215] sm:$0xff]
    %v5715 = vld [vmem:[#allocation2 + $0x21d] sm:$0xff]
    %v5716 = vld [vmem:[#allocation2 + $0x225] sm:$0xff]
    %v5717 = vld [vmem:[#allocation2 + $0x22d] sm:$0xff]
    %v5718 = vld [vmem:[#allocation2 + $0x235] sm:$0xff]
    %v5719 = vld [vmem:[#allocation2 + $0x23d] sm:$0xff]
    %v5720 = vld [vmem:[#allocation2 + $0x245] sm:$0xff]
    %v5721 = vld [vmem:[#allocation2 + $0x24d] sm:$0xff]
    %v5722 = vld [vmem:[#allocation2 + $0x255] sm:$0xff]
    %v5723 = vld [vmem:[#allocation2 + $0x25d] sm:$0xff]
    %v5724 = vld [vmem:[#allocation2 + $0x265] sm:$0xff]
    %v5725 = vld [vmem:[#allocation2 + $0x26d] sm:$0xff]
    %v5726 = vld [vmem:[#allocation2 + $0x275] sm:$0xff]
    %v5727 = vld [vmem:[#allocation2 + $0x27d] sm:$0xff]
    %v5728 = vld [vmem:[#allocation2 + $0x285] sm:$0xff]
    %v5729 = vpack.c.bf16 %v5649, %v5648
    %v5730 = vpack.c.bf16 %v5651, %v5650
    %v5731 = vpack.c.bf16 %v5653, %v5652
    %v5732 = vpack.c.bf16 %v5655, %v5654
    %v5733 = vpack.c.bf16 %v5657, %v5656
    %v5734 = vpack.c.bf16 %v5659, %v5658
    %v5735 = vpack.c.bf16 %v5661, %v5660
    %v5736 = vpack.c.bf16 %v5663, %v5662
    %v5737 = vpack.c.bf16 %v5665, %v5664
    %v5738 = vpack.c.bf16 %v5667, %v5666
    %v5739 = vpack.c.bf16 %v5669, %v5668
    %v5740 = vpack.c.bf16 %v5671, %v5670
    %v5741 = vpack.c.bf16 %v5673, %v5672
    %v5742 = vpack.c.bf16 %v5675, %v5674
    %v5743 = vpack.c.bf16 %v5677, %v5676
    %v5744 = vpack.c.bf16 %v5679, %v5678
    %v5745 = vpack.c.bf16 %v5681, %v5680
    %v5746 = vpack.c.bf16 %v5683, %v5682
    %v5747 = vpack.c.bf16 %v5685, %v5684
    %v5748 = vpack.c.bf16 %v5687, %v5686
    %v5749 = vpack.c.bf16 %v5689, %v5688
    %v5750 = vpack.c.bf16 %v5691, %v5690
    %v5751 = vpack.c.bf16 %v5693, %v5692
    %v5752 = vpack.c.bf16 %v5695, %v5694
    %v5753 = vpack.c.bf16 %v5697, %v5696
    %v5754 = vpack.c.bf16 %v5699, %v5698
    %v5755 = vpack.c.bf16 %v5701, %v5700
    %v5756 = vpack.c.bf16 %v5703, %v5702
    %v5757 = vpack.c.bf16 %v5705, %v5704
    %v5758 = vpack.c.bf16 %v5707, %v5706
    %v5759 = vpack.c.bf16 %v5709, %v5708
    %v5760 = vpack.c.bf16 %v5711, %v5710
    %v5761 = vpack.c.bf16 %v5713, %v5712
    %v5762 = vpack.c.bf16 %v5715, %v5714
    %v5763 = vpack.c.bf16 %v5717, %v5716
    %v5764 = vpack.c.bf16 %v5719, %v5718
    %v5765 = vpack.c.bf16 %v5721, %v5720
    %v5766 = vpack.c.bf16 %v5723, %v5722
    %v5767 = vpack.c.bf16 %v5725, %v5724
    %v5768 = vpack.c.bf16 %v5727, %v5726
    %v5769 = vpack.c.bf16 %v5728, %v5728
    %v5770 = vld [vmem:[#allocation6] sm:$0xf]
    %v5771 = vld [vmem:[#allocation6 + $0x4] sm:$0xf]
    %v5772 = vld [vmem:[#allocation6 + $0x8] sm:$0xf]
    %v5773 = vld [vmem:[#allocation6 + $0xc] sm:$0xf]
    %v5774 = vld [vmem:[#allocation6 + $0x10] sm:$0xf]
    %v5775 = vld [vmem:[#allocation6 + $0x14] sm:$0xf]
    %v5776 = vld [vmem:[#allocation6 + $0x18] sm:$0xf]
    %v5777 = vld [vmem:[#allocation6 + $0x1c] sm:$0xf]
    %v5778 = vld [vmem:[#allocation6 + $0x20] sm:$0xf]
    %v5779 = vld [vmem:[#allocation6 + $0x24] sm:$0xf]
    %v5780 = vld [vmem:[#allocation6 + $0x28] sm:$0xf]
    %v5781 = vld [vmem:[#allocation6 + $0x2c] sm:$0xf]
    %v5782 = vld [vmem:[#allocation6 + $0x30] sm:$0xf]
    %v5783 = vld [vmem:[#allocation6 + $0x34] sm:$0xf]
    %v5784 = vld [vmem:[#allocation6 + $0x38] sm:$0xf]
    %v5785 = vld [vmem:[#allocation6 + $0x3c] sm:$0xf]
    %v5786 = vld [vmem:[#allocation2 + $0x6] sm:$0xff]
    %v5787 = vld [vmem:[#allocation2 + $0xe] sm:$0xff]
    %v5788 = vld [vmem:[#allocation2 + $0x16] sm:$0xff]
    %v5789 = vld [vmem:[#allocation2 + $0x1e] sm:$0xff]
    %v5790 = vld [vmem:[#allocation2 + $0x26] sm:$0xff]
    %v5791 = vld [vmem:[#allocation2 + $0x2e] sm:$0xff]
    %v5792 = vld [vmem:[#allocation2 + $0x36] sm:$0xff]
    %v5793 = vld [vmem:[#allocation2 + $0x3e] sm:$0xff]
    %v5794 = vld [vmem:[#allocation2 + $0x46] sm:$0xff]
    %v5795 = vld [vmem:[#allocation2 + $0x4e] sm:$0xff]
    %v5796 = vld [vmem:[#allocation2 + $0x56] sm:$0xff]
    %v5797 = vld [vmem:[#allocation2 + $0x5e] sm:$0xff]
    %v5798 = vld [vmem:[#allocation2 + $0x66] sm:$0xff]
    %v5799 = vld [vmem:[#allocation2 + $0x6e] sm:$0xff]
    %v5800 = vld [vmem:[#allocation2 + $0x76] sm:$0xff]
    %v5801 = vld [vmem:[#allocation2 + $0x7e] sm:$0xff]
    %v5802 = vld [vmem:[#allocation2 + $0x86] sm:$0xff]
    %v5803 = vld [vmem:[#allocation2 + $0x8e] sm:$0xff]
    %v5804 = vld [vmem:[#allocation2 + $0x96] sm:$0xff]
    %v5805 = vld [vmem:[#allocation2 + $0x9e] sm:$0xff]
    %v5806 = vld [vmem:[#allocation2 + $0xa6] sm:$0xff]
    %v5807 = vld [vmem:[#allocation2 + $0xae] sm:$0xff]
    %v5808 = vld [vmem:[#allocation2 + $0xb6] sm:$0xff]
    %v5809 = vld [vmem:[#allocation2 + $0xbe] sm:$0xff]
    %v5810 = vld [vmem:[#allocation2 + $0xc6] sm:$0xff]
    %v5811 = vld [vmem:[#allocation2 + $0xce] sm:$0xff]
    %v5812 = vld [vmem:[#allocation2 + $0xd6] sm:$0xff]
    %v5813 = vld [vmem:[#allocation2 + $0xde] sm:$0xff]
    %v5814 = vld [vmem:[#allocation2 + $0xe6] sm:$0xff]
    %v5815 = vld [vmem:[#allocation2 + $0xee] sm:$0xff]
    %v5816 = vld [vmem:[#allocation2 + $0xf6] sm:$0xff]
    %v5817 = vld [vmem:[#allocation2 + $0xfe] sm:$0xff]
    %v5818 = vld [vmem:[#allocation2 + $0x106] sm:$0xff]
    %v5819 = vld [vmem:[#allocation2 + $0x10e] sm:$0xff]
    %v5820 = vld [vmem:[#allocation2 + $0x116] sm:$0xff]
    %v5821 = vld [vmem:[#allocation2 + $0x11e] sm:$0xff]
    %v5822 = vld [vmem:[#allocation2 + $0x126] sm:$0xff]
    %v5823 = vld [vmem:[#allocation2 + $0x12e] sm:$0xff]
    %v5824 = vld [vmem:[#allocation2 + $0x136] sm:$0xff]
    %v5825 = vld [vmem:[#allocation2 + $0x13e] sm:$0xff]
    %v5826 = vld [vmem:[#allocation2 + $0x146] sm:$0xff]
    %v5827 = vld [vmem:[#allocation2 + $0x14e] sm:$0xff]
    %v5828 = vld [vmem:[#allocation2 + $0x156] sm:$0xff]
    %v5829 = vld [vmem:[#allocation2 + $0x15e] sm:$0xff]
    %v5830 = vld [vmem:[#allocation2 + $0x166] sm:$0xff]
    %v5831 = vld [vmem:[#allocation2 + $0x16e] sm:$0xff]
    %v5832 = vld [vmem:[#allocation2 + $0x176] sm:$0xff]
    %v5833 = vld [vmem:[#allocation2 + $0x17e] sm:$0xff]
    %v5834 = vld [vmem:[#allocation2 + $0x186] sm:$0xff]
    %v5835 = vld [vmem:[#allocation2 + $0x18e] sm:$0xff]
    %v5836 = vld [vmem:[#allocation2 + $0x196] sm:$0xff]
    %v5837 = vld [vmem:[#allocation2 + $0x19e] sm:$0xff]
    %v5838 = vld [vmem:[#allocation2 + $0x1a6] sm:$0xff]
    %v5839 = vld [vmem:[#allocation2 + $0x1ae] sm:$0xff]
    %v5840 = vld [vmem:[#allocation2 + $0x1b6] sm:$0xff]
    %v5841 = vld [vmem:[#allocation2 + $0x1be] sm:$0xff]
    %v5842 = vld [vmem:[#allocation2 + $0x1c6] sm:$0xff]
    %v5843 = vld [vmem:[#allocation2 + $0x1ce] sm:$0xff]
    %v5844 = vld [vmem:[#allocation2 + $0x1d6] sm:$0xff]
    %v5845 = vld [vmem:[#allocation2 + $0x1de] sm:$0xff]
    %v5846 = vld [vmem:[#allocation2 + $0x1e6] sm:$0xff]
    %v5847 = vld [vmem:[#allocation2 + $0x1ee] sm:$0xff]
    %v5848 = vld [vmem:[#allocation2 + $0x1f6] sm:$0xff]
    %v5849 = vld [vmem:[#allocation2 + $0x1fe] sm:$0xff]
    %v5850 = vld [vmem:[#allocation2 + $0x206] sm:$0xff]
    %v5851 = vld [vmem:[#allocation2 + $0x20e] sm:$0xff]
    %v5852 = vld [vmem:[#allocation2 + $0x216] sm:$0xff]
    %v5853 = vld [vmem:[#allocation2 + $0x21e] sm:$0xff]
    %v5854 = vld [vmem:[#allocation2 + $0x226] sm:$0xff]
    %v5855 = vld [vmem:[#allocation2 + $0x22e] sm:$0xff]
    %v5856 = vld [vmem:[#allocation2 + $0x236] sm:$0xff]
    %v5857 = vld [vmem:[#allocation2 + $0x23e] sm:$0xff]
    %v5858 = vld [vmem:[#allocation2 + $0x246] sm:$0xff]
    %v5859 = vld [vmem:[#allocation2 + $0x24e] sm:$0xff]
    %v5860 = vld [vmem:[#allocation2 + $0x256] sm:$0xff]
    %v5861 = vld [vmem:[#allocation2 + $0x25e] sm:$0xff]
    %v5862 = vld [vmem:[#allocation2 + $0x266] sm:$0xff]
    %v5863 = vld [vmem:[#allocation2 + $0x26e] sm:$0xff]
    %v5864 = vld [vmem:[#allocation2 + $0x276] sm:$0xff]
    %v5865 = vld [vmem:[#allocation2 + $0x27e] sm:$0xff]
    %v5866 = vld [vmem:[#allocation2 + $0x286] sm:$0xff]
    %v5867 = vpack.c.bf16 %v5787, %v5786
    %v5868 = vpack.c.bf16 %v5789, %v5788
    %v5869 = vpack.c.bf16 %v5791, %v5790
    %v5870 = vpack.c.bf16 %v5793, %v5792
    %v5871 = vpack.c.bf16 %v5795, %v5794
    %v5872 = vpack.c.bf16 %v5797, %v5796
    %v5873 = vpack.c.bf16 %v5799, %v5798
    %v5874 = vpack.c.bf16 %v5801, %v5800
    %v5875 = vpack.c.bf16 %v5803, %v5802
    %v5876 = vpack.c.bf16 %v5805, %v5804
    %v5877 = vpack.c.bf16 %v5807, %v5806
    %v5878 = vpack.c.bf16 %v5809, %v5808
    %v5879 = vpack.c.bf16 %v5811, %v5810
    %v5880 = vpack.c.bf16 %v5813, %v5812
    %v5881 = vpack.c.bf16 %v5815, %v5814
    %v5882 = vpack.c.bf16 %v5817, %v5816
    %v5883 = vpack.c.bf16 %v5819, %v5818
    %v5884 = vpack.c.bf16 %v5821, %v5820
    %v5885 = vpack.c.bf16 %v5823, %v5822
    %v5886 = vpack.c.bf16 %v5825, %v5824
    %v5887 = vpack.c.bf16 %v5827, %v5826
    %v5888 = vpack.c.bf16 %v5829, %v5828
    %v5889 = vpack.c.bf16 %v5831, %v5830
    %v5890 = vpack.c.bf16 %v5833, %v5832
    %v5891 = vpack.c.bf16 %v5835, %v5834
    %v5892 = vpack.c.bf16 %v5837, %v5836
    %v5893 = vpack.c.bf16 %v5839, %v5838
    %v5894 = vpack.c.bf16 %v5841, %v5840
    %v5895 = vpack.c.bf16 %v5843, %v5842
    %v5896 = vpack.c.bf16 %v5845, %v5844
    %v5897 = vpack.c.bf16 %v5847, %v5846
    %v5898 = vpack.c.bf16 %v5849, %v5848
    %v5899 = vpack.c.bf16 %v5851, %v5850
    %v5900 = vpack.c.bf16 %v5853, %v5852
    %v5901 = vpack.c.bf16 %v5855, %v5854
    %v5902 = vpack.c.bf16 %v5857, %v5856
    %v5903 = vpack.c.bf16 %v5859, %v5858
    %v5904 = vpack.c.bf16 %v5861, %v5860
    %v5905 = vpack.c.bf16 %v5863, %v5862
    %v5906 = vpack.c.bf16 %v5865, %v5864
    %v5907 = vpack.c.bf16 %v5866, %v5866
    %s5908 = scalar_lea.vmem [#allocation6], 64
    %v5909 = vld [vmem:[%s5908] sm:$0xf]
    %v5910 = vld [vmem:[%s5908 + $0x4] sm:$0xf]
    %v5911 = vld [vmem:[%s5908 + $0x8] sm:$0xf]
    %v5912 = vld [vmem:[%s5908 + $0xc] sm:$0xf]
    %v5913 = vld [vmem:[%s5908 + $0x10] sm:$0xf]
    %v5914 = vld [vmem:[%s5908 + $0x14] sm:$0xf]
    %v5915 = vld [vmem:[%s5908 + $0x18] sm:$0xf]
    %v5916 = vld [vmem:[%s5908 + $0x1c] sm:$0xf]
    %v5917 = vld [vmem:[%s5908 + $0x20] sm:$0xf]
    %v5918 = vld [vmem:[%s5908 + $0x24] sm:$0xf]
    %v5919 = vld [vmem:[%s5908 + $0x28] sm:$0xf]
    %v5920 = vld [vmem:[%s5908 + $0x2c] sm:$0xf]
    %v5921 = vld [vmem:[%s5908 + $0x30] sm:$0xf]
    %v5922 = vld [vmem:[%s5908 + $0x34] sm:$0xf]
    %v5923 = vld [vmem:[%s5908 + $0x38] sm:$0xf]
    %v5924 = vld [vmem:[%s5908 + $0x3c] sm:$0xf]
    %v5941 = vunpack.c.l.b16 %v5909
    %v5942 = vunpack.c.l.b16 %v5910
    %v5943 = vunpack.c.l.b16 %v5911
    %v5944 = vunpack.c.l.b16 %v5912
    %v5945 = vunpack.c.l.b16 %v5913
    %v5946 = vunpack.c.l.b16 %v5914
    %v5947 = vunpack.c.l.b16 %v5915
    %v5948 = vunpack.c.l.b16 %v5916
    %v5949 = vunpack.c.l.b16 %v5917
    %v5950 = vunpack.c.l.b16 %v5918
    %v5951 = vunpack.c.l.b16 %v5919
    %v5952 = vunpack.c.l.b16 %v5920
    %v5953 = vunpack.c.l.b16 %v5921
    %v5954 = vunpack.c.l.b16 %v5922
    %v5955 = vunpack.c.l.b16 %v5923
    %v5956 = vunpack.c.l.b16 %v5924
    %v5957 = vpack.c.b16 %v5942, %v5941
    %v5958 = vpack.c.b16 %v5944, %v5943
    %v5959 = vpack.c.b16 %v5946, %v5945
    %v5960 = vpack.c.b16 %v5948, %v5947
    %v5961 = vpack.c.b16 %v5950, %v5949
    %v5962 = vpack.c.b16 %v5952, %v5951
    %v5963 = vpack.c.b16 %v5954, %v5953
    %v5964 = vpack.c.b16 %v5956, %v5955
    %5973 = vmatpush.bf16.msra.mxu0 %v5964
    %5974 = vmatpush.bf16.msra.mxu0 %v5963
    %5975 = vmatpush.bf16.msra.mxu0 %v5962
    %5976 = vmatpush.bf16.msra.mxu0 %v5961
    %5977 = vmatpush.bf16.msra.mxu0 %v5960
    %5978 = vmatpush.bf16.msra.mxu0 %v5959
    %5979 = vmatpush.bf16.msra.mxu0 %v5958
    %5980 = vmatpush.bf16.msra.mxu0 %v5957
    %5981 = vmatmul.bf16.gmra.mxu0 %v5867
    %v5982 = vpop.f32.mrf.mxu0
    %v5983 = vadd.f32 0.0, %v5982
    %v5984 = vpop.f32.mrf.mxu0
    %v5985 = vadd.f32 0.0, %v5984
    %5986 = vmatmul.bf16.gmra.mxu0 %v5868
    %v5987 = vpop.f32.mrf.mxu0
    %v5988 = vadd.f32 0.0, %v5987
    %v5989 = vpop.f32.mrf.mxu0
    %v5990 = vadd.f32 0.0, %v5989
    %5991 = vmatmul.bf16.gmra.mxu0 %v5869
    %v5992 = vpop.f32.mrf.mxu0
    %v5993 = vadd.f32 0.0, %v5992
    %v5994 = vpop.f32.mrf.mxu0
    %v5995 = vadd.f32 0.0, %v5994
    %5996 = vmatmul.bf16.gmra.mxu0 %v5870
    %v5997 = vpop.f32.mrf.mxu0
    %v5998 = vadd.f32 0.0, %v5997
    %v5999 = vpop.f32.mrf.mxu0
    %v6000 = vadd.f32 0.0, %v5999
    %6001 = vmatmul.bf16.gmra.mxu0 %v5871
    %v6002 = vpop.f32.mrf.mxu0
    %v6003 = vadd.f32 0.0, %v6002
    %v6004 = vpop.f32.mrf.mxu0
    %v6005 = vadd.f32 0.0, %v6004
    %6006 = vmatmul.bf16.gmra.mxu0 %v5872
    %v6007 = vpop.f32.mrf.mxu0
    %v6008 = vadd.f32 0.0, %v6007
    %v6009 = vpop.f32.mrf.mxu0
    %v6010 = vadd.f32 0.0, %v6009
    %6011 = vmatmul.bf16.gmra.mxu0 %v5873
    %v6012 = vpop.f32.mrf.mxu0
    %v6013 = vadd.f32 0.0, %v6012
    %v6014 = vpop.f32.mrf.mxu0
    %v6015 = vadd.f32 0.0, %v6014
    %6016 = vmatmul.bf16.gmra.mxu0 %v5874
    %v6017 = vpop.f32.mrf.mxu0
    %v6018 = vadd.f32 0.0, %v6017
    %v6019 = vpop.f32.mrf.mxu0
    %v6020 = vadd.f32 0.0, %v6019
    %6021 = vmatmul.bf16.gmra.mxu0 %v5875
    %v6022 = vpop.f32.mrf.mxu0
    %v6023 = vadd.f32 0.0, %v6022
    %v6024 = vpop.f32.mrf.mxu0
    %v6025 = vadd.f32 0.0, %v6024
    %6026 = vmatmul.bf16.gmra.mxu0 %v5876
    %v6027 = vpop.f32.mrf.mxu0
    %v6028 = vadd.f32 0.0, %v6027
    %v6029 = vpop.f32.mrf.mxu0
    %v6030 = vadd.f32 0.0, %v6029
    %6031 = vmatmul.bf16.gmra.mxu0 %v5877
    %v6032 = vpop.f32.mrf.mxu0
    %v6033 = vadd.f32 0.0, %v6032
    %v6034 = vpop.f32.mrf.mxu0
    %v6035 = vadd.f32 0.0, %v6034
    %6036 = vmatmul.bf16.gmra.mxu0 %v5878
    %v6037 = vpop.f32.mrf.mxu0
    %v6038 = vadd.f32 0.0, %v6037
    %v6039 = vpop.f32.mrf.mxu0
    %v6040 = vadd.f32 0.0, %v6039
    %6041 = vmatmul.bf16.gmra.mxu0 %v5879
    %v6042 = vpop.f32.mrf.mxu0
    %v6043 = vadd.f32 0.0, %v6042
    %v6044 = vpop.f32.mrf.mxu0
    %v6045 = vadd.f32 0.0, %v6044
    %6046 = vmatmul.bf16.gmra.mxu0 %v5880
    %v6047 = vpop.f32.mrf.mxu0
    %v6048 = vadd.f32 0.0, %v6047
    %v6049 = vpop.f32.mrf.mxu0
    %v6050 = vadd.f32 0.0, %v6049
    %6051 = vmatmul.bf16.gmra.mxu0 %v5881
    %v6052 = vpop.f32.mrf.mxu0
    %v6053 = vadd.f32 0.0, %v6052
    %v6054 = vpop.f32.mrf.mxu0
    %v6055 = vadd.f32 0.0, %v6054
    %6056 = vmatmul.bf16.gmra.mxu0 %v5882
    %v6057 = vpop.f32.mrf.mxu0
    %v6058 = vadd.f32 0.0, %v6057
    %v6059 = vpop.f32.mrf.mxu0
    %v6060 = vadd.f32 0.0, %v6059
    %6061 = vmatmul.bf16.gmra.mxu0 %v5883
    %v6062 = vpop.f32.mrf.mxu0
    %v6063 = vadd.f32 0.0, %v6062
    %v6064 = vpop.f32.mrf.mxu0
    %v6065 = vadd.f32 0.0, %v6064
    %6066 = vmatmul.bf16.gmra.mxu0 %v5884
    %v6067 = vpop.f32.mrf.mxu0
    %v6068 = vadd.f32 0.0, %v6067
    %v6069 = vpop.f32.mrf.mxu0
    %v6070 = vadd.f32 0.0, %v6069
    %6071 = vmatmul.bf16.gmra.mxu0 %v5885
    %v6072 = vpop.f32.mrf.mxu0
    %v6073 = vadd.f32 0.0, %v6072
    %v6074 = vpop.f32.mrf.mxu0
    %v6075 = vadd.f32 0.0, %v6074
    %6076 = vmatmul.bf16.gmra.mxu0 %v5886
    %v6077 = vpop.f32.mrf.mxu0
    %v6078 = vadd.f32 0.0, %v6077
    %v6079 = vpop.f32.mrf.mxu0
    %v6080 = vadd.f32 0.0, %v6079
    %6081 = vmatmul.bf16.gmra.mxu0 %v5887
    %v6082 = vpop.f32.mrf.mxu0
    %v6083 = vadd.f32 0.0, %v6082
    %v6084 = vpop.f32.mrf.mxu0
    %v6085 = vadd.f32 0.0, %v6084
    %6086 = vmatmul.bf16.gmra.mxu0 %v5888
    %v6087 = vpop.f32.mrf.mxu0
    %v6088 = vadd.f32 0.0, %v6087
    %v6089 = vpop.f32.mrf.mxu0
    %v6090 = vadd.f32 0.0, %v6089
    %6091 = vmatmul.bf16.gmra.mxu0 %v5889
    %v6092 = vpop.f32.mrf.mxu0
    %v6093 = vadd.f32 0.0, %v6092
    %v6094 = vpop.f32.mrf.mxu0
    %v6095 = vadd.f32 0.0, %v6094
    %6096 = vmatmul.bf16.gmra.mxu0 %v5890
    %v6097 = vpop.f32.mrf.mxu0
    %v6098 = vadd.f32 0.0, %v6097
    %v6099 = vpop.f32.mrf.mxu0
    %v6100 = vadd.f32 0.0, %v6099
    %6101 = vmatmul.bf16.gmra.mxu0 %v5891
    %v6102 = vpop.f32.mrf.mxu0
    %v6103 = vadd.f32 0.0, %v6102
    %v6104 = vpop.f32.mrf.mxu0
    %v6105 = vadd.f32 0.0, %v6104
    %6106 = vmatmul.bf16.gmra.mxu0 %v5892
    %v6107 = vpop.f32.mrf.mxu0
    %v6108 = vadd.f32 0.0, %v6107
    %v6109 = vpop.f32.mrf.mxu0
    %v6110 = vadd.f32 0.0, %v6109
    %6111 = vmatmul.bf16.gmra.mxu0 %v5893
    %v6112 = vpop.f32.mrf.mxu0
    %v6113 = vadd.f32 0.0, %v6112
    %v6114 = vpop.f32.mrf.mxu0
    %v6115 = vadd.f32 0.0, %v6114
    %6116 = vmatmul.bf16.gmra.mxu0 %v5894
    %v6117 = vpop.f32.mrf.mxu0
    %v6118 = vadd.f32 0.0, %v6117
    %v6119 = vpop.f32.mrf.mxu0
    %v6120 = vadd.f32 0.0, %v6119
    %6121 = vmatmul.bf16.gmra.mxu0 %v5895
    %v6122 = vpop.f32.mrf.mxu0
    %v6123 = vadd.f32 0.0, %v6122
    %v6124 = vpop.f32.mrf.mxu0
    %v6125 = vadd.f32 0.0, %v6124
    %6126 = vmatmul.bf16.gmra.mxu0 %v5896
    %v6127 = vpop.f32.mrf.mxu0
    %v6128 = vadd.f32 0.0, %v6127
    %v6129 = vpop.f32.mrf.mxu0
    %v6130 = vadd.f32 0.0, %v6129
    %6131 = vmatmul.bf16.gmra.mxu0 %v5897
    %v6132 = vpop.f32.mrf.mxu0
    %v6133 = vadd.f32 0.0, %v6132
    %v6134 = vpop.f32.mrf.mxu0
    %v6135 = vadd.f32 0.0, %v6134
    %6136 = vmatmul.bf16.gmra.mxu0 %v5898
    %v6137 = vpop.f32.mrf.mxu0
    %v6138 = vadd.f32 0.0, %v6137
    %v6139 = vpop.f32.mrf.mxu0
    %v6140 = vadd.f32 0.0, %v6139
    %6141 = vmatmul.bf16.gmra.mxu0 %v5899
    %v6142 = vpop.f32.mrf.mxu0
    %v6143 = vadd.f32 0.0, %v6142
    %v6144 = vpop.f32.mrf.mxu0
    %v6145 = vadd.f32 0.0, %v6144
    %6146 = vmatmul.bf16.gmra.mxu0 %v5900
    %v6147 = vpop.f32.mrf.mxu0
    %v6148 = vadd.f32 0.0, %v6147
    %v6149 = vpop.f32.mrf.mxu0
    %v6150 = vadd.f32 0.0, %v6149
    %6151 = vmatmul.bf16.gmra.mxu0 %v5901
    %v6152 = vpop.f32.mrf.mxu0
    %v6153 = vadd.f32 0.0, %v6152
    %v6154 = vpop.f32.mrf.mxu0
    %v6155 = vadd.f32 0.0, %v6154
    %6156 = vmatmul.bf16.gmra.mxu0 %v5902
    %v6157 = vpop.f32.mrf.mxu0
    %v6158 = vadd.f32 0.0, %v6157
    %v6159 = vpop.f32.mrf.mxu0
    %v6160 = vadd.f32 0.0, %v6159
    %6161 = vmatmul.bf16.gmra.mxu0 %v5903
    %v6162 = vpop.f32.mrf.mxu0
    %v6163 = vadd.f32 0.0, %v6162
    %v6164 = vpop.f32.mrf.mxu0
    %v6165 = vadd.f32 0.0, %v6164
    %6166 = vmatmul.bf16.gmra.mxu0 %v5904
    %v6167 = vpop.f32.mrf.mxu0
    %v6168 = vadd.f32 0.0, %v6167
    %v6169 = vpop.f32.mrf.mxu0
    %v6170 = vadd.f32 0.0, %v6169
    %6171 = vmatmul.bf16.gmra.mxu0 %v5905
    %v6172 = vpop.f32.mrf.mxu0
    %v6173 = vadd.f32 0.0, %v6172
    %v6174 = vpop.f32.mrf.mxu0
    %v6175 = vadd.f32 0.0, %v6174
    %6176 = vmatmul.bf16.gmra.mxu0 %v5906
    %v6177 = vpop.f32.mrf.mxu0
    %v6178 = vadd.f32 0.0, %v6177
    %v6179 = vpop.f32.mrf.mxu0
    %v6180 = vadd.f32 0.0, %v6179
    %6181 = vmatmul.bf16.gmra.mxu0 %v5907
    %v6182 = vpop.f32.mrf.mxu0
    %v6183 = vadd.f32 0.0, %v6182
    %v6184 = vpop.f32.mrf.mxu0
    %6185 = vdwg.mxu0
    %v6202 = vunpack.c.l.b16 %v5770
    %v6203 = vunpack.c.l.b16 %v5771
    %v6204 = vunpack.c.l.b16 %v5772
    %v6205 = vunpack.c.l.b16 %v5773
    %v6206 = vunpack.c.l.b16 %v5774
    %v6207 = vunpack.c.l.b16 %v5775
    %v6208 = vunpack.c.l.b16 %v5776
    %v6209 = vunpack.c.l.b16 %v5777
    %v6210 = vunpack.c.l.b16 %v5778
    %v6211 = vunpack.c.l.b16 %v5779
    %v6212 = vunpack.c.l.b16 %v5780
    %v6213 = vunpack.c.l.b16 %v5781
    %v6214 = vunpack.c.l.b16 %v5782
    %v6215 = vunpack.c.l.b16 %v5783
    %v6216 = vunpack.c.l.b16 %v5784
    %v6217 = vunpack.c.l.b16 %v5785
    %v6218 = vpack.c.b16 %v6203, %v6202
    %v6219 = vpack.c.b16 %v6205, %v6204
    %v6220 = vpack.c.b16 %v6207, %v6206
    %v6221 = vpack.c.b16 %v6209, %v6208
    %v6222 = vpack.c.b16 %v6211, %v6210
    %v6223 = vpack.c.b16 %v6213, %v6212
    %v6224 = vpack.c.b16 %v6215, %v6214
    %v6225 = vpack.c.b16 %v6217, %v6216
    %6234 = vmatpush.bf16.msra.mxu0 %v6225
    %6235 = vmatpush.bf16.msra.mxu0 %v6224
    %6236 = vmatpush.bf16.msra.mxu0 %v6223
    %6237 = vmatpush.bf16.msra.mxu0 %v6222
    %6238 = vmatpush.bf16.msra.mxu0 %v6221
    %6239 = vmatpush.bf16.msra.mxu0 %v6220
    %6240 = vmatpush.bf16.msra.mxu0 %v6219
    %6241 = vmatpush.bf16.msra.mxu0 %v6218
    %6242 = vmatmul.bf16.gmra.mxu0 %v5729
    %v6243 = vpop.f32.mrf.mxu0
    %v6244 = vadd.f32 %v5983, %v6243
    %v6245 = vpop.f32.mrf.mxu0
    %v6246 = vadd.f32 %v5985, %v6245
    %6247 = vmatmul.bf16.gmra.mxu0 %v5730
    %v6248 = vpop.f32.mrf.mxu0
    %v6249 = vadd.f32 %v5988, %v6248
    %v6250 = vpop.f32.mrf.mxu0
    %v6251 = vadd.f32 %v5990, %v6250
    %6252 = vmatmul.bf16.gmra.mxu0 %v5731
    %v6253 = vpop.f32.mrf.mxu0
    %v6254 = vadd.f32 %v5993, %v6253
    %v6255 = vpop.f32.mrf.mxu0
    %v6256 = vadd.f32 %v5995, %v6255
    %6257 = vmatmul.bf16.gmra.mxu0 %v5732
    %v6258 = vpop.f32.mrf.mxu0
    %v6259 = vadd.f32 %v5998, %v6258
    %v6260 = vpop.f32.mrf.mxu0
    %v6261 = vadd.f32 %v6000, %v6260
    %6262 = vmatmul.bf16.gmra.mxu0 %v5733
    %v6263 = vpop.f32.mrf.mxu0
    %v6264 = vadd.f32 %v6003, %v6263
    %v6265 = vpop.f32.mrf.mxu0
    %v6266 = vadd.f32 %v6005, %v6265
    %6267 = vmatmul.bf16.gmra.mxu0 %v5734
    %v6268 = vpop.f32.mrf.mxu0
    %v6269 = vadd.f32 %v6008, %v6268
    %v6270 = vpop.f32.mrf.mxu0
    %v6271 = vadd.f32 %v6010, %v6270
    %6272 = vmatmul.bf16.gmra.mxu0 %v5735
    %v6273 = vpop.f32.mrf.mxu0
    %v6274 = vadd.f32 %v6013, %v6273
    %v6275 = vpop.f32.mrf.mxu0
    %v6276 = vadd.f32 %v6015, %v6275
    %6277 = vmatmul.bf16.gmra.mxu0 %v5736
    %v6278 = vpop.f32.mrf.mxu0
    %v6279 = vadd.f32 %v6018, %v6278
    %v6280 = vpop.f32.mrf.mxu0
    %v6281 = vadd.f32 %v6020, %v6280
    %6282 = vmatmul.bf16.gmra.mxu0 %v5737
    %v6283 = vpop.f32.mrf.mxu0
    %v6284 = vadd.f32 %v6023, %v6283
    %v6285 = vpop.f32.mrf.mxu0
    %v6286 = vadd.f32 %v6025, %v6285
    %6287 = vmatmul.bf16.gmra.mxu0 %v5738
    %v6288 = vpop.f32.mrf.mxu0
    %v6289 = vadd.f32 %v6028, %v6288
    %v6290 = vpop.f32.mrf.mxu0
    %v6291 = vadd.f32 %v6030, %v6290
    %6292 = vmatmul.bf16.gmra.mxu0 %v5739
    %v6293 = vpop.f32.mrf.mxu0
    %v6294 = vadd.f32 %v6033, %v6293
    %v6295 = vpop.f32.mrf.mxu0
    %v6296 = vadd.f32 %v6035, %v6295
    %6297 = vmatmul.bf16.gmra.mxu0 %v5740
    %v6298 = vpop.f32.mrf.mxu0
    %v6299 = vadd.f32 %v6038, %v6298
    %v6300 = vpop.f32.mrf.mxu0
    %v6301 = vadd.f32 %v6040, %v6300
    %6302 = vmatmul.bf16.gmra.mxu0 %v5741
    %v6303 = vpop.f32.mrf.mxu0
    %v6304 = vadd.f32 %v6043, %v6303
    %v6305 = vpop.f32.mrf.mxu0
    %v6306 = vadd.f32 %v6045, %v6305
    %6307 = vmatmul.bf16.gmra.mxu0 %v5742
    %v6308 = vpop.f32.mrf.mxu0
    %v6309 = vadd.f32 %v6048, %v6308
    %v6310 = vpop.f32.mrf.mxu0
    %v6311 = vadd.f32 %v6050, %v6310
    %6312 = vmatmul.bf16.gmra.mxu0 %v5743
    %v6313 = vpop.f32.mrf.mxu0
    %v6314 = vadd.f32 %v6053, %v6313
    %v6315 = vpop.f32.mrf.mxu0
    %v6316 = vadd.f32 %v6055, %v6315
    %6317 = vmatmul.bf16.gmra.mxu0 %v5744
    %v6318 = vpop.f32.mrf.mxu0
    %v6319 = vadd.f32 %v6058, %v6318
    %v6320 = vpop.f32.mrf.mxu0
    %v6321 = vadd.f32 %v6060, %v6320
    %6322 = vmatmul.bf16.gmra.mxu0 %v5745
    %v6323 = vpop.f32.mrf.mxu0
    %v6324 = vadd.f32 %v6063, %v6323
    %v6325 = vpop.f32.mrf.mxu0
    %v6326 = vadd.f32 %v6065, %v6325
    %6327 = vmatmul.bf16.gmra.mxu0 %v5746
    %v6328 = vpop.f32.mrf.mxu0
    %v6329 = vadd.f32 %v6068, %v6328
    %v6330 = vpop.f32.mrf.mxu0
    %v6331 = vadd.f32 %v6070, %v6330
    %6332 = vmatmul.bf16.gmra.mxu0 %v5747
    %v6333 = vpop.f32.mrf.mxu0
    %v6334 = vadd.f32 %v6073, %v6333
    %v6335 = vpop.f32.mrf.mxu0
    %v6336 = vadd.f32 %v6075, %v6335
    %6337 = vmatmul.bf16.gmra.mxu0 %v5748
    %v6338 = vpop.f32.mrf.mxu0
    %v6339 = vadd.f32 %v6078, %v6338
    %v6340 = vpop.f32.mrf.mxu0
    %v6341 = vadd.f32 %v6080, %v6340
    %6342 = vmatmul.bf16.gmra.mxu0 %v5749
    %v6343 = vpop.f32.mrf.mxu0
    %v6344 = vadd.f32 %v6083, %v6343
    %v6345 = vpop.f32.mrf.mxu0
    %v6346 = vadd.f32 %v6085, %v6345
    %6347 = vmatmul.bf16.gmra.mxu0 %v5750
    %v6348 = vpop.f32.mrf.mxu0
    %v6349 = vadd.f32 %v6088, %v6348
    %v6350 = vpop.f32.mrf.mxu0
    %v6351 = vadd.f32 %v6090, %v6350
    %6352 = vmatmul.bf16.gmra.mxu0 %v5751
    %v6353 = vpop.f32.mrf.mxu0
    %v6354 = vadd.f32 %v6093, %v6353
    %v6355 = vpop.f32.mrf.mxu0
    %v6356 = vadd.f32 %v6095, %v6355
    %6357 = vmatmul.bf16.gmra.mxu0 %v5752
    %v6358 = vpop.f32.mrf.mxu0
    %v6359 = vadd.f32 %v6098, %v6358
    %v6360 = vpop.f32.mrf.mxu0
    %v6361 = vadd.f32 %v6100, %v6360
    %6362 = vmatmul.bf16.gmra.mxu0 %v5753
    %v6363 = vpop.f32.mrf.mxu0
    %v6364 = vadd.f32 %v6103, %v6363
    %v6365 = vpop.f32.mrf.mxu0
    %v6366 = vadd.f32 %v6105, %v6365
    %6367 = vmatmul.bf16.gmra.mxu0 %v5754
    %v6368 = vpop.f32.mrf.mxu0
    %v6369 = vadd.f32 %v6108, %v6368
    %v6370 = vpop.f32.mrf.mxu0
    %v6371 = vadd.f32 %v6110, %v6370
    %6372 = vmatmul.bf16.gmra.mxu0 %v5755
    %v6373 = vpop.f32.mrf.mxu0
    %v6374 = vadd.f32 %v6113, %v6373
    %v6375 = vpop.f32.mrf.mxu0
    %v6376 = vadd.f32 %v6115, %v6375
    %6377 = vmatmul.bf16.gmra.mxu0 %v5756
    %v6378 = vpop.f32.mrf.mxu0
    %v6379 = vadd.f32 %v6118, %v6378
    %v6380 = vpop.f32.mrf.mxu0
    %v6381 = vadd.f32 %v6120, %v6380
    %6382 = vmatmul.bf16.gmra.mxu0 %v5757
    %v6383 = vpop.f32.mrf.mxu0
    %v6384 = vadd.f32 %v6123, %v6383
    %v6385 = vpop.f32.mrf.mxu0
    %v6386 = vadd.f32 %v6125, %v6385
    %6387 = vmatmul.bf16.gmra.mxu0 %v5758
    %v6388 = vpop.f32.mrf.mxu0
    %v6389 = vadd.f32 %v6128, %v6388
    %v6390 = vpop.f32.mrf.mxu0
    %v6391 = vadd.f32 %v6130, %v6390
    %6392 = vmatmul.bf16.gmra.mxu0 %v5759
    %v6393 = vpop.f32.mrf.mxu0
    %v6394 = vadd.f32 %v6133, %v6393
    %v6395 = vpop.f32.mrf.mxu0
    %v6396 = vadd.f32 %v6135, %v6395
    %6397 = vmatmul.bf16.gmra.mxu0 %v5760
    %v6398 = vpop.f32.mrf.mxu0
    %v6399 = vadd.f32 %v6138, %v6398
    %v6400 = vpop.f32.mrf.mxu0
    %v6401 = vadd.f32 %v6140, %v6400
    %6402 = vmatmul.bf16.gmra.mxu0 %v5761
    %v6403 = vpop.f32.mrf.mxu0
    %v6404 = vadd.f32 %v6143, %v6403
    %v6405 = vpop.f32.mrf.mxu0
    %v6406 = vadd.f32 %v6145, %v6405
    %6407 = vmatmul.bf16.gmra.mxu0 %v5762
    %v6408 = vpop.f32.mrf.mxu0
    %v6409 = vadd.f32 %v6148, %v6408
    %v6410 = vpop.f32.mrf.mxu0
    %v6411 = vadd.f32 %v6150, %v6410
    %6412 = vmatmul.bf16.gmra.mxu0 %v5763
    %v6413 = vpop.f32.mrf.mxu0
    %v6414 = vadd.f32 %v6153, %v6413
    %v6415 = vpop.f32.mrf.mxu0
    %v6416 = vadd.f32 %v6155, %v6415
    %6417 = vmatmul.bf16.gmra.mxu0 %v5764
    %v6418 = vpop.f32.mrf.mxu0
    %v6419 = vadd.f32 %v6158, %v6418
    %v6420 = vpop.f32.mrf.mxu0
    %v6421 = vadd.f32 %v6160, %v6420
    %6422 = vmatmul.bf16.gmra.mxu0 %v5765
    %v6423 = vpop.f32.mrf.mxu0
    %v6424 = vadd.f32 %v6163, %v6423
    %v6425 = vpop.f32.mrf.mxu0
    %v6426 = vadd.f32 %v6165, %v6425
    %6427 = vmatmul.bf16.gmra.mxu0 %v5766
    %v6428 = vpop.f32.mrf.mxu0
    %v6429 = vadd.f32 %v6168, %v6428
    %v6430 = vpop.f32.mrf.mxu0
    %v6431 = vadd.f32 %v6170, %v6430
    %6432 = vmatmul.bf16.gmra.mxu0 %v5767
    %v6433 = vpop.f32.mrf.mxu0
    %v6434 = vadd.f32 %v6173, %v6433
    %v6435 = vpop.f32.mrf.mxu0
    %v6436 = vadd.f32 %v6175, %v6435
    %6437 = vmatmul.bf16.gmra.mxu0 %v5768
    %v6438 = vpop.f32.mrf.mxu0
    %v6439 = vadd.f32 %v6178, %v6438
    %v6440 = vpop.f32.mrf.mxu0
    %v6441 = vadd.f32 %v6180, %v6440
    %6442 = vmatmul.bf16.gmra.mxu0 %v5769
    %v6443 = vpop.f32.mrf.mxu0
    %v6444 = vadd.f32 %v6183, %v6443
    %v6445 = vpop.f32.mrf.mxu0
    %6446 = vdwg.mxu0
    %v6447 = vld [vmem:[#allocation2 + $0x7] sm:$0xff]
    %v6448 = vld [vmem:[#allocation2 + $0xf] sm:$0xff]
    %v6449 = vld [vmem:[#allocation2 + $0x17] sm:$0xff]
    %v6450 = vld [vmem:[#allocation2 + $0x1f] sm:$0xff]
    %v6451 = vld [vmem:[#allocation2 + $0x27] sm:$0xff]
    %v6452 = vld [vmem:[#allocation2 + $0x2f] sm:$0xff]
    %v6453 = vld [vmem:[#allocation2 + $0x37] sm:$0xff]
    %v6454 = vld [vmem:[#allocation2 + $0x3f] sm:$0xff]
    %v6455 = vld [vmem:[#allocation2 + $0x47] sm:$0xff]
    %v6456 = vld [vmem:[#allocation2 + $0x4f] sm:$0xff]
    %v6457 = vld [vmem:[#allocation2 + $0x57] sm:$0xff]
    %v6458 = vld [vmem:[#allocation2 + $0x5f] sm:$0xff]
    %v6459 = vld [vmem:[#allocation2 + $0x67] sm:$0xff]
    %v6460 = vld [vmem:[#allocation2 + $0x6f] sm:$0xff]
    %v6461 = vld [vmem:[#allocation2 + $0x77] sm:$0xff]
    %v6462 = vld [vmem:[#allocation2 + $0x7f] sm:$0xff]
    %v6463 = vld [vmem:[#allocation2 + $0x87] sm:$0xff]
    %v6464 = vld [vmem:[#allocation2 + $0x8f] sm:$0xff]
    %v6465 = vld [vmem:[#allocation2 + $0x97] sm:$0xff]
    %v6466 = vld [vmem:[#allocation2 + $0x9f] sm:$0xff]
    %v6467 = vld [vmem:[#allocation2 + $0xa7] sm:$0xff]
    %v6468 = vld [vmem:[#allocation2 + $0xaf] sm:$0xff]
    %v6469 = vld [vmem:[#allocation2 + $0xb7] sm:$0xff]
    %v6470 = vld [vmem:[#allocation2 + $0xbf] sm:$0xff]
    %v6471 = vld [vmem:[#allocation2 + $0xc7] sm:$0xff]
    %v6472 = vld [vmem:[#allocation2 + $0xcf] sm:$0xff]
    %v6473 = vld [vmem:[#allocation2 + $0xd7] sm:$0xff]
    %v6474 = vld [vmem:[#allocation2 + $0xdf] sm:$0xff]
    %v6475 = vld [vmem:[#allocation2 + $0xe7] sm:$0xff]
    %v6476 = vld [vmem:[#allocation2 + $0xef] sm:$0xff]
    %v6477 = vld [vmem:[#allocation2 + $0xf7] sm:$0xff]
    %v6478 = vld [vmem:[#allocation2 + $0xff] sm:$0xff]
    %v6479 = vld [vmem:[#allocation2 + $0x107] sm:$0xff]
    %v6480 = vld [vmem:[#allocation2 + $0x10f] sm:$0xff]
    %v6481 = vld [vmem:[#allocation2 + $0x117] sm:$0xff]
    %v6482 = vld [vmem:[#allocation2 + $0x11f] sm:$0xff]
    %v6483 = vld [vmem:[#allocation2 + $0x127] sm:$0xff]
    %v6484 = vld [vmem:[#allocation2 + $0x12f] sm:$0xff]
    %v6485 = vld [vmem:[#allocation2 + $0x137] sm:$0xff]
    %v6486 = vld [vmem:[#allocation2 + $0x13f] sm:$0xff]
    %v6487 = vld [vmem:[#allocation2 + $0x147] sm:$0xff]
    %v6488 = vld [vmem:[#allocation2 + $0x14f] sm:$0xff]
    %v6489 = vld [vmem:[#allocation2 + $0x157] sm:$0xff]
    %v6490 = vld [vmem:[#allocation2 + $0x15f] sm:$0xff]
    %v6491 = vld [vmem:[#allocation2 + $0x167] sm:$0xff]
    %v6492 = vld [vmem:[#allocation2 + $0x16f] sm:$0xff]
    %v6493 = vld [vmem:[#allocation2 + $0x177] sm:$0xff]
    %v6494 = vld [vmem:[#allocation2 + $0x17f] sm:$0xff]
    %v6495 = vld [vmem:[#allocation2 + $0x187] sm:$0xff]
    %v6496 = vld [vmem:[#allocation2 + $0x18f] sm:$0xff]
    %v6497 = vld [vmem:[#allocation2 + $0x197] sm:$0xff]
    %v6498 = vld [vmem:[#allocation2 + $0x19f] sm:$0xff]
    %v6499 = vld [vmem:[#allocation2 + $0x1a7] sm:$0xff]
    %v6500 = vld [vmem:[#allocation2 + $0x1af] sm:$0xff]
    %v6501 = vld [vmem:[#allocation2 + $0x1b7] sm:$0xff]
    %v6502 = vld [vmem:[#allocation2 + $0x1bf] sm:$0xff]
    %v6503 = vld [vmem:[#allocation2 + $0x1c7] sm:$0xff]
    %v6504 = vld [vmem:[#allocation2 + $0x1cf] sm:$0xff]
    %v6505 = vld [vmem:[#allocation2 + $0x1d7] sm:$0xff]
    %v6506 = vld [vmem:[#allocation2 + $0x1df] sm:$0xff]
    %v6507 = vld [vmem:[#allocation2 + $0x1e7] sm:$0xff]
    %v6508 = vld [vmem:[#allocation2 + $0x1ef] sm:$0xff]
    %v6509 = vld [vmem:[#allocation2 + $0x1f7] sm:$0xff]
    %v6510 = vld [vmem:[#allocation2 + $0x1ff] sm:$0xff]
    %v6511 = vld [vmem:[#allocation2 + $0x207] sm:$0xff]
    %v6512 = vld [vmem:[#allocation2 + $0x20f] sm:$0xff]
    %v6513 = vld [vmem:[#allocation2 + $0x217] sm:$0xff]
    %v6514 = vld [vmem:[#allocation2 + $0x21f] sm:$0xff]
    %v6515 = vld [vmem:[#allocation2 + $0x227] sm:$0xff]
    %v6516 = vld [vmem:[#allocation2 + $0x22f] sm:$0xff]
    %v6517 = vld [vmem:[#allocation2 + $0x237] sm:$0xff]
    %v6518 = vld [vmem:[#allocation2 + $0x23f] sm:$0xff]
    %v6519 = vld [vmem:[#allocation2 + $0x247] sm:$0xff]
    %v6520 = vld [vmem:[#allocation2 + $0x24f] sm:$0xff]
    %v6521 = vld [vmem:[#allocation2 + $0x257] sm:$0xff]
    %v6522 = vld [vmem:[#allocation2 + $0x25f] sm:$0xff]
    %v6523 = vld [vmem:[#allocation2 + $0x267] sm:$0xff]
    %v6524 = vld [vmem:[#allocation2 + $0x26f] sm:$0xff]
    %v6525 = vld [vmem:[#allocation2 + $0x277] sm:$0xff]
    %v6526 = vld [vmem:[#allocation2 + $0x27f] sm:$0xff]
    %v6527 = vld [vmem:[#allocation2 + $0x287] sm:$0xff]
    %v6528 = vpack.c.bf16 %v6448, %v6447
    %v6529 = vpack.c.bf16 %v6450, %v6449
    %v6530 = vpack.c.bf16 %v6452, %v6451
    %v6531 = vpack.c.bf16 %v6454, %v6453
    %v6532 = vpack.c.bf16 %v6456, %v6455
    %v6533 = vpack.c.bf16 %v6458, %v6457
    %v6534 = vpack.c.bf16 %v6460, %v6459
    %v6535 = vpack.c.bf16 %v6462, %v6461
    %v6536 = vpack.c.bf16 %v6464, %v6463
    %v6537 = vpack.c.bf16 %v6466, %v6465
    %v6538 = vpack.c.bf16 %v6468, %v6467
    %v6539 = vpack.c.bf16 %v6470, %v6469
    %v6540 = vpack.c.bf16 %v6472, %v6471
    %v6541 = vpack.c.bf16 %v6474, %v6473
    %v6542 = vpack.c.bf16 %v6476, %v6475
    %v6543 = vpack.c.bf16 %v6478, %v6477
    %v6544 = vpack.c.bf16 %v6480, %v6479
    %v6545 = vpack.c.bf16 %v6482, %v6481
    %v6546 = vpack.c.bf16 %v6484, %v6483
    %v6547 = vpack.c.bf16 %v6486, %v6485
    %v6548 = vpack.c.bf16 %v6488, %v6487
    %v6549 = vpack.c.bf16 %v6490, %v6489
    %v6550 = vpack.c.bf16 %v6492, %v6491
    %v6551 = vpack.c.bf16 %v6494, %v6493
    %v6552 = vpack.c.bf16 %v6496, %v6495
    %v6553 = vpack.c.bf16 %v6498, %v6497
    %v6554 = vpack.c.bf16 %v6500, %v6499
    %v6555 = vpack.c.bf16 %v6502, %v6501
    %v6556 = vpack.c.bf16 %v6504, %v6503
    %v6557 = vpack.c.bf16 %v6506, %v6505
    %v6558 = vpack.c.bf16 %v6508, %v6507
    %v6559 = vpack.c.bf16 %v6510, %v6509
    %v6560 = vpack.c.bf16 %v6512, %v6511
    %v6561 = vpack.c.bf16 %v6514, %v6513
    %v6562 = vpack.c.bf16 %v6516, %v6515
    %v6563 = vpack.c.bf16 %v6518, %v6517
    %v6564 = vpack.c.bf16 %v6520, %v6519
    %v6565 = vpack.c.bf16 %v6522, %v6521
    %v6566 = vpack.c.bf16 %v6524, %v6523
    %v6567 = vpack.c.bf16 %v6526, %v6525
    %v6568 = vpack.c.bf16 %v6527, %v6527
    %s6569 = scalar_lea.vmem [#allocation6], 128
    %v6570 = vld [vmem:[%s6569] sm:$0xf]
    %v6571 = vld [vmem:[%s6569 + $0x4] sm:$0xf]
    %v6572 = vld [vmem:[%s6569 + $0x8] sm:$0xf]
    %v6573 = vld [vmem:[%s6569 + $0xc] sm:$0xf]
    %v6574 = vld [vmem:[%s6569 + $0x10] sm:$0xf]
    %v6575 = vld [vmem:[%s6569 + $0x14] sm:$0xf]
    %v6576 = vld [vmem:[%s6569 + $0x18] sm:$0xf]
    %v6577 = vld [vmem:[%s6569 + $0x1c] sm:$0xf]
    %v6578 = vld [vmem:[%s6569 + $0x20] sm:$0xf]
    %v6579 = vld [vmem:[%s6569 + $0x24] sm:$0xf]
    %v6580 = vld [vmem:[%s6569 + $0x28] sm:$0xf]
    %v6581 = vld [vmem:[%s6569 + $0x2c] sm:$0xf]
    %v6582 = vld [vmem:[%s6569 + $0x30] sm:$0xf]
    %v6583 = vld [vmem:[%s6569 + $0x34] sm:$0xf]
    %v6584 = vld [vmem:[%s6569 + $0x38] sm:$0xf]
    %v6585 = vld [vmem:[%s6569 + $0x3c] sm:$0xf]
    %v6602 = vunpack.c.l.b16 %v6570
    %v6603 = vunpack.c.l.b16 %v6571
    %v6604 = vunpack.c.l.b16 %v6572
    %v6605 = vunpack.c.l.b16 %v6573
    %v6606 = vunpack.c.l.b16 %v6574
    %v6607 = vunpack.c.l.b16 %v6575
    %v6608 = vunpack.c.l.b16 %v6576
    %v6609 = vunpack.c.l.b16 %v6577
    %v6610 = vunpack.c.l.b16 %v6578
    %v6611 = vunpack.c.l.b16 %v6579
    %v6612 = vunpack.c.l.b16 %v6580
    %v6613 = vunpack.c.l.b16 %v6581
    %v6614 = vunpack.c.l.b16 %v6582
    %v6615 = vunpack.c.l.b16 %v6583
    %v6616 = vunpack.c.l.b16 %v6584
    %v6617 = vunpack.c.l.b16 %v6585
    %v6618 = vpack.c.b16 %v6603, %v6602
    %v6619 = vpack.c.b16 %v6605, %v6604
    %v6620 = vpack.c.b16 %v6607, %v6606
    %v6621 = vpack.c.b16 %v6609, %v6608
    %v6622 = vpack.c.b16 %v6611, %v6610
    %v6623 = vpack.c.b16 %v6613, %v6612
    %v6624 = vpack.c.b16 %v6615, %v6614
    %v6625 = vpack.c.b16 %v6617, %v6616
    %6634 = vmatpush.bf16.msra.mxu0 %v6625
    %6635 = vmatpush.bf16.msra.mxu0 %v6624
    %6636 = vmatpush.bf16.msra.mxu0 %v6623
    %6637 = vmatpush.bf16.msra.mxu0 %v6622
    %6638 = vmatpush.bf16.msra.mxu0 %v6621
    %6639 = vmatpush.bf16.msra.mxu0 %v6620
    %6640 = vmatpush.bf16.msra.mxu0 %v6619
    %6641 = vmatpush.bf16.msra.mxu0 %v6618
    %6642 = vmatmul.bf16.gmra.mxu0 %v6528
    %v6643 = vpop.f32.mrf.mxu0
    %v6644 = vadd.f32 0.0, %v6643
    %v6645 = vpop.f32.mrf.mxu0
    %v6646 = vadd.f32 0.0, %v6645
    %6647 = vmatmul.bf16.gmra.mxu0 %v6529
    %v6648 = vpop.f32.mrf.mxu0
    %v6649 = vadd.f32 0.0, %v6648
    %v6650 = vpop.f32.mrf.mxu0
    %v6651 = vadd.f32 0.0, %v6650
    %6652 = vmatmul.bf16.gmra.mxu0 %v6530
    %v6653 = vpop.f32.mrf.mxu0
    %v6654 = vadd.f32 0.0, %v6653
    %v6655 = vpop.f32.mrf.mxu0
    %v6656 = vadd.f32 0.0, %v6655
    %6657 = vmatmul.bf16.gmra.mxu0 %v6531
    %v6658 = vpop.f32.mrf.mxu0
    %v6659 = vadd.f32 0.0, %v6658
    %v6660 = vpop.f32.mrf.mxu0
    %v6661 = vadd.f32 0.0, %v6660
    %6662 = vmatmul.bf16.gmra.mxu0 %v6532
    %v6663 = vpop.f32.mrf.mxu0
    %v6664 = vadd.f32 0.0, %v6663
    %v6665 = vpop.f32.mrf.mxu0
    %v6666 = vadd.f32 0.0, %v6665
    %6667 = vmatmul.bf16.gmra.mxu0 %v6533
    %v6668 = vpop.f32.mrf.mxu0
    %v6669 = vadd.f32 0.0, %v6668
    %v6670 = vpop.f32.mrf.mxu0
    %v6671 = vadd.f32 0.0, %v6670
    %6672 = vmatmul.bf16.gmra.mxu0 %v6534
    %v6673 = vpop.f32.mrf.mxu0
    %v6674 = vadd.f32 0.0, %v6673
    %v6675 = vpop.f32.mrf.mxu0
    %v6676 = vadd.f32 0.0, %v6675
    %6677 = vmatmul.bf16.gmra.mxu0 %v6535
    %v6678 = vpop.f32.mrf.mxu0
    %v6679 = vadd.f32 0.0, %v6678
    %v6680 = vpop.f32.mrf.mxu0
    %v6681 = vadd.f32 0.0, %v6680
    %6682 = vmatmul.bf16.gmra.mxu0 %v6536
    %v6683 = vpop.f32.mrf.mxu0
    %v6684 = vadd.f32 0.0, %v6683
    %v6685 = vpop.f32.mrf.mxu0
    %v6686 = vadd.f32 0.0, %v6685
    %6687 = vmatmul.bf16.gmra.mxu0 %v6537
    %v6688 = vpop.f32.mrf.mxu0
    %v6689 = vadd.f32 0.0, %v6688
    %v6690 = vpop.f32.mrf.mxu0
    %v6691 = vadd.f32 0.0, %v6690
    %6692 = vmatmul.bf16.gmra.mxu0 %v6538
    %v6693 = vpop.f32.mrf.mxu0
    %v6694 = vadd.f32 0.0, %v6693
    %v6695 = vpop.f32.mrf.mxu0
    %v6696 = vadd.f32 0.0, %v6695
    %6697 = vmatmul.bf16.gmra.mxu0 %v6539
    %v6698 = vpop.f32.mrf.mxu0
    %v6699 = vadd.f32 0.0, %v6698
    %v6700 = vpop.f32.mrf.mxu0
    %v6701 = vadd.f32 0.0, %v6700
    %6702 = vmatmul.bf16.gmra.mxu0 %v6540
    %v6703 = vpop.f32.mrf.mxu0
    %v6704 = vadd.f32 0.0, %v6703
    %v6705 = vpop.f32.mrf.mxu0
    %v6706 = vadd.f32 0.0, %v6705
    %6707 = vmatmul.bf16.gmra.mxu0 %v6541
    %v6708 = vpop.f32.mrf.mxu0
    %v6709 = vadd.f32 0.0, %v6708
    %v6710 = vpop.f32.mrf.mxu0
    %v6711 = vadd.f32 0.0, %v6710
    %6712 = vmatmul.bf16.gmra.mxu0 %v6542
    %v6713 = vpop.f32.mrf.mxu0
    %v6714 = vadd.f32 0.0, %v6713
    %v6715 = vpop.f32.mrf.mxu0
    %v6716 = vadd.f32 0.0, %v6715
    %6717 = vmatmul.bf16.gmra.mxu0 %v6543
    %v6718 = vpop.f32.mrf.mxu0
    %v6719 = vadd.f32 0.0, %v6718
    %v6720 = vpop.f32.mrf.mxu0
    %v6721 = vadd.f32 0.0, %v6720
    %6722 = vmatmul.bf16.gmra.mxu0 %v6544
    %v6723 = vpop.f32.mrf.mxu0
    %v6724 = vadd.f32 0.0, %v6723
    %v6725 = vpop.f32.mrf.mxu0
    %v6726 = vadd.f32 0.0, %v6725
    %6727 = vmatmul.bf16.gmra.mxu0 %v6545
    %v6728 = vpop.f32.mrf.mxu0
    %v6729 = vadd.f32 0.0, %v6728
    %v6730 = vpop.f32.mrf.mxu0
    %v6731 = vadd.f32 0.0, %v6730
    %6732 = vmatmul.bf16.gmra.mxu0 %v6546
    %v6733 = vpop.f32.mrf.mxu0
    %v6734 = vadd.f32 0.0, %v6733
    %v6735 = vpop.f32.mrf.mxu0
    %v6736 = vadd.f32 0.0, %v6735
    %6737 = vmatmul.bf16.gmra.mxu0 %v6547
    %v6738 = vpop.f32.mrf.mxu0
    %v6739 = vadd.f32 0.0, %v6738
    %v6740 = vpop.f32.mrf.mxu0
    %v6741 = vadd.f32 0.0, %v6740
    %6742 = vmatmul.bf16.gmra.mxu0 %v6548
    %v6743 = vpop.f32.mrf.mxu0
    %v6744 = vadd.f32 0.0, %v6743
    %v6745 = vpop.f32.mrf.mxu0
    %v6746 = vadd.f32 0.0, %v6745
    %6747 = vmatmul.bf16.gmra.mxu0 %v6549
    %v6748 = vpop.f32.mrf.mxu0
    %v6749 = vadd.f32 0.0, %v6748
    %v6750 = vpop.f32.mrf.mxu0
    %v6751 = vadd.f32 0.0, %v6750
    %6752 = vmatmul.bf16.gmra.mxu0 %v6550
    %v6753 = vpop.f32.mrf.mxu0
    %v6754 = vadd.f32 0.0, %v6753
    %v6755 = vpop.f32.mrf.mxu0
    %v6756 = vadd.f32 0.0, %v6755
    %6757 = vmatmul.bf16.gmra.mxu0 %v6551
    %v6758 = vpop.f32.mrf.mxu0
    %v6759 = vadd.f32 0.0, %v6758
    %v6760 = vpop.f32.mrf.mxu0
    %v6761 = vadd.f32 0.0, %v6760
    %6762 = vmatmul.bf16.gmra.mxu0 %v6552
    %v6763 = vpop.f32.mrf.mxu0
    %v6764 = vadd.f32 0.0, %v6763
    %v6765 = vpop.f32.mrf.mxu0
    %v6766 = vadd.f32 0.0, %v6765
    %6767 = vmatmul.bf16.gmra.mxu0 %v6553
    %v6768 = vpop.f32.mrf.mxu0
    %v6769 = vadd.f32 0.0, %v6768
    %v6770 = vpop.f32.mrf.mxu0
    %v6771 = vadd.f32 0.0, %v6770
    %6772 = vmatmul.bf16.gmra.mxu0 %v6554
    %v6773 = vpop.f32.mrf.mxu0
    %v6774 = vadd.f32 0.0, %v6773
    %v6775 = vpop.f32.mrf.mxu0
    %v6776 = vadd.f32 0.0, %v6775
    %6777 = vmatmul.bf16.gmra.mxu0 %v6555
    %v6778 = vpop.f32.mrf.mxu0
    %v6779 = vadd.f32 0.0, %v6778
    %v6780 = vpop.f32.mrf.mxu0
    %v6781 = vadd.f32 0.0, %v6780
    %6782 = vmatmul.bf16.gmra.mxu0 %v6556
    %v6783 = vpop.f32.mrf.mxu0
    %v6784 = vadd.f32 0.0, %v6783
    %v6785 = vpop.f32.mrf.mxu0
    %v6786 = vadd.f32 0.0, %v6785
    %6787 = vmatmul.bf16.gmra.mxu0 %v6557
    %v6788 = vpop.f32.mrf.mxu0
    %v6789 = vadd.f32 0.0, %v6788
    %v6790 = vpop.f32.mrf.mxu0
    %v6791 = vadd.f32 0.0, %v6790
    %6792 = vmatmul.bf16.gmra.mxu0 %v6558
    %v6793 = vpop.f32.mrf.mxu0
    %v6794 = vadd.f32 0.0, %v6793
    %v6795 = vpop.f32.mrf.mxu0
    %v6796 = vadd.f32 0.0, %v6795
    %6797 = vmatmul.bf16.gmra.mxu0 %v6559
    %v6798 = vpop.f32.mrf.mxu0
    %v6799 = vadd.f32 0.0, %v6798
    %v6800 = vpop.f32.mrf.mxu0
    %v6801 = vadd.f32 0.0, %v6800
    %6802 = vmatmul.bf16.gmra.mxu0 %v6560
    %v6803 = vpop.f32.mrf.mxu0
    %v6804 = vadd.f32 0.0, %v6803
    %v6805 = vpop.f32.mrf.mxu0
    %v6806 = vadd.f32 0.0, %v6805
    %6807 = vmatmul.bf16.gmra.mxu0 %v6561
    %v6808 = vpop.f32.mrf.mxu0
    %v6809 = vadd.f32 0.0, %v6808
    %v6810 = vpop.f32.mrf.mxu0
    %v6811 = vadd.f32 0.0, %v6810
    %6812 = vmatmul.bf16.gmra.mxu0 %v6562
    %v6813 = vpop.f32.mrf.mxu0
    %v6814 = vadd.f32 0.0, %v6813
    %v6815 = vpop.f32.mrf.mxu0
    %v6816 = vadd.f32 0.0, %v6815
    %6817 = vmatmul.bf16.gmra.mxu0 %v6563
    %v6818 = vpop.f32.mrf.mxu0
    %v6819 = vadd.f32 0.0, %v6818
    %v6820 = vpop.f32.mrf.mxu0
    %v6821 = vadd.f32 0.0, %v6820
    %6822 = vmatmul.bf16.gmra.mxu0 %v6564
    %v6823 = vpop.f32.mrf.mxu0
    %v6824 = vadd.f32 0.0, %v6823
    %v6825 = vpop.f32.mrf.mxu0
    %v6826 = vadd.f32 0.0, %v6825
    %6827 = vmatmul.bf16.gmra.mxu0 %v6565
    %v6828 = vpop.f32.mrf.mxu0
    %v6829 = vadd.f32 0.0, %v6828
    %v6830 = vpop.f32.mrf.mxu0
    %v6831 = vadd.f32 0.0, %v6830
    %6832 = vmatmul.bf16.gmra.mxu0 %v6566
    %v6833 = vpop.f32.mrf.mxu0
    %v6834 = vadd.f32 0.0, %v6833
    %v6835 = vpop.f32.mrf.mxu0
    %v6836 = vadd.f32 0.0, %v6835
    %6837 = vmatmul.bf16.gmra.mxu0 %v6567
    %v6838 = vpop.f32.mrf.mxu0
    %v6839 = vadd.f32 0.0, %v6838
    %v6840 = vpop.f32.mrf.mxu0
    %v6841 = vadd.f32 0.0, %v6840
    %6842 = vmatmul.bf16.gmra.mxu0 %v6568
    %v6843 = vpop.f32.mrf.mxu0
    %v6844 = vadd.f32 0.0, %v6843
    %v6845 = vpop.f32.mrf.mxu0
    %6846 = vdwg.mxu0
    %v6847 = vadd.f32 %v6244, %v6644
    %v6848 = vadd.f32 %v6246, %v6646
    %v6849 = vadd.f32 %v6249, %v6649
    %v6850 = vadd.f32 %v6251, %v6651
    %v6851 = vadd.f32 %v6254, %v6654
    %v6852 = vadd.f32 %v6256, %v6656
    %v6853 = vadd.f32 %v6259, %v6659
    %v6854 = vadd.f32 %v6261, %v6661
    %v6855 = vadd.f32 %v6264, %v6664
    %v6856 = vadd.f32 %v6266, %v6666
    %v6857 = vadd.f32 %v6269, %v6669
    %v6858 = vadd.f32 %v6271, %v6671
    %v6859 = vadd.f32 %v6274, %v6674
    %v6860 = vadd.f32 %v6276, %v6676
    %v6861 = vadd.f32 %v6279, %v6679
    %v6862 = vadd.f32 %v6281, %v6681
    %v6863 = vadd.f32 %v6284, %v6684
    %v6864 = vadd.f32 %v6286, %v6686
    %v6865 = vadd.f32 %v6289, %v6689
    %v6866 = vadd.f32 %v6291, %v6691
    %v6867 = vadd.f32 %v6294, %v6694
    %v6868 = vadd.f32 %v6296, %v6696
    %v6869 = vadd.f32 %v6299, %v6699
    %v6870 = vadd.f32 %v6301, %v6701
    %v6871 = vadd.f32 %v6304, %v6704
    %v6872 = vadd.f32 %v6306, %v6706
    %v6873 = vadd.f32 %v6309, %v6709
    %v6874 = vadd.f32 %v6311, %v6711
    %v6875 = vadd.f32 %v6314, %v6714
    %v6876 = vadd.f32 %v6316, %v6716
    %v6877 = vadd.f32 %v6319, %v6719
    %v6878 = vadd.f32 %v6321, %v6721
    %v6879 = vadd.f32 %v6324, %v6724
    %v6880 = vadd.f32 %v6326, %v6726
    %v6881 = vadd.f32 %v6329, %v6729
    %v6882 = vadd.f32 %v6331, %v6731
    %v6883 = vadd.f32 %v6334, %v6734
    %v6884 = vadd.f32 %v6336, %v6736
    %v6885 = vadd.f32 %v6339, %v6739
    %v6886 = vadd.f32 %v6341, %v6741
    %v6887 = vadd.f32 %v6344, %v6744
    %v6888 = vadd.f32 %v6346, %v6746
    %v6889 = vadd.f32 %v6349, %v6749
    %v6890 = vadd.f32 %v6351, %v6751
    %v6891 = vadd.f32 %v6354, %v6754
    %v6892 = vadd.f32 %v6356, %v6756
    %v6893 = vadd.f32 %v6359, %v6759
    %v6894 = vadd.f32 %v6361, %v6761
    %v6895 = vadd.f32 %v6364, %v6764
    %v6896 = vadd.f32 %v6366, %v6766
    %v6897 = vadd.f32 %v6369, %v6769
    %v6898 = vadd.f32 %v6371, %v6771
    %v6899 = vadd.f32 %v6374, %v6774
    %v6900 = vadd.f32 %v6376, %v6776
    %v6901 = vadd.f32 %v6379, %v6779
    %v6902 = vadd.f32 %v6381, %v6781
    %v6903 = vadd.f32 %v6384, %v6784
    %v6904 = vadd.f32 %v6386, %v6786
    %v6905 = vadd.f32 %v6389, %v6789
    %v6906 = vadd.f32 %v6391, %v6791
    %v6907 = vadd.f32 %v6394, %v6794
    %v6908 = vadd.f32 %v6396, %v6796
    %v6909 = vadd.f32 %v6399, %v6799
    %v6910 = vadd.f32 %v6401, %v6801
    %v6911 = vadd.f32 %v6404, %v6804
    %v6912 = vadd.f32 %v6406, %v6806
    %v6913 = vadd.f32 %v6409, %v6809
    %v6914 = vadd.f32 %v6411, %v6811
    %v6915 = vadd.f32 %v6414, %v6814
    %v6916 = vadd.f32 %v6416, %v6816
    %v6917 = vadd.f32 %v6419, %v6819
    %v6918 = vadd.f32 %v6421, %v6821
    %v6919 = vadd.f32 %v6424, %v6824
    %v6920 = vadd.f32 %v6426, %v6826
    %v6921 = vadd.f32 %v6429, %v6829
    %v6922 = vadd.f32 %v6431, %v6831
    %v6923 = vadd.f32 %v6434, %v6834
    %v6924 = vadd.f32 %v6436, %v6836
    %v6925 = vadd.f32 %v6439, %v6839
    %v6926 = vadd.f32 %v6441, %v6841
    %v6927 = vadd.f32 %v6444, %v6844
    %v6928 = vld [vmem:[#allocation2 + $0x17] sm:$0xff]
    %v6929 = vld [vmem:[#allocation2 + $0x1f] sm:$0xff]
    %v6930 = vld [vmem:[#allocation2 + $0x27] sm:$0xff]
    %v6931 = vld [vmem:[#allocation2 + $0x2f] sm:$0xff]
    %v6932 = vld [vmem:[#allocation2 + $0x37] sm:$0xff]
    %v6933 = vld [vmem:[#allocation2 + $0x3f] sm:$0xff]
    %v6934 = vld [vmem:[#allocation2 + $0x47] sm:$0xff]
    %v6935 = vld [vmem:[#allocation2 + $0x4f] sm:$0xff]
    %v6936 = vld [vmem:[#allocation2 + $0x57] sm:$0xff]
    %v6937 = vld [vmem:[#allocation2 + $0x5f] sm:$0xff]
    %v6938 = vld [vmem:[#allocation2 + $0x67] sm:$0xff]
    %v6939 = vld [vmem:[#allocation2 + $0x6f] sm:$0xff]
    %v6940 = vld [vmem:[#allocation2 + $0x77] sm:$0xff]
    %v6941 = vld [vmem:[#allocation2 + $0x7f] sm:$0xff]
    %v6942 = vld [vmem:[#allocation2 + $0x87] sm:$0xff]
    %v6943 = vld [vmem:[#allocation2 + $0x8f] sm:$0xff]
    %v6944 = vld [vmem:[#allocation2 + $0x97] sm:$0xff]
    %v6945 = vld [vmem:[#allocation2 + $0x9f] sm:$0xff]
    %v6946 = vld [vmem:[#allocation2 + $0xa7] sm:$0xff]
    %v6947 = vld [vmem:[#allocation2 + $0xaf] sm:$0xff]
    %v6948 = vld [vmem:[#allocation2 + $0xb7] sm:$0xff]
    %v6949 = vld [vmem:[#allocation2 + $0xbf] sm:$0xff]
    %v6950 = vld [vmem:[#allocation2 + $0xc7] sm:$0xff]
    %v6951 = vld [vmem:[#allocation2 + $0xcf] sm:$0xff]
    %v6952 = vld [vmem:[#allocation2 + $0xd7] sm:$0xff]
    %v6953 = vld [vmem:[#allocation2 + $0xdf] sm:$0xff]
    %v6954 = vld [vmem:[#allocation2 + $0xe7] sm:$0xff]
    %v6955 = vld [vmem:[#allocation2 + $0xef] sm:$0xff]
    %v6956 = vld [vmem:[#allocation2 + $0xf7] sm:$0xff]
    %v6957 = vld [vmem:[#allocation2 + $0xff] sm:$0xff]
    %v6958 = vld [vmem:[#allocation2 + $0x107] sm:$0xff]
    %v6959 = vld [vmem:[#allocation2 + $0x10f] sm:$0xff]
    %v6960 = vld [vmem:[#allocation2 + $0x117] sm:$0xff]
    %v6961 = vld [vmem:[#allocation2 + $0x11f] sm:$0xff]
    %v6962 = vld [vmem:[#allocation2 + $0x127] sm:$0xff]
    %v6963 = vld [vmem:[#allocation2 + $0x12f] sm:$0xff]
    %v6964 = vld [vmem:[#allocation2 + $0x137] sm:$0xff]
    %v6965 = vld [vmem:[#allocation2 + $0x13f] sm:$0xff]
    %v6966 = vld [vmem:[#allocation2 + $0x147] sm:$0xff]
    %v6967 = vld [vmem:[#allocation2 + $0x14f] sm:$0xff]
    %v6968 = vld [vmem:[#allocation2 + $0x157] sm:$0xff]
    %v6969 = vld [vmem:[#allocation2 + $0x15f] sm:$0xff]
    %v6970 = vld [vmem:[#allocation2 + $0x167] sm:$0xff]
    %v6971 = vld [vmem:[#allocation2 + $0x16f] sm:$0xff]
    %v6972 = vld [vmem:[#allocation2 + $0x177] sm:$0xff]
    %v6973 = vld [vmem:[#allocation2 + $0x17f] sm:$0xff]
    %v6974 = vld [vmem:[#allocation2 + $0x187] sm:$0xff]
    %v6975 = vld [vmem:[#allocation2 + $0x18f] sm:$0xff]
    %v6976 = vld [vmem:[#allocation2 + $0x197] sm:$0xff]
    %v6977 = vld [vmem:[#allocation2 + $0x19f] sm:$0xff]
    %v6978 = vld [vmem:[#allocation2 + $0x1a7] sm:$0xff]
    %v6979 = vld [vmem:[#allocation2 + $0x1af] sm:$0xff]
    %v6980 = vld [vmem:[#allocation2 + $0x1b7] sm:$0xff]
    %v6981 = vld [vmem:[#allocation2 + $0x1bf] sm:$0xff]
    %v6982 = vld [vmem:[#allocation2 + $0x1c7] sm:$0xff]
    %v6983 = vld [vmem:[#allocation2 + $0x1cf] sm:$0xff]
    %v6984 = vld [vmem:[#allocation2 + $0x1d7] sm:$0xff]
    %v6985 = vld [vmem:[#allocation2 + $0x1df] sm:$0xff]
    %v6986 = vld [vmem:[#allocation2 + $0x1e7] sm:$0xff]
    %v6987 = vld [vmem:[#allocation2 + $0x1ef] sm:$0xff]
    %v6988 = vld [vmem:[#allocation2 + $0x1f7] sm:$0xff]
    %v6989 = vld [vmem:[#allocation2 + $0x1ff] sm:$0xff]
    %v6990 = vld [vmem:[#allocation2 + $0x207] sm:$0xff]
    %v6991 = vld [vmem:[#allocation2 + $0x20f] sm:$0xff]
    %v6992 = vld [vmem:[#allocation2 + $0x217] sm:$0xff]
    %v6993 = vld [vmem:[#allocation2 + $0x21f] sm:$0xff]
    %v6994 = vld [vmem:[#allocation2 + $0x227] sm:$0xff]
    %v6995 = vld [vmem:[#allocation2 + $0x22f] sm:$0xff]
    %v6996 = vld [vmem:[#allocation2 + $0x237] sm:$0xff]
    %v6997 = vld [vmem:[#allocation2 + $0x23f] sm:$0xff]
    %v6998 = vld [vmem:[#allocation2 + $0x247] sm:$0xff]
    %v6999 = vld [vmem:[#allocation2 + $0x24f] sm:$0xff]
    %v7000 = vld [vmem:[#allocation2 + $0x257] sm:$0xff]
    %v7001 = vld [vmem:[#allocation2 + $0x25f] sm:$0xff]
    %v7002 = vld [vmem:[#allocation2 + $0x267] sm:$0xff]
    %v7003 = vld [vmem:[#allocation2 + $0x26f] sm:$0xff]
    %v7004 = vld [vmem:[#allocation2 + $0x277] sm:$0xff]
    %v7005 = vld [vmem:[#allocation2 + $0x27f] sm:$0xff]
    %v7006 = vld [vmem:[#allocation2 + $0x287] sm:$0xff]
    %v7007 = vld [vmem:[#allocation2 + $0x28f] sm:$0xff]
    %v7008 = vld [vmem:[#allocation2 + $0x297] sm:$0xff]
    %v7009 = vpack.c.bf16 %v6929, %v6928
    %v7010 = vpack.c.bf16 %v6931, %v6930
    %v7011 = vpack.c.bf16 %v6933, %v6932
    %v7012 = vpack.c.bf16 %v6935, %v6934
    %v7013 = vpack.c.bf16 %v6937, %v6936
    %v7014 = vpack.c.bf16 %v6939, %v6938
    %v7015 = vpack.c.bf16 %v6941, %v6940
    %v7016 = vpack.c.bf16 %v6943, %v6942
    %v7017 = vpack.c.bf16 %v6945, %v6944
    %v7018 = vpack.c.bf16 %v6947, %v6946
    %v7019 = vpack.c.bf16 %v6949, %v6948
    %v7020 = vpack.c.bf16 %v6951, %v6950
    %v7021 = vpack.c.bf16 %v6953, %v6952
    %v7022 = vpack.c.bf16 %v6955, %v6954
    %v7023 = vpack.c.bf16 %v6957, %v6956
    %v7024 = vpack.c.bf16 %v6959, %v6958
    %v7025 = vpack.c.bf16 %v6961, %v6960
    %v7026 = vpack.c.bf16 %v6963, %v6962
    %v7027 = vpack.c.bf16 %v6965, %v6964
    %v7028 = vpack.c.bf16 %v6967, %v6966
    %v7029 = vpack.c.bf16 %v6969, %v6968
    %v7030 = vpack.c.bf16 %v6971, %v6970
    %v7031 = vpack.c.bf16 %v6973, %v6972
    %v7032 = vpack.c.bf16 %v6975, %v6974
    %v7033 = vpack.c.bf16 %v6977, %v6976
    %v7034 = vpack.c.bf16 %v6979, %v6978
    %v7035 = vpack.c.bf16 %v6981, %v6980
    %v7036 = vpack.c.bf16 %v6983, %v6982
    %v7037 = vpack.c.bf16 %v6985, %v6984
    %v7038 = vpack.c.bf16 %v6987, %v6986
    %v7039 = vpack.c.bf16 %v6989, %v6988
    %v7040 = vpack.c.bf16 %v6991, %v6990
    %v7041 = vpack.c.bf16 %v6993, %v6992
    %v7042 = vpack.c.bf16 %v6995, %v6994
    %v7043 = vpack.c.bf16 %v6997, %v6996
    %v7044 = vpack.c.bf16 %v6999, %v6998
    %v7045 = vpack.c.bf16 %v7001, %v7000
    %v7046 = vpack.c.bf16 %v7003, %v7002
    %v7047 = vpack.c.bf16 %v7005, %v7004
    %v7048 = vpack.c.bf16 %v7007, %v7006
    %v7049 = vpack.c.bf16 %v7008, %v7008
    %s7050 = scalar_lea.vmem [#allocation6], 192
    %v7051 = vld [vmem:[%s7050] sm:$0xf]
    %v7052 = vld [vmem:[%s7050 + $0x4] sm:$0xf]
    %v7053 = vld [vmem:[%s7050 + $0x8] sm:$0xf]
    %v7054 = vld [vmem:[%s7050 + $0xc] sm:$0xf]
    %v7055 = vld [vmem:[%s7050 + $0x10] sm:$0xf]
    %v7056 = vld [vmem:[%s7050 + $0x14] sm:$0xf]
    %v7057 = vld [vmem:[%s7050 + $0x18] sm:$0xf]
    %v7058 = vld [vmem:[%s7050 + $0x1c] sm:$0xf]
    %v7059 = vld [vmem:[%s7050 + $0x20] sm:$0xf]
    %v7060 = vld [vmem:[%s7050 + $0x24] sm:$0xf]
    %v7061 = vld [vmem:[%s7050 + $0x28] sm:$0xf]
    %v7062 = vld [vmem:[%s7050 + $0x2c] sm:$0xf]
    %v7063 = vld [vmem:[%s7050 + $0x30] sm:$0xf]
    %v7064 = vld [vmem:[%s7050 + $0x34] sm:$0xf]
    %v7065 = vld [vmem:[%s7050 + $0x38] sm:$0xf]
    %v7066 = vld [vmem:[%s7050 + $0x3c] sm:$0xf]
    %v7083 = vunpack.c.l.b16 %v7051
    %v7084 = vunpack.c.l.b16 %v7052
    %v7085 = vunpack.c.l.b16 %v7053
    %v7086 = vunpack.c.l.b16 %v7054
    %v7087 = vunpack.c.l.b16 %v7055
    %v7088 = vunpack.c.l.b16 %v7056
    %v7089 = vunpack.c.l.b16 %v7057
    %v7090 = vunpack.c.l.b16 %v7058
    %v7091 = vunpack.c.l.b16 %v7059
    %v7092 = vunpack.c.l.b16 %v7060
    %v7093 = vunpack.c.l.b16 %v7061
    %v7094 = vunpack.c.l.b16 %v7062
    %v7095 = vunpack.c.l.b16 %v7063
    %v7096 = vunpack.c.l.b16 %v7064
    %v7097 = vunpack.c.l.b16 %v7065
    %v7098 = vunpack.c.l.b16 %v7066
    %v7099 = vpack.c.b16 %v7084, %v7083
    %v7100 = vpack.c.b16 %v7086, %v7085
    %v7101 = vpack.c.b16 %v7088, %v7087
    %v7102 = vpack.c.b16 %v7090, %v7089
    %v7103 = vpack.c.b16 %v7092, %v7091
    %v7104 = vpack.c.b16 %v7094, %v7093
    %v7105 = vpack.c.b16 %v7096, %v7095
    %v7106 = vpack.c.b16 %v7098, %v7097
    %7115 = vmatpush.bf16.msra.mxu0 %v7106
    %7116 = vmatpush.bf16.msra.mxu0 %v7105
    %7117 = vmatpush.bf16.msra.mxu0 %v7104
    %7118 = vmatpush.bf16.msra.mxu0 %v7103
    %7119 = vmatpush.bf16.msra.mxu0 %v7102
    %7120 = vmatpush.bf16.msra.mxu0 %v7101
    %7121 = vmatpush.bf16.msra.mxu0 %v7100
    %7122 = vmatpush.bf16.msra.mxu0 %v7099
    %7123 = vmatmul.bf16.gmra.mxu0 %v7009
    %v7124 = vpop.f32.mrf.mxu0
    %v7125 = vadd.f32 0.0, %v7124
    %v7126 = vpop.f32.mrf.mxu0
    %v7127 = vadd.f32 0.0, %v7126
    %7128 = vmatmul.bf16.gmra.mxu0 %v7010
    %v7129 = vpop.f32.mrf.mxu0
    %v7130 = vadd.f32 0.0, %v7129
    %v7131 = vpop.f32.mrf.mxu0
    %v7132 = vadd.f32 0.0, %v7131
    %7133 = vmatmul.bf16.gmra.mxu0 %v7011
    %v7134 = vpop.f32.mrf.mxu0
    %v7135 = vadd.f32 0.0, %v7134
    %v7136 = vpop.f32.mrf.mxu0
    %v7137 = vadd.f32 0.0, %v7136
    %7138 = vmatmul.bf16.gmra.mxu0 %v7012
    %v7139 = vpop.f32.mrf.mxu0
    %v7140 = vadd.f32 0.0, %v7139
    %v7141 = vpop.f32.mrf.mxu0
    %v7142 = vadd.f32 0.0, %v7141
    %7143 = vmatmul.bf16.gmra.mxu0 %v7013
    %v7144 = vpop.f32.mrf.mxu0
    %v7145 = vadd.f32 0.0, %v7144
    %v7146 = vpop.f32.mrf.mxu0
    %v7147 = vadd.f32 0.0, %v7146
    %7148 = vmatmul.bf16.gmra.mxu0 %v7014
    %v7149 = vpop.f32.mrf.mxu0
    %v7150 = vadd.f32 0.0, %v7149
    %v7151 = vpop.f32.mrf.mxu0
    %v7152 = vadd.f32 0.0, %v7151
    %7153 = vmatmul.bf16.gmra.mxu0 %v7015
    %v7154 = vpop.f32.mrf.mxu0
    %v7155 = vadd.f32 0.0, %v7154
    %v7156 = vpop.f32.mrf.mxu0
    %v7157 = vadd.f32 0.0, %v7156
    %7158 = vmatmul.bf16.gmra.mxu0 %v7016
    %v7159 = vpop.f32.mrf.mxu0
    %v7160 = vadd.f32 0.0, %v7159
    %v7161 = vpop.f32.mrf.mxu0
    %v7162 = vadd.f32 0.0, %v7161
    %7163 = vmatmul.bf16.gmra.mxu0 %v7017
    %v7164 = vpop.f32.mrf.mxu0
    %v7165 = vadd.f32 0.0, %v7164
    %v7166 = vpop.f32.mrf.mxu0
    %v7167 = vadd.f32 0.0, %v7166
    %7168 = vmatmul.bf16.gmra.mxu0 %v7018
    %v7169 = vpop.f32.mrf.mxu0
    %v7170 = vadd.f32 0.0, %v7169
    %v7171 = vpop.f32.mrf.mxu0
    %v7172 = vadd.f32 0.0, %v7171
    %7173 = vmatmul.bf16.gmra.mxu0 %v7019
    %v7174 = vpop.f32.mrf.mxu0
    %v7175 = vadd.f32 0.0, %v7174
    %v7176 = vpop.f32.mrf.mxu0
    %v7177 = vadd.f32 0.0, %v7176
    %7178 = vmatmul.bf16.gmra.mxu0 %v7020
    %v7179 = vpop.f32.mrf.mxu0
    %v7180 = vadd.f32 0.0, %v7179
    %v7181 = vpop.f32.mrf.mxu0
    %v7182 = vadd.f32 0.0, %v7181
    %7183 = vmatmul.bf16.gmra.mxu0 %v7021
    %v7184 = vpop.f32.mrf.mxu0
    %v7185 = vadd.f32 0.0, %v7184
    %v7186 = vpop.f32.mrf.mxu0
    %v7187 = vadd.f32 0.0, %v7186
    %7188 = vmatmul.bf16.gmra.mxu0 %v7022
    %v7189 = vpop.f32.mrf.mxu0
    %v7190 = vadd.f32 0.0, %v7189
    %v7191 = vpop.f32.mrf.mxu0
    %v7192 = vadd.f32 0.0, %v7191
    %7193 = vmatmul.bf16.gmra.mxu0 %v7023
    %v7194 = vpop.f32.mrf.mxu0
    %v7195 = vadd.f32 0.0, %v7194
    %v7196 = vpop.f32.mrf.mxu0
    %v7197 = vadd.f32 0.0, %v7196
    %7198 = vmatmul.bf16.gmra.mxu0 %v7024
    %v7199 = vpop.f32.mrf.mxu0
    %v7200 = vadd.f32 0.0, %v7199
    %v7201 = vpop.f32.mrf.mxu0
    %v7202 = vadd.f32 0.0, %v7201
    %7203 = vmatmul.bf16.gmra.mxu0 %v7025
    %v7204 = vpop.f32.mrf.mxu0
    %v7205 = vadd.f32 0.0, %v7204
    %v7206 = vpop.f32.mrf.mxu0
    %v7207 = vadd.f32 0.0, %v7206
    %7208 = vmatmul.bf16.gmra.mxu0 %v7026
    %v7209 = vpop.f32.mrf.mxu0
    %v7210 = vadd.f32 0.0, %v7209
    %v7211 = vpop.f32.mrf.mxu0
    %v7212 = vadd.f32 0.0, %v7211
    %7213 = vmatmul.bf16.gmra.mxu0 %v7027
    %v7214 = vpop.f32.mrf.mxu0
    %v7215 = vadd.f32 0.0, %v7214
    %v7216 = vpop.f32.mrf.mxu0
    %v7217 = vadd.f32 0.0, %v7216
    %7218 = vmatmul.bf16.gmra.mxu0 %v7028
    %v7219 = vpop.f32.mrf.mxu0
    %v7220 = vadd.f32 0.0, %v7219
    %v7221 = vpop.f32.mrf.mxu0
    %v7222 = vadd.f32 0.0, %v7221
    %7223 = vmatmul.bf16.gmra.mxu0 %v7029
    %v7224 = vpop.f32.mrf.mxu0
    %v7225 = vadd.f32 0.0, %v7224
    %v7226 = vpop.f32.mrf.mxu0
    %v7227 = vadd.f32 0.0, %v7226
    %7228 = vmatmul.bf16.gmra.mxu0 %v7030
    %v7229 = vpop.f32.mrf.mxu0
    %v7230 = vadd.f32 0.0, %v7229
    %v7231 = vpop.f32.mrf.mxu0
    %v7232 = vadd.f32 0.0, %v7231
    %7233 = vmatmul.bf16.gmra.mxu0 %v7031
    %v7234 = vpop.f32.mrf.mxu0
    %v7235 = vadd.f32 0.0, %v7234
    %v7236 = vpop.f32.mrf.mxu0
    %v7237 = vadd.f32 0.0, %v7236
    %7238 = vmatmul.bf16.gmra.mxu0 %v7032
    %v7239 = vpop.f32.mrf.mxu0
    %v7240 = vadd.f32 0.0, %v7239
    %v7241 = vpop.f32.mrf.mxu0
    %v7242 = vadd.f32 0.0, %v7241
    %7243 = vmatmul.bf16.gmra.mxu0 %v7033
    %v7244 = vpop.f32.mrf.mxu0
    %v7245 = vadd.f32 0.0, %v7244
    %v7246 = vpop.f32.mrf.mxu0
    %v7247 = vadd.f32 0.0, %v7246
    %7248 = vmatmul.bf16.gmra.mxu0 %v7034
    %v7249 = vpop.f32.mrf.mxu0
    %v7250 = vadd.f32 0.0, %v7249
    %v7251 = vpop.f32.mrf.mxu0
    %v7252 = vadd.f32 0.0, %v7251
    %7253 = vmatmul.bf16.gmra.mxu0 %v7035
    %v7254 = vpop.f32.mrf.mxu0
    %v7255 = vadd.f32 0.0, %v7254
    %v7256 = vpop.f32.mrf.mxu0
    %v7257 = vadd.f32 0.0, %v7256
    %7258 = vmatmul.bf16.gmra.mxu0 %v7036
    %v7259 = vpop.f32.mrf.mxu0
    %v7260 = vadd.f32 0.0, %v7259
    %v7261 = vpop.f32.mrf.mxu0
    %v7262 = vadd.f32 0.0, %v7261
    %7263 = vmatmul.bf16.gmra.mxu0 %v7037
    %v7264 = vpop.f32.mrf.mxu0
    %v7265 = vadd.f32 0.0, %v7264
    %v7266 = vpop.f32.mrf.mxu0
    %v7267 = vadd.f32 0.0, %v7266
    %7268 = vmatmul.bf16.gmra.mxu0 %v7038
    %v7269 = vpop.f32.mrf.mxu0
    %v7270 = vadd.f32 0.0, %v7269
    %v7271 = vpop.f32.mrf.mxu0
    %v7272 = vadd.f32 0.0, %v7271
    %7273 = vmatmul.bf16.gmra.mxu0 %v7039
    %v7274 = vpop.f32.mrf.mxu0
    %v7275 = vadd.f32 0.0, %v7274
    %v7276 = vpop.f32.mrf.mxu0
    %v7277 = vadd.f32 0.0, %v7276
    %7278 = vmatmul.bf16.gmra.mxu0 %v7040
    %v7279 = vpop.f32.mrf.mxu0
    %v7280 = vadd.f32 0.0, %v7279
    %v7281 = vpop.f32.mrf.mxu0
    %v7282 = vadd.f32 0.0, %v7281
    %7283 = vmatmul.bf16.gmra.mxu0 %v7041
    %v7284 = vpop.f32.mrf.mxu0
    %v7285 = vadd.f32 0.0, %v7284
    %v7286 = vpop.f32.mrf.mxu0
    %v7287 = vadd.f32 0.0, %v7286
    %7288 = vmatmul.bf16.gmra.mxu0 %v7042
    %v7289 = vpop.f32.mrf.mxu0
    %v7290 = vadd.f32 0.0, %v7289
    %v7291 = vpop.f32.mrf.mxu0
    %v7292 = vadd.f32 0.0, %v7291
    %7293 = vmatmul.bf16.gmra.mxu0 %v7043
    %v7294 = vpop.f32.mrf.mxu0
    %v7295 = vadd.f32 0.0, %v7294
    %v7296 = vpop.f32.mrf.mxu0
    %v7297 = vadd.f32 0.0, %v7296
    %7298 = vmatmul.bf16.gmra.mxu0 %v7044
    %v7299 = vpop.f32.mrf.mxu0
    %v7300 = vadd.f32 0.0, %v7299
    %v7301 = vpop.f32.mrf.mxu0
    %v7302 = vadd.f32 0.0, %v7301
    %7303 = vmatmul.bf16.gmra.mxu0 %v7045
    %v7304 = vpop.f32.mrf.mxu0
    %v7305 = vadd.f32 0.0, %v7304
    %v7306 = vpop.f32.mrf.mxu0
    %v7307 = vadd.f32 0.0, %v7306
    %7308 = vmatmul.bf16.gmra.mxu0 %v7046
    %v7309 = vpop.f32.mrf.mxu0
    %v7310 = vadd.f32 0.0, %v7309
    %v7311 = vpop.f32.mrf.mxu0
    %v7312 = vadd.f32 0.0, %v7311
    %7313 = vmatmul.bf16.gmra.mxu0 %v7047
    %v7314 = vpop.f32.mrf.mxu0
    %v7315 = vadd.f32 0.0, %v7314
    %v7316 = vpop.f32.mrf.mxu0
    %v7317 = vadd.f32 0.0, %v7316
    %7318 = vmatmul.bf16.gmra.mxu0 %v7048
    %v7319 = vpop.f32.mrf.mxu0
    %v7320 = vadd.f32 0.0, %v7319
    %v7321 = vpop.f32.mrf.mxu0
    %v7322 = vadd.f32 0.0, %v7321
    %7323 = vmatmul.bf16.gmra.mxu0 %v7049
    %v7324 = vpop.f32.mrf.mxu0
    %v7325 = vadd.f32 0.0, %v7324
    %v7326 = vpop.f32.mrf.mxu0
    %7327 = vdwg.mxu0
    %v7328 = vadd.f32 %v6847, %v7125
    %v7329 = vadd.f32 %v6848, %v7127
    %v7330 = vadd.f32 %v6849, %v7130
    %v7331 = vadd.f32 %v6850, %v7132
    %v7332 = vadd.f32 %v6851, %v7135
    %v7333 = vadd.f32 %v6852, %v7137
    %v7334 = vadd.f32 %v6853, %v7140
    %v7335 = vadd.f32 %v6854, %v7142
    %v7336 = vadd.f32 %v6855, %v7145
    %v7337 = vadd.f32 %v6856, %v7147
    %v7338 = vadd.f32 %v6857, %v7150
    %v7339 = vadd.f32 %v6858, %v7152
    %v7340 = vadd.f32 %v6859, %v7155
    %v7341 = vadd.f32 %v6860, %v7157
    %v7342 = vadd.f32 %v6861, %v7160
    %v7343 = vadd.f32 %v6862, %v7162
    %v7344 = vadd.f32 %v6863, %v7165
    %v7345 = vadd.f32 %v6864, %v7167
    %v7346 = vadd.f32 %v6865, %v7170
    %v7347 = vadd.f32 %v6866, %v7172
    %v7348 = vadd.f32 %v6867, %v7175
    %v7349 = vadd.f32 %v6868, %v7177
    %v7350 = vadd.f32 %v6869, %v7180
    %v7351 = vadd.f32 %v6870, %v7182
    %v7352 = vadd.f32 %v6871, %v7185
    %v7353 = vadd.f32 %v6872, %v7187
    %v7354 = vadd.f32 %v6873, %v7190
    %v7355 = vadd.f32 %v6874, %v7192
    %v7356 = vadd.f32 %v6875, %v7195
    %v7357 = vadd.f32 %v6876, %v7197
    %v7358 = vadd.f32 %v6877, %v7200
    %v7359 = vadd.f32 %v6878, %v7202
    %v7360 = vadd.f32 %v6879, %v7205
    %v7361 = vadd.f32 %v6880, %v7207
    %v7362 = vadd.f32 %v6881, %v7210
    %v7363 = vadd.f32 %v6882, %v7212
    %v7364 = vadd.f32 %v6883, %v7215
    %v7365 = vadd.f32 %v6884, %v7217
    %v7366 = vadd.f32 %v6885, %v7220
    %v7367 = vadd.f32 %v6886, %v7222
    %v7368 = vadd.f32 %v6887, %v7225
    %v7369 = vadd.f32 %v6888, %v7227
    %v7370 = vadd.f32 %v6889, %v7230
    %v7371 = vadd.f32 %v6890, %v7232
    %v7372 = vadd.f32 %v6891, %v7235
    %v7373 = vadd.f32 %v6892, %v7237
    %v7374 = vadd.f32 %v6893, %v7240
    %v7375 = vadd.f32 %v6894, %v7242
    %v7376 = vadd.f32 %v6895, %v7245
    %v7377 = vadd.f32 %v6896, %v7247
    %v7378 = vadd.f32 %v6897, %v7250
    %v7379 = vadd.f32 %v6898, %v7252
    %v7380 = vadd.f32 %v6899, %v7255
    %v7381 = vadd.f32 %v6900, %v7257
    %v7382 = vadd.f32 %v6901, %v7260
    %v7383 = vadd.f32 %v6902, %v7262
    %v7384 = vadd.f32 %v6903, %v7265
    %v7385 = vadd.f32 %v6904, %v7267
    %v7386 = vadd.f32 %v6905, %v7270
    %v7387 = vadd.f32 %v6906, %v7272
    %v7388 = vadd.f32 %v6907, %v7275
    %v7389 = vadd.f32 %v6908, %v7277
    %v7390 = vadd.f32 %v6909, %v7280
    %v7391 = vadd.f32 %v6910, %v7282
    %v7392 = vadd.f32 %v6911, %v7285
    %v7393 = vadd.f32 %v6912, %v7287
    %v7394 = vadd.f32 %v6913, %v7290
    %v7395 = vadd.f32 %v6914, %v7292
    %v7396 = vadd.f32 %v6915, %v7295
    %v7397 = vadd.f32 %v6916, %v7297
    %v7398 = vadd.f32 %v6917, %v7300
    %v7399 = vadd.f32 %v6918, %v7302
    %v7400 = vadd.f32 %v6919, %v7305
    %v7401 = vadd.f32 %v6920, %v7307
    %v7402 = vadd.f32 %v6921, %v7310
    %v7403 = vadd.f32 %v6922, %v7312
    %v7404 = vadd.f32 %v6923, %v7315
    %v7405 = vadd.f32 %v6924, %v7317
    %v7406 = vadd.f32 %v6925, %v7320
    %v7407 = vadd.f32 %v6926, %v7322
    %v7408 = vadd.f32 %v6927, %v7325
    %v7409 = vld [vmem:[#allocation2 + $0x18] sm:$0xff]
    %v7410 = vld [vmem:[#allocation2 + $0x20] sm:$0xff]
    %v7411 = vld [vmem:[#allocation2 + $0x28] sm:$0xff]
    %v7412 = vld [vmem:[#allocation2 + $0x30] sm:$0xff]
    %v7413 = vld [vmem:[#allocation2 + $0x38] sm:$0xff]
    %v7414 = vld [vmem:[#allocation2 + $0x40] sm:$0xff]
    %v7415 = vld [vmem:[#allocation2 + $0x48] sm:$0xff]
    %v7416 = vld [vmem:[#allocation2 + $0x50] sm:$0xff]
    %v7417 = vld [vmem:[#allocation2 + $0x58] sm:$0xff]
    %v7418 = vld [vmem:[#allocation2 + $0x60] sm:$0xff]
    %v7419 = vld [vmem:[#allocation2 + $0x68] sm:$0xff]
    %v7420 = vld [vmem:[#allocation2 + $0x70] sm:$0xff]
    %v7421 = vld [vmem:[#allocation2 + $0x78] sm:$0xff]
    %v7422 = vld [vmem:[#allocation2 + $0x80] sm:$0xff]
    %v7423 = vld [vmem:[#allocation2 + $0x88] sm:$0xff]
    %v7424 = vld [vmem:[#allocation2 + $0x90] sm:$0xff]
    %v7425 = vld [vmem:[#allocation2 + $0x98] sm:$0xff]
    %v7426 = vld [vmem:[#allocation2 + $0xa0] sm:$0xff]
    %v7427 = vld [vmem:[#allocation2 + $0xa8] sm:$0xff]
    %v7428 = vld [vmem:[#allocation2 + $0xb0] sm:$0xff]
    %v7429 = vld [vmem:[#allocation2 + $0xb8] sm:$0xff]
    %v7430 = vld [vmem:[#allocation2 + $0xc0] sm:$0xff]
    %v7431 = vld [vmem:[#allocation2 + $0xc8] sm:$0xff]
    %v7432 = vld [vmem:[#allocation2 + $0xd0] sm:$0xff]
    %v7433 = vld [vmem:[#allocation2 + $0xd8] sm:$0xff]
    %v7434 = vld [vmem:[#allocation2 + $0xe0] sm:$0xff]
    %v7435 = vld [vmem:[#allocation2 + $0xe8] sm:$0xff]
    %v7436 = vld [vmem:[#allocation2 + $0xf0] sm:$0xff]
    %v7437 = vld [vmem:[#allocation2 + $0xf8] sm:$0xff]
    %v7438 = vld [vmem:[#allocation2 + $0x100] sm:$0xff]
    %v7439 = vld [vmem:[#allocation2 + $0x108] sm:$0xff]
    %v7440 = vld [vmem:[#allocation2 + $0x110] sm:$0xff]
    %v7441 = vld [vmem:[#allocation2 + $0x118] sm:$0xff]
    %v7442 = vld [vmem:[#allocation2 + $0x120] sm:$0xff]
    %v7443 = vld [vmem:[#allocation2 + $0x128] sm:$0xff]
    %v7444 = vld [vmem:[#allocation2 + $0x130] sm:$0xff]
    %v7445 = vld [vmem:[#allocation2 + $0x138] sm:$0xff]
    %v7446 = vld [vmem:[#allocation2 + $0x140] sm:$0xff]
    %v7447 = vld [vmem:[#allocation2 + $0x148] sm:$0xff]
    %v7448 = vld [vmem:[#allocation2 + $0x150] sm:$0xff]
    %v7449 = vld [vmem:[#allocation2 + $0x158] sm:$0xff]
    %v7450 = vld [vmem:[#allocation2 + $0x160] sm:$0xff]
    %v7451 = vld [vmem:[#allocation2 + $0x168] sm:$0xff]
    %v7452 = vld [vmem:[#allocation2 + $0x170] sm:$0xff]
    %v7453 = vld [vmem:[#allocation2 + $0x178] sm:$0xff]
    %v7454 = vld [vmem:[#allocation2 + $0x180] sm:$0xff]
    %v7455 = vld [vmem:[#allocation2 + $0x188] sm:$0xff]
    %v7456 = vld [vmem:[#allocation2 + $0x190] sm:$0xff]
    %v7457 = vld [vmem:[#allocation2 + $0x198] sm:$0xff]
    %v7458 = vld [vmem:[#allocation2 + $0x1a0] sm:$0xff]
    %v7459 = vld [vmem:[#allocation2 + $0x1a8] sm:$0xff]
    %v7460 = vld [vmem:[#allocation2 + $0x1b0] sm:$0xff]
    %v7461 = vld [vmem:[#allocation2 + $0x1b8] sm:$0xff]
    %v7462 = vld [vmem:[#allocation2 + $0x1c0] sm:$0xff]
    %v7463 = vld [vmem:[#allocation2 + $0x1c8] sm:$0xff]
    %v7464 = vld [vmem:[#allocation2 + $0x1d0] sm:$0xff]
    %v7465 = vld [vmem:[#allocation2 + $0x1d8] sm:$0xff]
    %v7466 = vld [vmem:[#allocation2 + $0x1e0] sm:$0xff]
    %v7467 = vld [vmem:[#allocation2 + $0x1e8] sm:$0xff]
    %v7468 = vld [vmem:[#allocation2 + $0x1f0] sm:$0xff]
    %v7469 = vld [vmem:[#allocation2 + $0x1f8] sm:$0xff]
    %v7470 = vld [vmem:[#allocation2 + $0x200] sm:$0xff]
    %v7471 = vld [vmem:[#allocation2 + $0x208] sm:$0xff]
    %v7472 = vld [vmem:[#allocation2 + $0x210] sm:$0xff]
    %v7473 = vld [vmem:[#allocation2 + $0x218] sm:$0xff]
    %v7474 = vld [vmem:[#allocation2 + $0x220] sm:$0xff]
    %v7475 = vld [vmem:[#allocation2 + $0x228] sm:$0xff]
    %v7476 = vld [vmem:[#allocation2 + $0x230] sm:$0xff]
    %v7477 = vld [vmem:[#allocation2 + $0x238] sm:$0xff]
    %v7478 = vld [vmem:[#allocation2 + $0x240] sm:$0xff]
    %v7479 = vld [vmem:[#allocation2 + $0x248] sm:$0xff]
    %v7480 = vld [vmem:[#allocation2 + $0x250] sm:$0xff]
    %v7481 = vld [vmem:[#allocation2 + $0x258] sm:$0xff]
    %v7482 = vld [vmem:[#allocation2 + $0x260] sm:$0xff]
    %v7483 = vld [vmem:[#allocation2 + $0x268] sm:$0xff]
    %v7484 = vld [vmem:[#allocation2 + $0x270] sm:$0xff]
    %v7485 = vld [vmem:[#allocation2 + $0x278] sm:$0xff]
    %v7486 = vld [vmem:[#allocation2 + $0x280] sm:$0xff]
    %v7487 = vld [vmem:[#allocation2 + $0x288] sm:$0xff]
    %v7488 = vld [vmem:[#allocation2 + $0x290] sm:$0xff]
    %v7489 = vld [vmem:[#allocation2 + $0x298] sm:$0xff]
    %v7490 = vpack.c.bf16 %v7410, %v7409
    %v7491 = vpack.c.bf16 %v7412, %v7411
    %v7492 = vpack.c.bf16 %v7414, %v7413
    %v7493 = vpack.c.bf16 %v7416, %v7415
    %v7494 = vpack.c.bf16 %v7418, %v7417
    %v7495 = vpack.c.bf16 %v7420, %v7419
    %v7496 = vpack.c.bf16 %v7422, %v7421
    %v7497 = vpack.c.bf16 %v7424, %v7423
    %v7498 = vpack.c.bf16 %v7426, %v7425
    %v7499 = vpack.c.bf16 %v7428, %v7427
    %v7500 = vpack.c.bf16 %v7430, %v7429
    %v7501 = vpack.c.bf16 %v7432, %v7431
    %v7502 = vpack.c.bf16 %v7434, %v7433
    %v7503 = vpack.c.bf16 %v7436, %v7435
    %v7504 = vpack.c.bf16 %v7438, %v7437
    %v7505 = vpack.c.bf16 %v7440, %v7439
    %v7506 = vpack.c.bf16 %v7442, %v7441
    %v7507 = vpack.c.bf16 %v7444, %v7443
    %v7508 = vpack.c.bf16 %v7446, %v7445
    %v7509 = vpack.c.bf16 %v7448, %v7447
    %v7510 = vpack.c.bf16 %v7450, %v7449
    %v7511 = vpack.c.bf16 %v7452, %v7451
    %v7512 = vpack.c.bf16 %v7454, %v7453
    %v7513 = vpack.c.bf16 %v7456, %v7455
    %v7514 = vpack.c.bf16 %v7458, %v7457
    %v7515 = vpack.c.bf16 %v7460, %v7459
    %v7516 = vpack.c.bf16 %v7462, %v7461
    %v7517 = vpack.c.bf16 %v7464, %v7463
    %v7518 = vpack.c.bf16 %v7466, %v7465
    %v7519 = vpack.c.bf16 %v7468, %v7467
    %v7520 = vpack.c.bf16 %v7470, %v7469
    %v7521 = vpack.c.bf16 %v7472, %v7471
    %v7522 = vpack.c.bf16 %v7474, %v7473
    %v7523 = vpack.c.bf16 %v7476, %v7475
    %v7524 = vpack.c.bf16 %v7478, %v7477
    %v7525 = vpack.c.bf16 %v7480, %v7479
    %v7526 = vpack.c.bf16 %v7482, %v7481
    %v7527 = vpack.c.bf16 %v7484, %v7483
    %v7528 = vpack.c.bf16 %v7486, %v7485
    %v7529 = vpack.c.bf16 %v7488, %v7487
    %v7530 = vpack.c.bf16 %v7489, %v7489
    %s7531 = scalar_lea.vmem [#allocation6], 256
    %v7532 = vld [vmem:[%s7531] sm:$0xf]
    %v7533 = vld [vmem:[%s7531 + $0x4] sm:$0xf]
    %v7534 = vld [vmem:[%s7531 + $0x8] sm:$0xf]
    %v7535 = vld [vmem:[%s7531 + $0xc] sm:$0xf]
    %v7536 = vld [vmem:[%s7531 + $0x10] sm:$0xf]
    %v7537 = vld [vmem:[%s7531 + $0x14] sm:$0xf]
    %v7538 = vld [vmem:[%s7531 + $0x18] sm:$0xf]
    %v7539 = vld [vmem:[%s7531 + $0x1c] sm:$0xf]
    %v7540 = vld [vmem:[%s7531 + $0x20] sm:$0xf]
    %v7541 = vld [vmem:[%s7531 + $0x24] sm:$0xf]
    %v7542 = vld [vmem:[%s7531 + $0x28] sm:$0xf]
    %v7543 = vld [vmem:[%s7531 + $0x2c] sm:$0xf]
    %v7544 = vld [vmem:[%s7531 + $0x30] sm:$0xf]
    %v7545 = vld [vmem:[%s7531 + $0x34] sm:$0xf]
    %v7546 = vld [vmem:[%s7531 + $0x38] sm:$0xf]
    %v7547 = vld [vmem:[%s7531 + $0x3c] sm:$0xf]
    %v7564 = vunpack.c.l.b16 %v7532
    %v7565 = vunpack.c.l.b16 %v7533
    %v7566 = vunpack.c.l.b16 %v7534
    %v7567 = vunpack.c.l.b16 %v7535
    %v7568 = vunpack.c.l.b16 %v7536
    %v7569 = vunpack.c.l.b16 %v7537
    %v7570 = vunpack.c.l.b16 %v7538
    %v7571 = vunpack.c.l.b16 %v7539
    %v7572 = vunpack.c.l.b16 %v7540
    %v7573 = vunpack.c.l.b16 %v7541
    %v7574 = vunpack.c.l.b16 %v7542
    %v7575 = vunpack.c.l.b16 %v7543
    %v7576 = vunpack.c.l.b16 %v7544
    %v7577 = vunpack.c.l.b16 %v7545
    %v7578 = vunpack.c.l.b16 %v7546
    %v7579 = vunpack.c.l.b16 %v7547
    %v7580 = vpack.c.b16 %v7565, %v7564
    %v7581 = vpack.c.b16 %v7567, %v7566
    %v7582 = vpack.c.b16 %v7569, %v7568
    %v7583 = vpack.c.b16 %v7571, %v7570
    %v7584 = vpack.c.b16 %v7573, %v7572
    %v7585 = vpack.c.b16 %v7575, %v7574
    %v7586 = vpack.c.b16 %v7577, %v7576
    %v7587 = vpack.c.b16 %v7579, %v7578
    %7596 = vmatpush.bf16.msra.mxu0 %v7587
    %7597 = vmatpush.bf16.msra.mxu0 %v7586
    %7598 = vmatpush.bf16.msra.mxu0 %v7585
    %7599 = vmatpush.bf16.msra.mxu0 %v7584
    %7600 = vmatpush.bf16.msra.mxu0 %v7583
    %7601 = vmatpush.bf16.msra.mxu0 %v7582
    %7602 = vmatpush.bf16.msra.mxu0 %v7581
    %7603 = vmatpush.bf16.msra.mxu0 %v7580
    %7604 = vmatmul.bf16.gmra.mxu0 %v7490
    %v7605 = vpop.f32.mrf.mxu0
    %v7606 = vadd.f32 0.0, %v7605
    %v7607 = vpop.f32.mrf.mxu0
    %v7608 = vadd.f32 0.0, %v7607
    %7609 = vmatmul.bf16.gmra.mxu0 %v7491
    %v7610 = vpop.f32.mrf.mxu0
    %v7611 = vadd.f32 0.0, %v7610
    %v7612 = vpop.f32.mrf.mxu0
    %v7613 = vadd.f32 0.0, %v7612
    %7614 = vmatmul.bf16.gmra.mxu0 %v7492
    %v7615 = vpop.f32.mrf.mxu0
    %v7616 = vadd.f32 0.0, %v7615
    %v7617 = vpop.f32.mrf.mxu0
    %v7618 = vadd.f32 0.0, %v7617
    %7619 = vmatmul.bf16.gmra.mxu0 %v7493
    %v7620 = vpop.f32.mrf.mxu0
    %v7621 = vadd.f32 0.0, %v7620
    %v7622 = vpop.f32.mrf.mxu0
    %v7623 = vadd.f32 0.0, %v7622
    %7624 = vmatmul.bf16.gmra.mxu0 %v7494
    %v7625 = vpop.f32.mrf.mxu0
    %v7626 = vadd.f32 0.0, %v7625
    %v7627 = vpop.f32.mrf.mxu0
    %v7628 = vadd.f32 0.0, %v7627
    %7629 = vmatmul.bf16.gmra.mxu0 %v7495
    %v7630 = vpop.f32.mrf.mxu0
    %v7631 = vadd.f32 0.0, %v7630
    %v7632 = vpop.f32.mrf.mxu0
    %v7633 = vadd.f32 0.0, %v7632
    %7634 = vmatmul.bf16.gmra.mxu0 %v7496
    %v7635 = vpop.f32.mrf.mxu0
    %v7636 = vadd.f32 0.0, %v7635
    %v7637 = vpop.f32.mrf.mxu0
    %v7638 = vadd.f32 0.0, %v7637
    %7639 = vmatmul.bf16.gmra.mxu0 %v7497
    %v7640 = vpop.f32.mrf.mxu0
    %v7641 = vadd.f32 0.0, %v7640
    %v7642 = vpop.f32.mrf.mxu0
    %v7643 = vadd.f32 0.0, %v7642
    %7644 = vmatmul.bf16.gmra.mxu0 %v7498
    %v7645 = vpop.f32.mrf.mxu0
    %v7646 = vadd.f32 0.0, %v7645
    %v7647 = vpop.f32.mrf.mxu0
    %v7648 = vadd.f32 0.0, %v7647
    %7649 = vmatmul.bf16.gmra.mxu0 %v7499
    %v7650 = vpop.f32.mrf.mxu0
    %v7651 = vadd.f32 0.0, %v7650
    %v7652 = vpop.f32.mrf.mxu0
    %v7653 = vadd.f32 0.0, %v7652
    %7654 = vmatmul.bf16.gmra.mxu0 %v7500
    %v7655 = vpop.f32.mrf.mxu0
    %v7656 = vadd.f32 0.0, %v7655
    %v7657 = vpop.f32.mrf.mxu0
    %v7658 = vadd.f32 0.0, %v7657
    %7659 = vmatmul.bf16.gmra.mxu0 %v7501
    %v7660 = vpop.f32.mrf.mxu0
    %v7661 = vadd.f32 0.0, %v7660
    %v7662 = vpop.f32.mrf.mxu0
    %v7663 = vadd.f32 0.0, %v7662
    %7664 = vmatmul.bf16.gmra.mxu0 %v7502
    %v7665 = vpop.f32.mrf.mxu0
    %v7666 = vadd.f32 0.0, %v7665
    %v7667 = vpop.f32.mrf.mxu0
    %v7668 = vadd.f32 0.0, %v7667
    %7669 = vmatmul.bf16.gmra.mxu0 %v7503
    %v7670 = vpop.f32.mrf.mxu0
    %v7671 = vadd.f32 0.0, %v7670
    %v7672 = vpop.f32.mrf.mxu0
    %v7673 = vadd.f32 0.0, %v7672
    %7674 = vmatmul.bf16.gmra.mxu0 %v7504
    %v7675 = vpop.f32.mrf.mxu0
    %v7676 = vadd.f32 0.0, %v7675
    %v7677 = vpop.f32.mrf.mxu0
    %v7678 = vadd.f32 0.0, %v7677
    %7679 = vmatmul.bf16.gmra.mxu0 %v7505
    %v7680 = vpop.f32.mrf.mxu0
    %v7681 = vadd.f32 0.0, %v7680
    %v7682 = vpop.f32.mrf.mxu0
    %v7683 = vadd.f32 0.0, %v7682
    %7684 = vmatmul.bf16.gmra.mxu0 %v7506
    %v7685 = vpop.f32.mrf.mxu0
    %v7686 = vadd.f32 0.0, %v7685
    %v7687 = vpop.f32.mrf.mxu0
    %v7688 = vadd.f32 0.0, %v7687
    %7689 = vmatmul.bf16.gmra.mxu0 %v7507
    %v7690 = vpop.f32.mrf.mxu0
    %v7691 = vadd.f32 0.0, %v7690
    %v7692 = vpop.f32.mrf.mxu0
    %v7693 = vadd.f32 0.0, %v7692
    %7694 = vmatmul.bf16.gmra.mxu0 %v7508
    %v7695 = vpop.f32.mrf.mxu0
    %v7696 = vadd.f32 0.0, %v7695
    %v7697 = vpop.f32.mrf.mxu0
    %v7698 = vadd.f32 0.0, %v7697
    %7699 = vmatmul.bf16.gmra.mxu0 %v7509
    %v7700 = vpop.f32.mrf.mxu0
    %v7701 = vadd.f32 0.0, %v7700
    %v7702 = vpop.f32.mrf.mxu0
    %v7703 = vadd.f32 0.0, %v7702
    %7704 = vmatmul.bf16.gmra.mxu0 %v7510
    %v7705 = vpop.f32.mrf.mxu0
    %v7706 = vadd.f32 0.0, %v7705
    %v7707 = vpop.f32.mrf.mxu0
    %v7708 = vadd.f32 0.0, %v7707
    %7709 = vmatmul.bf16.gmra.mxu0 %v7511
    %v7710 = vpop.f32.mrf.mxu0
    %v7711 = vadd.f32 0.0, %v7710
    %v7712 = vpop.f32.mrf.mxu0
    %v7713 = vadd.f32 0.0, %v7712
    %7714 = vmatmul.bf16.gmra.mxu0 %v7512
    %v7715 = vpop.f32.mrf.mxu0
    %v7716 = vadd.f32 0.0, %v7715
    %v7717 = vpop.f32.mrf.mxu0
    %v7718 = vadd.f32 0.0, %v7717
    %7719 = vmatmul.bf16.gmra.mxu0 %v7513
    %v7720 = vpop.f32.mrf.mxu0
    %v7721 = vadd.f32 0.0, %v7720
    %v7722 = vpop.f32.mrf.mxu0
    %v7723 = vadd.f32 0.0, %v7722
    %7724 = vmatmul.bf16.gmra.mxu0 %v7514
    %v7725 = vpop.f32.mrf.mxu0
    %v7726 = vadd.f32 0.0, %v7725
    %v7727 = vpop.f32.mrf.mxu0
    %v7728 = vadd.f32 0.0, %v7727
    %7729 = vmatmul.bf16.gmra.mxu0 %v7515
    %v7730 = vpop.f32.mrf.mxu0
    %v7731 = vadd.f32 0.0, %v7730
    %v7732 = vpop.f32.mrf.mxu0
    %v7733 = vadd.f32 0.0, %v7732
    %7734 = vmatmul.bf16.gmra.mxu0 %v7516
    %v7735 = vpop.f32.mrf.mxu0
    %v7736 = vadd.f32 0.0, %v7735
    %v7737 = vpop.f32.mrf.mxu0
    %v7738 = vadd.f32 0.0, %v7737
    %7739 = vmatmul.bf16.gmra.mxu0 %v7517
    %v7740 = vpop.f32.mrf.mxu0
    %v7741 = vadd.f32 0.0, %v7740
    %v7742 = vpop.f32.mrf.mxu0
    %v7743 = vadd.f32 0.0, %v7742
    %7744 = vmatmul.bf16.gmra.mxu0 %v7518
    %v7745 = vpop.f32.mrf.mxu0
    %v7746 = vadd.f32 0.0, %v7745
    %v7747 = vpop.f32.mrf.mxu0
    %v7748 = vadd.f32 0.0, %v7747
    %7749 = vmatmul.bf16.gmra.mxu0 %v7519
    %v7750 = vpop.f32.mrf.mxu0
    %v7751 = vadd.f32 0.0, %v7750
    %v7752 = vpop.f32.mrf.mxu0
    %v7753 = vadd.f32 0.0, %v7752
    %7754 = vmatmul.bf16.gmra.mxu0 %v7520
    %v7755 = vpop.f32.mrf.mxu0
    %v7756 = vadd.f32 0.0, %v7755
    %v7757 = vpop.f32.mrf.mxu0
    %v7758 = vadd.f32 0.0, %v7757
    %7759 = vmatmul.bf16.gmra.mxu0 %v7521
    %v7760 = vpop.f32.mrf.mxu0
    %v7761 = vadd.f32 0.0, %v7760
    %v7762 = vpop.f32.mrf.mxu0
    %v7763 = vadd.f32 0.0, %v7762
    %7764 = vmatmul.bf16.gmra.mxu0 %v7522
    %v7765 = vpop.f32.mrf.mxu0
    %v7766 = vadd.f32 0.0, %v7765
    %v7767 = vpop.f32.mrf.mxu0
    %v7768 = vadd.f32 0.0, %v7767
    %7769 = vmatmul.bf16.gmra.mxu0 %v7523
    %v7770 = vpop.f32.mrf.mxu0
    %v7771 = vadd.f32 0.0, %v7770
    %v7772 = vpop.f32.mrf.mxu0
    %v7773 = vadd.f32 0.0, %v7772
    %7774 = vmatmul.bf16.gmra.mxu0 %v7524
    %v7775 = vpop.f32.mrf.mxu0
    %v7776 = vadd.f32 0.0, %v7775
    %v7777 = vpop.f32.mrf.mxu0
    %v7778 = vadd.f32 0.0, %v7777
    %7779 = vmatmul.bf16.gmra.mxu0 %v7525
    %v7780 = vpop.f32.mrf.mxu0
    %v7781 = vadd.f32 0.0, %v7780
    %v7782 = vpop.f32.mrf.mxu0
    %v7783 = vadd.f32 0.0, %v7782
    %7784 = vmatmul.bf16.gmra.mxu0 %v7526
    %v7785 = vpop.f32.mrf.mxu0
    %v7786 = vadd.f32 0.0, %v7785
    %v7787 = vpop.f32.mrf.mxu0
    %v7788 = vadd.f32 0.0, %v7787
    %7789 = vmatmul.bf16.gmra.mxu0 %v7527
    %v7790 = vpop.f32.mrf.mxu0
    %v7791 = vadd.f32 0.0, %v7790
    %v7792 = vpop.f32.mrf.mxu0
    %v7793 = vadd.f32 0.0, %v7792
    %7794 = vmatmul.bf16.gmra.mxu0 %v7528
    %v7795 = vpop.f32.mrf.mxu0
    %v7796 = vadd.f32 0.0, %v7795
    %v7797 = vpop.f32.mrf.mxu0
    %v7798 = vadd.f32 0.0, %v7797
    %7799 = vmatmul.bf16.gmra.mxu0 %v7529
    %v7800 = vpop.f32.mrf.mxu0
    %v7801 = vadd.f32 0.0, %v7800
    %v7802 = vpop.f32.mrf.mxu0
    %v7803 = vadd.f32 0.0, %v7802
    %7804 = vmatmul.bf16.gmra.mxu0 %v7530
    %v7805 = vpop.f32.mrf.mxu0
    %v7806 = vadd.f32 0.0, %v7805
    %v7807 = vpop.f32.mrf.mxu0
    %7808 = vdwg.mxu0
    %v7809 = vadd.f32 %v7328, %v7606
    %v7810 = vadd.f32 %v7329, %v7608
    %v7811 = vadd.f32 %v7330, %v7611
    %v7812 = vadd.f32 %v7331, %v7613
    %v7813 = vadd.f32 %v7332, %v7616
    %v7814 = vadd.f32 %v7333, %v7618
    %v7815 = vadd.f32 %v7334, %v7621
    %v7816 = vadd.f32 %v7335, %v7623
    %v7817 = vadd.f32 %v7336, %v7626
    %v7818 = vadd.f32 %v7337, %v7628
    %v7819 = vadd.f32 %v7338, %v7631
    %v7820 = vadd.f32 %v7339, %v7633
    %v7821 = vadd.f32 %v7340, %v7636
    %v7822 = vadd.f32 %v7341, %v7638
    %v7823 = vadd.f32 %v7342, %v7641
    %v7824 = vadd.f32 %v7343, %v7643
    %v7825 = vadd.f32 %v7344, %v7646
    %v7826 = vadd.f32 %v7345, %v7648
    %v7827 = vadd.f32 %v7346, %v7651
    %v7828 = vadd.f32 %v7347, %v7653
    %v7829 = vadd.f32 %v7348, %v7656
    %v7830 = vadd.f32 %v7349, %v7658
    %v7831 = vadd.f32 %v7350, %v7661
    %v7832 = vadd.f32 %v7351, %v7663
    %v7833 = vadd.f32 %v7352, %v7666
    %v7834 = vadd.f32 %v7353, %v7668
    %v7835 = vadd.f32 %v7354, %v7671
    %v7836 = vadd.f32 %v7355, %v7673
    %v7837 = vadd.f32 %v7356, %v7676
    %v7838 = vadd.f32 %v7357, %v7678
    %v7839 = vadd.f32 %v7358, %v7681
    %v7840 = vadd.f32 %v7359, %v7683
    %v7841 = vadd.f32 %v7360, %v7686
    %v7842 = vadd.f32 %v7361, %v7688
    %v7843 = vadd.f32 %v7362, %v7691
    %v7844 = vadd.f32 %v7363, %v7693
    %v7845 = vadd.f32 %v7364, %v7696
    %v7846 = vadd.f32 %v7365, %v7698
    %v7847 = vadd.f32 %v7366, %v7701
    %v7848 = vadd.f32 %v7367, %v7703
    %v7849 = vadd.f32 %v7368, %v7706
    %v7850 = vadd.f32 %v7369, %v7708
    %v7851 = vadd.f32 %v7370, %v7711
    %v7852 = vadd.f32 %v7371, %v7713
    %v7853 = vadd.f32 %v7372, %v7716
    %v7854 = vadd.f32 %v7373, %v7718
    %v7855 = vadd.f32 %v7374, %v7721
    %v7856 = vadd.f32 %v7375, %v7723
    %v7857 = vadd.f32 %v7376, %v7726
    %v7858 = vadd.f32 %v7377, %v7728
    %v7859 = vadd.f32 %v7378, %v7731
    %v7860 = vadd.f32 %v7379, %v7733
    %v7861 = vadd.f32 %v7380, %v7736
    %v7862 = vadd.f32 %v7381, %v7738
    %v7863 = vadd.f32 %v7382, %v7741
    %v7864 = vadd.f32 %v7383, %v7743
    %v7865 = vadd.f32 %v7384, %v7746
    %v7866 = vadd.f32 %v7385, %v7748
    %v7867 = vadd.f32 %v7386, %v7751
    %v7868 = vadd.f32 %v7387, %v7753
    %v7869 = vadd.f32 %v7388, %v7756
    %v7870 = vadd.f32 %v7389, %v7758
    %v7871 = vadd.f32 %v7390, %v7761
    %v7872 = vadd.f32 %v7391, %v7763
    %v7873 = vadd.f32 %v7392, %v7766
    %v7874 = vadd.f32 %v7393, %v7768
    %v7875 = vadd.f32 %v7394, %v7771
    %v7876 = vadd.f32 %v7395, %v7773
    %v7877 = vadd.f32 %v7396, %v7776
    %v7878 = vadd.f32 %v7397, %v7778
    %v7879 = vadd.f32 %v7398, %v7781
    %v7880 = vadd.f32 %v7399, %v7783
    %v7881 = vadd.f32 %v7400, %v7786
    %v7882 = vadd.f32 %v7401, %v7788
    %v7883 = vadd.f32 %v7402, %v7791
    %v7884 = vadd.f32 %v7403, %v7793
    %v7885 = vadd.f32 %v7404, %v7796
    %v7886 = vadd.f32 %v7405, %v7798
    %v7887 = vadd.f32 %v7406, %v7801
    %v7888 = vadd.f32 %v7407, %v7803
    %v7889 = vadd.f32 %v7408, %v7806
    %v7890 = vld [vmem:[#allocation2 + $0x19] sm:$0xff]
    %v7891 = vld [vmem:[#allocation2 + $0x21] sm:$0xff]
    %v7892 = vld [vmem:[#allocation2 + $0x29] sm:$0xff]
    %v7893 = vld [vmem:[#allocation2 + $0x31] sm:$0xff]
    %v7894 = vld [vmem:[#allocation2 + $0x39] sm:$0xff]
    %v7895 = vld [vmem:[#allocation2 + $0x41] sm:$0xff]
    %v7896 = vld [vmem:[#allocation2 + $0x49] sm:$0xff]
    %v7897 = vld [vmem:[#allocation2 + $0x51] sm:$0xff]
    %v7898 = vld [vmem:[#allocation2 + $0x59] sm:$0xff]
    %v7899 = vld [vmem:[#allocation2 + $0x61] sm:$0xff]
    %v7900 = vld [vmem:[#allocation2 + $0x69] sm:$0xff]
    %v7901 = vld [vmem:[#allocation2 + $0x71] sm:$0xff]
    %v7902 = vld [vmem:[#allocation2 + $0x79] sm:$0xff]
    %v7903 = vld [vmem:[#allocation2 + $0x81] sm:$0xff]
    %v7904 = vld [vmem:[#allocation2 + $0x89] sm:$0xff]
    %v7905 = vld [vmem:[#allocation2 + $0x91] sm:$0xff]
    %v7906 = vld [vmem:[#allocation2 + $0x99] sm:$0xff]
    %v7907 = vld [vmem:[#allocation2 + $0xa1] sm:$0xff]
    %v7908 = vld [vmem:[#allocation2 + $0xa9] sm:$0xff]
    %v7909 = vld [vmem:[#allocation2 + $0xb1] sm:$0xff]
    %v7910 = vld [vmem:[#allocation2 + $0xb9] sm:$0xff]
    %v7911 = vld [vmem:[#allocation2 + $0xc1] sm:$0xff]
    %v7912 = vld [vmem:[#allocation2 + $0xc9] sm:$0xff]
    %v7913 = vld [vmem:[#allocation2 + $0xd1] sm:$0xff]
    %v7914 = vld [vmem:[#allocation2 + $0xd9] sm:$0xff]
    %v7915 = vld [vmem:[#allocation2 + $0xe1] sm:$0xff]
    %v7916 = vld [vmem:[#allocation2 + $0xe9] sm:$0xff]
    %v7917 = vld [vmem:[#allocation2 + $0xf1] sm:$0xff]
    %v7918 = vld [vmem:[#allocation2 + $0xf9] sm:$0xff]
    %v7919 = vld [vmem:[#allocation2 + $0x101] sm:$0xff]
    %v7920 = vld [vmem:[#allocation2 + $0x109] sm:$0xff]
    %v7921 = vld [vmem:[#allocation2 + $0x111] sm:$0xff]
    %v7922 = vld [vmem:[#allocation2 + $0x119] sm:$0xff]
    %v7923 = vld [vmem:[#allocation2 + $0x121] sm:$0xff]
    %v7924 = vld [vmem:[#allocation2 + $0x129] sm:$0xff]
    %v7925 = vld [vmem:[#allocation2 + $0x131] sm:$0xff]
    %v7926 = vld [vmem:[#allocation2 + $0x139] sm:$0xff]
    %v7927 = vld [vmem:[#allocation2 + $0x141] sm:$0xff]
    %v7928 = vld [vmem:[#allocation2 + $0x149] sm:$0xff]
    %v7929 = vld [vmem:[#allocation2 + $0x151] sm:$0xff]
    %v7930 = vld [vmem:[#allocation2 + $0x159] sm:$0xff]
    %v7931 = vld [vmem:[#allocation2 + $0x161] sm:$0xff]
    %v7932 = vld [vmem:[#allocation2 + $0x169] sm:$0xff]
    %v7933 = vld [vmem:[#allocation2 + $0x171] sm:$0xff]
    %v7934 = vld [vmem:[#allocation2 + $0x179] sm:$0xff]
    %v7935 = vld [vmem:[#allocation2 + $0x181] sm:$0xff]
    %v7936 = vld [vmem:[#allocation2 + $0x189] sm:$0xff]
    %v7937 = vld [vmem:[#allocation2 + $0x191] sm:$0xff]
    %v7938 = vld [vmem:[#allocation2 + $0x199] sm:$0xff]
    %v7939 = vld [vmem:[#allocation2 + $0x1a1] sm:$0xff]
    %v7940 = vld [vmem:[#allocation2 + $0x1a9] sm:$0xff]
    %v7941 = vld [vmem:[#allocation2 + $0x1b1] sm:$0xff]
    %v7942 = vld [vmem:[#allocation2 + $0x1b9] sm:$0xff]
    %v7943 = vld [vmem:[#allocation2 + $0x1c1] sm:$0xff]
    %v7944 = vld [vmem:[#allocation2 + $0x1c9] sm:$0xff]
    %v7945 = vld [vmem:[#allocation2 + $0x1d1] sm:$0xff]
    %v7946 = vld [vmem:[#allocation2 + $0x1d9] sm:$0xff]
    %v7947 = vld [vmem:[#allocation2 + $0x1e1] sm:$0xff]
    %v7948 = vld [vmem:[#allocation2 + $0x1e9] sm:$0xff]
    %v7949 = vld [vmem:[#allocation2 + $0x1f1] sm:$0xff]
    %v7950 = vld [vmem:[#allocation2 + $0x1f9] sm:$0xff]
    %v7951 = vld [vmem:[#allocation2 + $0x201] sm:$0xff]
    %v7952 = vld [vmem:[#allocation2 + $0x209] sm:$0xff]
    %v7953 = vld [vmem:[#allocation2 + $0x211] sm:$0xff]
    %v7954 = vld [vmem:[#allocation2 + $0x219] sm:$0xff]
    %v7955 = vld [vmem:[#allocation2 + $0x221] sm:$0xff]
    %v7956 = vld [vmem:[#allocation2 + $0x229] sm:$0xff]
    %v7957 = vld [vmem:[#allocation2 + $0x231] sm:$0xff]
    %v7958 = vld [vmem:[#allocation2 + $0x239] sm:$0xff]
    %v7959 = vld [vmem:[#allocation2 + $0x241] sm:$0xff]
    %v7960 = vld [vmem:[#allocation2 + $0x249] sm:$0xff]
    %v7961 = vld [vmem:[#allocation2 + $0x251] sm:$0xff]
    %v7962 = vld [vmem:[#allocation2 + $0x259] sm:$0xff]
    %v7963 = vld [vmem:[#allocation2 + $0x261] sm:$0xff]
    %v7964 = vld [vmem:[#allocation2 + $0x269] sm:$0xff]
    %v7965 = vld [vmem:[#allocation2 + $0x271] sm:$0xff]
    %v7966 = vld [vmem:[#allocation2 + $0x279] sm:$0xff]
    %v7967 = vld [vmem:[#allocation2 + $0x281] sm:$0xff]
    %v7968 = vld [vmem:[#allocation2 + $0x289] sm:$0xff]
    %v7969 = vld [vmem:[#allocation2 + $0x291] sm:$0xff]
    %v7970 = vld [vmem:[#allocation2 + $0x299] sm:$0xff]
    %v7971 = vpack.c.bf16 %v7891, %v7890
    %v7972 = vpack.c.bf16 %v7893, %v7892
    %v7973 = vpack.c.bf16 %v7895, %v7894
    %v7974 = vpack.c.bf16 %v7897, %v7896
    %v7975 = vpack.c.bf16 %v7899, %v7898
    %v7976 = vpack.c.bf16 %v7901, %v7900
    %v7977 = vpack.c.bf16 %v7903, %v7902
    %v7978 = vpack.c.bf16 %v7905, %v7904
    %v7979 = vpack.c.bf16 %v7907, %v7906
    %v7980 = vpack.c.bf16 %v7909, %v7908
    %v7981 = vpack.c.bf16 %v7911, %v7910
    %v7982 = vpack.c.bf16 %v7913, %v7912
    %v7983 = vpack.c.bf16 %v7915, %v7914
    %v7984 = vpack.c.bf16 %v7917, %v7916
    %v7985 = vpack.c.bf16 %v7919, %v7918
    %v7986 = vpack.c.bf16 %v7921, %v7920
    %v7987 = vpack.c.bf16 %v7923, %v7922
    %v7988 = vpack.c.bf16 %v7925, %v7924
    %v7989 = vpack.c.bf16 %v7927, %v7926
    %v7990 = vpack.c.bf16 %v7929, %v7928
    %v7991 = vpack.c.bf16 %v7931, %v7930
    %v7992 = vpack.c.bf16 %v7933, %v7932
    %v7993 = vpack.c.bf16 %v7935, %v7934
    %v7994 = vpack.c.bf16 %v7937, %v7936
    %v7995 = vpack.c.bf16 %v7939, %v7938
    %v7996 = vpack.c.bf16 %v7941, %v7940
    %v7997 = vpack.c.bf16 %v7943, %v7942
    %v7998 = vpack.c.bf16 %v7945, %v7944
    %v7999 = vpack.c.bf16 %v7947, %v7946
    %v8000 = vpack.c.bf16 %v7949, %v7948
    %v8001 = vpack.c.bf16 %v7951, %v7950
    %v8002 = vpack.c.bf16 %v7953, %v7952
    %v8003 = vpack.c.bf16 %v7955, %v7954
    %v8004 = vpack.c.bf16 %v7957, %v7956
    %v8005 = vpack.c.bf16 %v7959, %v7958
    %v8006 = vpack.c.bf16 %v7961, %v7960
    %v8007 = vpack.c.bf16 %v7963, %v7962
    %v8008 = vpack.c.bf16 %v7965, %v7964
    %v8009 = vpack.c.bf16 %v7967, %v7966
    %v8010 = vpack.c.bf16 %v7969, %v7968
    %v8011 = vpack.c.bf16 %v7970, %v7970
    %s8012 = scalar_lea.vmem [#allocation6], 320
    %v8013 = vld [vmem:[%s8012] sm:$0xf]
    %v8014 = vld [vmem:[%s8012 + $0x4] sm:$0xf]
    %v8015 = vld [vmem:[%s8012 + $0x8] sm:$0xf]
    %v8016 = vld [vmem:[%s8012 + $0xc] sm:$0xf]
    %v8017 = vld [vmem:[%s8012 + $0x10] sm:$0xf]
    %v8018 = vld [vmem:[%s8012 + $0x14] sm:$0xf]
    %v8019 = vld [vmem:[%s8012 + $0x18] sm:$0xf]
    %v8020 = vld [vmem:[%s8012 + $0x1c] sm:$0xf]
    %v8021 = vld [vmem:[%s8012 + $0x20] sm:$0xf]
    %v8022 = vld [vmem:[%s8012 + $0x24] sm:$0xf]
    %v8023 = vld [vmem:[%s8012 + $0x28] sm:$0xf]
    %v8024 = vld [vmem:[%s8012 + $0x2c] sm:$0xf]
    %v8025 = vld [vmem:[%s8012 + $0x30] sm:$0xf]
    %v8026 = vld [vmem:[%s8012 + $0x34] sm:$0xf]
    %v8027 = vld [vmem:[%s8012 + $0x38] sm:$0xf]
    %v8028 = vld [vmem:[%s8012 + $0x3c] sm:$0xf]
    %v8045 = vunpack.c.l.b16 %v8013
    %v8046 = vunpack.c.l.b16 %v8014
    %v8047 = vunpack.c.l.b16 %v8015
    %v8048 = vunpack.c.l.b16 %v8016
    %v8049 = vunpack.c.l.b16 %v8017
    %v8050 = vunpack.c.l.b16 %v8018
    %v8051 = vunpack.c.l.b16 %v8019
    %v8052 = vunpack.c.l.b16 %v8020
    %v8053 = vunpack.c.l.b16 %v8021
    %v8054 = vunpack.c.l.b16 %v8022
    %v8055 = vunpack.c.l.b16 %v8023
    %v8056 = vunpack.c.l.b16 %v8024
    %v8057 = vunpack.c.l.b16 %v8025
    %v8058 = vunpack.c.l.b16 %v8026
    %v8059 = vunpack.c.l.b16 %v8027
    %v8060 = vunpack.c.l.b16 %v8028
    %v8061 = vpack.c.b16 %v8046, %v8045
    %v8062 = vpack.c.b16 %v8048, %v8047
    %v8063 = vpack.c.b16 %v8050, %v8049
    %v8064 = vpack.c.b16 %v8052, %v8051
    %v8065 = vpack.c.b16 %v8054, %v8053
    %v8066 = vpack.c.b16 %v8056, %v8055
    %v8067 = vpack.c.b16 %v8058, %v8057
    %v8068 = vpack.c.b16 %v8060, %v8059
    %8077 = vmatpush.bf16.msra.mxu0 %v8068
    %8078 = vmatpush.bf16.msra.mxu0 %v8067
    %8079 = vmatpush.bf16.msra.mxu0 %v8066
    %8080 = vmatpush.bf16.msra.mxu0 %v8065
    %8081 = vmatpush.bf16.msra.mxu0 %v8064
    %8082 = vmatpush.bf16.msra.mxu0 %v8063
    %8083 = vmatpush.bf16.msra.mxu0 %v8062
    %8084 = vmatpush.bf16.msra.mxu0 %v8061
    %8085 = vmatmul.bf16.gmra.mxu0 %v7971
    %v8086 = vpop.f32.mrf.mxu0
    %v8087 = vadd.f32 0.0, %v8086
    %v8088 = vpop.f32.mrf.mxu0
    %v8089 = vadd.f32 0.0, %v8088
    %8090 = vmatmul.bf16.gmra.mxu0 %v7972
    %v8091 = vpop.f32.mrf.mxu0
    %v8092 = vadd.f32 0.0, %v8091
    %v8093 = vpop.f32.mrf.mxu0
    %v8094 = vadd.f32 0.0, %v8093
    %8095 = vmatmul.bf16.gmra.mxu0 %v7973
    %v8096 = vpop.f32.mrf.mxu0
    %v8097 = vadd.f32 0.0, %v8096
    %v8098 = vpop.f32.mrf.mxu0
    %v8099 = vadd.f32 0.0, %v8098
    %8100 = vmatmul.bf16.gmra.mxu0 %v7974
    %v8101 = vpop.f32.mrf.mxu0
    %v8102 = vadd.f32 0.0, %v8101
    %v8103 = vpop.f32.mrf.mxu0
    %v8104 = vadd.f32 0.0, %v8103
    %8105 = vmatmul.bf16.gmra.mxu0 %v7975
    %v8106 = vpop.f32.mrf.mxu0
    %v8107 = vadd.f32 0.0, %v8106
    %v8108 = vpop.f32.mrf.mxu0
    %v8109 = vadd.f32 0.0, %v8108
    %8110 = vmatmul.bf16.gmra.mxu0 %v7976
    %v8111 = vpop.f32.mrf.mxu0
    %v8112 = vadd.f32 0.0, %v8111
    %v8113 = vpop.f32.mrf.mxu0
    %v8114 = vadd.f32 0.0, %v8113
    %8115 = vmatmul.bf16.gmra.mxu0 %v7977
    %v8116 = vpop.f32.mrf.mxu0
    %v8117 = vadd.f32 0.0, %v8116
    %v8118 = vpop.f32.mrf.mxu0
    %v8119 = vadd.f32 0.0, %v8118
    %8120 = vmatmul.bf16.gmra.mxu0 %v7978
    %v8121 = vpop.f32.mrf.mxu0
    %v8122 = vadd.f32 0.0, %v8121
    %v8123 = vpop.f32.mrf.mxu0
    %v8124 = vadd.f32 0.0, %v8123
    %8125 = vmatmul.bf16.gmra.mxu0 %v7979
    %v8126 = vpop.f32.mrf.mxu0
    %v8127 = vadd.f32 0.0, %v8126
    %v8128 = vpop.f32.mrf.mxu0
    %v8129 = vadd.f32 0.0, %v8128
    %8130 = vmatmul.bf16.gmra.mxu0 %v7980
    %v8131 = vpop.f32.mrf.mxu0
    %v8132 = vadd.f32 0.0, %v8131
    %v8133 = vpop.f32.mrf.mxu0
    %v8134 = vadd.f32 0.0, %v8133
    %8135 = vmatmul.bf16.gmra.mxu0 %v7981
    %v8136 = vpop.f32.mrf.mxu0
    %v8137 = vadd.f32 0.0, %v8136
    %v8138 = vpop.f32.mrf.mxu0
    %v8139 = vadd.f32 0.0, %v8138
    %8140 = vmatmul.bf16.gmra.mxu0 %v7982
    %v8141 = vpop.f32.mrf.mxu0
    %v8142 = vadd.f32 0.0, %v8141
    %v8143 = vpop.f32.mrf.mxu0
    %v8144 = vadd.f32 0.0, %v8143
    %8145 = vmatmul.bf16.gmra.mxu0 %v7983
    %v8146 = vpop.f32.mrf.mxu0
    %v8147 = vadd.f32 0.0, %v8146
    %v8148 = vpop.f32.mrf.mxu0
    %v8149 = vadd.f32 0.0, %v8148
    %8150 = vmatmul.bf16.gmra.mxu0 %v7984
    %v8151 = vpop.f32.mrf.mxu0
    %v8152 = vadd.f32 0.0, %v8151
    %v8153 = vpop.f32.mrf.mxu0
    %v8154 = vadd.f32 0.0, %v8153
    %8155 = vmatmul.bf16.gmra.mxu0 %v7985
    %v8156 = vpop.f32.mrf.mxu0
    %v8157 = vadd.f32 0.0, %v8156
    %v8158 = vpop.f32.mrf.mxu0
    %v8159 = vadd.f32 0.0, %v8158
    %8160 = vmatmul.bf16.gmra.mxu0 %v7986
    %v8161 = vpop.f32.mrf.mxu0
    %v8162 = vadd.f32 0.0, %v8161
    %v8163 = vpop.f32.mrf.mxu0
    %v8164 = vadd.f32 0.0, %v8163
    %8165 = vmatmul.bf16.gmra.mxu0 %v7987
    %v8166 = vpop.f32.mrf.mxu0
    %v8167 = vadd.f32 0.0, %v8166
    %v8168 = vpop.f32.mrf.mxu0
    %v8169 = vadd.f32 0.0, %v8168
    %8170 = vmatmul.bf16.gmra.mxu0 %v7988
    %v8171 = vpop.f32.mrf.mxu0
    %v8172 = vadd.f32 0.0, %v8171
    %v8173 = vpop.f32.mrf.mxu0
    %v8174 = vadd.f32 0.0, %v8173
    %8175 = vmatmul.bf16.gmra.mxu0 %v7989
    %v8176 = vpop.f32.mrf.mxu0
    %v8177 = vadd.f32 0.0, %v8176
    %v8178 = vpop.f32.mrf.mxu0
    %v8179 = vadd.f32 0.0, %v8178
    %8180 = vmatmul.bf16.gmra.mxu0 %v7990
    %v8181 = vpop.f32.mrf.mxu0
    %v8182 = vadd.f32 0.0, %v8181
    %v8183 = vpop.f32.mrf.mxu0
    %v8184 = vadd.f32 0.0, %v8183
    %8185 = vmatmul.bf16.gmra.mxu0 %v7991
    %v8186 = vpop.f32.mrf.mxu0
    %v8187 = vadd.f32 0.0, %v8186
    %v8188 = vpop.f32.mrf.mxu0
    %v8189 = vadd.f32 0.0, %v8188
    %8190 = vmatmul.bf16.gmra.mxu0 %v7992
    %v8191 = vpop.f32.mrf.mxu0
    %v8192 = vadd.f32 0.0, %v8191
    %v8193 = vpop.f32.mrf.mxu0
    %v8194 = vadd.f32 0.0, %v8193
    %8195 = vmatmul.bf16.gmra.mxu0 %v7993
    %v8196 = vpop.f32.mrf.mxu0
    %v8197 = vadd.f32 0.0, %v8196
    %v8198 = vpop.f32.mrf.mxu0
    %v8199 = vadd.f32 0.0, %v8198
    %8200 = vmatmul.bf16.gmra.mxu0 %v7994
    %v8201 = vpop.f32.mrf.mxu0
    %v8202 = vadd.f32 0.0, %v8201
    %v8203 = vpop.f32.mrf.mxu0
    %v8204 = vadd.f32 0.0, %v8203
    %8205 = vmatmul.bf16.gmra.mxu0 %v7995
    %v8206 = vpop.f32.mrf.mxu0
    %v8207 = vadd.f32 0.0, %v8206
    %v8208 = vpop.f32.mrf.mxu0
    %v8209 = vadd.f32 0.0, %v8208
    %8210 = vmatmul.bf16.gmra.mxu0 %v7996
    %v8211 = vpop.f32.mrf.mxu0
    %v8212 = vadd.f32 0.0, %v8211
    %v8213 = vpop.f32.mrf.mxu0
    %v8214 = vadd.f32 0.0, %v8213
    %8215 = vmatmul.bf16.gmra.mxu0 %v7997
    %v8216 = vpop.f32.mrf.mxu0
    %v8217 = vadd.f32 0.0, %v8216
    %v8218 = vpop.f32.mrf.mxu0
    %v8219 = vadd.f32 0.0, %v8218
    %8220 = vmatmul.bf16.gmra.mxu0 %v7998
    %v8221 = vpop.f32.mrf.mxu0
    %v8222 = vadd.f32 0.0, %v8221
    %v8223 = vpop.f32.mrf.mxu0
    %v8224 = vadd.f32 0.0, %v8223
    %8225 = vmatmul.bf16.gmra.mxu0 %v7999
    %v8226 = vpop.f32.mrf.mxu0
    %v8227 = vadd.f32 0.0, %v8226
    %v8228 = vpop.f32.mrf.mxu0
    %v8229 = vadd.f32 0.0, %v8228
    %8230 = vmatmul.bf16.gmra.mxu0 %v8000
    %v8231 = vpop.f32.mrf.mxu0
    %v8232 = vadd.f32 0.0, %v8231
    %v8233 = vpop.f32.mrf.mxu0
    %v8234 = vadd.f32 0.0, %v8233
    %8235 = vmatmul.bf16.gmra.mxu0 %v8001
    %v8236 = vpop.f32.mrf.mxu0
    %v8237 = vadd.f32 0.0, %v8236
    %v8238 = vpop.f32.mrf.mxu0
    %v8239 = vadd.f32 0.0, %v8238
    %8240 = vmatmul.bf16.gmra.mxu0 %v8002
    %v8241 = vpop.f32.mrf.mxu0
    %v8242 = vadd.f32 0.0, %v8241
    %v8243 = vpop.f32.mrf.mxu0
    %v8244 = vadd.f32 0.0, %v8243
    %8245 = vmatmul.bf16.gmra.mxu0 %v8003
    %v8246 = vpop.f32.mrf.mxu0
    %v8247 = vadd.f32 0.0, %v8246
    %v8248 = vpop.f32.mrf.mxu0
    %v8249 = vadd.f32 0.0, %v8248
    %8250 = vmatmul.bf16.gmra.mxu0 %v8004
    %v8251 = vpop.f32.mrf.mxu0
    %v8252 = vadd.f32 0.0, %v8251
    %v8253 = vpop.f32.mrf.mxu0
    %v8254 = vadd.f32 0.0, %v8253
    %8255 = vmatmul.bf16.gmra.mxu0 %v8005
    %v8256 = vpop.f32.mrf.mxu0
    %v8257 = vadd.f32 0.0, %v8256
    %v8258 = vpop.f32.mrf.mxu0
    %v8259 = vadd.f32 0.0, %v8258
    %8260 = vmatmul.bf16.gmra.mxu0 %v8006
    %v8261 = vpop.f32.mrf.mxu0
    %v8262 = vadd.f32 0.0, %v8261
    %v8263 = vpop.f32.mrf.mxu0
    %v8264 = vadd.f32 0.0, %v8263
    %8265 = vmatmul.bf16.gmra.mxu0 %v8007
    %v8266 = vpop.f32.mrf.mxu0
    %v8267 = vadd.f32 0.0, %v8266
    %v8268 = vpop.f32.mrf.mxu0
    %v8269 = vadd.f32 0.0, %v8268
    %8270 = vmatmul.bf16.gmra.mxu0 %v8008
    %v8271 = vpop.f32.mrf.mxu0
    %v8272 = vadd.f32 0.0, %v8271
    %v8273 = vpop.f32.mrf.mxu0
    %v8274 = vadd.f32 0.0, %v8273
    %8275 = vmatmul.bf16.gmra.mxu0 %v8009
    %v8276 = vpop.f32.mrf.mxu0
    %v8277 = vadd.f32 0.0, %v8276
    %v8278 = vpop.f32.mrf.mxu0
    %v8279 = vadd.f32 0.0, %v8278
    %8280 = vmatmul.bf16.gmra.mxu0 %v8010
    %v8281 = vpop.f32.mrf.mxu0
    %v8282 = vadd.f32 0.0, %v8281
    %v8283 = vpop.f32.mrf.mxu0
    %v8284 = vadd.f32 0.0, %v8283
    %8285 = vmatmul.bf16.gmra.mxu0 %v8011
    %v8286 = vpop.f32.mrf.mxu0
    %v8287 = vadd.f32 0.0, %v8286
    %v8288 = vpop.f32.mrf.mxu0
    %8289 = vdwg.mxu0
    %v8290 = vadd.f32 %v7809, %v8087
    %v8291 = vadd.f32 %v7810, %v8089
    %v8292 = vadd.f32 %v7811, %v8092
    %v8293 = vadd.f32 %v7812, %v8094
    %v8294 = vadd.f32 %v7813, %v8097
    %v8295 = vadd.f32 %v7814, %v8099
    %v8296 = vadd.f32 %v7815, %v8102
    %v8297 = vadd.f32 %v7816, %v8104
    %v8298 = vadd.f32 %v7817, %v8107
    %v8299 = vadd.f32 %v7818, %v8109
    %v8300 = vadd.f32 %v7819, %v8112
    %v8301 = vadd.f32 %v7820, %v8114
    %v8302 = vadd.f32 %v7821, %v8117
    %v8303 = vadd.f32 %v7822, %v8119
    %v8304 = vadd.f32 %v7823, %v8122
    %v8305 = vadd.f32 %v7824, %v8124
    %v8306 = vadd.f32 %v7825, %v8127
    %v8307 = vadd.f32 %v7826, %v8129
    %v8308 = vadd.f32 %v7827, %v8132
    %v8309 = vadd.f32 %v7828, %v8134
    %v8310 = vadd.f32 %v7829, %v8137
    %v8311 = vadd.f32 %v7830, %v8139
    %v8312 = vadd.f32 %v7831, %v8142
    %v8313 = vadd.f32 %v7832, %v8144
    %v8314 = vadd.f32 %v7833, %v8147
    %v8315 = vadd.f32 %v7834, %v8149
    %v8316 = vadd.f32 %v7835, %v8152
    %v8317 = vadd.f32 %v7836, %v8154
    %v8318 = vadd.f32 %v7837, %v8157
    %v8319 = vadd.f32 %v7838, %v8159
    %v8320 = vadd.f32 %v7839, %v8162
    %v8321 = vadd.f32 %v7840, %v8164
    %v8322 = vadd.f32 %v7841, %v8167
    %v8323 = vadd.f32 %v7842, %v8169
    %v8324 = vadd.f32 %v7843, %v8172
    %v8325 = vadd.f32 %v7844, %v8174
    %v8326 = vadd.f32 %v7845, %v8177
    %v8327 = vadd.f32 %v7846, %v8179
    %v8328 = vadd.f32 %v7847, %v8182
    %v8329 = vadd.f32 %v7848, %v8184
    %v8330 = vadd.f32 %v7849, %v8187
    %v8331 = vadd.f32 %v7850, %v8189
    %v8332 = vadd.f32 %v7851, %v8192
    %v8333 = vadd.f32 %v7852, %v8194
    %v8334 = vadd.f32 %v7853, %v8197
    %v8335 = vadd.f32 %v7854, %v8199
    %v8336 = vadd.f32 %v7855, %v8202
    %v8337 = vadd.f32 %v7856, %v8204
    %v8338 = vadd.f32 %v7857, %v8207
    %v8339 = vadd.f32 %v7858, %v8209
    %v8340 = vadd.f32 %v7859, %v8212
    %v8341 = vadd.f32 %v7860, %v8214
    %v8342 = vadd.f32 %v7861, %v8217
    %v8343 = vadd.f32 %v7862, %v8219
    %v8344 = vadd.f32 %v7863, %v8222
    %v8345 = vadd.f32 %v7864, %v8224
    %v8346 = vadd.f32 %v7865, %v8227
    %v8347 = vadd.f32 %v7866, %v8229
    %v8348 = vadd.f32 %v7867, %v8232
    %v8349 = vadd.f32 %v7868, %v8234
    %v8350 = vadd.f32 %v7869, %v8237
    %v8351 = vadd.f32 %v7870, %v8239
    %v8352 = vadd.f32 %v7871, %v8242
    %v8353 = vadd.f32 %v7872, %v8244
    %v8354 = vadd.f32 %v7873, %v8247
    %v8355 = vadd.f32 %v7874, %v8249
    %v8356 = vadd.f32 %v7875, %v8252
    %v8357 = vadd.f32 %v7876, %v8254
    %v8358 = vadd.f32 %v7877, %v8257
    %v8359 = vadd.f32 %v7878, %v8259
    %v8360 = vadd.f32 %v7879, %v8262
    %v8361 = vadd.f32 %v7880, %v8264
    %v8362 = vadd.f32 %v7881, %v8267
    %v8363 = vadd.f32 %v7882, %v8269
    %v8364 = vadd.f32 %v7883, %v8272
    %v8365 = vadd.f32 %v7884, %v8274
    %v8366 = vadd.f32 %v7885, %v8277
    %v8367 = vadd.f32 %v7886, %v8279
    %v8368 = vadd.f32 %v7887, %v8282
    %v8369 = vadd.f32 %v7888, %v8284
    %v8370 = vadd.f32 %v7889, %v8287
    %v8371 = vld [vmem:[#allocation2 + $0x29] sm:$0xff]
    %v8372 = vld [vmem:[#allocation2 + $0x31] sm:$0xff]
    %v8373 = vld [vmem:[#allocation2 + $0x39] sm:$0xff]
    %v8374 = vld [vmem:[#allocation2 + $0x41] sm:$0xff]
    %v8375 = vld [vmem:[#allocation2 + $0x49] sm:$0xff]
    %v8376 = vld [vmem:[#allocation2 + $0x51] sm:$0xff]
    %v8377 = vld [vmem:[#allocation2 + $0x59] sm:$0xff]
    %v8378 = vld [vmem:[#allocation2 + $0x61] sm:$0xff]
    %v8379 = vld [vmem:[#allocation2 + $0x69] sm:$0xff]
    %v8380 = vld [vmem:[#allocation2 + $0x71] sm:$0xff]
    %v8381 = vld [vmem:[#allocation2 + $0x79] sm:$0xff]
    %v8382 = vld [vmem:[#allocation2 + $0x81] sm:$0xff]
    %v8383 = vld [vmem:[#allocation2 + $0x89] sm:$0xff]
    %v8384 = vld [vmem:[#allocation2 + $0x91] sm:$0xff]
    %v8385 = vld [vmem:[#allocation2 + $0x99] sm:$0xff]
    %v8386 = vld [vmem:[#allocation2 + $0xa1] sm:$0xff]
    %v8387 = vld [vmem:[#allocation2 + $0xa9] sm:$0xff]
    %v8388 = vld [vmem:[#allocation2 + $0xb1] sm:$0xff]
    %v8389 = vld [vmem:[#allocation2 + $0xb9] sm:$0xff]
    %v8390 = vld [vmem:[#allocation2 + $0xc1] sm:$0xff]
    %v8391 = vld [vmem:[#allocation2 + $0xc9] sm:$0xff]
    %v8392 = vld [vmem:[#allocation2 + $0xd1] sm:$0xff]
    %v8393 = vld [vmem:[#allocation2 + $0xd9] sm:$0xff]
    %v8394 = vld [vmem:[#allocation2 + $0xe1] sm:$0xff]
    %v8395 = vld [vmem:[#allocation2 + $0xe9] sm:$0xff]
    %v8396 = vld [vmem:[#allocation2 + $0xf1] sm:$0xff]
    %v8397 = vld [vmem:[#allocation2 + $0xf9] sm:$0xff]
    %v8398 = vld [vmem:[#allocation2 + $0x101] sm:$0xff]
    %v8399 = vld [vmem:[#allocation2 + $0x109] sm:$0xff]
    %v8400 = vld [vmem:[#allocation2 + $0x111] sm:$0xff]
    %v8401 = vld [vmem:[#allocation2 + $0x119] sm:$0xff]
    %v8402 = vld [vmem:[#allocation2 + $0x121] sm:$0xff]
    %v8403 = vld [vmem:[#allocation2 + $0x129] sm:$0xff]
    %v8404 = vld [vmem:[#allocation2 + $0x131] sm:$0xff]
    %v8405 = vld [vmem:[#allocation2 + $0x139] sm:$0xff]
    %v8406 = vld [vmem:[#allocation2 + $0x141] sm:$0xff]
    %v8407 = vld [vmem:[#allocation2 + $0x149] sm:$0xff]
    %v8408 = vld [vmem:[#allocation2 + $0x151] sm:$0xff]
    %v8409 = vld [vmem:[#allocation2 + $0x159] sm:$0xff]
    %v8410 = vld [vmem:[#allocation2 + $0x161] sm:$0xff]
    %v8411 = vld [vmem:[#allocation2 + $0x169] sm:$0xff]
    %v8412 = vld [vmem:[#allocation2 + $0x171] sm:$0xff]
    %v8413 = vld [vmem:[#allocation2 + $0x179] sm:$0xff]
    %v8414 = vld [vmem:[#allocation2 + $0x181] sm:$0xff]
    %v8415 = vld [vmem:[#allocation2 + $0x189] sm:$0xff]
    %v8416 = vld [vmem:[#allocation2 + $0x191] sm:$0xff]
    %v8417 = vld [vmem:[#allocation2 + $0x199] sm:$0xff]
    %v8418 = vld [vmem:[#allocation2 + $0x1a1] sm:$0xff]
    %v8419 = vld [vmem:[#allocation2 + $0x1a9] sm:$0xff]
    %v8420 = vld [vmem:[#allocation2 + $0x1b1] sm:$0xff]
    %v8421 = vld [vmem:[#allocation2 + $0x1b9] sm:$0xff]
    %v8422 = vld [vmem:[#allocation2 + $0x1c1] sm:$0xff]
    %v8423 = vld [vmem:[#allocation2 + $0x1c9] sm:$0xff]
    %v8424 = vld [vmem:[#allocation2 + $0x1d1] sm:$0xff]
    %v8425 = vld [vmem:[#allocation2 + $0x1d9] sm:$0xff]
    %v8426 = vld [vmem:[#allocation2 + $0x1e1] sm:$0xff]
    %v8427 = vld [vmem:[#allocation2 + $0x1e9] sm:$0xff]
    %v8428 = vld [vmem:[#allocation2 + $0x1f1] sm:$0xff]
    %v8429 = vld [vmem:[#allocation2 + $0x1f9] sm:$0xff]
    %v8430 = vld [vmem:[#allocation2 + $0x201] sm:$0xff]
    %v8431 = vld [vmem:[#allocation2 + $0x209] sm:$0xff]
    %v8432 = vld [vmem:[#allocation2 + $0x211] sm:$0xff]
    %v8433 = vld [vmem:[#allocation2 + $0x219] sm:$0xff]
    %v8434 = vld [vmem:[#allocation2 + $0x221] sm:$0xff]
    %v8435 = vld [vmem:[#allocation2 + $0x229] sm:$0xff]
    %v8436 = vld [vmem:[#allocation2 + $0x231] sm:$0xff]
    %v8437 = vld [vmem:[#allocation2 + $0x239] sm:$0xff]
    %v8438 = vld [vmem:[#allocation2 + $0x241] sm:$0xff]
    %v8439 = vld [vmem:[#allocation2 + $0x249] sm:$0xff]
    %v8440 = vld [vmem:[#allocation2 + $0x251] sm:$0xff]
    %v8441 = vld [vmem:[#allocation2 + $0x259] sm:$0xff]
    %v8442 = vld [vmem:[#allocation2 + $0x261] sm:$0xff]
    %v8443 = vld [vmem:[#allocation2 + $0x269] sm:$0xff]
    %v8444 = vld [vmem:[#allocation2 + $0x271] sm:$0xff]
    %v8445 = vld [vmem:[#allocation2 + $0x279] sm:$0xff]
    %v8446 = vld [vmem:[#allocation2 + $0x281] sm:$0xff]
    %v8447 = vld [vmem:[#allocation2 + $0x289] sm:$0xff]
    %v8448 = vld [vmem:[#allocation2 + $0x291] sm:$0xff]
    %v8449 = vld [vmem:[#allocation2 + $0x299] sm:$0xff]
    %v8450 = vld [vmem:[#allocation2 + $0x2a1] sm:$0xff]
    %v8451 = vld [vmem:[#allocation2 + $0x2a9] sm:$0xff]
    %v8452 = vpack.c.bf16 %v8372, %v8371
    %v8453 = vpack.c.bf16 %v8374, %v8373
    %v8454 = vpack.c.bf16 %v8376, %v8375
    %v8455 = vpack.c.bf16 %v8378, %v8377
    %v8456 = vpack.c.bf16 %v8380, %v8379
    %v8457 = vpack.c.bf16 %v8382, %v8381
    %v8458 = vpack.c.bf16 %v8384, %v8383
    %v8459 = vpack.c.bf16 %v8386, %v8385
    %v8460 = vpack.c.bf16 %v8388, %v8387
    %v8461 = vpack.c.bf16 %v8390, %v8389
    %v8462 = vpack.c.bf16 %v8392, %v8391
    %v8463 = vpack.c.bf16 %v8394, %v8393
    %v8464 = vpack.c.bf16 %v8396, %v8395
    %v8465 = vpack.c.bf16 %v8398, %v8397
    %v8466 = vpack.c.bf16 %v8400, %v8399
    %v8467 = vpack.c.bf16 %v8402, %v8401
    %v8468 = vpack.c.bf16 %v8404, %v8403
    %v8469 = vpack.c.bf16 %v8406, %v8405
    %v8470 = vpack.c.bf16 %v8408, %v8407
    %v8471 = vpack.c.bf16 %v8410, %v8409
    %v8472 = vpack.c.bf16 %v8412, %v8411
    %v8473 = vpack.c.bf16 %v8414, %v8413
    %v8474 = vpack.c.bf16 %v8416, %v8415
    %v8475 = vpack.c.bf16 %v8418, %v8417
    %v8476 = vpack.c.bf16 %v8420, %v8419
    %v8477 = vpack.c.bf16 %v8422, %v8421
    %v8478 = vpack.c.bf16 %v8424, %v8423
    %v8479 = vpack.c.bf16 %v8426, %v8425
    %v8480 = vpack.c.bf16 %v8428, %v8427
    %v8481 = vpack.c.bf16 %v8430, %v8429
    %v8482 = vpack.c.bf16 %v8432, %v8431
    %v8483 = vpack.c.bf16 %v8434, %v8433
    %v8484 = vpack.c.bf16 %v8436, %v8435
    %v8485 = vpack.c.bf16 %v8438, %v8437
    %v8486 = vpack.c.bf16 %v8440, %v8439
    %v8487 = vpack.c.bf16 %v8442, %v8441
    %v8488 = vpack.c.bf16 %v8444, %v8443
    %v8489 = vpack.c.bf16 %v8446, %v8445
    %v8490 = vpack.c.bf16 %v8448, %v8447
    %v8491 = vpack.c.bf16 %v8450, %v8449
    %v8492 = vpack.c.bf16 %v8451, %v8451
    %s8493 = scalar_lea.vmem [#allocation6], 384
    %v8494 = vld [vmem:[%s8493] sm:$0xf]
    %v8495 = vld [vmem:[%s8493 + $0x4] sm:$0xf]
    %v8496 = vld [vmem:[%s8493 + $0x8] sm:$0xf]
    %v8497 = vld [vmem:[%s8493 + $0xc] sm:$0xf]
    %v8498 = vld [vmem:[%s8493 + $0x10] sm:$0xf]
    %v8499 = vld [vmem:[%s8493 + $0x14] sm:$0xf]
    %v8500 = vld [vmem:[%s8493 + $0x18] sm:$0xf]
    %v8501 = vld [vmem:[%s8493 + $0x1c] sm:$0xf]
    %v8502 = vld [vmem:[%s8493 + $0x20] sm:$0xf]
    %v8503 = vld [vmem:[%s8493 + $0x24] sm:$0xf]
    %v8504 = vld [vmem:[%s8493 + $0x28] sm:$0xf]
    %v8505 = vld [vmem:[%s8493 + $0x2c] sm:$0xf]
    %v8506 = vld [vmem:[%s8493 + $0x30] sm:$0xf]
    %v8507 = vld [vmem:[%s8493 + $0x34] sm:$0xf]
    %v8508 = vld [vmem:[%s8493 + $0x38] sm:$0xf]
    %v8509 = vld [vmem:[%s8493 + $0x3c] sm:$0xf]
    %v8526 = vunpack.c.l.b16 %v8494
    %v8527 = vunpack.c.l.b16 %v8495
    %v8528 = vunpack.c.l.b16 %v8496
    %v8529 = vunpack.c.l.b16 %v8497
    %v8530 = vunpack.c.l.b16 %v8498
    %v8531 = vunpack.c.l.b16 %v8499
    %v8532 = vunpack.c.l.b16 %v8500
    %v8533 = vunpack.c.l.b16 %v8501
    %v8534 = vunpack.c.l.b16 %v8502
    %v8535 = vunpack.c.l.b16 %v8503
    %v8536 = vunpack.c.l.b16 %v8504
    %v8537 = vunpack.c.l.b16 %v8505
    %v8538 = vunpack.c.l.b16 %v8506
    %v8539 = vunpack.c.l.b16 %v8507
    %v8540 = vunpack.c.l.b16 %v8508
    %v8541 = vunpack.c.l.b16 %v8509
    %v8542 = vpack.c.b16 %v8527, %v8526
    %v8543 = vpack.c.b16 %v8529, %v8528
    %v8544 = vpack.c.b16 %v8531, %v8530
    %v8545 = vpack.c.b16 %v8533, %v8532
    %v8546 = vpack.c.b16 %v8535, %v8534
    %v8547 = vpack.c.b16 %v8537, %v8536
    %v8548 = vpack.c.b16 %v8539, %v8538
    %v8549 = vpack.c.b16 %v8541, %v8540
    %8558 = vmatpush.bf16.msra.mxu0 %v8549
    %8559 = vmatpush.bf16.msra.mxu0 %v8548
    %8560 = vmatpush.bf16.msra.mxu0 %v8547
    %8561 = vmatpush.bf16.msra.mxu0 %v8546
    %8562 = vmatpush.bf16.msra.mxu0 %v8545
    %8563 = vmatpush.bf16.msra.mxu0 %v8544
    %8564 = vmatpush.bf16.msra.mxu0 %v8543
    %8565 = vmatpush.bf16.msra.mxu0 %v8542
    %8566 = vmatmul.bf16.gmra.mxu0 %v8452
    %v8567 = vpop.f32.mrf.mxu0
    %v8568 = vadd.f32 0.0, %v8567
    %v8569 = vpop.f32.mrf.mxu0
    %v8570 = vadd.f32 0.0, %v8569
    %8571 = vmatmul.bf16.gmra.mxu0 %v8453
    %v8572 = vpop.f32.mrf.mxu0
    %v8573 = vadd.f32 0.0, %v8572
    %v8574 = vpop.f32.mrf.mxu0
    %v8575 = vadd.f32 0.0, %v8574
    %8576 = vmatmul.bf16.gmra.mxu0 %v8454
    %v8577 = vpop.f32.mrf.mxu0
    %v8578 = vadd.f32 0.0, %v8577
    %v8579 = vpop.f32.mrf.mxu0
    %v8580 = vadd.f32 0.0, %v8579
    %8581 = vmatmul.bf16.gmra.mxu0 %v8455
    %v8582 = vpop.f32.mrf.mxu0
    %v8583 = vadd.f32 0.0, %v8582
    %v8584 = vpop.f32.mrf.mxu0
    %v8585 = vadd.f32 0.0, %v8584
    %8586 = vmatmul.bf16.gmra.mxu0 %v8456
    %v8587 = vpop.f32.mrf.mxu0
    %v8588 = vadd.f32 0.0, %v8587
    %v8589 = vpop.f32.mrf.mxu0
    %v8590 = vadd.f32 0.0, %v8589
    %8591 = vmatmul.bf16.gmra.mxu0 %v8457
    %v8592 = vpop.f32.mrf.mxu0
    %v8593 = vadd.f32 0.0, %v8592
    %v8594 = vpop.f32.mrf.mxu0
    %v8595 = vadd.f32 0.0, %v8594
    %8596 = vmatmul.bf16.gmra.mxu0 %v8458
    %v8597 = vpop.f32.mrf.mxu0
    %v8598 = vadd.f32 0.0, %v8597
    %v8599 = vpop.f32.mrf.mxu0
    %v8600 = vadd.f32 0.0, %v8599
    %8601 = vmatmul.bf16.gmra.mxu0 %v8459
    %v8602 = vpop.f32.mrf.mxu0
    %v8603 = vadd.f32 0.0, %v8602
    %v8604 = vpop.f32.mrf.mxu0
    %v8605 = vadd.f32 0.0, %v8604
    %8606 = vmatmul.bf16.gmra.mxu0 %v8460
    %v8607 = vpop.f32.mrf.mxu0
    %v8608 = vadd.f32 0.0, %v8607
    %v8609 = vpop.f32.mrf.mxu0
    %v8610 = vadd.f32 0.0, %v8609
    %8611 = vmatmul.bf16.gmra.mxu0 %v8461
    %v8612 = vpop.f32.mrf.mxu0
    %v8613 = vadd.f32 0.0, %v8612
    %v8614 = vpop.f32.mrf.mxu0
    %v8615 = vadd.f32 0.0, %v8614
    %8616 = vmatmul.bf16.gmra.mxu0 %v8462
    %v8617 = vpop.f32.mrf.mxu0
    %v8618 = vadd.f32 0.0, %v8617
    %v8619 = vpop.f32.mrf.mxu0
    %v8620 = vadd.f32 0.0, %v8619
    %8621 = vmatmul.bf16.gmra.mxu0 %v8463
    %v8622 = vpop.f32.mrf.mxu0
    %v8623 = vadd.f32 0.0, %v8622
    %v8624 = vpop.f32.mrf.mxu0
    %v8625 = vadd.f32 0.0, %v8624
    %8626 = vmatmul.bf16.gmra.mxu0 %v8464
    %v8627 = vpop.f32.mrf.mxu0
    %v8628 = vadd.f32 0.0, %v8627
    %v8629 = vpop.f32.mrf.mxu0
    %v8630 = vadd.f32 0.0, %v8629
    %8631 = vmatmul.bf16.gmra.mxu0 %v8465
    %v8632 = vpop.f32.mrf.mxu0
    %v8633 = vadd.f32 0.0, %v8632
    %v8634 = vpop.f32.mrf.mxu0
    %v8635 = vadd.f32 0.0, %v8634
    %8636 = vmatmul.bf16.gmra.mxu0 %v8466
    %v8637 = vpop.f32.mrf.mxu0
    %v8638 = vadd.f32 0.0, %v8637
    %v8639 = vpop.f32.mrf.mxu0
    %v8640 = vadd.f32 0.0, %v8639
    %8641 = vmatmul.bf16.gmra.mxu0 %v8467
    %v8642 = vpop.f32.mrf.mxu0
    %v8643 = vadd.f32 0.0, %v8642
    %v8644 = vpop.f32.mrf.mxu0
    %v8645 = vadd.f32 0.0, %v8644
    %8646 = vmatmul.bf16.gmra.mxu0 %v8468
    %v8647 = vpop.f32.mrf.mxu0
    %v8648 = vadd.f32 0.0, %v8647
    %v8649 = vpop.f32.mrf.mxu0
    %v8650 = vadd.f32 0.0, %v8649
    %8651 = vmatmul.bf16.gmra.mxu0 %v8469
    %v8652 = vpop.f32.mrf.mxu0
    %v8653 = vadd.f32 0.0, %v8652
    %v8654 = vpop.f32.mrf.mxu0
    %v8655 = vadd.f32 0.0, %v8654
    %8656 = vmatmul.bf16.gmra.mxu0 %v8470
    %v8657 = vpop.f32.mrf.mxu0
    %v8658 = vadd.f32 0.0, %v8657
    %v8659 = vpop.f32.mrf.mxu0
    %v8660 = vadd.f32 0.0, %v8659
    %8661 = vmatmul.bf16.gmra.mxu0 %v8471
    %v8662 = vpop.f32.mrf.mxu0
    %v8663 = vadd.f32 0.0, %v8662
    %v8664 = vpop.f32.mrf.mxu0
    %v8665 = vadd.f32 0.0, %v8664
    %8666 = vmatmul.bf16.gmra.mxu0 %v8472
    %v8667 = vpop.f32.mrf.mxu0
    %v8668 = vadd.f32 0.0, %v8667
    %v8669 = vpop.f32.mrf.mxu0
    %v8670 = vadd.f32 0.0, %v8669
    %8671 = vmatmul.bf16.gmra.mxu0 %v8473
    %v8672 = vpop.f32.mrf.mxu0
    %v8673 = vadd.f32 0.0, %v8672
    %v8674 = vpop.f32.mrf.mxu0
    %v8675 = vadd.f32 0.0, %v8674
    %8676 = vmatmul.bf16.gmra.mxu0 %v8474
    %v8677 = vpop.f32.mrf.mxu0
    %v8678 = vadd.f32 0.0, %v8677
    %v8679 = vpop.f32.mrf.mxu0
    %v8680 = vadd.f32 0.0, %v8679
    %8681 = vmatmul.bf16.gmra.mxu0 %v8475
    %v8682 = vpop.f32.mrf.mxu0
    %v8683 = vadd.f32 0.0, %v8682
    %v8684 = vpop.f32.mrf.mxu0
    %v8685 = vadd.f32 0.0, %v8684
    %8686 = vmatmul.bf16.gmra.mxu0 %v8476
    %v8687 = vpop.f32.mrf.mxu0
    %v8688 = vadd.f32 0.0, %v8687
    %v8689 = vpop.f32.mrf.mxu0
    %v8690 = vadd.f32 0.0, %v8689
    %8691 = vmatmul.bf16.gmra.mxu0 %v8477
    %v8692 = vpop.f32.mrf.mxu0
    %v8693 = vadd.f32 0.0, %v8692
    %v8694 = vpop.f32.mrf.mxu0
    %v8695 = vadd.f32 0.0, %v8694
    %8696 = vmatmul.bf16.gmra.mxu0 %v8478
    %v8697 = vpop.f32.mrf.mxu0
    %v8698 = vadd.f32 0.0, %v8697
    %v8699 = vpop.f32.mrf.mxu0
    %v8700 = vadd.f32 0.0, %v8699
    %8701 = vmatmul.bf16.gmra.mxu0 %v8479
    %v8702 = vpop.f32.mrf.mxu0
    %v8703 = vadd.f32 0.0, %v8702
    %v8704 = vpop.f32.mrf.mxu0
    %v8705 = vadd.f32 0.0, %v8704
    %8706 = vmatmul.bf16.gmra.mxu0 %v8480
    %v8707 = vpop.f32.mrf.mxu0
    %v8708 = vadd.f32 0.0, %v8707
    %v8709 = vpop.f32.mrf.mxu0
    %v8710 = vadd.f32 0.0, %v8709
    %8711 = vmatmul.bf16.gmra.mxu0 %v8481
    %v8712 = vpop.f32.mrf.mxu0
    %v8713 = vadd.f32 0.0, %v8712
    %v8714 = vpop.f32.mrf.mxu0
    %v8715 = vadd.f32 0.0, %v8714
    %8716 = vmatmul.bf16.gmra.mxu0 %v8482
    %v8717 = vpop.f32.mrf.mxu0
    %v8718 = vadd.f32 0.0, %v8717
    %v8719 = vpop.f32.mrf.mxu0
    %v8720 = vadd.f32 0.0, %v8719
    %8721 = vmatmul.bf16.gmra.mxu0 %v8483
    %v8722 = vpop.f32.mrf.mxu0
    %v8723 = vadd.f32 0.0, %v8722
    %v8724 = vpop.f32.mrf.mxu0
    %v8725 = vadd.f32 0.0, %v8724
    %8726 = vmatmul.bf16.gmra.mxu0 %v8484
    %v8727 = vpop.f32.mrf.mxu0
    %v8728 = vadd.f32 0.0, %v8727
    %v8729 = vpop.f32.mrf.mxu0
    %v8730 = vadd.f32 0.0, %v8729
    %8731 = vmatmul.bf16.gmra.mxu0 %v8485
    %v8732 = vpop.f32.mrf.mxu0
    %v8733 = vadd.f32 0.0, %v8732
    %v8734 = vpop.f32.mrf.mxu0
    %v8735 = vadd.f32 0.0, %v8734
    %8736 = vmatmul.bf16.gmra.mxu0 %v8486
    %v8737 = vpop.f32.mrf.mxu0
    %v8738 = vadd.f32 0.0, %v8737
    %v8739 = vpop.f32.mrf.mxu0
    %v8740 = vadd.f32 0.0, %v8739
    %8741 = vmatmul.bf16.gmra.mxu0 %v8487
    %v8742 = vpop.f32.mrf.mxu0
    %v8743 = vadd.f32 0.0, %v8742
    %v8744 = vpop.f32.mrf.mxu0
    %v8745 = vadd.f32 0.0, %v8744
    %8746 = vmatmul.bf16.gmra.mxu0 %v8488
    %v8747 = vpop.f32.mrf.mxu0
    %v8748 = vadd.f32 0.0, %v8747
    %v8749 = vpop.f32.mrf.mxu0
    %v8750 = vadd.f32 0.0, %v8749
    %8751 = vmatmul.bf16.gmra.mxu0 %v8489
    %v8752 = vpop.f32.mrf.mxu0
    %v8753 = vadd.f32 0.0, %v8752
    %v8754 = vpop.f32.mrf.mxu0
    %v8755 = vadd.f32 0.0, %v8754
    %8756 = vmatmul.bf16.gmra.mxu0 %v8490
    %v8757 = vpop.f32.mrf.mxu0
    %v8758 = vadd.f32 0.0, %v8757
    %v8759 = vpop.f32.mrf.mxu0
    %v8760 = vadd.f32 0.0, %v8759
    %8761 = vmatmul.bf16.gmra.mxu0 %v8491
    %v8762 = vpop.f32.mrf.mxu0
    %v8763 = vadd.f32 0.0, %v8762
    %v8764 = vpop.f32.mrf.mxu0
    %v8765 = vadd.f32 0.0, %v8764
    %8766 = vmatmul.bf16.gmra.mxu0 %v8492
    %v8767 = vpop.f32.mrf.mxu0
    %v8768 = vadd.f32 0.0, %v8767
    %v8769 = vpop.f32.mrf.mxu0
    %8770 = vdwg.mxu0
    %v8771 = vadd.f32 %v8290, %v8568
    %v8772 = vadd.f32 %v8291, %v8570
    %v8773 = vadd.f32 %v8292, %v8573
    %v8774 = vadd.f32 %v8293, %v8575
    %v8775 = vadd.f32 %v8294, %v8578
    %v8776 = vadd.f32 %v8295, %v8580
    %v8777 = vadd.f32 %v8296, %v8583
    %v8778 = vadd.f32 %v8297, %v8585
    %v8779 = vadd.f32 %v8298, %v8588
    %v8780 = vadd.f32 %v8299, %v8590
    %v8781 = vadd.f32 %v8300, %v8593
    %v8782 = vadd.f32 %v8301, %v8595
    %v8783 = vadd.f32 %v8302, %v8598
    %v8784 = vadd.f32 %v8303, %v8600
    %v8785 = vadd.f32 %v8304, %v8603
    %v8786 = vadd.f32 %v8305, %v8605
    %v8787 = vadd.f32 %v8306, %v8608
    %v8788 = vadd.f32 %v8307, %v8610
    %v8789 = vadd.f32 %v8308, %v8613
    %v8790 = vadd.f32 %v8309, %v8615
    %v8791 = vadd.f32 %v8310, %v8618
    %v8792 = vadd.f32 %v8311, %v8620
    %v8793 = vadd.f32 %v8312, %v8623
    %v8794 = vadd.f32 %v8313, %v8625
    %v8795 = vadd.f32 %v8314, %v8628
    %v8796 = vadd.f32 %v8315, %v8630
    %v8797 = vadd.f32 %v8316, %v8633
    %v8798 = vadd.f32 %v8317, %v8635
    %v8799 = vadd.f32 %v8318, %v8638
    %v8800 = vadd.f32 %v8319, %v8640
    %v8801 = vadd.f32 %v8320, %v8643
    %v8802 = vadd.f32 %v8321, %v8645
    %v8803 = vadd.f32 %v8322, %v8648
    %v8804 = vadd.f32 %v8323, %v8650
    %v8805 = vadd.f32 %v8324, %v8653
    %v8806 = vadd.f32 %v8325, %v8655
    %v8807 = vadd.f32 %v8326, %v8658
    %v8808 = vadd.f32 %v8327, %v8660
    %v8809 = vadd.f32 %v8328, %v8663
    %v8810 = vadd.f32 %v8329, %v8665
    %v8811 = vadd.f32 %v8330, %v8668
    %v8812 = vadd.f32 %v8331, %v8670
    %v8813 = vadd.f32 %v8332, %v8673
    %v8814 = vadd.f32 %v8333, %v8675
    %v8815 = vadd.f32 %v8334, %v8678
    %v8816 = vadd.f32 %v8335, %v8680
    %v8817 = vadd.f32 %v8336, %v8683
    %v8818 = vadd.f32 %v8337, %v8685
    %v8819 = vadd.f32 %v8338, %v8688
    %v8820 = vadd.f32 %v8339, %v8690
    %v8821 = vadd.f32 %v8340, %v8693
    %v8822 = vadd.f32 %v8341, %v8695
    %v8823 = vadd.f32 %v8342, %v8698
    %v8824 = vadd.f32 %v8343, %v8700
    %v8825 = vadd.f32 %v8344, %v8703
    %v8826 = vadd.f32 %v8345, %v8705
    %v8827 = vadd.f32 %v8346, %v8708
    %v8828 = vadd.f32 %v8347, %v8710
    %v8829 = vadd.f32 %v8348, %v8713
    %v8830 = vadd.f32 %v8349, %v8715
    %v8831 = vadd.f32 %v8350, %v8718
    %v8832 = vadd.f32 %v8351, %v8720
    %v8833 = vadd.f32 %v8352, %v8723
    %v8834 = vadd.f32 %v8353, %v8725
    %v8835 = vadd.f32 %v8354, %v8728
    %v8836 = vadd.f32 %v8355, %v8730
    %v8837 = vadd.f32 %v8356, %v8733
    %v8838 = vadd.f32 %v8357, %v8735
    %v8839 = vadd.f32 %v8358, %v8738
    %v8840 = vadd.f32 %v8359, %v8740
    %v8841 = vadd.f32 %v8360, %v8743
    %v8842 = vadd.f32 %v8361, %v8745
    %v8843 = vadd.f32 %v8362, %v8748
    %v8844 = vadd.f32 %v8363, %v8750
    %v8845 = vadd.f32 %v8364, %v8753
    %v8846 = vadd.f32 %v8365, %v8755
    %v8847 = vadd.f32 %v8366, %v8758
    %v8848 = vadd.f32 %v8367, %v8760
    %v8849 = vadd.f32 %v8368, %v8763
    %v8850 = vadd.f32 %v8369, %v8765
    %v8851 = vadd.f32 %v8370, %v8768
    %v8852 = vld [vmem:[#allocation2 + $0x2a] sm:$0xff]
    %v8853 = vld [vmem:[#allocation2 + $0x32] sm:$0xff]
    %v8854 = vld [vmem:[#allocation2 + $0x3a] sm:$0xff]
    %v8855 = vld [vmem:[#allocation2 + $0x42] sm:$0xff]
    %v8856 = vld [vmem:[#allocation2 + $0x4a] sm:$0xff]
    %v8857 = vld [vmem:[#allocation2 + $0x52] sm:$0xff]
    %v8858 = vld [vmem:[#allocation2 + $0x5a] sm:$0xff]
    %v8859 = vld [vmem:[#allocation2 + $0x62] sm:$0xff]
    %v8860 = vld [vmem:[#allocation2 + $0x6a] sm:$0xff]
    %v8861 = vld [vmem:[#allocation2 + $0x72] sm:$0xff]
    %v8862 = vld [vmem:[#allocation2 + $0x7a] sm:$0xff]
    %v8863 = vld [vmem:[#allocation2 + $0x82] sm:$0xff]
    %v8864 = vld [vmem:[#allocation2 + $0x8a] sm:$0xff]
    %v8865 = vld [vmem:[#allocation2 + $0x92] sm:$0xff]
    %v8866 = vld [vmem:[#allocation2 + $0x9a] sm:$0xff]
    %v8867 = vld [vmem:[#allocation2 + $0xa2] sm:$0xff]
    %v8868 = vld [vmem:[#allocation2 + $0xaa] sm:$0xff]
    %v8869 = vld [vmem:[#allocation2 + $0xb2] sm:$0xff]
    %v8870 = vld [vmem:[#allocation2 + $0xba] sm:$0xff]
    %v8871 = vld [vmem:[#allocation2 + $0xc2] sm:$0xff]
    %v8872 = vld [vmem:[#allocation2 + $0xca] sm:$0xff]
    %v8873 = vld [vmem:[#allocation2 + $0xd2] sm:$0xff]
    %v8874 = vld [vmem:[#allocation2 + $0xda] sm:$0xff]
    %v8875 = vld [vmem:[#allocation2 + $0xe2] sm:$0xff]
    %v8876 = vld [vmem:[#allocation2 + $0xea] sm:$0xff]
    %v8877 = vld [vmem:[#allocation2 + $0xf2] sm:$0xff]
    %v8878 = vld [vmem:[#allocation2 + $0xfa] sm:$0xff]
    %v8879 = vld [vmem:[#allocation2 + $0x102] sm:$0xff]
    %v8880 = vld [vmem:[#allocation2 + $0x10a] sm:$0xff]
    %v8881 = vld [vmem:[#allocation2 + $0x112] sm:$0xff]
    %v8882 = vld [vmem:[#allocation2 + $0x11a] sm:$0xff]
    %v8883 = vld [vmem:[#allocation2 + $0x122] sm:$0xff]
    %v8884 = vld [vmem:[#allocation2 + $0x12a] sm:$0xff]
    %v8885 = vld [vmem:[#allocation2 + $0x132] sm:$0xff]
    %v8886 = vld [vmem:[#allocation2 + $0x13a] sm:$0xff]
    %v8887 = vld [vmem:[#allocation2 + $0x142] sm:$0xff]
    %v8888 = vld [vmem:[#allocation2 + $0x14a] sm:$0xff]
    %v8889 = vld [vmem:[#allocation2 + $0x152] sm:$0xff]
    %v8890 = vld [vmem:[#allocation2 + $0x15a] sm:$0xff]
    %v8891 = vld [vmem:[#allocation2 + $0x162] sm:$0xff]
    %v8892 = vld [vmem:[#allocation2 + $0x16a] sm:$0xff]
    %v8893 = vld [vmem:[#allocation2 + $0x172] sm:$0xff]
    %v8894 = vld [vmem:[#allocation2 + $0x17a] sm:$0xff]
    %v8895 = vld [vmem:[#allocation2 + $0x182] sm:$0xff]
    %v8896 = vld [vmem:[#allocation2 + $0x18a] sm:$0xff]
    %v8897 = vld [vmem:[#allocation2 + $0x192] sm:$0xff]
    %v8898 = vld [vmem:[#allocation2 + $0x19a] sm:$0xff]
    %v8899 = vld [vmem:[#allocation2 + $0x1a2] sm:$0xff]
    %v8900 = vld [vmem:[#allocation2 + $0x1aa] sm:$0xff]
    %v8901 = vld [vmem:[#allocation2 + $0x1b2] sm:$0xff]
    %v8902 = vld [vmem:[#allocation2 + $0x1ba] sm:$0xff]
    %v8903 = vld [vmem:[#allocation2 + $0x1c2] sm:$0xff]
    %v8904 = vld [vmem:[#allocation2 + $0x1ca] sm:$0xff]
    %v8905 = vld [vmem:[#allocation2 + $0x1d2] sm:$0xff]
    %v8906 = vld [vmem:[#allocation2 + $0x1da] sm:$0xff]
    %v8907 = vld [vmem:[#allocation2 + $0x1e2] sm:$0xff]
    %v8908 = vld [vmem:[#allocation2 + $0x1ea] sm:$0xff]
    %v8909 = vld [vmem:[#allocation2 + $0x1f2] sm:$0xff]
    %v8910 = vld [vmem:[#allocation2 + $0x1fa] sm:$0xff]
    %v8911 = vld [vmem:[#allocation2 + $0x202] sm:$0xff]
    %v8912 = vld [vmem:[#allocation2 + $0x20a] sm:$0xff]
    %v8913 = vld [vmem:[#allocation2 + $0x212] sm:$0xff]
    %v8914 = vld [vmem:[#allocation2 + $0x21a] sm:$0xff]
    %v8915 = vld [vmem:[#allocation2 + $0x222] sm:$0xff]
    %v8916 = vld [vmem:[#allocation2 + $0x22a] sm:$0xff]
    %v8917 = vld [vmem:[#allocation2 + $0x232] sm:$0xff]
    %v8918 = vld [vmem:[#allocation2 + $0x23a] sm:$0xff]
    %v8919 = vld [vmem:[#allocation2 + $0x242] sm:$0xff]
    %v8920 = vld [vmem:[#allocation2 + $0x24a] sm:$0xff]
    %v8921 = vld [vmem:[#allocation2 + $0x252] sm:$0xff]
    %v8922 = vld [vmem:[#allocation2 + $0x25a] sm:$0xff]
    %v8923 = vld [vmem:[#allocation2 + $0x262] sm:$0xff]
    %v8924 = vld [vmem:[#allocation2 + $0x26a] sm:$0xff]
    %v8925 = vld [vmem:[#allocation2 + $0x272] sm:$0xff]
    %v8926 = vld [vmem:[#allocation2 + $0x27a] sm:$0xff]
    %v8927 = vld [vmem:[#allocation2 + $0x282] sm:$0xff]
    %v8928 = vld [vmem:[#allocation2 + $0x28a] sm:$0xff]
    %v8929 = vld [vmem:[#allocation2 + $0x292] sm:$0xff]
    %v8930 = vld [vmem:[#allocation2 + $0x29a] sm:$0xff]
    %v8931 = vld [vmem:[#allocation2 + $0x2a2] sm:$0xff]
    %v8932 = vld [vmem:[#allocation2 + $0x2aa] sm:$0xff]
    %v8933 = vpack.c.bf16 %v8853, %v8852
    %v8934 = vpack.c.bf16 %v8855, %v8854
    %v8935 = vpack.c.bf16 %v8857, %v8856
    %v8936 = vpack.c.bf16 %v8859, %v8858
    %v8937 = vpack.c.bf16 %v8861, %v8860
    %v8938 = vpack.c.bf16 %v8863, %v8862
    %v8939 = vpack.c.bf16 %v8865, %v8864
    %v8940 = vpack.c.bf16 %v8867, %v8866
    %v8941 = vpack.c.bf16 %v8869, %v8868
    %v8942 = vpack.c.bf16 %v8871, %v8870
    %v8943 = vpack.c.bf16 %v8873, %v8872
    %v8944 = vpack.c.bf16 %v8875, %v8874
    %v8945 = vpack.c.bf16 %v8877, %v8876
    %v8946 = vpack.c.bf16 %v8879, %v8878
    %v8947 = vpack.c.bf16 %v8881, %v8880
    %v8948 = vpack.c.bf16 %v8883, %v8882
    %v8949 = vpack.c.bf16 %v8885, %v8884
    %v8950 = vpack.c.bf16 %v8887, %v8886
    %v8951 = vpack.c.bf16 %v8889, %v8888
    %v8952 = vpack.c.bf16 %v8891, %v8890
    %v8953 = vpack.c.bf16 %v8893, %v8892
    %v8954 = vpack.c.bf16 %v8895, %v8894
    %v8955 = vpack.c.bf16 %v8897, %v8896
    %v8956 = vpack.c.bf16 %v8899, %v8898
    %v8957 = vpack.c.bf16 %v8901, %v8900
    %v8958 = vpack.c.bf16 %v8903, %v8902
    %v8959 = vpack.c.bf16 %v8905, %v8904
    %v8960 = vpack.c.bf16 %v8907, %v8906
    %v8961 = vpack.c.bf16 %v8909, %v8908
    %v8962 = vpack.c.bf16 %v8911, %v8910
    %v8963 = vpack.c.bf16 %v8913, %v8912
    %v8964 = vpack.c.bf16 %v8915, %v8914
    %v8965 = vpack.c.bf16 %v8917, %v8916
    %v8966 = vpack.c.bf16 %v8919, %v8918
    %v8967 = vpack.c.bf16 %v8921, %v8920
    %v8968 = vpack.c.bf16 %v8923, %v8922
    %v8969 = vpack.c.bf16 %v8925, %v8924
    %v8970 = vpack.c.bf16 %v8927, %v8926
    %v8971 = vpack.c.bf16 %v8929, %v8928
    %v8972 = vpack.c.bf16 %v8931, %v8930
    %v8973 = vpack.c.bf16 %v8932, %v8932
    %s8974 = scalar_lea.vmem [#allocation6], 448
    %v8975 = vld [vmem:[%s8974] sm:$0xf]
    %v8976 = vld [vmem:[%s8974 + $0x4] sm:$0xf]
    %v8977 = vld [vmem:[%s8974 + $0x8] sm:$0xf]
    %v8978 = vld [vmem:[%s8974 + $0xc] sm:$0xf]
    %v8979 = vld [vmem:[%s8974 + $0x10] sm:$0xf]
    %v8980 = vld [vmem:[%s8974 + $0x14] sm:$0xf]
    %v8981 = vld [vmem:[%s8974 + $0x18] sm:$0xf]
    %v8982 = vld [vmem:[%s8974 + $0x1c] sm:$0xf]
    %v8983 = vld [vmem:[%s8974 + $0x20] sm:$0xf]
    %v8984 = vld [vmem:[%s8974 + $0x24] sm:$0xf]
    %v8985 = vld [vmem:[%s8974 + $0x28] sm:$0xf]
    %v8986 = vld [vmem:[%s8974 + $0x2c] sm:$0xf]
    %v8987 = vld [vmem:[%s8974 + $0x30] sm:$0xf]
    %v8988 = vld [vmem:[%s8974 + $0x34] sm:$0xf]
    %v8989 = vld [vmem:[%s8974 + $0x38] sm:$0xf]
    %v8990 = vld [vmem:[%s8974 + $0x3c] sm:$0xf]
    %v9007 = vunpack.c.l.b16 %v8975
    %v9008 = vunpack.c.l.b16 %v8976
    %v9009 = vunpack.c.l.b16 %v8977
    %v9010 = vunpack.c.l.b16 %v8978
    %v9011 = vunpack.c.l.b16 %v8979
    %v9012 = vunpack.c.l.b16 %v8980
    %v9013 = vunpack.c.l.b16 %v8981
    %v9014 = vunpack.c.l.b16 %v8982
    %v9015 = vunpack.c.l.b16 %v8983
    %v9016 = vunpack.c.l.b16 %v8984
    %v9017 = vunpack.c.l.b16 %v8985
    %v9018 = vunpack.c.l.b16 %v8986
    %v9019 = vunpack.c.l.b16 %v8987
    %v9020 = vunpack.c.l.b16 %v8988
    %v9021 = vunpack.c.l.b16 %v8989
    %v9022 = vunpack.c.l.b16 %v8990
    %v9023 = vpack.c.b16 %v9008, %v9007
    %v9024 = vpack.c.b16 %v9010, %v9009
    %v9025 = vpack.c.b16 %v9012, %v9011
    %v9026 = vpack.c.b16 %v9014, %v9013
    %v9027 = vpack.c.b16 %v9016, %v9015
    %v9028 = vpack.c.b16 %v9018, %v9017
    %v9029 = vpack.c.b16 %v9020, %v9019
    %v9030 = vpack.c.b16 %v9022, %v9021
    %9039 = vmatpush.bf16.msra.mxu0 %v9030
    %9040 = vmatpush.bf16.msra.mxu0 %v9029
    %9041 = vmatpush.bf16.msra.mxu0 %v9028
    %9042 = vmatpush.bf16.msra.mxu0 %v9027
    %9043 = vmatpush.bf16.msra.mxu0 %v9026
    %9044 = vmatpush.bf16.msra.mxu0 %v9025
    %9045 = vmatpush.bf16.msra.mxu0 %v9024
    %9046 = vmatpush.bf16.msra.mxu0 %v9023
    %9047 = vmatmul.bf16.gmra.mxu0 %v8933
    %v9048 = vpop.f32.mrf.mxu0
    %v9049 = vadd.f32 0.0, %v9048
    %v9050 = vpop.f32.mrf.mxu0
    %v9051 = vadd.f32 0.0, %v9050
    %9052 = vmatmul.bf16.gmra.mxu0 %v8934
    %v9053 = vpop.f32.mrf.mxu0
    %v9054 = vadd.f32 0.0, %v9053
    %v9055 = vpop.f32.mrf.mxu0
    %v9056 = vadd.f32 0.0, %v9055
    %9057 = vmatmul.bf16.gmra.mxu0 %v8935
    %v9058 = vpop.f32.mrf.mxu0
    %v9059 = vadd.f32 0.0, %v9058
    %v9060 = vpop.f32.mrf.mxu0
    %v9061 = vadd.f32 0.0, %v9060
    %9062 = vmatmul.bf16.gmra.mxu0 %v8936
    %v9063 = vpop.f32.mrf.mxu0
    %v9064 = vadd.f32 0.0, %v9063
    %v9065 = vpop.f32.mrf.mxu0
    %v9066 = vadd.f32 0.0, %v9065
    %9067 = vmatmul.bf16.gmra.mxu0 %v8937
    %v9068 = vpop.f32.mrf.mxu0
    %v9069 = vadd.f32 0.0, %v9068
    %v9070 = vpop.f32.mrf.mxu0
    %v9071 = vadd.f32 0.0, %v9070
    %9072 = vmatmul.bf16.gmra.mxu0 %v8938
    %v9073 = vpop.f32.mrf.mxu0
    %v9074 = vadd.f32 0.0, %v9073
    %v9075 = vpop.f32.mrf.mxu0
    %v9076 = vadd.f32 0.0, %v9075
    %9077 = vmatmul.bf16.gmra.mxu0 %v8939
    %v9078 = vpop.f32.mrf.mxu0
    %v9079 = vadd.f32 0.0, %v9078
    %v9080 = vpop.f32.mrf.mxu0
    %v9081 = vadd.f32 0.0, %v9080
    %9082 = vmatmul.bf16.gmra.mxu0 %v8940
    %v9083 = vpop.f32.mrf.mxu0
    %v9084 = vadd.f32 0.0, %v9083
    %v9085 = vpop.f32.mrf.mxu0
    %v9086 = vadd.f32 0.0, %v9085
    %9087 = vmatmul.bf16.gmra.mxu0 %v8941
    %v9088 = vpop.f32.mrf.mxu0
    %v9089 = vadd.f32 0.0, %v9088
    %v9090 = vpop.f32.mrf.mxu0
    %v9091 = vadd.f32 0.0, %v9090
    %9092 = vmatmul.bf16.gmra.mxu0 %v8942
    %v9093 = vpop.f32.mrf.mxu0
    %v9094 = vadd.f32 0.0, %v9093
    %v9095 = vpop.f32.mrf.mxu0
    %v9096 = vadd.f32 0.0, %v9095
    %9097 = vmatmul.bf16.gmra.mxu0 %v8943
    %v9098 = vpop.f32.mrf.mxu0
    %v9099 = vadd.f32 0.0, %v9098
    %v9100 = vpop.f32.mrf.mxu0
    %v9101 = vadd.f32 0.0, %v9100
    %9102 = vmatmul.bf16.gmra.mxu0 %v8944
    %v9103 = vpop.f32.mrf.mxu0
    %v9104 = vadd.f32 0.0, %v9103
    %v9105 = vpop.f32.mrf.mxu0
    %v9106 = vadd.f32 0.0, %v9105
    %9107 = vmatmul.bf16.gmra.mxu0 %v8945
    %v9108 = vpop.f32.mrf.mxu0
    %v9109 = vadd.f32 0.0, %v9108
    %v9110 = vpop.f32.mrf.mxu0
    %v9111 = vadd.f32 0.0, %v9110
    %9112 = vmatmul.bf16.gmra.mxu0 %v8946
    %v9113 = vpop.f32.mrf.mxu0
    %v9114 = vadd.f32 0.0, %v9113
    %v9115 = vpop.f32.mrf.mxu0
    %v9116 = vadd.f32 0.0, %v9115
    %9117 = vmatmul.bf16.gmra.mxu0 %v8947
    %v9118 = vpop.f32.mrf.mxu0
    %v9119 = vadd.f32 0.0, %v9118
    %v9120 = vpop.f32.mrf.mxu0
    %v9121 = vadd.f32 0.0, %v9120
    %9122 = vmatmul.bf16.gmra.mxu0 %v8948
    %v9123 = vpop.f32.mrf.mxu0
    %v9124 = vadd.f32 0.0, %v9123
    %v9125 = vpop.f32.mrf.mxu0
    %v9126 = vadd.f32 0.0, %v9125
    %9127 = vmatmul.bf16.gmra.mxu0 %v8949
    %v9128 = vpop.f32.mrf.mxu0
    %v9129 = vadd.f32 0.0, %v9128
    %v9130 = vpop.f32.mrf.mxu0
    %v9131 = vadd.f32 0.0, %v9130
    %9132 = vmatmul.bf16.gmra.mxu0 %v8950
    %v9133 = vpop.f32.mrf.mxu0
    %v9134 = vadd.f32 0.0, %v9133
    %v9135 = vpop.f32.mrf.mxu0
    %v9136 = vadd.f32 0.0, %v9135
    %9137 = vmatmul.bf16.gmra.mxu0 %v8951
    %v9138 = vpop.f32.mrf.mxu0
    %v9139 = vadd.f32 0.0, %v9138
    %v9140 = vpop.f32.mrf.mxu0
    %v9141 = vadd.f32 0.0, %v9140
    %9142 = vmatmul.bf16.gmra.mxu0 %v8952
    %v9143 = vpop.f32.mrf.mxu0
    %v9144 = vadd.f32 0.0, %v9143
    %v9145 = vpop.f32.mrf.mxu0
    %v9146 = vadd.f32 0.0, %v9145
    %9147 = vmatmul.bf16.gmra.mxu0 %v8953
    %v9148 = vpop.f32.mrf.mxu0
    %v9149 = vadd.f32 0.0, %v9148
    %v9150 = vpop.f32.mrf.mxu0
    %v9151 = vadd.f32 0.0, %v9150
    %9152 = vmatmul.bf16.gmra.mxu0 %v8954
    %v9153 = vpop.f32.mrf.mxu0
    %v9154 = vadd.f32 0.0, %v9153
    %v9155 = vpop.f32.mrf.mxu0
    %v9156 = vadd.f32 0.0, %v9155
    %9157 = vmatmul.bf16.gmra.mxu0 %v8955
    %v9158 = vpop.f32.mrf.mxu0
    %v9159 = vadd.f32 0.0, %v9158
    %v9160 = vpop.f32.mrf.mxu0
    %v9161 = vadd.f32 0.0, %v9160
    %9162 = vmatmul.bf16.gmra.mxu0 %v8956
    %v9163 = vpop.f32.mrf.mxu0
    %v9164 = vadd.f32 0.0, %v9163
    %v9165 = vpop.f32.mrf.mxu0
    %v9166 = vadd.f32 0.0, %v9165
    %9167 = vmatmul.bf16.gmra.mxu0 %v8957
    %v9168 = vpop.f32.mrf.mxu0
    %v9169 = vadd.f32 0.0, %v9168
    %v9170 = vpop.f32.mrf.mxu0
    %v9171 = vadd.f32 0.0, %v9170
    %9172 = vmatmul.bf16.gmra.mxu0 %v8958
    %v9173 = vpop.f32.mrf.mxu0
    %v9174 = vadd.f32 0.0, %v9173
    %v9175 = vpop.f32.mrf.mxu0
    %v9176 = vadd.f32 0.0, %v9175
    %9177 = vmatmul.bf16.gmra.mxu0 %v8959
    %v9178 = vpop.f32.mrf.mxu0
    %v9179 = vadd.f32 0.0, %v9178
    %v9180 = vpop.f32.mrf.mxu0
    %v9181 = vadd.f32 0.0, %v9180
    %9182 = vmatmul.bf16.gmra.mxu0 %v8960
    %v9183 = vpop.f32.mrf.mxu0
    %v9184 = vadd.f32 0.0, %v9183
    %v9185 = vpop.f32.mrf.mxu0
    %v9186 = vadd.f32 0.0, %v9185
    %9187 = vmatmul.bf16.gmra.mxu0 %v8961
    %v9188 = vpop.f32.mrf.mxu0
    %v9189 = vadd.f32 0.0, %v9188
    %v9190 = vpop.f32.mrf.mxu0
    %v9191 = vadd.f32 0.0, %v9190
    %9192 = vmatmul.bf16.gmra.mxu0 %v8962
    %v9193 = vpop.f32.mrf.mxu0
    %v9194 = vadd.f32 0.0, %v9193
    %v9195 = vpop.f32.mrf.mxu0
    %v9196 = vadd.f32 0.0, %v9195
    %9197 = vmatmul.bf16.gmra.mxu0 %v8963
    %v9198 = vpop.f32.mrf.mxu0
    %v9199 = vadd.f32 0.0, %v9198
    %v9200 = vpop.f32.mrf.mxu0
    %v9201 = vadd.f32 0.0, %v9200
    %9202 = vmatmul.bf16.gmra.mxu0 %v8964
    %v9203 = vpop.f32.mrf.mxu0
    %v9204 = vadd.f32 0.0, %v9203
    %v9205 = vpop.f32.mrf.mxu0
    %v9206 = vadd.f32 0.0, %v9205
    %9207 = vmatmul.bf16.gmra.mxu0 %v8965
    %v9208 = vpop.f32.mrf.mxu0
    %v9209 = vadd.f32 0.0, %v9208
    %v9210 = vpop.f32.mrf.mxu0
    %v9211 = vadd.f32 0.0, %v9210
    %9212 = vmatmul.bf16.gmra.mxu0 %v8966
    %v9213 = vpop.f32.mrf.mxu0
    %v9214 = vadd.f32 0.0, %v9213
    %v9215 = vpop.f32.mrf.mxu0
    %v9216 = vadd.f32 0.0, %v9215
    %9217 = vmatmul.bf16.gmra.mxu0 %v8967
    %v9218 = vpop.f32.mrf.mxu0
    %v9219 = vadd.f32 0.0, %v9218
    %v9220 = vpop.f32.mrf.mxu0
    %v9221 = vadd.f32 0.0, %v9220
    %9222 = vmatmul.bf16.gmra.mxu0 %v8968
    %v9223 = vpop.f32.mrf.mxu0
    %v9224 = vadd.f32 0.0, %v9223
    %v9225 = vpop.f32.mrf.mxu0
    %v9226 = vadd.f32 0.0, %v9225
    %9227 = vmatmul.bf16.gmra.mxu0 %v8969
    %v9228 = vpop.f32.mrf.mxu0
    %v9229 = vadd.f32 0.0, %v9228
    %v9230 = vpop.f32.mrf.mxu0
    %v9231 = vadd.f32 0.0, %v9230
    %9232 = vmatmul.bf16.gmra.mxu0 %v8970
    %v9233 = vpop.f32.mrf.mxu0
    %v9234 = vadd.f32 0.0, %v9233
    %v9235 = vpop.f32.mrf.mxu0
    %v9236 = vadd.f32 0.0, %v9235
    %9237 = vmatmul.bf16.gmra.mxu0 %v8971
    %v9238 = vpop.f32.mrf.mxu0
    %v9239 = vadd.f32 0.0, %v9238
    %v9240 = vpop.f32.mrf.mxu0
    %v9241 = vadd.f32 0.0, %v9240
    %9242 = vmatmul.bf16.gmra.mxu0 %v8972
    %v9243 = vpop.f32.mrf.mxu0
    %v9244 = vadd.f32 0.0, %v9243
    %v9245 = vpop.f32.mrf.mxu0
    %v9246 = vadd.f32 0.0, %v9245
    %9247 = vmatmul.bf16.gmra.mxu0 %v8973
    %v9248 = vpop.f32.mrf.mxu0
    %v9249 = vadd.f32 0.0, %v9248
    %v9250 = vpop.f32.mrf.mxu0
    %9251 = vdwg.mxu0
    %v9252 = vadd.f32 %v8771, %v9049
    %v9253 = vadd.f32 %v8772, %v9051
    %v9254 = vadd.f32 %v8773, %v9054
    %v9255 = vadd.f32 %v8774, %v9056
    %v9256 = vadd.f32 %v8775, %v9059
    %v9257 = vadd.f32 %v8776, %v9061
    %v9258 = vadd.f32 %v8777, %v9064
    %v9259 = vadd.f32 %v8778, %v9066
    %v9260 = vadd.f32 %v8779, %v9069
    %v9261 = vadd.f32 %v8780, %v9071
    %v9262 = vadd.f32 %v8781, %v9074
    %v9263 = vadd.f32 %v8782, %v9076
    %v9264 = vadd.f32 %v8783, %v9079
    %v9265 = vadd.f32 %v8784, %v9081
    %v9266 = vadd.f32 %v8785, %v9084
    %v9267 = vadd.f32 %v8786, %v9086
    %v9268 = vadd.f32 %v8787, %v9089
    %v9269 = vadd.f32 %v8788, %v9091
    %v9270 = vadd.f32 %v8789, %v9094
    %v9271 = vadd.f32 %v8790, %v9096
    %v9272 = vadd.f32 %v8791, %v9099
    %v9273 = vadd.f32 %v8792, %v9101
    %v9274 = vadd.f32 %v8793, %v9104
    %v9275 = vadd.f32 %v8794, %v9106
    %v9276 = vadd.f32 %v8795, %v9109
    %v9277 = vadd.f32 %v8796, %v9111
    %v9278 = vadd.f32 %v8797, %v9114
    %v9279 = vadd.f32 %v8798, %v9116
    %v9280 = vadd.f32 %v8799, %v9119
    %v9281 = vadd.f32 %v8800, %v9121
    %v9282 = vadd.f32 %v8801, %v9124
    %v9283 = vadd.f32 %v8802, %v9126
    %v9284 = vadd.f32 %v8803, %v9129
    %v9285 = vadd.f32 %v8804, %v9131
    %v9286 = vadd.f32 %v8805, %v9134
    %v9287 = vadd.f32 %v8806, %v9136
    %v9288 = vadd.f32 %v8807, %v9139
    %v9289 = vadd.f32 %v8808, %v9141
    %v9290 = vadd.f32 %v8809, %v9144
    %v9291 = vadd.f32 %v8810, %v9146
    %v9292 = vadd.f32 %v8811, %v9149
    %v9293 = vadd.f32 %v8812, %v9151
    %v9294 = vadd.f32 %v8813, %v9154
    %v9295 = vadd.f32 %v8814, %v9156
    %v9296 = vadd.f32 %v8815, %v9159
    %v9297 = vadd.f32 %v8816, %v9161
    %v9298 = vadd.f32 %v8817, %v9164
    %v9299 = vadd.f32 %v8818, %v9166
    %v9300 = vadd.f32 %v8819, %v9169
    %v9301 = vadd.f32 %v8820, %v9171
    %v9302 = vadd.f32 %v8821, %v9174
    %v9303 = vadd.f32 %v8822, %v9176
    %v9304 = vadd.f32 %v8823, %v9179
    %v9305 = vadd.f32 %v8824, %v9181
    %v9306 = vadd.f32 %v8825, %v9184
    %v9307 = vadd.f32 %v8826, %v9186
    %v9308 = vadd.f32 %v8827, %v9189
    %v9309 = vadd.f32 %v8828, %v9191
    %v9310 = vadd.f32 %v8829, %v9194
    %v9311 = vadd.f32 %v8830, %v9196
    %v9312 = vadd.f32 %v8831, %v9199
    %v9313 = vadd.f32 %v8832, %v9201
    %v9314 = vadd.f32 %v8833, %v9204
    %v9315 = vadd.f32 %v8834, %v9206
    %v9316 = vadd.f32 %v8835, %v9209
    %v9317 = vadd.f32 %v8836, %v9211
    %v9318 = vadd.f32 %v8837, %v9214
    %v9319 = vadd.f32 %v8838, %v9216
    %v9320 = vadd.f32 %v8839, %v9219
    %v9321 = vadd.f32 %v8840, %v9221
    %v9322 = vadd.f32 %v8841, %v9224
    %v9323 = vadd.f32 %v8842, %v9226
    %v9324 = vadd.f32 %v8843, %v9229
    %v9325 = vadd.f32 %v8844, %v9231
    %v9326 = vadd.f32 %v8845, %v9234
    %v9327 = vadd.f32 %v8846, %v9236
    %v9328 = vadd.f32 %v8847, %v9239
    %v9329 = vadd.f32 %v8848, %v9241
    %v9330 = vadd.f32 %v8849, %v9244
    %v9331 = vadd.f32 %v8850, %v9246
    %v9332 = vadd.f32 %v8851, %v9249
    %v9333 = vld [vmem:[#allocation2 + $0x2b] sm:$0xff]
    %v9334 = vld [vmem:[#allocation2 + $0x33] sm:$0xff]
    %v9335 = vld [vmem:[#allocation2 + $0x3b] sm:$0xff]
    %v9336 = vld [vmem:[#allocation2 + $0x43] sm:$0xff]
    %v9337 = vld [vmem:[#allocation2 + $0x4b] sm:$0xff]
    %v9338 = vld [vmem:[#allocation2 + $0x53] sm:$0xff]
    %v9339 = vld [vmem:[#allocation2 + $0x5b] sm:$0xff]
    %v9340 = vld [vmem:[#allocation2 + $0x63] sm:$0xff]
    %v9341 = vld [vmem:[#allocation2 + $0x6b] sm:$0xff]
    %v9342 = vld [vmem:[#allocation2 + $0x73] sm:$0xff]
    %v9343 = vld [vmem:[#allocation2 + $0x7b] sm:$0xff]
    %v9344 = vld [vmem:[#allocation2 + $0x83] sm:$0xff]
    %v9345 = vld [vmem:[#allocation2 + $0x8b] sm:$0xff]
    %v9346 = vld [vmem:[#allocation2 + $0x93] sm:$0xff]
    %v9347 = vld [vmem:[#allocation2 + $0x9b] sm:$0xff]
    %v9348 = vld [vmem:[#allocation2 + $0xa3] sm:$0xff]
    %v9349 = vld [vmem:[#allocation2 + $0xab] sm:$0xff]
    %v9350 = vld [vmem:[#allocation2 + $0xb3] sm:$0xff]
    %v9351 = vld [vmem:[#allocation2 + $0xbb] sm:$0xff]
    %v9352 = vld [vmem:[#allocation2 + $0xc3] sm:$0xff]
    %v9353 = vld [vmem:[#allocation2 + $0xcb] sm:$0xff]
    %v9354 = vld [vmem:[#allocation2 + $0xd3] sm:$0xff]
    %v9355 = vld [vmem:[#allocation2 + $0xdb] sm:$0xff]
    %v9356 = vld [vmem:[#allocation2 + $0xe3] sm:$0xff]
    %v9357 = vld [vmem:[#allocation2 + $0xeb] sm:$0xff]
    %v9358 = vld [vmem:[#allocation2 + $0xf3] sm:$0xff]
    %v9359 = vld [vmem:[#allocation2 + $0xfb] sm:$0xff]
    %v9360 = vld [vmem:[#allocation2 + $0x103] sm:$0xff]
    %v9361 = vld [vmem:[#allocation2 + $0x10b] sm:$0xff]
    %v9362 = vld [vmem:[#allocation2 + $0x113] sm:$0xff]
    %v9363 = vld [vmem:[#allocation2 + $0x11b] sm:$0xff]
    %v9364 = vld [vmem:[#allocation2 + $0x123] sm:$0xff]
    %v9365 = vld [vmem:[#allocation2 + $0x12b] sm:$0xff]
    %v9366 = vld [vmem:[#allocation2 + $0x133] sm:$0xff]
    %v9367 = vld [vmem:[#allocation2 + $0x13b] sm:$0xff]
    %v9368 = vld [vmem:[#allocation2 + $0x143] sm:$0xff]
    %v9369 = vld [vmem:[#allocation2 + $0x14b] sm:$0xff]
    %v9370 = vld [vmem:[#allocation2 + $0x153] sm:$0xff]
    %v9371 = vld [vmem:[#allocation2 + $0x15b] sm:$0xff]
    %v9372 = vld [vmem:[#allocation2 + $0x163] sm:$0xff]
    %v9373 = vld [vmem:[#allocation2 + $0x16b] sm:$0xff]
    %v9374 = vld [vmem:[#allocation2 + $0x173] sm:$0xff]
    %v9375 = vld [vmem:[#allocation2 + $0x17b] sm:$0xff]
    %v9376 = vld [vmem:[#allocation2 + $0x183] sm:$0xff]
    %v9377 = vld [vmem:[#allocation2 + $0x18b] sm:$0xff]
    %v9378 = vld [vmem:[#allocation2 + $0x193] sm:$0xff]
    %v9379 = vld [vmem:[#allocation2 + $0x19b] sm:$0xff]
    %v9380 = vld [vmem:[#allocation2 + $0x1a3] sm:$0xff]
    %v9381 = vld [vmem:[#allocation2 + $0x1ab] sm:$0xff]
    %v9382 = vld [vmem:[#allocation2 + $0x1b3] sm:$0xff]
    %v9383 = vld [vmem:[#allocation2 + $0x1bb] sm:$0xff]
    %v9384 = vld [vmem:[#allocation2 + $0x1c3] sm:$0xff]
    %v9385 = vld [vmem:[#allocation2 + $0x1cb] sm:$0xff]
    %v9386 = vld [vmem:[#allocation2 + $0x1d3] sm:$0xff]
    %v9387 = vld [vmem:[#allocation2 + $0x1db] sm:$0xff]
    %v9388 = vld [vmem:[#allocation2 + $0x1e3] sm:$0xff]
    %v9389 = vld [vmem:[#allocation2 + $0x1eb] sm:$0xff]
    %v9390 = vld [vmem:[#allocation2 + $0x1f3] sm:$0xff]
    %v9391 = vld [vmem:[#allocation2 + $0x1fb] sm:$0xff]
    %v9392 = vld [vmem:[#allocation2 + $0x203] sm:$0xff]
    %v9393 = vld [vmem:[#allocation2 + $0x20b] sm:$0xff]
    %v9394 = vld [vmem:[#allocation2 + $0x213] sm:$0xff]
    %v9395 = vld [vmem:[#allocation2 + $0x21b] sm:$0xff]
    %v9396 = vld [vmem:[#allocation2 + $0x223] sm:$0xff]
    %v9397 = vld [vmem:[#allocation2 + $0x22b] sm:$0xff]
    %v9398 = vld [vmem:[#allocation2 + $0x233] sm:$0xff]
    %v9399 = vld [vmem:[#allocation2 + $0x23b] sm:$0xff]
    %v9400 = vld [vmem:[#allocation2 + $0x243] sm:$0xff]
    %v9401 = vld [vmem:[#allocation2 + $0x24b] sm:$0xff]
    %v9402 = vld [vmem:[#allocation2 + $0x253] sm:$0xff]
    %v9403 = vld [vmem:[#allocation2 + $0x25b] sm:$0xff]
    %v9404 = vld [vmem:[#allocation2 + $0x263] sm:$0xff]
    %v9405 = vld [vmem:[#allocation2 + $0x26b] sm:$0xff]
    %v9406 = vld [vmem:[#allocation2 + $0x273] sm:$0xff]
    %v9407 = vld [vmem:[#allocation2 + $0x27b] sm:$0xff]
    %v9408 = vld [vmem:[#allocation2 + $0x283] sm:$0xff]
    %v9409 = vld [vmem:[#allocation2 + $0x28b] sm:$0xff]
    %v9410 = vld [vmem:[#allocation2 + $0x293] sm:$0xff]
    %v9411 = vld [vmem:[#allocation2 + $0x29b] sm:$0xff]
    %v9412 = vld [vmem:[#allocation2 + $0x2a3] sm:$0xff]
    %v9413 = vld [vmem:[#allocation2 + $0x2ab] sm:$0xff]
    %v9414 = vpack.c.bf16 %v9334, %v9333
    %v9415 = vpack.c.bf16 %v9336, %v9335
    %v9416 = vpack.c.bf16 %v9338, %v9337
    %v9417 = vpack.c.bf16 %v9340, %v9339
    %v9418 = vpack.c.bf16 %v9342, %v9341
    %v9419 = vpack.c.bf16 %v9344, %v9343
    %v9420 = vpack.c.bf16 %v9346, %v9345
    %v9421 = vpack.c.bf16 %v9348, %v9347
    %v9422 = vpack.c.bf16 %v9350, %v9349
    %v9423 = vpack.c.bf16 %v9352, %v9351
    %v9424 = vpack.c.bf16 %v9354, %v9353
    %v9425 = vpack.c.bf16 %v9356, %v9355
    %v9426 = vpack.c.bf16 %v9358, %v9357
    %v9427 = vpack.c.bf16 %v9360, %v9359
    %v9428 = vpack.c.bf16 %v9362, %v9361
    %v9429 = vpack.c.bf16 %v9364, %v9363
    %v9430 = vpack.c.bf16 %v9366, %v9365
    %v9431 = vpack.c.bf16 %v9368, %v9367
    %v9432 = vpack.c.bf16 %v9370, %v9369
    %v9433 = vpack.c.bf16 %v9372, %v9371
    %v9434 = vpack.c.bf16 %v9374, %v9373
    %v9435 = vpack.c.bf16 %v9376, %v9375
    %v9436 = vpack.c.bf16 %v9378, %v9377
    %v9437 = vpack.c.bf16 %v9380, %v9379
    %v9438 = vpack.c.bf16 %v9382, %v9381
    %v9439 = vpack.c.bf16 %v9384, %v9383
    %v9440 = vpack.c.bf16 %v9386, %v9385
    %v9441 = vpack.c.bf16 %v9388, %v9387
    %v9442 = vpack.c.bf16 %v9390, %v9389
    %v9443 = vpack.c.bf16 %v9392, %v9391
    %v9444 = vpack.c.bf16 %v9394, %v9393
    %v9445 = vpack.c.bf16 %v9396, %v9395
    %v9446 = vpack.c.bf16 %v9398, %v9397
    %v9447 = vpack.c.bf16 %v9400, %v9399
    %v9448 = vpack.c.bf16 %v9402, %v9401
    %v9449 = vpack.c.bf16 %v9404, %v9403
    %v9450 = vpack.c.bf16 %v9406, %v9405
    %v9451 = vpack.c.bf16 %v9408, %v9407
    %v9452 = vpack.c.bf16 %v9410, %v9409
    %v9453 = vpack.c.bf16 %v9412, %v9411
    %v9454 = vpack.c.bf16 %v9413, %v9413
    %s9455 = scalar_lea.vmem [#allocation6], 512
    %v9456 = vld [vmem:[%s9455] sm:$0xf]
    %v9457 = vld [vmem:[%s9455 + $0x4] sm:$0xf]
    %v9458 = vld [vmem:[%s9455 + $0x8] sm:$0xf]
    %v9459 = vld [vmem:[%s9455 + $0xc] sm:$0xf]
    %v9460 = vld [vmem:[%s9455 + $0x10] sm:$0xf]
    %v9461 = vld [vmem:[%s9455 + $0x14] sm:$0xf]
    %v9462 = vld [vmem:[%s9455 + $0x18] sm:$0xf]
    %v9463 = vld [vmem:[%s9455 + $0x1c] sm:$0xf]
    %v9464 = vld [vmem:[%s9455 + $0x20] sm:$0xf]
    %v9465 = vld [vmem:[%s9455 + $0x24] sm:$0xf]
    %v9466 = vld [vmem:[%s9455 + $0x28] sm:$0xf]
    %v9467 = vld [vmem:[%s9455 + $0x2c] sm:$0xf]
    %v9468 = vld [vmem:[%s9455 + $0x30] sm:$0xf]
    %v9469 = vld [vmem:[%s9455 + $0x34] sm:$0xf]
    %v9470 = vld [vmem:[%s9455 + $0x38] sm:$0xf]
    %v9471 = vld [vmem:[%s9455 + $0x3c] sm:$0xf]
    %v9488 = vunpack.c.l.b16 %v9456
    %v9489 = vunpack.c.l.b16 %v9457
    %v9490 = vunpack.c.l.b16 %v9458
    %v9491 = vunpack.c.l.b16 %v9459
    %v9492 = vunpack.c.l.b16 %v9460
    %v9493 = vunpack.c.l.b16 %v9461
    %v9494 = vunpack.c.l.b16 %v9462
    %v9495 = vunpack.c.l.b16 %v9463
    %v9496 = vunpack.c.l.b16 %v9464
    %v9497 = vunpack.c.l.b16 %v9465
    %v9498 = vunpack.c.l.b16 %v9466
    %v9499 = vunpack.c.l.b16 %v9467
    %v9500 = vunpack.c.l.b16 %v9468
    %v9501 = vunpack.c.l.b16 %v9469
    %v9502 = vunpack.c.l.b16 %v9470
    %v9503 = vunpack.c.l.b16 %v9471
    %v9504 = vpack.c.b16 %v9489, %v9488
    %v9505 = vpack.c.b16 %v9491, %v9490
    %v9506 = vpack.c.b16 %v9493, %v9492
    %v9507 = vpack.c.b16 %v9495, %v9494
    %v9508 = vpack.c.b16 %v9497, %v9496
    %v9509 = vpack.c.b16 %v9499, %v9498
    %v9510 = vpack.c.b16 %v9501, %v9500
    %v9511 = vpack.c.b16 %v9503, %v9502
    %9520 = vmatpush.bf16.msra.mxu0 %v9511
    %9521 = vmatpush.bf16.msra.mxu0 %v9510
    %9522 = vmatpush.bf16.msra.mxu0 %v9509
    %9523 = vmatpush.bf16.msra.mxu0 %v9508
    %9524 = vmatpush.bf16.msra.mxu0 %v9507
    %9525 = vmatpush.bf16.msra.mxu0 %v9506
    %9526 = vmatpush.bf16.msra.mxu0 %v9505
    %9527 = vmatpush.bf16.msra.mxu0 %v9504
    %9528 = vmatmul.bf16.gmra.mxu0 %v9414
    %v9529 = vpop.f32.mrf.mxu0
    %v9530 = vadd.f32 0.0, %v9529
    %v9531 = vpop.f32.mrf.mxu0
    %v9532 = vadd.f32 0.0, %v9531
    %9533 = vmatmul.bf16.gmra.mxu0 %v9415
    %v9534 = vpop.f32.mrf.mxu0
    %v9535 = vadd.f32 0.0, %v9534
    %v9536 = vpop.f32.mrf.mxu0
    %v9537 = vadd.f32 0.0, %v9536
    %9538 = vmatmul.bf16.gmra.mxu0 %v9416
    %v9539 = vpop.f32.mrf.mxu0
    %v9540 = vadd.f32 0.0, %v9539
    %v9541 = vpop.f32.mrf.mxu0
    %v9542 = vadd.f32 0.0, %v9541
    %9543 = vmatmul.bf16.gmra.mxu0 %v9417
    %v9544 = vpop.f32.mrf.mxu0
    %v9545 = vadd.f32 0.0, %v9544
    %v9546 = vpop.f32.mrf.mxu0
    %v9547 = vadd.f32 0.0, %v9546
    %9548 = vmatmul.bf16.gmra.mxu0 %v9418
    %v9549 = vpop.f32.mrf.mxu0
    %v9550 = vadd.f32 0.0, %v9549
    %v9551 = vpop.f32.mrf.mxu0
    %v9552 = vadd.f32 0.0, %v9551
    %9553 = vmatmul.bf16.gmra.mxu0 %v9419
    %v9554 = vpop.f32.mrf.mxu0
    %v9555 = vadd.f32 0.0, %v9554
    %v9556 = vpop.f32.mrf.mxu0
    %v9557 = vadd.f32 0.0, %v9556
    %9558 = vmatmul.bf16.gmra.mxu0 %v9420
    %v9559 = vpop.f32.mrf.mxu0
    %v9560 = vadd.f32 0.0, %v9559
    %v9561 = vpop.f32.mrf.mxu0
    %v9562 = vadd.f32 0.0, %v9561
    %9563 = vmatmul.bf16.gmra.mxu0 %v9421
    %v9564 = vpop.f32.mrf.mxu0
    %v9565 = vadd.f32 0.0, %v9564
    %v9566 = vpop.f32.mrf.mxu0
    %v9567 = vadd.f32 0.0, %v9566
    %9568 = vmatmul.bf16.gmra.mxu0 %v9422
    %v9569 = vpop.f32.mrf.mxu0
    %v9570 = vadd.f32 0.0, %v9569
    %v9571 = vpop.f32.mrf.mxu0
    %v9572 = vadd.f32 0.0, %v9571
    %9573 = vmatmul.bf16.gmra.mxu0 %v9423
    %v9574 = vpop.f32.mrf.mxu0
    %v9575 = vadd.f32 0.0, %v9574
    %v9576 = vpop.f32.mrf.mxu0
    %v9577 = vadd.f32 0.0, %v9576
    %9578 = vmatmul.bf16.gmra.mxu0 %v9424
    %v9579 = vpop.f32.mrf.mxu0
    %v9580 = vadd.f32 0.0, %v9579
    %v9581 = vpop.f32.mrf.mxu0
    %v9582 = vadd.f32 0.0, %v9581
    %9583 = vmatmul.bf16.gmra.mxu0 %v9425
    %v9584 = vpop.f32.mrf.mxu0
    %v9585 = vadd.f32 0.0, %v9584
    %v9586 = vpop.f32.mrf.mxu0
    %v9587 = vadd.f32 0.0, %v9586
    %9588 = vmatmul.bf16.gmra.mxu0 %v9426
    %v9589 = vpop.f32.mrf.mxu0
    %v9590 = vadd.f32 0.0, %v9589
    %v9591 = vpop.f32.mrf.mxu0
    %v9592 = vadd.f32 0.0, %v9591
    %9593 = vmatmul.bf16.gmra.mxu0 %v9427
    %v9594 = vpop.f32.mrf.mxu0
    %v9595 = vadd.f32 0.0, %v9594
    %v9596 = vpop.f32.mrf.mxu0
    %v9597 = vadd.f32 0.0, %v9596
    %9598 = vmatmul.bf16.gmra.mxu0 %v9428
    %v9599 = vpop.f32.mrf.mxu0
    %v9600 = vadd.f32 0.0, %v9599
    %v9601 = vpop.f32.mrf.mxu0
    %v9602 = vadd.f32 0.0, %v9601
    %9603 = vmatmul.bf16.gmra.mxu0 %v9429
    %v9604 = vpop.f32.mrf.mxu0
    %v9605 = vadd.f32 0.0, %v9604
    %v9606 = vpop.f32.mrf.mxu0
    %v9607 = vadd.f32 0.0, %v9606
    %9608 = vmatmul.bf16.gmra.mxu0 %v9430
    %v9609 = vpop.f32.mrf.mxu0
    %v9610 = vadd.f32 0.0, %v9609
    %v9611 = vpop.f32.mrf.mxu0
    %v9612 = vadd.f32 0.0, %v9611
    %9613 = vmatmul.bf16.gmra.mxu0 %v9431
    %v9614 = vpop.f32.mrf.mxu0
    %v9615 = vadd.f32 0.0, %v9614
    %v9616 = vpop.f32.mrf.mxu0
    %v9617 = vadd.f32 0.0, %v9616
    %9618 = vmatmul.bf16.gmra.mxu0 %v9432
    %v9619 = vpop.f32.mrf.mxu0
    %v9620 = vadd.f32 0.0, %v9619
    %v9621 = vpop.f32.mrf.mxu0
    %v9622 = vadd.f32 0.0, %v9621
    %9623 = vmatmul.bf16.gmra.mxu0 %v9433
    %v9624 = vpop.f32.mrf.mxu0
    %v9625 = vadd.f32 0.0, %v9624
    %v9626 = vpop.f32.mrf.mxu0
    %v9627 = vadd.f32 0.0, %v9626
    %9628 = vmatmul.bf16.gmra.mxu0 %v9434
    %v9629 = vpop.f32.mrf.mxu0
    %v9630 = vadd.f32 0.0, %v9629
    %v9631 = vpop.f32.mrf.mxu0
    %v9632 = vadd.f32 0.0, %v9631
    %9633 = vmatmul.bf16.gmra.mxu0 %v9435
    %v9634 = vpop.f32.mrf.mxu0
    %v9635 = vadd.f32 0.0, %v9634
    %v9636 = vpop.f32.mrf.mxu0
    %v9637 = vadd.f32 0.0, %v9636
    %9638 = vmatmul.bf16.gmra.mxu0 %v9436
    %v9639 = vpop.f32.mrf.mxu0
    %v9640 = vadd.f32 0.0, %v9639
    %v9641 = vpop.f32.mrf.mxu0
    %v9642 = vadd.f32 0.0, %v9641
    %9643 = vmatmul.bf16.gmra.mxu0 %v9437
    %v9644 = vpop.f32.mrf.mxu0
    %v9645 = vadd.f32 0.0, %v9644
    %v9646 = vpop.f32.mrf.mxu0
    %v9647 = vadd.f32 0.0, %v9646
    %9648 = vmatmul.bf16.gmra.mxu0 %v9438
    %v9649 = vpop.f32.mrf.mxu0
    %v9650 = vadd.f32 0.0, %v9649
    %v9651 = vpop.f32.mrf.mxu0
    %v9652 = vadd.f32 0.0, %v9651
    %9653 = vmatmul.bf16.gmra.mxu0 %v9439
    %v9654 = vpop.f32.mrf.mxu0
    %v9655 = vadd.f32 0.0, %v9654
    %v9656 = vpop.f32.mrf.mxu0
    %v9657 = vadd.f32 0.0, %v9656
    %9658 = vmatmul.bf16.gmra.mxu0 %v9440
    %v9659 = vpop.f32.mrf.mxu0
    %v9660 = vadd.f32 0.0, %v9659
    %v9661 = vpop.f32.mrf.mxu0
    %v9662 = vadd.f32 0.0, %v9661
    %9663 = vmatmul.bf16.gmra.mxu0 %v9441
    %v9664 = vpop.f32.mrf.mxu0
    %v9665 = vadd.f32 0.0, %v9664
    %v9666 = vpop.f32.mrf.mxu0
    %v9667 = vadd.f32 0.0, %v9666
    %9668 = vmatmul.bf16.gmra.mxu0 %v9442
    %v9669 = vpop.f32.mrf.mxu0
    %v9670 = vadd.f32 0.0, %v9669
    %v9671 = vpop.f32.mrf.mxu0
    %v9672 = vadd.f32 0.0, %v9671
    %9673 = vmatmul.bf16.gmra.mxu0 %v9443
    %v9674 = vpop.f32.mrf.mxu0
    %v9675 = vadd.f32 0.0, %v9674
    %v9676 = vpop.f32.mrf.mxu0
    %v9677 = vadd.f32 0.0, %v9676
    %9678 = vmatmul.bf16.gmra.mxu0 %v9444
    %v9679 = vpop.f32.mrf.mxu0
    %v9680 = vadd.f32 0.0, %v9679
    %v9681 = vpop.f32.mrf.mxu0
    %v9682 = vadd.f32 0.0, %v9681
    %9683 = vmatmul.bf16.gmra.mxu0 %v9445
    %v9684 = vpop.f32.mrf.mxu0
    %v9685 = vadd.f32 0.0, %v9684
    %v9686 = vpop.f32.mrf.mxu0
    %v9687 = vadd.f32 0.0, %v9686
    %9688 = vmatmul.bf16.gmra.mxu0 %v9446
    %v9689 = vpop.f32.mrf.mxu0
    %v9690 = vadd.f32 0.0, %v9689
    %v9691 = vpop.f32.mrf.mxu0
    %v9692 = vadd.f32 0.0, %v9691
    %9693 = vmatmul.bf16.gmra.mxu0 %v9447
    %v9694 = vpop.f32.mrf.mxu0
    %v9695 = vadd.f32 0.0, %v9694
    %v9696 = vpop.f32.mrf.mxu0
    %v9697 = vadd.f32 0.0, %v9696
    %9698 = vmatmul.bf16.gmra.mxu0 %v9448
    %v9699 = vpop.f32.mrf.mxu0
    %v9700 = vadd.f32 0.0, %v9699
    %v9701 = vpop.f32.mrf.mxu0
    %v9702 = vadd.f32 0.0, %v9701
    %9703 = vmatmul.bf16.gmra.mxu0 %v9449
    %v9704 = vpop.f32.mrf.mxu0
    %v9705 = vadd.f32 0.0, %v9704
    %v9706 = vpop.f32.mrf.mxu0
    %v9707 = vadd.f32 0.0, %v9706
    %9708 = vmatmul.bf16.gmra.mxu0 %v9450
    %v9709 = vpop.f32.mrf.mxu0
    %v9710 = vadd.f32 0.0, %v9709
    %v9711 = vpop.f32.mrf.mxu0
    %v9712 = vadd.f32 0.0, %v9711
    %9713 = vmatmul.bf16.gmra.mxu0 %v9451
    %v9714 = vpop.f32.mrf.mxu0
    %v9715 = vadd.f32 0.0, %v9714
    %v9716 = vpop.f32.mrf.mxu0
    %v9717 = vadd.f32 0.0, %v9716
    %9718 = vmatmul.bf16.gmra.mxu0 %v9452
    %v9719 = vpop.f32.mrf.mxu0
    %v9720 = vadd.f32 0.0, %v9719
    %v9721 = vpop.f32.mrf.mxu0
    %v9722 = vadd.f32 0.0, %v9721
    %9723 = vmatmul.bf16.gmra.mxu0 %v9453
    %v9724 = vpop.f32.mrf.mxu0
    %v9725 = vadd.f32 0.0, %v9724
    %v9726 = vpop.f32.mrf.mxu0
    %v9727 = vadd.f32 0.0, %v9726
    %9728 = vmatmul.bf16.gmra.mxu0 %v9454
    %v9729 = vpop.f32.mrf.mxu0
    %v9730 = vadd.f32 0.0, %v9729
    %v9731 = vpop.f32.mrf.mxu0
    %9732 = vdwg.mxu0
    %v9733 = vadd.f32 %v9252, %v9530
    %v9734 = vadd.f32 %v9253, %v9532
    %v9735 = vadd.f32 %v9254, %v9535
    %v9736 = vadd.f32 %v9255, %v9537
    %v9737 = vadd.f32 %v9256, %v9540
    %v9738 = vadd.f32 %v9257, %v9542
    %v9739 = vadd.f32 %v9258, %v9545
    %v9740 = vadd.f32 %v9259, %v9547
    %v9741 = vadd.f32 %v9260, %v9550
    %v9742 = vadd.f32 %v9261, %v9552
    %v9743 = vadd.f32 %v9262, %v9555
    %v9744 = vadd.f32 %v9263, %v9557
    %v9745 = vadd.f32 %v9264, %v9560
    %v9746 = vadd.f32 %v9265, %v9562
    %v9747 = vadd.f32 %v9266, %v9565
    %v9748 = vadd.f32 %v9267, %v9567
    %v9749 = vadd.f32 %v9268, %v9570
    %v9750 = vadd.f32 %v9269, %v9572
    %v9751 = vadd.f32 %v9270, %v9575
    %v9752 = vadd.f32 %v9271, %v9577
    %v9753 = vadd.f32 %v9272, %v9580
    %v9754 = vadd.f32 %v9273, %v9582
    %v9755 = vadd.f32 %v9274, %v9585
    %v9756 = vadd.f32 %v9275, %v9587
    %v9757 = vadd.f32 %v9276, %v9590
    %v9758 = vadd.f32 %v9277, %v9592
    %v9759 = vadd.f32 %v9278, %v9595
    %v9760 = vadd.f32 %v9279, %v9597
    %v9761 = vadd.f32 %v9280, %v9600
    %v9762 = vadd.f32 %v9281, %v9602
    %v9763 = vadd.f32 %v9282, %v9605
    %v9764 = vadd.f32 %v9283, %v9607
    %v9765 = vadd.f32 %v9284, %v9610
    %v9766 = vadd.f32 %v9285, %v9612
    %v9767 = vadd.f32 %v9286, %v9615
    %v9768 = vadd.f32 %v9287, %v9617
    %v9769 = vadd.f32 %v9288, %v9620
    %v9770 = vadd.f32 %v9289, %v9622
    %v9771 = vadd.f32 %v9290, %v9625
    %v9772 = vadd.f32 %v9291, %v9627
    %v9773 = vadd.f32 %v9292, %v9630
    %v9774 = vadd.f32 %v9293, %v9632
    %v9775 = vadd.f32 %v9294, %v9635
    %v9776 = vadd.f32 %v9295, %v9637
    %v9777 = vadd.f32 %v9296, %v9640
    %v9778 = vadd.f32 %v9297, %v9642
    %v9779 = vadd.f32 %v9298, %v9645
    %v9780 = vadd.f32 %v9299, %v9647
    %v9781 = vadd.f32 %v9300, %v9650
    %v9782 = vadd.f32 %v9301, %v9652
    %v9783 = vadd.f32 %v9302, %v9655
    %v9784 = vadd.f32 %v9303, %v9657
    %v9785 = vadd.f32 %v9304, %v9660
    %v9786 = vadd.f32 %v9305, %v9662
    %v9787 = vadd.f32 %v9306, %v9665
    %v9788 = vadd.f32 %v9307, %v9667
    %v9789 = vadd.f32 %v9308, %v9670
    %v9790 = vadd.f32 %v9309, %v9672
    %v9791 = vadd.f32 %v9310, %v9675
    %v9792 = vadd.f32 %v9311, %v9677
    %v9793 = vadd.f32 %v9312, %v9680
    %v9794 = vadd.f32 %v9313, %v9682
    %v9795 = vadd.f32 %v9314, %v9685
    %v9796 = vadd.f32 %v9315, %v9687
    %v9797 = vadd.f32 %v9316, %v9690
    %v9798 = vadd.f32 %v9317, %v9692
    %v9799 = vadd.f32 %v9318, %v9695
    %v9800 = vadd.f32 %v9319, %v9697
    %v9801 = vadd.f32 %v9320, %v9700
    %v9802 = vadd.f32 %v9321, %v9702
    %v9803 = vadd.f32 %v9322, %v9705
    %v9804 = vadd.f32 %v9323, %v9707
    %v9805 = vadd.f32 %v9324, %v9710
    %v9806 = vadd.f32 %v9325, %v9712
    %v9807 = vadd.f32 %v9326, %v9715
    %v9808 = vadd.f32 %v9327, %v9717
    %v9809 = vadd.f32 %v9328, %v9720
    %v9810 = vadd.f32 %v9329, %v9722
    %v9811 = vadd.f32 %v9330, %v9725
    %v9812 = vadd.f32 %v9331, %v9727
    %v9813 = vadd.f32 %v9332, %v9730
    %v9814 = vmul.f32 %v9733, %v4312
    %v9815 = vmul.f32 %v9734, %v4317
    %v9816 = vmul.f32 %v9735, %v4322
    %v9817 = vmul.f32 %v9736, %v4327
    %v9818 = vmul.f32 %v9737, %v4332
    %v9819 = vmul.f32 %v9738, %v4337
    %v9820 = vmul.f32 %v9739, %v4342
    %v9821 = vmul.f32 %v9740, %v4347
    %v9822 = vmul.f32 %v9741, %v4352
    %v9823 = vmul.f32 %v9742, %v4357
    %v9824 = vmul.f32 %v9743, %v4362
    %v9825 = vmul.f32 %v9744, %v4367
    %v9826 = vmul.f32 %v9745, %v4372
    %v9827 = vmul.f32 %v9746, %v4377
    %v9828 = vmul.f32 %v9747, %v4382
    %v9829 = vmul.f32 %v9748, %v4387
    %v9830 = vmul.f32 %v9749, %v4392
    %v9831 = vmul.f32 %v9750, %v4397
    %v9832 = vmul.f32 %v9751, %v4402
    %v9833 = vmul.f32 %v9752, %v4407
    %v9834 = vmul.f32 %v9753, %v4412
    %v9835 = vmul.f32 %v9754, %v4417
    %v9836 = vmul.f32 %v9755, %v4422
    %v9837 = vmul.f32 %v9756, %v4427
    %v9838 = vmul.f32 %v9757, %v4432
    %v9839 = vmul.f32 %v9758, %v4437
    %v9840 = vmul.f32 %v9759, %v4442
    %v9841 = vmul.f32 %v9760, %v4447
    %v9842 = vmul.f32 %v9761, %v4452
    %v9843 = vmul.f32 %v9762, %v4457
    %v9844 = vmul.f32 %v9763, %v4462
    %v9845 = vmul.f32 %v9764, %v4467
    %v9846 = vmul.f32 %v9765, %v4472
    %v9847 = vmul.f32 %v9766, %v4477
    %v9848 = vmul.f32 %v9767, %v4482
    %v9849 = vmul.f32 %v9768, %v4487
    %v9850 = vmul.f32 %v9769, %v4492
    %v9851 = vmul.f32 %v9770, %v4497
    %v9852 = vmul.f32 %v9771, %v4502
    %v9853 = vmul.f32 %v9772, %v4507
    %v9854 = vmul.f32 %v9773, %v4512
    %v9855 = vmul.f32 %v9774, %v4517
    %v9856 = vmul.f32 %v9775, %v4522
    %v9857 = vmul.f32 %v9776, %v4527
    %v9858 = vmul.f32 %v9777, %v4532
    %v9859 = vmul.f32 %v9778, %v4537
    %v9860 = vmul.f32 %v9779, %v4542
    %v9861 = vmul.f32 %v9780, %v4547
    %v9862 = vmul.f32 %v9781, %v4552
    %v9863 = vmul.f32 %v9782, %v4557
    %v9864 = vmul.f32 %v9783, %v4562
    %v9865 = vmul.f32 %v9784, %v4567
    %v9866 = vmul.f32 %v9785, %v4572
    %v9867 = vmul.f32 %v9786, %v4577
    %v9868 = vmul.f32 %v9787, %v4582
    %v9869 = vmul.f32 %v9788, %v4587
    %v9870 = vmul.f32 %v9789, %v4592
    %v9871 = vmul.f32 %v9790, %v4597
    %v9872 = vmul.f32 %v9791, %v4602
    %v9873 = vmul.f32 %v9792, %v4607
    %v9874 = vmul.f32 %v9793, %v4612
    %v9875 = vmul.f32 %v9794, %v4617
    %v9876 = vmul.f32 %v9795, %v4622
    %v9877 = vmul.f32 %v9796, %v4627
    %v9878 = vmul.f32 %v9797, %v4632
    %v9879 = vmul.f32 %v9798, %v4637
    %v9880 = vmul.f32 %v9799, %v4642
    %v9881 = vmul.f32 %v9800, %v4647
    %v9882 = vmul.f32 %v9801, %v4652
    %v9883 = vmul.f32 %v9802, %v4657
    %v9884 = vmul.f32 %v9803, %v4662
    %v9885 = vmul.f32 %v9804, %v4667
    %v9886 = vmul.f32 %v9805, %v4672
    %v9887 = vmul.f32 %v9806, %v4677
    %v9888 = vmul.f32 %v9807, %v4682
    %v9889 = vmul.f32 %v9808, %v4687
    %v9890 = vmul.f32 %v9809, %v4692
    %v9891 = vmul.f32 %v9810, %v4697
    %v9892 = vmul.f32 %v9811, %v4702
    %v9893 = vmul.f32 %v9812, %v4707
    %v9894 = vmul.f32 %v9813, %v4712
    %v9895 = vadd.f32 %v9814, %v9815
    %v9896 = vadd.f32 %v9895, %v9816
    %v9897 = vadd.f32 %v9896, %v9817
    %v9898 = vadd.f32 %v9897, %v9818
    %v9899 = vadd.f32 %v9898, %v9819
    %v9900 = vadd.f32 %v9899, %v9820
    %v9901 = vadd.f32 %v9900, %v9821
    %v9902 = vadd.f32 %v9901, %v9822
    %v9903 = vadd.f32 %v9902, %v9823
    %v9904 = vadd.f32 %v9903, %v9824
    %v9905 = vadd.f32 %v9904, %v9825
    %v9906 = vadd.f32 %v9905, %v9826
    %v9907 = vadd.f32 %v9906, %v9827
    %v9908 = vadd.f32 %v9907, %v9828
    %v9909 = vadd.f32 %v9908, %v9829
    %v9910 = vadd.f32 %v9909, %v9830
    %v9911 = vadd.f32 %v9910, %v9831
    %v9912 = vadd.f32 %v9911, %v9832
    %v9913 = vadd.f32 %v9912, %v9833
    %v9914 = vadd.f32 %v9913, %v9834
    %v9915 = vadd.f32 %v9914, %v9835
    %v9916 = vadd.f32 %v9915, %v9836
    %v9917 = vadd.f32 %v9916, %v9837
    %v9918 = vadd.f32 %v9917, %v9838
    %v9919 = vadd.f32 %v9918, %v9839
    %v9920 = vadd.f32 %v9919, %v9840
    %v9921 = vadd.f32 %v9920, %v9841
    %v9922 = vadd.f32 %v9921, %v9842
    %v9923 = vadd.f32 %v9922, %v9843
    %v9924 = vadd.f32 %v9923, %v9844
    %v9925 = vadd.f32 %v9924, %v9845
    %v9926 = vadd.f32 %v9925, %v9846
    %v9927 = vadd.f32 %v9926, %v9847
    %v9928 = vadd.f32 %v9927, %v9848
    %v9929 = vadd.f32 %v9928, %v9849
    %v9930 = vadd.f32 %v9929, %v9850
    %v9931 = vadd.f32 %v9930, %v9851
    %v9932 = vadd.f32 %v9931, %v9852
    %v9933 = vadd.f32 %v9932, %v9853
    %v9934 = vadd.f32 %v9933, %v9854
    %v9935 = vadd.f32 %v9934, %v9855
    %v9936 = vadd.f32 %v9935, %v9856
    %v9937 = vadd.f32 %v9936, %v9857
    %v9938 = vadd.f32 %v9937, %v9858
    %v9939 = vadd.f32 %v9938, %v9859
    %v9940 = vadd.f32 %v9939, %v9860
    %v9941 = vadd.f32 %v9940, %v9861
    %v9942 = vadd.f32 %v9941, %v9862
    %v9943 = vadd.f32 %v9942, %v9863
    %v9944 = vadd.f32 %v9943, %v9864
    %v9945 = vadd.f32 %v9944, %v9865
    %v9946 = vadd.f32 %v9945, %v9866
    %v9947 = vadd.f32 %v9946, %v9867
    %v9948 = vadd.f32 %v9947, %v9868
    %v9949 = vadd.f32 %v9948, %v9869
    %v9950 = vadd.f32 %v9949, %v9870
    %v9951 = vadd.f32 %v9950, %v9871
    %v9952 = vadd.f32 %v9951, %v9872
    %v9953 = vadd.f32 %v9952, %v9873
    %v9954 = vadd.f32 %v9953, %v9874
    %v9955 = vadd.f32 %v9954, %v9875
    %v9956 = vadd.f32 %v9955, %v9876
    %v9957 = vadd.f32 %v9956, %v9877
    %v9958 = vadd.f32 %v9957, %v9878
    %v9959 = vadd.f32 %v9958, %v9879
    %v9960 = vadd.f32 %v9959, %v9880
    %v9961 = vadd.f32 %v9960, %v9881
    %v9962 = vadd.f32 %v9961, %v9882
    %v9963 = vadd.f32 %v9962, %v9883
    %v9964 = vadd.f32 %v9963, %v9884
    %v9965 = vadd.f32 %v9964, %v9885
    %v9966 = vadd.f32 %v9965, %v9886
    %v9967 = vadd.f32 %v9966, %v9887
    %v9968 = vadd.f32 %v9967, %v9888
    %v9969 = vadd.f32 %v9968, %v9889
    %v9970 = vadd.f32 %v9969, %v9890
    %v9971 = vadd.f32 %v9970, %v9891
    %v9972 = vadd.f32 %v9971, %v9892
    %v9973 = vadd.f32 %v9972, %v9893
    %v9974 = vadd.f32 %v9973, %v9894
    %v9975 = vrot.slane %v9974, 4
    %v9976 = vadd.f32 %v9974, %v9975
    %v9977 = vrot.slane %v9976, 2
    %v9978 = vadd.f32 %v9976, %v9977
    %v9979 = vrot.slane %v9978, 1
    %v9980 = vadd.f32 %v9978, %v9979
    %v9981 = vmul.f32 %v9814, %v9733
    %v9982 = vmul.f32 %v9815, %v9734
    %v9983 = vmul.f32 %v9816, %v9735
    %v9984 = vmul.f32 %v9817, %v9736
    %v9985 = vmul.f32 %v9818, %v9737
    %v9986 = vmul.f32 %v9819, %v9738
    %v9987 = vmul.f32 %v9820, %v9739
    %v9988 = vmul.f32 %v9821, %v9740
    %v9989 = vmul.f32 %v9822, %v9741
    %v9990 = vmul.f32 %v9823, %v9742
    %v9991 = vmul.f32 %v9824, %v9743
    %v9992 = vmul.f32 %v9825, %v9744
    %v9993 = vmul.f32 %v9826, %v9745
    %v9994 = vmul.f32 %v9827, %v9746
    %v9995 = vmul.f32 %v9828, %v9747
    %v9996 = vmul.f32 %v9829, %v9748
    %v9997 = vmul.f32 %v9830, %v9749
    %v9998 = vmul.f32 %v9831, %v9750
    %v9999 = vmul.f32 %v9832, %v9751
    %v10000 = vmul.f32 %v9833, %v9752
    %v10001 = vmul.f32 %v9834, %v9753
    %v10002 = vmul.f32 %v9835, %v9754
    %v10003 = vmul.f32 %v9836, %v9755
    %v10004 = vmul.f32 %v9837, %v9756
    %v10005 = vmul.f32 %v9838, %v9757
    %v10006 = vmul.f32 %v9839, %v9758
    %v10007 = vmul.f32 %v9840, %v9759
    %v10008 = vmul.f32 %v9841, %v9760
    %v10009 = vmul.f32 %v9842, %v9761
    %v10010 = vmul.f32 %v9843, %v9762
    %v10011 = vmul.f32 %v9844, %v9763
    %v10012 = vmul.f32 %v9845, %v9764
    %v10013 = vmul.f32 %v9846, %v9765
    %v10014 = vmul.f32 %v9847, %v9766
    %v10015 = vmul.f32 %v9848, %v9767
    %v10016 = vmul.f32 %v9849, %v9768
    %v10017 = vmul.f32 %v9850, %v9769
    %v10018 = vmul.f32 %v9851, %v9770
    %v10019 = vmul.f32 %v9852, %v9771
    %v10020 = vmul.f32 %v9853, %v9772
    %v10021 = vmul.f32 %v9854, %v9773
    %v10022 = vmul.f32 %v9855, %v9774
    %v10023 = vmul.f32 %v9856, %v9775
    %v10024 = vmul.f32 %v9857, %v9776
    %v10025 = vmul.f32 %v9858, %v9777
    %v10026 = vmul.f32 %v9859, %v9778
    %v10027 = vmul.f32 %v9860, %v9779
    %v10028 = vmul.f32 %v9861, %v9780
    %v10029 = vmul.f32 %v9862, %v9781
    %v10030 = vmul.f32 %v9863, %v9782
    %v10031 = vmul.f32 %v9864, %v9783
    %v10032 = vmul.f32 %v9865, %v9784
    %v10033 = vmul.f32 %v9866, %v9785
    %v10034 = vmul.f32 %v9867, %v9786
    %v10035 = vmul.f32 %v9868, %v9787
    %v10036 = vmul.f32 %v9869, %v9788
    %v10037 = vmul.f32 %v9870, %v9789
    %v10038 = vmul.f32 %v9871, %v9790
    %v10039 = vmul.f32 %v9872, %v9791
    %v10040 = vmul.f32 %v9873, %v9792
    %v10041 = vmul.f32 %v9874, %v9793
    %v10042 = vmul.f32 %v9875, %v9794
    %v10043 = vmul.f32 %v9876, %v9795
    %v10044 = vmul.f32 %v9877, %v9796
    %v10045 = vmul.f32 %v9878, %v9797
    %v10046 = vmul.f32 %v9879, %v9798
    %v10047 = vmul.f32 %v9880, %v9799
    %v10048 = vmul.f32 %v9881, %v9800
    %v10049 = vmul.f32 %v9882, %v9801
    %v10050 = vmul.f32 %v9883, %v9802
    %v10051 = vmul.f32 %v9884, %v9803
    %v10052 = vmul.f32 %v9885, %v9804
    %v10053 = vmul.f32 %v9886, %v9805
    %v10054 = vmul.f32 %v9887, %v9806
    %v10055 = vmul.f32 %v9888, %v9807
    %v10056 = vmul.f32 %v9889, %v9808
    %v10057 = vmul.f32 %v9890, %v9809
    %v10058 = vmul.f32 %v9891, %v9810
    %v10059 = vmul.f32 %v9892, %v9811
    %v10060 = vmul.f32 %v9893, %v9812
    %v10061 = vmul.f32 %v9894, %v9813
    %v10062 = vadd.f32 %v9981, %v9982
    %v10063 = vadd.f32 %v10062, %v9983
    %v10064 = vadd.f32 %v10063, %v9984
    %v10065 = vadd.f32 %v10064, %v9985
    %v10066 = vadd.f32 %v10065, %v9986
    %v10067 = vadd.f32 %v10066, %v9987
    %v10068 = vadd.f32 %v10067, %v9988
    %v10069 = vadd.f32 %v10068, %v9989
    %v10070 = vadd.f32 %v10069, %v9990
    %v10071 = vadd.f32 %v10070, %v9991
    %v10072 = vadd.f32 %v10071, %v9992
    %v10073 = vadd.f32 %v10072, %v9993
    %v10074 = vadd.f32 %v10073, %v9994
    %v10075 = vadd.f32 %v10074, %v9995
    %v10076 = vadd.f32 %v10075, %v9996
    %v10077 = vadd.f32 %v10076, %v9997
    %v10078 = vadd.f32 %v10077, %v9998
    %v10079 = vadd.f32 %v10078, %v9999
    %v10080 = vadd.f32 %v10079, %v10000
    %v10081 = vadd.f32 %v10080, %v10001
    %v10082 = vadd.f32 %v10081, %v10002
    %v10083 = vadd.f32 %v10082, %v10003
    %v10084 = vadd.f32 %v10083, %v10004
    %v10085 = vadd.f32 %v10084, %v10005
    %v10086 = vadd.f32 %v10085, %v10006
    %v10087 = vadd.f32 %v10086, %v10007
    %v10088 = vadd.f32 %v10087, %v10008
    %v10089 = vadd.f32 %v10088, %v10009
    %v10090 = vadd.f32 %v10089, %v10010
    %v10091 = vadd.f32 %v10090, %v10011
    %v10092 = vadd.f32 %v10091, %v10012
    %v10093 = vadd.f32 %v10092, %v10013
    %v10094 = vadd.f32 %v10093, %v10014
    %v10095 = vadd.f32 %v10094, %v10015
    %v10096 = vadd.f32 %v10095, %v10016
    %v10097 = vadd.f32 %v10096, %v10017
    %v10098 = vadd.f32 %v10097, %v10018
    %v10099 = vadd.f32 %v10098, %v10019
    %v10100 = vadd.f32 %v10099, %v10020
    %v10101 = vadd.f32 %v10100, %v10021
    %v10102 = vadd.f32 %v10101, %v10022
    %v10103 = vadd.f32 %v10102, %v10023
    %v10104 = vadd.f32 %v10103, %v10024
    %v10105 = vadd.f32 %v10104, %v10025
    %v10106 = vadd.f32 %v10105, %v10026
    %v10107 = vadd.f32 %v10106, %v10027
    %v10108 = vadd.f32 %v10107, %v10028
    %v10109 = vadd.f32 %v10108, %v10029
    %v10110 = vadd.f32 %v10109, %v10030
    %v10111 = vadd.f32 %v10110, %v10031
    %v10112 = vadd.f32 %v10111, %v10032
    %v10113 = vadd.f32 %v10112, %v10033
    %v10114 = vadd.f32 %v10113, %v10034
    %v10115 = vadd.f32 %v10114, %v10035
    %v10116 = vadd.f32 %v10115, %v10036
    %v10117 = vadd.f32 %v10116, %v10037
    %v10118 = vadd.f32 %v10117, %v10038
    %v10119 = vadd.f32 %v10118, %v10039
    %v10120 = vadd.f32 %v10119, %v10040
    %v10121 = vadd.f32 %v10120, %v10041
    %v10122 = vadd.f32 %v10121, %v10042
    %v10123 = vadd.f32 %v10122, %v10043
    %v10124 = vadd.f32 %v10123, %v10044
    %v10125 = vadd.f32 %v10124, %v10045
    %v10126 = vadd.f32 %v10125, %v10046
    %v10127 = vadd.f32 %v10126, %v10047
    %v10128 = vadd.f32 %v10127, %v10048
    %v10129 = vadd.f32 %v10128, %v10049
    %v10130 = vadd.f32 %v10129, %v10050
    %v10131 = vadd.f32 %v10130, %v10051
    %v10132 = vadd.f32 %v10131, %v10052
    %v10133 = vadd.f32 %v10132, %v10053
    %v10134 = vadd.f32 %v10133, %v10054
    %v10135 = vadd.f32 %v10134, %v10055
    %v10136 = vadd.f32 %v10135, %v10056
    %v10137 = vadd.f32 %v10136, %v10057
    %v10138 = vadd.f32 %v10137, %v10058
    %v10139 = vadd.f32 %v10138, %v10059
    %v10140 = vadd.f32 %v10139, %v10060
    %v10141 = vadd.f32 %v10140, %v10061
    %v10142 = vrot.slane %v10141, 4
    %v10143 = vadd.f32 %v10141, %v10142
    %v10144 = vrot.slane %v10143, 2
    %v10145 = vadd.f32 %v10143, %v10144
    %v10146 = vrot.slane %v10145, 1
    %v10147 = vadd.f32 %v10145, %v10146
    %v10148 = vmul.f32 %v9980, 0.001953125
    %v10149 = vmul.f32 %v10147, 0.001953125
    %v10150 = vmul.f32 %v10148, %v10148
    %v10151 = vsub.f32 %v10149, %v10150
    %v10152 = vmax.f32 %v10151, 0.0
    %v10153 = vld [vmem:[%s6] sm:$0x1]
    %v10154 = vadd.f32 %v10152, 1e-05
    %v10155 = vrsqrt.pop %v10154
    %v10156 = vmul.f32 %v10155, %v10154
    %v10157 = vmul.f32 %v10156, %v10155
    %v10158 = vmul.f32 0.5, %v10157
    %v10159 = vsub.f32 1.5, %v10158
    %v10160 = vmul.f32 %v10155, %v10159
    %vm10161 = vweird.f32 %v10154
    %vm10162 = vweird.f32 %v10155
    %vm10163 = vmor %vm10161, %vm10162
    %v10164 = vsel %vm10163, %v10155, %v10160
    %v10165 = vmul.f32 %v10153, %v10164
    %v10166 = vld [vmem:[%s7] sm:$0x1]
    %v10167 = vmul.f32 %v10148, %v10165
    %v10168 = vsub.f32 %v10166, %v10167
    %v10170 = vperm.slane %v10165, 0
    %v10172 = vmul.f32 %v9733, %v10170
    %v10173 = vmul.f32 %v9734, %v10170
    %v10174 = vmul.f32 %v9735, %v10170
    %v10175 = vmul.f32 %v9736, %v10170
    %v10176 = vmul.f32 %v9737, %v10170
    %v10177 = vmul.f32 %v9738, %v10170
    %v10178 = vmul.f32 %v9739, %v10170
    %v10179 = vmul.f32 %v9740, %v10170
    %v10180 = vmul.f32 %v9741, %v10170
    %v10181 = vmul.f32 %v9742, %v10170
    %v10182 = vmul.f32 %v9743, %v10170
    %v10183 = vmul.f32 %v9744, %v10170
    %v10184 = vmul.f32 %v9745, %v10170
    %v10185 = vmul.f32 %v9746, %v10170
    %v10186 = vmul.f32 %v9747, %v10170
    %v10187 = vmul.f32 %v9748, %v10170
    %v10188 = vmul.f32 %v9749, %v10170
    %v10189 = vmul.f32 %v9750, %v10170
    %v10190 = vmul.f32 %v9751, %v10170
    %v10191 = vmul.f32 %v9752, %v10170
    %v10192 = vmul.f32 %v9753, %v10170
    %v10193 = vmul.f32 %v9754, %v10170
    %v10194 = vmul.f32 %v9755, %v10170
    %v10195 = vmul.f32 %v9756, %v10170
    %v10196 = vmul.f32 %v9757, %v10170
    %v10197 = vmul.f32 %v9758, %v10170
    %v10198 = vmul.f32 %v9759, %v10170
    %v10199 = vmul.f32 %v9760, %v10170
    %v10200 = vmul.f32 %v9761, %v10170
    %v10201 = vmul.f32 %v9762, %v10170
    %v10202 = vmul.f32 %v9763, %v10170
    %v10203 = vmul.f32 %v9764, %v10170
    %v10204 = vmul.f32 %v9765, %v10170
    %v10205 = vmul.f32 %v9766, %v10170
    %v10206 = vmul.f32 %v9767, %v10170
    %v10207 = vmul.f32 %v9768, %v10170
    %v10208 = vmul.f32 %v9769, %v10170
    %v10209 = vmul.f32 %v9770, %v10170
    %v10210 = vmul.f32 %v9771, %v10170
    %v10211 = vmul.f32 %v9772, %v10170
    %v10212 = vmul.f32 %v9773, %v10170
    %v10213 = vmul.f32 %v9774, %v10170
    %v10214 = vmul.f32 %v9775, %v10170
    %v10215 = vmul.f32 %v9776, %v10170
    %v10216 = vmul.f32 %v9777, %v10170
    %v10217 = vmul.f32 %v9778, %v10170
    %v10218 = vmul.f32 %v9779, %v10170
    %v10219 = vmul.f32 %v9780, %v10170
    %v10220 = vmul.f32 %v9781, %v10170
    %v10221 = vmul.f32 %v9782, %v10170
    %v10222 = vmul.f32 %v9783, %v10170
    %v10223 = vmul.f32 %v9784, %v10170
    %v10224 = vmul.f32 %v9785, %v10170
    %v10225 = vmul.f32 %v9786, %v10170
    %v10226 = vmul.f32 %v9787, %v10170
    %v10227 = vmul.f32 %v9788, %v10170
    %v10228 = vmul.f32 %v9789, %v10170
    %v10229 = vmul.f32 %v9790, %v10170
    %v10230 = vmul.f32 %v9791, %v10170
    %v10231 = vmul.f32 %v9792, %v10170
    %v10232 = vmul.f32 %v9793, %v10170
    %v10233 = vmul.f32 %v9794, %v10170
    %v10234 = vmul.f32 %v9795, %v10170
    %v10235 = vmul.f32 %v9796, %v10170
    %v10236 = vmul.f32 %v9797, %v10170
    %v10237 = vmul.f32 %v9798, %v10170
    %v10238 = vmul.f32 %v9799, %v10170
    %v10239 = vmul.f32 %v9800, %v10170
    %v10240 = vmul.f32 %v9801, %v10170
    %v10241 = vmul.f32 %v9802, %v10170
    %v10242 = vmul.f32 %v9803, %v10170
    %v10243 = vmul.f32 %v9804, %v10170
    %v10244 = vmul.f32 %v9805, %v10170
    %v10245 = vmul.f32 %v9806, %v10170
    %v10246 = vmul.f32 %v9807, %v10170
    %v10247 = vmul.f32 %v9808, %v10170
    %v10248 = vmul.f32 %v9809, %v10170
    %v10249 = vmul.f32 %v9810, %v10170
    %v10250 = vmul.f32 %v9811, %v10170
    %v10251 = vmul.f32 %v9812, %v10170
    %v10252 = vmul.f32 %v9813, %v10170
    %v10254 = vperm.slane %v10168, 0
    %v10256 = vadd.f32 %v10172, %v10254
    %v10257 = vadd.f32 %v10173, %v10254
    %v10258 = vadd.f32 %v10174, %v10254
    %v10259 = vadd.f32 %v10175, %v10254
    %v10260 = vadd.f32 %v10176, %v10254
    %v10261 = vadd.f32 %v10177, %v10254
    %v10262 = vadd.f32 %v10178, %v10254
    %v10263 = vadd.f32 %v10179, %v10254
    %v10264 = vadd.f32 %v10180, %v10254
    %v10265 = vadd.f32 %v10181, %v10254
    %v10266 = vadd.f32 %v10182, %v10254
    %v10267 = vadd.f32 %v10183, %v10254
    %v10268 = vadd.f32 %v10184, %v10254
    %v10269 = vadd.f32 %v10185, %v10254
    %v10270 = vadd.f32 %v10186, %v10254
    %v10271 = vadd.f32 %v10187, %v10254
    %v10272 = vadd.f32 %v10188, %v10254
    %v10273 = vadd.f32 %v10189, %v10254
    %v10274 = vadd.f32 %v10190, %v10254
    %v10275 = vadd.f32 %v10191, %v10254
    %v10276 = vadd.f32 %v10192, %v10254
    %v10277 = vadd.f32 %v10193, %v10254
    %v10278 = vadd.f32 %v10194, %v10254
    %v10279 = vadd.f32 %v10195, %v10254
    %v10280 = vadd.f32 %v10196, %v10254
    %v10281 = vadd.f32 %v10197, %v10254
    %v10282 = vadd.f32 %v10198, %v10254
    %v10283 = vadd.f32 %v10199, %v10254
    %v10284 = vadd.f32 %v10200, %v10254
    %v10285 = vadd.f32 %v10201, %v10254
    %v10286 = vadd.f32 %v10202, %v10254
    %v10287 = vadd.f32 %v10203, %v10254
    %v10288 = vadd.f32 %v10204, %v10254
    %v10289 = vadd.f32 %v10205, %v10254
    %v10290 = vadd.f32 %v10206, %v10254
    %v10291 = vadd.f32 %v10207, %v10254
    %v10292 = vadd.f32 %v10208, %v10254
    %v10293 = vadd.f32 %v10209, %v10254
    %v10294 = vadd.f32 %v10210, %v10254
    %v10295 = vadd.f32 %v10211, %v10254
    %v10296 = vadd.f32 %v10212, %v10254
    %v10297 = vadd.f32 %v10213, %v10254
    %v10298 = vadd.f32 %v10214, %v10254
    %v10299 = vadd.f32 %v10215, %v10254
    %v10300 = vadd.f32 %v10216, %v10254
    %v10301 = vadd.f32 %v10217, %v10254
    %v10302 = vadd.f32 %v10218, %v10254
    %v10303 = vadd.f32 %v10219, %v10254
    %v10304 = vadd.f32 %v10220, %v10254
    %v10305 = vadd.f32 %v10221, %v10254
    %v10306 = vadd.f32 %v10222, %v10254
    %v10307 = vadd.f32 %v10223, %v10254
    %v10308 = vadd.f32 %v10224, %v10254
    %v10309 = vadd.f32 %v10225, %v10254
    %v10310 = vadd.f32 %v10226, %v10254
    %v10311 = vadd.f32 %v10227, %v10254
    %v10312 = vadd.f32 %v10228, %v10254
    %v10313 = vadd.f32 %v10229, %v10254
    %v10314 = vadd.f32 %v10230, %v10254
    %v10315 = vadd.f32 %v10231, %v10254
    %v10316 = vadd.f32 %v10232, %v10254
    %v10317 = vadd.f32 %v10233, %v10254
    %v10318 = vadd.f32 %v10234, %v10254
    %v10319 = vadd.f32 %v10235, %v10254
    %v10320 = vadd.f32 %v10236, %v10254
    %v10321 = vadd.f32 %v10237, %v10254
    %v10322 = vadd.f32 %v10238, %v10254
    %v10323 = vadd.f32 %v10239, %v10254
    %v10324 = vadd.f32 %v10240, %v10254
    %v10325 = vadd.f32 %v10241, %v10254
    %v10326 = vadd.f32 %v10242, %v10254
    %v10327 = vadd.f32 %v10243, %v10254
    %v10328 = vadd.f32 %v10244, %v10254
    %v10329 = vadd.f32 %v10245, %v10254
    %v10330 = vadd.f32 %v10246, %v10254
    %v10331 = vadd.f32 %v10247, %v10254
    %v10332 = vadd.f32 %v10248, %v10254
    %v10333 = vadd.f32 %v10249, %v10254
    %v10334 = vadd.f32 %v10250, %v10254
    %v10335 = vadd.f32 %v10251, %v10254
    %v10336 = vadd.f32 %v10252, %v10254
    %v10337 = vld [vmem:[#allocation3 + $0x18] sm:$0xff]
    %v10338 = vld [vmem:[#allocation3 + $0x20] sm:$0xff]
    %v10339 = vld [vmem:[#allocation3 + $0x28] sm:$0xff]
    %v10340 = vld [vmem:[#allocation3 + $0x30] sm:$0xff]
    %v10341 = vld [vmem:[#allocation3 + $0x38] sm:$0xff]
    %v10342 = vld [vmem:[#allocation3 + $0x40] sm:$0xff]
    %v10343 = vld [vmem:[#allocation3 + $0x48] sm:$0xff]
    %v10344 = vld [vmem:[#allocation3 + $0x50] sm:$0xff]
    %v10345 = vld [vmem:[#allocation3 + $0x58] sm:$0xff]
    %v10346 = vld [vmem:[#allocation3 + $0x60] sm:$0xff]
    %v10347 = vld [vmem:[#allocation3 + $0x68] sm:$0xff]
    %v10348 = vld [vmem:[#allocation3 + $0x70] sm:$0xff]
    %v10349 = vld [vmem:[#allocation3 + $0x78] sm:$0xff]
    %v10350 = vld [vmem:[#allocation3 + $0x80] sm:$0xff]
    %v10351 = vld [vmem:[#allocation3 + $0x88] sm:$0xff]
    %v10352 = vld [vmem:[#allocation3 + $0x90] sm:$0xff]
    %v10353 = vld [vmem:[#allocation3 + $0x98] sm:$0xff]
    %v10354 = vld [vmem:[#allocation3 + $0xa0] sm:$0xff]
    %v10355 = vld [vmem:[#allocation3 + $0xa8] sm:$0xff]
    %v10356 = vld [vmem:[#allocation3 + $0xb0] sm:$0xff]
    %v10357 = vld [vmem:[#allocation3 + $0xb8] sm:$0xff]
    %v10358 = vld [vmem:[#allocation3 + $0xc0] sm:$0xff]
    %v10359 = vld [vmem:[#allocation3 + $0xc8] sm:$0xff]
    %v10360 = vld [vmem:[#allocation3 + $0xd0] sm:$0xff]
    %v10361 = vld [vmem:[#allocation3 + $0xd8] sm:$0xff]
    %v10362 = vld [vmem:[#allocation3 + $0xe0] sm:$0xff]
    %v10363 = vld [vmem:[#allocation3 + $0xe8] sm:$0xff]
    %v10364 = vld [vmem:[#allocation3 + $0xf0] sm:$0xff]
    %v10365 = vld [vmem:[#allocation3 + $0xf8] sm:$0xff]
    %v10366 = vld [vmem:[#allocation3 + $0x100] sm:$0xff]
    %v10367 = vld [vmem:[#allocation3 + $0x108] sm:$0xff]
    %v10368 = vld [vmem:[#allocation3 + $0x110] sm:$0xff]
    %v10369 = vld [vmem:[#allocation3 + $0x118] sm:$0xff]
    %v10370 = vld [vmem:[#allocation3 + $0x120] sm:$0xff]
    %v10371 = vld [vmem:[#allocation3 + $0x128] sm:$0xff]
    %v10372 = vld [vmem:[#allocation3 + $0x130] sm:$0xff]
    %v10373 = vld [vmem:[#allocation3 + $0x138] sm:$0xff]
    %v10374 = vld [vmem:[#allocation3 + $0x140] sm:$0xff]
    %v10375 = vld [vmem:[#allocation3 + $0x148] sm:$0xff]
    %v10376 = vld [vmem:[#allocation3 + $0x150] sm:$0xff]
    %v10377 = vld [vmem:[#allocation3 + $0x158] sm:$0xff]
    %v10378 = vld [vmem:[#allocation3 + $0x160] sm:$0xff]
    %v10379 = vld [vmem:[#allocation3 + $0x168] sm:$0xff]
    %v10380 = vld [vmem:[#allocation3 + $0x170] sm:$0xff]
    %v10381 = vld [vmem:[#allocation3 + $0x178] sm:$0xff]
    %v10382 = vld [vmem:[#allocation3 + $0x180] sm:$0xff]
    %v10383 = vld [vmem:[#allocation3 + $0x188] sm:$0xff]
    %v10384 = vld [vmem:[#allocation3 + $0x190] sm:$0xff]
    %v10385 = vld [vmem:[#allocation3 + $0x198] sm:$0xff]
    %v10386 = vld [vmem:[#allocation3 + $0x1a0] sm:$0xff]
    %v10387 = vld [vmem:[#allocation3 + $0x1a8] sm:$0xff]
    %v10388 = vld [vmem:[#allocation3 + $0x1b0] sm:$0xff]
    %v10389 = vld [vmem:[#allocation3 + $0x1b8] sm:$0xff]
    %v10390 = vld [vmem:[#allocation3 + $0x1c0] sm:$0xff]
    %v10391 = vld [vmem:[#allocation3 + $0x1c8] sm:$0xff]
    %v10392 = vld [vmem:[#allocation3 + $0x1d0] sm:$0xff]
    %v10393 = vld [vmem:[#allocation3 + $0x1d8] sm:$0xff]
    %v10394 = vld [vmem:[#allocation3 + $0x1e0] sm:$0xff]
    %v10395 = vld [vmem:[#allocation3 + $0x1e8] sm:$0xff]
    %v10396 = vld [vmem:[#allocation3 + $0x1f0] sm:$0xff]
    %v10397 = vld [vmem:[#allocation3 + $0x1f8] sm:$0xff]
    %v10398 = vld [vmem:[#allocation3 + $0x200] sm:$0xff]
    %v10399 = vld [vmem:[#allocation3 + $0x208] sm:$0xff]
    %v10400 = vld [vmem:[#allocation3 + $0x210] sm:$0xff]
    %v10401 = vld [vmem:[#allocation3 + $0x218] sm:$0xff]
    %v10402 = vld [vmem:[#allocation3 + $0x220] sm:$0xff]
    %v10403 = vld [vmem:[#allocation3 + $0x228] sm:$0xff]
    %v10404 = vld [vmem:[#allocation3 + $0x230] sm:$0xff]
    %v10405 = vld [vmem:[#allocation3 + $0x238] sm:$0xff]
    %v10406 = vld [vmem:[#allocation3 + $0x240] sm:$0xff]
    %v10407 = vld [vmem:[#allocation3 + $0x248] sm:$0xff]
    %v10408 = vld [vmem:[#allocation3 + $0x250] sm:$0xff]
    %v10409 = vld [vmem:[#allocation3 + $0x258] sm:$0xff]
    %v10410 = vld [vmem:[#allocation3 + $0x260] sm:$0xff]
    %v10411 = vld [vmem:[#allocation3 + $0x268] sm:$0xff]
    %v10412 = vld [vmem:[#allocation3 + $0x270] sm:$0xff]
    %v10413 = vld [vmem:[#allocation3 + $0x278] sm:$0xff]
    %v10414 = vld [vmem:[#allocation3 + $0x280] sm:$0xff]
    %v10415 = vld [vmem:[#allocation3 + $0x288] sm:$0xff]
    %v10416 = vld [vmem:[#allocation3 + $0x290] sm:$0xff]
    %v10417 = vld [vmem:[#allocation3 + $0x298] sm:$0xff]
    %v10418 = vadd.f32 %v10256, %v10337
    %v10419 = vadd.f32 %v10257, %v10338
    %v10420 = vadd.f32 %v10258, %v10339
    %v10421 = vadd.f32 %v10259, %v10340
    %v10422 = vadd.f32 %v10260, %v10341
    %v10423 = vadd.f32 %v10261, %v10342
    %v10424 = vadd.f32 %v10262, %v10343
    %v10425 = vadd.f32 %v10263, %v10344
    %v10426 = vadd.f32 %v10264, %v10345
    %v10427 = vadd.f32 %v10265, %v10346
    %v10428 = vadd.f32 %v10266, %v10347
    %v10429 = vadd.f32 %v10267, %v10348
    %v10430 = vadd.f32 %v10268, %v10349
    %v10431 = vadd.f32 %v10269, %v10350
    %v10432 = vadd.f32 %v10270, %v10351
    %v10433 = vadd.f32 %v10271, %v10352
    %v10434 = vadd.f32 %v10272, %v10353
    %v10435 = vadd.f32 %v10273, %v10354
    %v10436 = vadd.f32 %v10274, %v10355
    %v10437 = vadd.f32 %v10275, %v10356
    %v10438 = vadd.f32 %v10276, %v10357
    %v10439 = vadd.f32 %v10277, %v10358
    %v10440 = vadd.f32 %v10278, %v10359
    %v10441 = vadd.f32 %v10279, %v10360
    %v10442 = vadd.f32 %v10280, %v10361
    %v10443 = vadd.f32 %v10281, %v10362
    %v10444 = vadd.f32 %v10282, %v10363
    %v10445 = vadd.f32 %v10283, %v10364
    %v10446 = vadd.f32 %v10284, %v10365
    %v10447 = vadd.f32 %v10285, %v10366
    %v10448 = vadd.f32 %v10286, %v10367
    %v10449 = vadd.f32 %v10287, %v10368
    %v10450 = vadd.f32 %v10288, %v10369
    %v10451 = vadd.f32 %v10289, %v10370
    %v10452 = vadd.f32 %v10290, %v10371
    %v10453 = vadd.f32 %v10291, %v10372
    %v10454 = vadd.f32 %v10292, %v10373
    %v10455 = vadd.f32 %v10293, %v10374
    %v10456 = vadd.f32 %v10294, %v10375
    %v10457 = vadd.f32 %v10295, %v10376
    %v10458 = vadd.f32 %v10296, %v10377
    %v10459 = vadd.f32 %v10297, %v10378
    %v10460 = vadd.f32 %v10298, %v10379
    %v10461 = vadd.f32 %v10299, %v10380
    %v10462 = vadd.f32 %v10300, %v10381
    %v10463 = vadd.f32 %v10301, %v10382
    %v10464 = vadd.f32 %v10302, %v10383
    %v10465 = vadd.f32 %v10303, %v10384
    %v10466 = vadd.f32 %v10304, %v10385
    %v10467 = vadd.f32 %v10305, %v10386
    %v10468 = vadd.f32 %v10306, %v10387
    %v10469 = vadd.f32 %v10307, %v10388
    %v10470 = vadd.f32 %v10308, %v10389
    %v10471 = vadd.f32 %v10309, %v10390
    %v10472 = vadd.f32 %v10310, %v10391
    %v10473 = vadd.f32 %v10311, %v10392
    %v10474 = vadd.f32 %v10312, %v10393
    %v10475 = vadd.f32 %v10313, %v10394
    %v10476 = vadd.f32 %v10314, %v10395
    %v10477 = vadd.f32 %v10315, %v10396
    %v10478 = vadd.f32 %v10316, %v10397
    %v10479 = vadd.f32 %v10317, %v10398
    %v10480 = vadd.f32 %v10318, %v10399
    %v10481 = vadd.f32 %v10319, %v10400
    %v10482 = vadd.f32 %v10320, %v10401
    %v10483 = vadd.f32 %v10321, %v10402
    %v10484 = vadd.f32 %v10322, %v10403
    %v10485 = vadd.f32 %v10323, %v10404
    %v10486 = vadd.f32 %v10324, %v10405
    %v10487 = vadd.f32 %v10325, %v10406
    %v10488 = vadd.f32 %v10326, %v10407
    %v10489 = vadd.f32 %v10327, %v10408
    %v10490 = vadd.f32 %v10328, %v10409
    %v10491 = vadd.f32 %v10329, %v10410
    %v10492 = vadd.f32 %v10330, %v10411
    %v10493 = vadd.f32 %v10331, %v10412
    %v10494 = vadd.f32 %v10332, %v10413
    %v10495 = vadd.f32 %v10333, %v10414
    %v10496 = vadd.f32 %v10334, %v10415
    %v10497 = vadd.f32 %v10335, %v10416
    %v10498 = vadd.f32 %v10336, %v10417
    %vm10499 = vcmp.ge.f32.partialorder %v10418, 0.0
    %vm10500 = vcmp.ge.f32.partialorder %v10419, 0.0
    %vm10501 = vcmp.ge.f32.partialorder %v10420, 0.0
    %vm10502 = vcmp.ge.f32.partialorder %v10421, 0.0
    %vm10503 = vcmp.ge.f32.partialorder %v10422, 0.0
    %vm10504 = vcmp.ge.f32.partialorder %v10423, 0.0
    %vm10505 = vcmp.ge.f32.partialorder %v10424, 0.0
    %vm10506 = vcmp.ge.f32.partialorder %v10425, 0.0
    %vm10507 = vcmp.ge.f32.partialorder %v10426, 0.0
    %vm10508 = vcmp.ge.f32.partialorder %v10427, 0.0
    %vm10509 = vcmp.ge.f32.partialorder %v10428, 0.0
    %vm10510 = vcmp.ge.f32.partialorder %v10429, 0.0
    %vm10511 = vcmp.ge.f32.partialorder %v10430, 0.0
    %vm10512 = vcmp.ge.f32.partialorder %v10431, 0.0
    %vm10513 = vcmp.ge.f32.partialorder %v10432, 0.0
    %vm10514 = vcmp.ge.f32.partialorder %v10433, 0.0
    %vm10515 = vcmp.ge.f32.partialorder %v10434, 0.0
    %vm10516 = vcmp.ge.f32.partialorder %v10435, 0.0
    %vm10517 = vcmp.ge.f32.partialorder %v10436, 0.0
    %vm10518 = vcmp.ge.f32.partialorder %v10437, 0.0
    %vm10519 = vcmp.ge.f32.partialorder %v10438, 0.0
    %vm10520 = vcmp.ge.f32.partialorder %v10439, 0.0
    %vm10521 = vcmp.ge.f32.partialorder %v10440, 0.0
    %vm10522 = vcmp.ge.f32.partialorder %v10441, 0.0
    %vm10523 = vcmp.ge.f32.partialorder %v10442, 0.0
    %vm10524 = vcmp.ge.f32.partialorder %v10443, 0.0
    %vm10525 = vcmp.ge.f32.partialorder %v10444, 0.0
    %vm10526 = vcmp.ge.f32.partialorder %v10445, 0.0
    %vm10527 = vcmp.ge.f32.partialorder %v10446, 0.0
    %vm10528 = vcmp.ge.f32.partialorder %v10447, 0.0
    %vm10529 = vcmp.ge.f32.partialorder %v10448, 0.0
    %vm10530 = vcmp.ge.f32.partialorder %v10449, 0.0
    %vm10531 = vcmp.ge.f32.partialorder %v10450, 0.0
    %vm10532 = vcmp.ge.f32.partialorder %v10451, 0.0
    %vm10533 = vcmp.ge.f32.partialorder %v10452, 0.0
    %vm10534 = vcmp.ge.f32.partialorder %v10453, 0.0
    %vm10535 = vcmp.ge.f32.partialorder %v10454, 0.0
    %vm10536 = vcmp.ge.f32.partialorder %v10455, 0.0
    %vm10537 = vcmp.ge.f32.partialorder %v10456, 0.0
    %vm10538 = vcmp.ge.f32.partialorder %v10457, 0.0
    %vm10539 = vcmp.ge.f32.partialorder %v10458, 0.0
    %vm10540 = vcmp.ge.f32.partialorder %v10459, 0.0
    %vm10541 = vcmp.ge.f32.partialorder %v10460, 0.0
    %vm10542 = vcmp.ge.f32.partialorder %v10461, 0.0
    %vm10543 = vcmp.ge.f32.partialorder %v10462, 0.0
    %vm10544 = vcmp.ge.f32.partialorder %v10463, 0.0
    %vm10545 = vcmp.ge.f32.partialorder %v10464, 0.0
    %vm10546 = vcmp.ge.f32.partialorder %v10465, 0.0
    %vm10547 = vcmp.ge.f32.partialorder %v10466, 0.0
    %vm10548 = vcmp.ge.f32.partialorder %v10467, 0.0
    %vm10549 = vcmp.ge.f32.partialorder %v10468, 0.0
    %vm10550 = vcmp.ge.f32.partialorder %v10469, 0.0
    %vm10551 = vcmp.ge.f32.partialorder %v10470, 0.0
    %vm10552 = vcmp.ge.f32.partialorder %v10471, 0.0
    %vm10553 = vcmp.ge.f32.partialorder %v10472, 0.0
    %vm10554 = vcmp.ge.f32.partialorder %v10473, 0.0
    %vm10555 = vcmp.ge.f32.partialorder %v10474, 0.0
    %vm10556 = vcmp.ge.f32.partialorder %v10475, 0.0
    %vm10557 = vcmp.ge.f32.partialorder %v10476, 0.0
    %vm10558 = vcmp.ge.f32.partialorder %v10477, 0.0
    %vm10559 = vcmp.ge.f32.partialorder %v10478, 0.0
    %vm10560 = vcmp.ge.f32.partialorder %v10479, 0.0
    %vm10561 = vcmp.ge.f32.partialorder %v10480, 0.0
    %vm10562 = vcmp.ge.f32.partialorder %v10481, 0.0
    %vm10563 = vcmp.ge.f32.partialorder %v10482, 0.0
    %vm10564 = vcmp.ge.f32.partialorder %v10483, 0.0
    %vm10565 = vcmp.ge.f32.partialorder %v10484, 0.0
    %vm10566 = vcmp.ge.f32.partialorder %v10485, 0.0
    %vm10567 = vcmp.ge.f32.partialorder %v10486, 0.0
    %vm10568 = vcmp.ge.f32.partialorder %v10487, 0.0
    %vm10569 = vcmp.ge.f32.partialorder %v10488, 0.0
    %vm10570 = vcmp.ge.f32.partialorder %v10489, 0.0
    %vm10571 = vcmp.ge.f32.partialorder %v10490, 0.0
    %vm10572 = vcmp.ge.f32.partialorder %v10491, 0.0
    %vm10573 = vcmp.ge.f32.partialorder %v10492, 0.0
    %vm10574 = vcmp.ge.f32.partialorder %v10493, 0.0
    %vm10575 = vcmp.ge.f32.partialorder %v10494, 0.0
    %vm10576 = vcmp.ge.f32.partialorder %v10495, 0.0
    %vm10577 = vcmp.ge.f32.partialorder %v10496, 0.0
    %vm10578 = vcmp.ge.f32.partialorder %v10497, 0.0
    %vm10579 = vcmp.ge.f32.partialorder %v10498, 0.0
    %v10580 = vmul.f32 %v10418, 0.01
    %v10581 = vmul.f32 %v10419, 0.01
    %v10582 = vmul.f32 %v10420, 0.01
    %v10583 = vmul.f32 %v10421, 0.01
    %v10584 = vmul.f32 %v10422, 0.01
    %v10585 = vmul.f32 %v10423, 0.01
    %v10586 = vmul.f32 %v10424, 0.01
    %v10587 = vmul.f32 %v10425, 0.01
    %v10588 = vmul.f32 %v10426, 0.01
    %v10589 = vmul.f32 %v10427, 0.01
    %v10590 = vmul.f32 %v10428, 0.01
    %v10591 = vmul.f32 %v10429, 0.01
    %v10592 = vmul.f32 %v10430, 0.01
    %v10593 = vmul.f32 %v10431, 0.01
    %v10594 = vmul.f32 %v10432, 0.01
    %v10595 = vmul.f32 %v10433, 0.01
    %v10596 = vmul.f32 %v10434, 0.01
    %v10597 = vmul.f32 %v10435, 0.01
    %v10598 = vmul.f32 %v10436, 0.01
    %v10599 = vmul.f32 %v10437, 0.01
    %v10600 = vmul.f32 %v10438, 0.01
    %v10601 = vmul.f32 %v10439, 0.01
    %v10602 = vmul.f32 %v10440, 0.01
    %v10603 = vmul.f32 %v10441, 0.01
    %v10604 = vmul.f32 %v10442, 0.01
    %v10605 = vmul.f32 %v10443, 0.01
    %v10606 = vmul.f32 %v10444, 0.01
    %v10607 = vmul.f32 %v10445, 0.01
    %v10608 = vmul.f32 %v10446, 0.01
    %v10609 = vmul.f32 %v10447, 0.01
    %v10610 = vmul.f32 %v10448, 0.01
    %v10611 = vmul.f32 %v10449, 0.01
    %v10612 = vmul.f32 %v10450, 0.01
    %v10613 = vmul.f32 %v10451, 0.01
    %v10614 = vmul.f32 %v10452, 0.01
    %v10615 = vmul.f32 %v10453, 0.01
    %v10616 = vmul.f32 %v10454, 0.01
    %v10617 = vmul.f32 %v10455, 0.01
    %v10618 = vmul.f32 %v10456, 0.01
    %v10619 = vmul.f32 %v10457, 0.01
    %v10620 = vmul.f32 %v10458, 0.01
    %v10621 = vmul.f32 %v10459, 0.01
    %v10622 = vmul.f32 %v10460, 0.01
    %v10623 = vmul.f32 %v10461, 0.01
    %v10624 = vmul.f32 %v10462, 0.01
    %v10625 = vmul.f32 %v10463, 0.01
    %v10626 = vmul.f32 %v10464, 0.01
    %v10627 = vmul.f32 %v10465, 0.01
    %v10628 = vmul.f32 %v10466, 0.01
    %v10629 = vmul.f32 %v10467, 0.01
    %v10630 = vmul.f32 %v10468, 0.01
    %v10631 = vmul.f32 %v10469, 0.01
    %v10632 = vmul.f32 %v10470, 0.01
    %v10633 = vmul.f32 %v10471, 0.01
    %v10634 = vmul.f32 %v10472, 0.01
    %v10635 = vmul.f32 %v10473, 0.01
    %v10636 = vmul.f32 %v10474, 0.01
    %v10637 = vmul.f32 %v10475, 0.01
    %v10638 = vmul.f32 %v10476, 0.01
    %v10639 = vmul.f32 %v10477, 0.01
    %v10640 = vmul.f32 %v10478, 0.01
    %v10641 = vmul.f32 %v10479, 0.01
    %v10642 = vmul.f32 %v10480, 0.01
    %v10643 = vmul.f32 %v10481, 0.01
    %v10644 = vmul.f32 %v10482, 0.01
    %v10645 = vmul.f32 %v10483, 0.01
    %v10646 = vmul.f32 %v10484, 0.01
    %v10647 = vmul.f32 %v10485, 0.01
    %v10648 = vmul.f32 %v10486, 0.01
    %v10649 = vmul.f32 %v10487, 0.01
    %v10650 = vmul.f32 %v10488, 0.01
    %v10651 = vmul.f32 %v10489, 0.01
    %v10652 = vmul.f32 %v10490, 0.01
    %v10653 = vmul.f32 %v10491, 0.01
    %v10654 = vmul.f32 %v10492, 0.01
    %v10655 = vmul.f32 %v10493, 0.01
    %v10656 = vmul.f32 %v10494, 0.01
    %v10657 = vmul.f32 %v10495, 0.01
    %v10658 = vmul.f32 %v10496, 0.01
    %v10659 = vmul.f32 %v10497, 0.01
    %v10660 = vmul.f32 %v10498, 0.01
    %v10661 = vsel %vm10499, %v10418, %v10580
    %v10662 = vsel %vm10500, %v10419, %v10581
    %v10663 = vsel %vm10501, %v10420, %v10582
    %v10664 = vsel %vm10502, %v10421, %v10583
    %v10665 = vsel %vm10503, %v10422, %v10584
    %v10666 = vsel %vm10504, %v10423, %v10585
    %v10667 = vsel %vm10505, %v10424, %v10586
    %v10668 = vsel %vm10506, %v10425, %v10587
    %v10669 = vsel %vm10507, %v10426, %v10588
    %v10670 = vsel %vm10508, %v10427, %v10589
    %v10671 = vsel %vm10509, %v10428, %v10590
    %v10672 = vsel %vm10510, %v10429, %v10591
    %v10673 = vsel %vm10511, %v10430, %v10592
    %v10674 = vsel %vm10512, %v10431, %v10593
    %v10675 = vsel %vm10513, %v10432, %v10594
    %v10676 = vsel %vm10514, %v10433, %v10595
    %v10677 = vsel %vm10515, %v10434, %v10596
    %v10678 = vsel %vm10516, %v10435, %v10597
    %v10679 = vsel %vm10517, %v10436, %v10598
    %v10680 = vsel %vm10518, %v10437, %v10599
    %v10681 = vsel %vm10519, %v10438, %v10600
    %v10682 = vsel %vm10520, %v10439, %v10601
    %v10683 = vsel %vm10521, %v10440, %v10602
    %v10684 = vsel %vm10522, %v10441, %v10603
    %v10685 = vsel %vm10523, %v10442, %v10604
    %v10686 = vsel %vm10524, %v10443, %v10605
    %v10687 = vsel %vm10525, %v10444, %v10606
    %v10688 = vsel %vm10526, %v10445, %v10607
    %v10689 = vsel %vm10527, %v10446, %v10608
    %v10690 = vsel %vm10528, %v10447, %v10609
    %v10691 = vsel %vm10529, %v10448, %v10610
    %v10692 = vsel %vm10530, %v10449, %v10611
    %v10693 = vsel %vm10531, %v10450, %v10612
    %v10694 = vsel %vm10532, %v10451, %v10613
    %v10695 = vsel %vm10533, %v10452, %v10614
    %v10696 = vsel %vm10534, %v10453, %v10615
    %v10697 = vsel %vm10535, %v10454, %v10616
    %v10698 = vsel %vm10536, %v10455, %v10617
    %v10699 = vsel %vm10537, %v10456, %v10618
    %v10700 = vsel %vm10538, %v10457, %v10619
    %v10701 = vsel %vm10539, %v10458, %v10620
    %v10702 = vsel %vm10540, %v10459, %v10621
    %v10703 = vsel %vm10541, %v10460, %v10622
    %v10704 = vsel %vm10542, %v10461, %v10623
    %v10705 = vsel %vm10543, %v10462, %v10624
    %v10706 = vsel %vm10544, %v10463, %v10625
    %v10707 = vsel %vm10545, %v10464, %v10626
    %v10708 = vsel %vm10546, %v10465, %v10627
    %v10709 = vsel %vm10547, %v10466, %v10628
    %v10710 = vsel %vm10548, %v10467, %v10629
    %v10711 = vsel %vm10549, %v10468, %v10630
    %v10712 = vsel %vm10550, %v10469, %v10631
    %v10713 = vsel %vm10551, %v10470, %v10632
    %v10714 = vsel %vm10552, %v10471, %v10633
    %v10715 = vsel %vm10553, %v10472, %v10634
    %v10716 = vsel %vm10554, %v10473, %v10635
    %v10717 = vsel %vm10555, %v10474, %v10636
    %v10718 = vsel %vm10556, %v10475, %v10637
    %v10719 = vsel %vm10557, %v10476, %v10638
    %v10720 = vsel %vm10558, %v10477, %v10639
    %v10721 = vsel %vm10559, %v10478, %v10640
    %v10722 = vsel %vm10560, %v10479, %v10641
    %v10723 = vsel %vm10561, %v10480, %v10642
    %v10724 = vsel %vm10562, %v10481, %v10643
    %v10725 = vsel %vm10563, %v10482, %v10644
    %v10726 = vsel %vm10564, %v10483, %v10645
    %v10727 = vsel %vm10565, %v10484, %v10646
    %v10728 = vsel %vm10566, %v10485, %v10647
    %v10729 = vsel %vm10567, %v10486, %v10648
    %v10730 = vsel %vm10568, %v10487, %v10649
    %v10731 = vsel %vm10569, %v10488, %v10650
    %v10732 = vsel %vm10570, %v10489, %v10651
    %v10733 = vsel %vm10571, %v10490, %v10652
    %v10734 = vsel %vm10572, %v10491, %v10653
    %v10735 = vsel %vm10573, %v10492, %v10654
    %v10736 = vsel %vm10574, %v10493, %v10655
    %v10737 = vsel %vm10575, %v10494, %v10656
    %v10738 = vsel %vm10576, %v10495, %v10657
    %v10739 = vsel %vm10577, %v10496, %v10658
    %v10740 = vsel %vm10578, %v10497, %v10659
    %v10741 = vsel %vm10579, %v10498, %v10660
    %10742 = vst [vmem:[#allocation8] sm:$0xff] %v10661
    %10743 = vst [vmem:[#allocation8 + $0x8] sm:$0xff] %v10662
    %10744 = vst [vmem:[#allocation8 + $0x10] sm:$0xff] %v10663
    %10745 = vst [vmem:[#allocation8 + $0x18] sm:$0xff] %v10664
    %10746 = vst [vmem:[#allocation8 + $0x20] sm:$0xff] %v10665
    %10747 = vst [vmem:[#allocation8 + $0x28] sm:$0xff] %v10666
    %10748 = vst [vmem:[#allocation8 + $0x30] sm:$0xff] %v10667
    %10749 = vst [vmem:[#allocation8 + $0x38] sm:$0xff] %v10668
    %10750 = vst [vmem:[#allocation8 + $0x40] sm:$0xff] %v10669
    %10751 = vst [vmem:[#allocation8 + $0x48] sm:$0xff] %v10670
    %10752 = vst [vmem:[#allocation8 + $0x50] sm:$0xff] %v10671
    %10753 = vst [vmem:[#allocation8 + $0x58] sm:$0xff] %v10672
    %10754 = vst [vmem:[#allocation8 + $0x60] sm:$0xff] %v10673
    %10755 = vst [vmem:[#allocation8 + $0x68] sm:$0xff] %v10674
    %10756 = vst [vmem:[#allocation8 + $0x70] sm:$0xff] %v10675
    %10757 = vst [vmem:[#allocation8 + $0x78] sm:$0xff] %v10676
    %10758 = vst [vmem:[#allocation8 + $0x80] sm:$0xff] %v10677
    %10759 = vst [vmem:[#allocation8 + $0x88] sm:$0xff] %v10678
    %10760 = vst [vmem:[#allocation8 + $0x90] sm:$0xff] %v10679
    %10761 = vst [vmem:[#allocation8 + $0x98] sm:$0xff] %v10680
    %10762 = vst [vmem:[#allocation8 + $0xa0] sm:$0xff] %v10681
    %10763 = vst [vmem:[#allocation8 + $0xa8] sm:$0xff] %v10682
    %10764 = vst [vmem:[#allocation8 + $0xb0] sm:$0xff] %v10683
    %10765 = vst [vmem:[#allocation8 + $0xb8] sm:$0xff] %v10684
    %10766 = vst [vmem:[#allocation8 + $0xc0] sm:$0xff] %v10685
    %10767 = vst [vmem:[#allocation8 + $0xc8] sm:$0xff] %v10686
    %10768 = vst [vmem:[#allocation8 + $0xd0] sm:$0xff] %v10687
    %10769 = vst [vmem:[#allocation8 + $0xd8] sm:$0xff] %v10688
    %10770 = vst [vmem:[#allocation8 + $0xe0] sm:$0xff] %v10689
    %10771 = vst [vmem:[#allocation8 + $0xe8] sm:$0xff] %v10690
    %10772 = vst [vmem:[#allocation8 + $0xf0] sm:$0xff] %v10691
    %10773 = vst [vmem:[#allocation8 + $0xf8] sm:$0xff] %v10692
    %10774 = vst [vmem:[#allocation8 + $0x100] sm:$0xff] %v10693
    %10775 = vst [vmem:[#allocation8 + $0x108] sm:$0xff] %v10694
    %10776 = vst [vmem:[#allocation8 + $0x110] sm:$0xff] %v10695
    %10777 = vst [vmem:[#allocation8 + $0x118] sm:$0xff] %v10696
    %10778 = vst [vmem:[#allocation8 + $0x120] sm:$0xff] %v10697
    %10779 = vst [vmem:[#allocation8 + $0x128] sm:$0xff] %v10698
    %10780 = vst [vmem:[#allocation8 + $0x130] sm:$0xff] %v10699
    %10781 = vst [vmem:[#allocation8 + $0x138] sm:$0xff] %v10700
    %10782 = vst [vmem:[#allocation8 + $0x140] sm:$0xff] %v10701
    %10783 = vst [vmem:[#allocation8 + $0x148] sm:$0xff] %v10702
    %10784 = vst [vmem:[#allocation8 + $0x150] sm:$0xff] %v10703
    %10785 = vst [vmem:[#allocation8 + $0x158] sm:$0xff] %v10704
    %10786 = vst [vmem:[#allocation8 + $0x160] sm:$0xff] %v10705
    %10787 = vst [vmem:[#allocation8 + $0x168] sm:$0xff] %v10706
    %10788 = vst [vmem:[#allocation8 + $0x170] sm:$0xff] %v10707
    %10789 = vst [vmem:[#allocation8 + $0x178] sm:$0xff] %v10708
    %10790 = vst [vmem:[#allocation8 + $0x180] sm:$0xff] %v10709
    %10791 = vst [vmem:[#allocation8 + $0x188] sm:$0xff] %v10710
    %10792 = vst [vmem:[#allocation8 + $0x190] sm:$0xff] %v10711
    %10793 = vst [vmem:[#allocation8 + $0x198] sm:$0xff] %v10712
    %10794 = vst [vmem:[#allocation8 + $0x1a0] sm:$0xff] %v10713
    %10795 = vst [vmem:[#allocation8 + $0x1a8] sm:$0xff] %v10714
    %10796 = vst [vmem:[#allocation8 + $0x1b0] sm:$0xff] %v10715
    %10797 = vst [vmem:[#allocation8 + $0x1b8] sm:$0xff] %v10716
    %10798 = vst [vmem:[#allocation8 + $0x1c0] sm:$0xff] %v10717
    %10799 = vst [vmem:[#allocation8 + $0x1c8] sm:$0xff] %v10718
    %10800 = vst [vmem:[#allocation8 + $0x1d0] sm:$0xff] %v10719
    %10801 = vst [vmem:[#allocation8 + $0x1d8] sm:$0xff] %v10720
    %10802 = vst [vmem:[#allocation8 + $0x1e0] sm:$0xff] %v10721
    %10803 = vst [vmem:[#allocation8 + $0x1e8] sm:$0xff] %v10722
    %10804 = vst [vmem:[#allocation8 + $0x1f0] sm:$0xff] %v10723
    %10805 = vst [vmem:[#allocation8 + $0x1f8] sm:$0xff] %v10724
    %10806 = vst [vmem:[#allocation8 + $0x200] sm:$0xff] %v10725
    %10807 = vst [vmem:[#allocation8 + $0x208] sm:$0xff] %v10726
    %10808 = vst [vmem:[#allocation8 + $0x210] sm:$0xff] %v10727
    %10809 = vst [vmem:[#allocation8 + $0x218] sm:$0xff] %v10728
    %10810 = vst [vmem:[#allocation8 + $0x220] sm:$0xff] %v10729
    %10811 = vst [vmem:[#allocation8 + $0x228] sm:$0xff] %v10730
    %10812 = vst [vmem:[#allocation8 + $0x230] sm:$0xff] %v10731
    %10813 = vst [vmem:[#allocation8 + $0x238] sm:$0xff] %v10732
    %10814 = vst [vmem:[#allocation8 + $0x240] sm:$0xff] %v10733
    %10815 = vst [vmem:[#allocation8 + $0x248] sm:$0xff] %v10734
    %10816 = vst [vmem:[#allocation8 + $0x250] sm:$0xff] %v10735
    %10817 = vst [vmem:[#allocation8 + $0x258] sm:$0xff] %v10736
    %10818 = vst [vmem:[#allocation8 + $0x260] sm:$0xff] %v10737
    %10819 = vst [vmem:[#allocation8 + $0x268] sm:$0xff] %v10738
    %10820 = vst [vmem:[#allocation8 + $0x270] sm:$0xff] %v10739
    %10821 = vst [vmem:[#allocation8 + $0x278] sm:$0xff] %v10740
    %10822 = vst [vmem:[#allocation8 + $0x280] sm:$0xff] %v10741
    // Predicated region
    $region42: #{tpu_custom_call.1} parent=1 // pred_check
      _
    $region43: #{tpu_custom_call.1} parent=1 // pred_check_branch
      %10824 = sbr.rel (0) target = $region45
    $region44: #{tpu_custom_call.1} parent=1 // pred_region
      %10826 = vsyncadd [#allocation5], 0
      %s10827 = sshll.u32 [#allocation8], 4
      %s10828 = int_to_ptr.vmem [resolvable:$true] %s10827
      %s10829 = sshll.u32 %s8, 4
      %s10830 = int_to_ptr.hbm [resolvable:$true] %s10829
      %10835 = dma.vmem_to_hbm [thread:$0]  %s10828, 10368, %s10830, [#allocation5], 128, 128, 8
    $region45: #{tpu_custom_call.1} parent=1 // pred_fallthru
      _
    // Predicated region
    $region46: #{tpu_custom_call.1} parent=1 // pred_check
      _
    $region47: #{tpu_custom_call.1} parent=1 // pred_check_branch
      %10837 = sbr.rel (0) target = $region49
    $region48: #{tpu_custom_call.1} parent=1 // pred_region
      %10839 = dma.done [#allocation5], 10368
    $region49: #{tpu_custom_call.1} parent=1 // pred_fallthru
      _
    %10840 = vsyncpa [#allocation4], 1
    %10841 = vsyncpa [#allocation7], 1
    %10842 = vsyncpa [#allocation5], 1

</llo_original>
